<compile_context>
chip_gen: v5e
topology: v5e:2x2
jax: 0.10.0
libtpu: 0.0.40
codegen_flags: <defaults>
</compile_context>

<pallas_src>
import functools

import jax
import jax.numpy as jnp
from jax import lax
from jax.experimental import pallas as pl
from jax.experimental.pallas import tpu as pltpu


# ----------------------------------------------------------------------------
# Fused kernel: all four layers for one batch element per grid step
# ----------------------------------------------------------------------------
def _fused_autoencoder_kernel(
        x_ref, w1_ref, b1_ref, w2_ref, b2_ref, w3_ref, b3_ref, w4_ref, b4_ref,
        out_ref, a1_ref, a2_ref, a3_ref, *, hq, wq):
    """All spatial grids in this kernel share the same (hq+1, wq+1) padded
    geometry, flattened row-major to `comp` rows with C on the lane axis.
    A 3x3 conv tap then becomes `buffer[offset : offset + comp, :] @ W_tap`."""
    f32 = jnp.float32
    S = wq + 1                      # row stride of the padded grid
    comp = (hq + 1) * S             # flattened padded grid size
    cstride = comp + S + 1          # rows per stored component / scratch buffer

    # Interior masks over the flattened (hq+1, wq+1) grid.
    k = lax.broadcasted_iota(jnp.int32, (comp, 1), 0).astype(f32)
    row = jnp.floor(k / S)
    col = k - row * S
    lead_ok = (row >= 1.0) & (col >= 1.0)      # data at [1:, 1:], zero border at 0
    trail_ok = (row < hq) & (col < wq)         # data at [:hq, :wq], zero border at end

    # Fresh zero state: borders/tails act as conv zero-padding.
    a1_ref[...] = jnp.zeros_like(a1_ref)
    a2_ref[...] = jnp.zeros_like(a2_ref)
    a3_ref[...] = jnp.zeros_like(a3_ref)

    # ---- layer 1: Conv2d(3->32, k3, s2, p1) + ReLU; output in 2x2 polyphase form
    for qy in range(2):
        for qx in range(2):
            acc = jnp.zeros((comp, 32), f32)
            for i in range(3):
                ty = 2 * qy + i
                cy, oy = (ty, 0) if ty < 4 else (0, 1)
                for j in range(3):
                    tx = 2 * qx + j
                    cx, ox = (tx, 0) if tx < 4 else (0, 1)
                    lo = (cy * 4 + cx) * cstride + oy * S + ox
                    src = x_ref[0, lo:lo + comp, :]                       # (comp, 8)
                    acc = acc + jnp.dot(src, w1_ref[i * 3 + j],
                                        preferred_element_type=f32)
            acc = jnp.maximum(acc + b1_ref[...], 0.0)
            a1_ref[qy * 2 + qx, 0:comp, :] = jnp.where(lead_ok, acc, 0.0)

    # ---- layer 2: Conv2d(32->64, k3, s2, p1) + ReLU (reads polyphase a1)
    enc_tap = ((1, 0), (0, 1), (1, 1))          # kernel tap -> (input parity, offset)
    acc = jnp.zeros((comp, 64), f32)
    for i in range(3):
        py_, oy = enc_tap[i]
        for j in range(3):
            px_, ox = enc_tap[j]
            lo = oy * S + ox
            src = a1_ref[py_ * 2 + px_, lo:lo + comp, :]                  # (comp, 32)
            acc = acc + jnp.dot(src, w2_ref[i * 3 + j],
                                preferred_element_type=f32)
    acc = jnp.maximum(acc + b2_ref[...], 0.0)
    a2_ref[0:comp, :] = jnp.where(trail_ok, acc, 0.0)

    # ---- layer 3: ConvTranspose2d(64->32, k3, s2, p1, op1) + ReLU (sub-pixel phases)
    dec_tap = (((0, 1),), ((1, 0), (0, 2)))     # output parity -> ((offset, tap), ...)
    for py in range(2):
        for px in range(2):
            acc = jnp.zeros((comp, 32), f32)
            for dy, i in dec_tap[py]:
                for dx, j in dec_tap[px]:
                    lo = dy * S + dx
                    src = a2_ref[lo:lo + comp, :]                         # (comp, 64)
                    acc = acc + jnp.dot(src, w3_ref[i * 3 + j],
                                        preferred_element_type=f32)
            acc = jnp.maximum(acc + b3_ref[...], 0.0)
            a3_ref[py * 2 + px, 0:comp, :] = jnp.where(trail_ok, acc, 0.0)

    # ---- layer 4: ConvTranspose2d(32->3(->8), k3, s2, p1, op1); 16 output sub-phases
    for py in range(2):
        for px in range(2):
            for qy in range(2):
                for qx in range(2):
                    acc = jnp.zeros((comp, 8), f32)
                    for dy, i in dec_tap[py]:
                        sy = qy + dy
                        cy, oy = (sy, 0) if sy < 2 else (0, 1)
                        for dx, j in dec_tap[px]:
                            sx = qx + dx
                            cx, ox = (sx, 0) if sx < 2 else (0, 1)
                            lo = oy * S + ox
                            src = a3_ref[cy * 2 + cx, lo:lo + comp, :]    # (comp, 32)
                            acc = acc + jnp.dot(src, w4_ref[i * 3 + j],
                                                preferred_element_type=f32)
                    acc = acc + b4_ref[...]
                    out_ref[0, (2 * qy + py) * 4 + (2 * qx + px), :, :] = acc


# ----------------------------------------------------------------------------
# Boundary-only layout plumbing (tiny, once per call)
# ----------------------------------------------------------------------------
def _prep_input(x_nchw, hq, wq):
    """NCHW -> 16 stride-4 polyphase components of the (pad=1) padded NHWC input,
    each with an (S+1)-row leading zero apron, flattened for the kernel."""
    n = x_nchw.shape[0]
    S = wq + 1
    comp = (hq + 1) * S
    x = jnp.transpose(x_nchw, (0, 2, 3, 1))                               # NHWC
    x = jnp.pad(x, ((0, 0), (1, 3), (1, 3), (0, 8 - x.shape[-1])))        # pad H/W/C
    x = x.reshape(n, hq + 1, 4, wq + 1, 4, 8)
    x = jnp.transpose(x, (0, 2, 4, 1, 3, 5))                              # (n,ry,rx,a,b,c)
    x = x.reshape(n, 16, comp, 8)
    x = jnp.pad(x, ((0, 0), (0, 0), (S + 1, 0), (0, 0)))
    return x.reshape(n, 16 * (comp + S + 1), 8)


def _pack_params(p):
    """Fold PyTorch weight layouts into per-tap (Cin, Cout) matrices, pad K/N."""
    w1 = jnp.transpose(p["w1"], (2, 3, 1, 0)).reshape(9, 3, 32)
    w1 = jnp.pad(w1, ((0, 0), (0, 5), (0, 0)))                            # Cin 3 -> 8
    w2 = jnp.transpose(p["w2"], (2, 3, 1, 0)).reshape(9, 32, 64)
    w3 = jnp.transpose(p["w3"], (2, 3, 0, 1)).reshape(9, 64, 32)
    w4 = jnp.transpose(p["w4"], (2, 3, 0, 1)).reshape(9, 32, 3)
    w4 = jnp.pad(w4, ((0, 0), (0, 0), (0, 5)))                            # Cout 3 -> 8
    return (w1, p["b1"].reshape(1, 32),
            w2, p["b2"].reshape(1, 64),
            w3, p["b3"].reshape(1, 32),
            w4, jnp.pad(p["b4"], (0, 5)).reshape(1, 8))


# ----------------------------------------------------------------------------
# Forward pass
# ----------------------------------------------------------------------------
@jax.jit
def autoencoder_forward(x, params):
    n, c, h, w = x.shape
    assert h % 4 == 0 and w % 4 == 0 and c == 3
    hq, wq = h // 4, w // 4
    S = wq + 1
    comp = (hq + 1) * S
    cstride = comp + S + 1

    xp = _prep_input(x, hq, wq)
    w1, b1, w2, b2, w3, b3, w4, b4 = _pack_params(params)

    kernel = functools.partial(_fused_autoencoder_kernel, hq=hq, wq=wq)
    out = pl.pallas_call(
        kernel,
        out_shape=jax.ShapeDtypeStruct((n, 16, comp, 8), jnp.float32),
        grid=(n,),
        in_specs=[
            pl.BlockSpec((1, 16 * cstride, 8), lambda i: (i, 0, 0)),
            pl.BlockSpec((9, 8, 32), lambda i: (0, 0, 0)),
            pl.BlockSpec((1, 32), lambda i: (0, 0)),
            pl.BlockSpec((9, 32, 64), lambda i: (0, 0, 0)),
            pl.BlockSpec((1, 64), lambda i: (0, 0)),
            pl.BlockSpec((9, 64, 32), lambda i: (0, 0, 0)),
            pl.BlockSpec((1, 32), lambda i: (0, 0)),
            pl.BlockSpec((9, 32, 8), lambda i: (0, 0, 0)),
            pl.BlockSpec((1, 8), lambda i: (0, 0)),
        ],
        out_specs=pl.BlockSpec((1, 16, comp, 8), lambda i: (i, 0, 0, 0)),
        scratch_shapes=[
            pltpu.VMEM((4, cstride, 32), jnp.float32),   # layer-1 polyphase output
            pltpu.VMEM((cstride, 64), jnp.float32),      # layer-2 output
            pltpu.VMEM((4, cstride, 32), jnp.float32),   # layer-3 polyphase output
        ],
        compiler_params=pltpu.CompilerParams(
            dimension_semantics=("parallel",)),
    )(xp, w1, b1, w2, b2, w3, b3, w4, b4)

    # Re-interleave the 16 output phases -> NCHW, drop channel padding.
    out = out.reshape(n, 4, 4, hq + 1, wq + 1, 8)[:, :, :, :hq, :wq, :]
    out = jnp.transpose(out, (0, 5, 3, 1, 4, 2))          # (n, c, a, ry, b, rx)
    out = out.reshape(n, 8, 4 * hq, 4 * wq)
    return out[:, :3]


# ----------------------------------------------------------------------------
# Pure-JAX reference (lax convs) for the correctness check
# ----------------------------------------------------------------------------
def _ref_forward(x, p):
    dn = ("NCHW", "OIHW", "NCHW")

    def conv(x, w, b, s, pad):
        y = lax.conv_general_dilated(x, w, (s, s), ((pad, pad), (pad, pad)),
                                     dimension_numbers=dn)
        return y + b[None, :, None, None]

    def deconv(x, w, b, s, pad, op):
        k = w.shape[2]
        wc = jnp.flip(w, (2, 3)).transpose(1, 0, 2, 3)
        y = lax.conv_general_dilated(
            x, wc, (1, 1),
            ((k - 1 - pad, k - 1 - pad + op), (k - 1 - pad, k - 1 - pad + op)),
            lhs_dilation=(s, s), dimension_numbers=dn)
        return y + b[None, :, None, None]

    x = jnp.maximum(conv(x, p["w1"], p["b1"], 2, 1), 0.0)
    x = jnp.maximum(conv(x, p["w2"], p["b2"], 2, 1), 0.0)
    x = jnp.maximum(deconv(x, p["w3"], p["b3"], 2, 1, 1), 0.0)
    x = deconv(x, p["w4"], p["b4"], 2, 1, 1)
    return x


# ----------------------------------------------------------------------------
# Deterministic parameter init (matches PyTorch module shapes)
# ----------------------------------------------------------------------------
def init_params(key):
    def u(key, shape, fan_in):
        bound = 1.0 / (fan_in ** 0.5)
        return jax.random.uniform(key, shape, jnp.float32, -bound, bound)

    ks = jax.random.split(key, 8)
    return {
        # Conv2d(3, 32, 3, stride=2, padding=1)
        "w1": u(ks[0], (32, 3, 3, 3), 3 * 9),   "b1": u(ks[1], (32,), 3 * 9),
        # Conv2d(32, 64, 3, stride=2, padding=1)
        "w2": u(ks[2], (64, 32, 3, 3), 32 * 9), "b2": u(ks[3], (64,), 32 * 9),
        # ConvTranspose2d(64, 32, 3, stride=2, padding=1, output_padding=1)
        "w3": u(ks[4], (64, 32, 3, 3), 64 * 9), "b3": u(ks[5], (32,), 64 * 9),
        # ConvTranspose2d(32, 3, 3, stride=2, padding=1, output_padding=1)
        "w4": u(ks[6], (32, 3, 3, 3), 32 * 9),  "b4": u(ks[7], (3,), 32 * 9),
    }


if __name__ == "__main__":
    key = jax.random.PRNGKey(0)
    k_param, k_x = jax.random.split(key)
    params = init_params(k_param)

    # Small input consistent with the module: NCHW, 3 input channels.
    x = jax.random.normal(k_x, (2, 3, 16, 16), dtype=jnp.float32)

    out = jax.block_until_ready(autoencoder_forward(x, params))
    ref = jax.block_until_ready(_ref_forward(x, params))

    assert out.shape == (2, 3, 16, 16), out.shape
    assert jnp.allclose(out, ref, atol=1e-4, rtol=1e-3), "mismatch vs lax reference"
    print("KERNEL_OK")
</pallas_src>

<mosaic_0001>
module attributes {stable_mosaic.version = 11 : i64} {
  func.func @_fused_autoencoder_kernel(%arg0: i32, %arg1: memref<1x496x8xf32, #tpu.memory_space<vmem>>, %arg2: memref<9x8x32xf32, #tpu.memory_space<vmem>>, %arg3: memref<1x32xf32, #tpu.memory_space<vmem>>, %arg4: memref<9x32x64xf32, #tpu.memory_space<vmem>>, %arg5: memref<1x64xf32, #tpu.memory_space<vmem>>, %arg6: memref<9x64x32xf32, #tpu.memory_space<vmem>>, %arg7: memref<1x32xf32, #tpu.memory_space<vmem>>, %arg8: memref<9x32x8xf32, #tpu.memory_space<vmem>>, %arg9: memref<1x8xf32, #tpu.memory_space<vmem>>, %arg10: memref<1x16x25x8xf32, #tpu.memory_space<vmem>>, %arg11: memref<4x31x32xf32, #tpu.memory_space<vmem>>, %arg12: memref<31x64xf32, #tpu.memory_space<vmem>>, %arg13: memref<4x31x32xf32, #tpu.memory_space<vmem>>) attributes {dimension_semantics = [#tpu.dimension_semantics<parallel>], iteration_bounds = array<i64: 2>, scalar_prefetch = 0 : i64, scratch_operands = 3 : i64, tpu.core_type = #tpu.core_type<tc>, window_params = [{transform_indices = @transform_0, window_bounds = array<i64: 1, 496, 8>}, {pipeline_mode = #tpu.pipeline_mode<synchronous>, transform_indices = @transform_1, window_bounds = array<i64: 9, 8, 32>}, {pipeline_mode = #tpu.pipeline_mode<synchronous>, transform_indices = @transform_2, window_bounds = array<i64: 1, 32>}, {pipeline_mode = #tpu.pipeline_mode<synchronous>, transform_indices = @transform_3, window_bounds = array<i64: 9, 32, 64>}, {pipeline_mode = #tpu.pipeline_mode<synchronous>, transform_indices = @transform_4, window_bounds = array<i64: 1, 64>}, {pipeline_mode = #tpu.pipeline_mode<synchronous>, transform_indices = @transform_5, window_bounds = array<i64: 9, 64, 32>}, {pipeline_mode = #tpu.pipeline_mode<synchronous>, transform_indices = @transform_6, window_bounds = array<i64: 1, 32>}, {pipeline_mode = #tpu.pipeline_mode<synchronous>, transform_indices = @transform_7, window_bounds = array<i64: 9, 32, 8>}, {pipeline_mode = #tpu.pipeline_mode<synchronous>, transform_indices = @transform_8, window_bounds = array<i64: 1, 8>}, {transform_indices = @transform_9, window_bounds = array<i64: 1, 16, 25, 8>}]} {
    %0 = tpu.iota {dimensions = array<i32: 0>} : vector<25x1xi32>
    %1 = arith.sitofp %0 : vector<25x1xi32> to vector<25x1xf32>
    %cst = arith.constant 5.000000e+00 : f32
    %2 = vector.broadcast %cst : f32 to vector<25x1xf32>
    %3 = arith.divf %1, %2 : vector<25x1xf32>
    %4 = math.floor %3 : vector<25x1xf32>
    %cst_0 = arith.constant 5.000000e+00 : f32
    %5 = vector.broadcast %cst_0 : f32 to vector<25x1xf32>
    %6 = arith.mulf %4, %5 : vector<25x1xf32>
    %7 = arith.subf %1, %6 : vector<25x1xf32>
    %cst_1 = arith.constant 1.000000e+00 : f32
    %8 = vector.broadcast %cst_1 : f32 to vector<25x1xf32>
    %9 = arith.cmpf oge, %4, %8 : vector<25x1xf32>
    %cst_2 = arith.constant 1.000000e+00 : f32
    %10 = vector.broadcast %cst_2 : f32 to vector<25x1xf32>
    %11 = arith.cmpf oge, %7, %10 : vector<25x1xf32>
    %12 = arith.andi %9, %11 : vector<25x1xi1>
    %cst_3 = arith.constant 4.000000e+00 : f32
    %13 = vector.broadcast %cst_3 : f32 to vector<25x1xf32>
    %14 = arith.cmpf olt, %4, %13 : vector<25x1xf32>
    %cst_4 = arith.constant 4.000000e+00 : f32
    %15 = vector.broadcast %cst_4 : f32 to vector<25x1xf32>
    %16 = arith.cmpf olt, %7, %15 : vector<25x1xf32>
    %17 = arith.andi %14, %16 : vector<25x1xi1>
    %cst_5 = arith.constant 0.000000e+00 : f32
    %18 = vector.broadcast %cst_5 : f32 to vector<4x31x32xf32>
    %c0 = arith.constant 0 : index
    %c0_6 = arith.constant 0 : index
    %c0_7 = arith.constant 0 : index
    %19 = vector.load %arg11[%c0, %c0_6, %c0_7] : memref<4x31x32xf32, #tpu.memory_space<vmem>>, vector<4x31x32xf32>
    tpu.vector_store %arg11[%c0, %c0_6, %c0_7], %18 {strides = array<i32>} : memref<4x31x32xf32, #tpu.memory_space<vmem>>, vector<4x31x32xf32>,
    %cst_8 = arith.constant 0.000000e+00 : f32
    %20 = vector.broadcast %cst_8 : f32 to vector<31x64xf32>
    %c0_9 = arith.constant 0 : index
    %c0_10 = arith.constant 0 : index
    %21 = vector.load %arg12[%c0_9, %c0_10] : memref<31x64xf32, #tpu.memory_space<vmem>>, vector<31x64xf32>
    tpu.vector_store %arg12[%c0_9, %c0_10], %20 {strides = array<i32>} : memref<31x64xf32, #tpu.memory_space<vmem>>, vector<31x64xf32>,
    %cst_11 = arith.constant 0.000000e+00 : f32
    %22 = vector.broadcast %cst_11 : f32 to vector<4x31x32xf32>
    %c0_12 = arith.constant 0 : index
    %c0_13 = arith.constant 0 : index
    %c0_14 = arith.constant 0 : index
    %23 = vector.load %arg13[%c0_12, %c0_13, %c0_14] : memref<4x31x32xf32, #tpu.memory_space<vmem>>, vector<4x31x32xf32>
    tpu.vector_store %arg13[%c0_12, %c0_13, %c0_14], %22 {strides = array<i32>} : memref<4x31x32xf32, #tpu.memory_space<vmem>>, vector<4x31x32xf32>,
    %cst_15 = arith.constant 0.000000e+00 : f32
    %24 = vector.broadcast %cst_15 : f32 to vector<25x32xf32>
    %c0_16 = arith.constant 0 : index
    %c0_17 = arith.constant 0 : index
    %c0_18 = arith.constant 0 : index
    %25 = vector.load %arg1[%c0_16, %c0_17, %c0_18] : memref<1x496x8xf32, #tpu.memory_space<vmem>>, vector<1x25x8xf32>
    %26 = vector.shape_cast %25 : vector<1x25x8xf32> to vector<25x8xf32>
    %c0_19 = arith.constant 0 : index
    %c0_20 = arith.constant 0 : index
    %c0_21 = arith.constant 0 : index
    %27 = vector.load %arg2[%c0_19, %c0_20, %c0_21] : memref<9x8x32xf32, #tpu.memory_space<vmem>>, vector<1x8x32xf32>
    %28 = vector.shape_cast %27 : vector<1x8x32xf32> to vector<8x32xf32>
    %cst_22 = arith.constant dense<0.000000e+00> : vector<25x32xf32>
    %29 = tpu.matmul %26, %28, %cst_22 {dimension_numbers = #tpu.dot_dimension_numbers<[1], [0], [0], [1], [0, 0, 1, 1], [], []>} : vector<25x8xf32>, vector<8x32xf32>, vector<25x32xf32> -> vector<25x32xf32>
    %30 = arith.addf %24, %29 : vector<25x32xf32>
    %c0_23 = arith.constant 0 : index
    %c31 = arith.constant 31 : index
    %c0_24 = arith.constant 0 : index
    %31 = vector.load %arg1[%c0_23, %c31, %c0_24] : memref<1x496x8xf32, #tpu.memory_space<vmem>>, vector<1x25x8xf32>
    %32 = vector.shape_cast %31 : vector<1x25x8xf32> to vector<25x8xf32>
    %c1 = arith.constant 1 : index
    %c0_25 = arith.constant 0 : index
    %c0_26 = arith.constant 0 : index
    %33 = vector.load %arg2[%c1, %c0_25, %c0_26] : memref<9x8x32xf32, #tpu.memory_space<vmem>>, vector<1x8x32xf32>
    %34 = vector.shape_cast %33 : vector<1x8x32xf32> to vector<8x32xf32>
    %cst_27 = arith.constant dense<0.000000e+00> : vector<25x32xf32>
    %35 = tpu.matmul %32, %34, %cst_27 {dimension_numbers = #tpu.dot_dimension_numbers<[1], [0], [0], [1], [0, 0, 1, 1], [], []>} : vector<25x8xf32>, vector<8x32xf32>, vector<25x32xf32> -> vector<25x32xf32>
    %36 = arith.addf %30, %35 : vector<25x32xf32>
    %c0_28 = arith.constant 0 : index
    %c62 = arith.constant 62 : index
    %c0_29 = arith.constant 0 : index
    %37 = vector.load %arg1[%c0_28, %c62, %c0_29] : memref<1x496x8xf32, #tpu.memory_space<vmem>>, vector<1x25x8xf32>
    %38 = vector.shape_cast %37 : vector<1x25x8xf32> to vector<25x8xf32>
    %c2 = arith.constant 2 : index
    %c0_30 = arith.constant 0 : index
    %c0_31 = arith.constant 0 : index
    %39 = vector.load %arg2[%c2, %c0_30, %c0_31] : memref<9x8x32xf32, #tpu.memory_space<vmem>>, vector<1x8x32xf32>
    %40 = vector.shape_cast %39 : vector<1x8x32xf32> to vector<8x32xf32>
    %cst_32 = arith.constant dense<0.000000e+00> : vector<25x32xf32>
    %41 = tpu.matmul %38, %40, %cst_32 {dimension_numbers = #tpu.dot_dimension_numbers<[1], [0], [0], [1], [0, 0, 1, 1], [], []>} : vector<25x8xf32>, vector<8x32xf32>, vector<25x32xf32> -> vector<25x32xf32>
    %42 = arith.addf %36, %41 : vector<25x32xf32>
    %c0_33 = arith.constant 0 : index
    %c124 = arith.constant 124 : index
    %c0_34 = arith.constant 0 : index
    %43 = vector.load %arg1[%c0_33, %c124, %c0_34] : memref<1x496x8xf32, #tpu.memory_space<vmem>>, vector<1x25x8xf32>
    %44 = vector.shape_cast %43 : vector<1x25x8xf32> to vector<25x8xf32>
    %c3 = arith.constant 3 : index
    %c0_35 = arith.constant 0 : index
    %c0_36 = arith.constant 0 : index
    %45 = vector.load %arg2[%c3, %c0_35, %c0_36] : memref<9x8x32xf32, #tpu.memory_space<vmem>>, vector<1x8x32xf32>
    %46 = vector.shape_cast %45 : vector<1x8x32xf32> to vector<8x32xf32>
    %cst_37 = arith.constant dense<0.000000e+00> : vector<25x32xf32>
    %47 = tpu.matmul %44, %46, %cst_37 {dimension_numbers = #tpu.dot_dimension_numbers<[1], [0], [0], [1], [0, 0, 1, 1], [], []>} : vector<25x8xf32>, vector<8x32xf32>, vector<25x32xf32> -> vector<25x32xf32>
    %48 = arith.addf %42, %47 : vector<25x32xf32>
    %c0_38 = arith.constant 0 : index
    %c155 = arith.constant 155 : index
    %c0_39 = arith.constant 0 : index
    %49 = vector.load %arg1[%c0_38, %c155, %c0_39] : memref<1x496x8xf32, #tpu.memory_space<vmem>>, vector<1x25x8xf32>
    %50 = vector.shape_cast %49 : vector<1x25x8xf32> to vector<25x8xf32>
    %c4 = arith.constant 4 : index
    %c0_40 = arith.constant 0 : index
    %c0_41 = arith.constant 0 : index
    %51 = vector.load %arg2[%c4, %c0_40, %c0_41] : memref<9x8x32xf32, #tpu.memory_space<vmem>>, vector<1x8x32xf32>
    %52 = vector.shape_cast %51 : vector<1x8x32xf32> to vector<8x32xf32>
    %cst_42 = arith.constant dense<0.000000e+00> : vector<25x32xf32>
    %53 = tpu.matmul %50, %52, %cst_42 {dimension_numbers = #tpu.dot_dimension_numbers<[1], [0], [0], [1], [0, 0, 1, 1], [], []>} : vector<25x8xf32>, vector<8x32xf32>, vector<25x32xf32> -> vector<25x32xf32>
    %54 = arith.addf %48, %53 : vector<25x32xf32>
    %c0_43 = arith.constant 0 : index
    %c186 = arith.constant 186 : index
    %c0_44 = arith.constant 0 : index
    %55 = vector.load %arg1[%c0_43, %c186, %c0_44] : memref<1x496x8xf32, #tpu.memory_space<vmem>>, vector<1x25x8xf32>
    %56 = vector.shape_cast %55 : vector<1x25x8xf32> to vector<25x8xf32>
    %c5 = arith.constant 5 : index
    %c0_45 = arith.constant 0 : index
    %c0_46 = arith.constant 0 : index
    %57 = vector.load %arg2[%c5, %c0_45, %c0_46] : memref<9x8x32xf32, #tpu.memory_space<vmem>>, vector<1x8x32xf32>
    %58 = vector.shape_cast %57 : vector<1x8x32xf32> to vector<8x32xf32>
    %cst_47 = arith.constant dense<0.000000e+00> : vector<25x32xf32>
    %59 = tpu.matmul %56, %58, %cst_47 {dimension_numbers = #tpu.dot_dimension_numbers<[1], [0], [0], [1], [0, 0, 1, 1], [], []>} : vector<25x8xf32>, vector<8x32xf32>, vector<25x32xf32> -> vector<25x32xf32>
    %60 = arith.addf %54, %59 : vector<25x32xf32>
    %c0_48 = arith.constant 0 : index
    %c248 = arith.constant 248 : index
    %c0_49 = arith.constant 0 : index
    %61 = vector.load %arg1[%c0_48, %c248, %c0_49] : memref<1x496x8xf32, #tpu.memory_space<vmem>>, vector<1x25x8xf32>
    %62 = vector.shape_cast %61 : vector<1x25x8xf32> to vector<25x8xf32>
    %c6 = arith.constant 6 : index
    %c0_50 = arith.constant 0 : index
    %c0_51 = arith.constant 0 : index
    %63 = vector.load %arg2[%c6, %c0_50, %c0_51] : memref<9x8x32xf32, #tpu.memory_space<vmem>>, vector<1x8x32xf32>
    %64 = vector.shape_cast %63 : vector<1x8x32xf32> to vector<8x32xf32>
    %cst_52 = arith.constant dense<0.000000e+00> : vector<25x32xf32>
    %65 = tpu.matmul %62, %64, %cst_52 {dimension_numbers = #tpu.dot_dimension_numbers<[1], [0], [0], [1], [0, 0, 1, 1], [], []>} : vector<25x8xf32>, vector<8x32xf32>, vector<25x32xf32> -> vector<25x32xf32>
    %66 = arith.addf %60, %65 : vector<25x32xf32>
    %c0_53 = arith.constant 0 : index
    %c279 = arith.constant 279 : index
    %c0_54 = arith.constant 0 : index
    %67 = vector.load %arg1[%c0_53, %c279, %c0_54] : memref<1x496x8xf32, #tpu.memory_space<vmem>>, vector<1x25x8xf32>
    %68 = vector.shape_cast %67 : vector<1x25x8xf32> to vector<25x8xf32>
    %c7 = arith.constant 7 : index
    %c0_55 = arith.constant 0 : index
    %c0_56 = arith.constant 0 : index
    %69 = vector.load %arg2[%c7, %c0_55, %c0_56] : memref<9x8x32xf32, #tpu.memory_space<vmem>>, vector<1x8x32xf32>
    %70 = vector.shape_cast %69 : vector<1x8x32xf32> to vector<8x32xf32>
    %cst_57 = arith.constant dense<0.000000e+00> : vector<25x32xf32>
    %71 = tpu.matmul %68, %70, %cst_57 {dimension_numbers = #tpu.dot_dimension_numbers<[1], [0], [0], [1], [0, 0, 1, 1], [], []>} : vector<25x8xf32>, vector<8x32xf32>, vector<25x32xf32> -> vector<25x32xf32>
    %72 = arith.addf %66, %71 : vector<25x32xf32>
    %c0_58 = arith.constant 0 : index
    %c310 = arith.constant 310 : index
    %c0_59 = arith.constant 0 : index
    %73 = vector.load %arg1[%c0_58, %c310, %c0_59] : memref<1x496x8xf32, #tpu.memory_space<vmem>>, vector<1x25x8xf32>
    %74 = vector.shape_cast %73 : vector<1x25x8xf32> to vector<25x8xf32>
    %c8 = arith.constant 8 : index
    %c0_60 = arith.constant 0 : index
    %c0_61 = arith.constant 0 : index
    %75 = vector.load %arg2[%c8, %c0_60, %c0_61] : memref<9x8x32xf32, #tpu.memory_space<vmem>>, vector<1x8x32xf32>
    %76 = vector.shape_cast %75 : vector<1x8x32xf32> to vector<8x32xf32>
    %cst_62 = arith.constant dense<0.000000e+00> : vector<25x32xf32>
    %77 = tpu.matmul %74, %76, %cst_62 {dimension_numbers = #tpu.dot_dimension_numbers<[1], [0], [0], [1], [0, 0, 1, 1], [], []>} : vector<25x8xf32>, vector<8x32xf32>, vector<25x32xf32> -> vector<25x32xf32>
    %78 = arith.addf %72, %77 : vector<25x32xf32>
    %c0_63 = arith.constant 0 : index
    %c0_64 = arith.constant 0 : index
    %79 = vector.load %arg3[%c0_63, %c0_64] : memref<1x32xf32, #tpu.memory_space<vmem>>, vector<1x32xf32>
    %80 = vector.broadcast %79 : vector<1x32xf32> to vector<25x32xf32>
    %81 = arith.addf %78, %80 : vector<25x32xf32>
    %cst_65 = arith.constant 0.000000e+00 : f32
    %82 = vector.broadcast %cst_65 : f32 to vector<25x32xf32>
    %83 = arith.maximumf %81, %82 : vector<25x32xf32>
    %cst_66 = arith.constant 0.000000e+00 : f32
    %84 = vector.shape_cast %12 : vector<25x1xi1> to vector<25x1xi1>
    %85 = vector.broadcast %84 : vector<25x1xi1> to vector<25x32xi1>
    %86 = vector.broadcast %cst_66 : f32 to vector<25x32xf32>
    %87 = arith.select %85, %83, %86 : vector<25x32xi1>, vector<25x32xf32>
    %c0_67 = arith.constant 0 : index
    %c0_68 = arith.constant 0 : index
    %c0_69 = arith.constant 0 : index
    %88 = vector.load %arg11[%c0_67, %c0_68, %c0_69] : memref<4x31x32xf32, #tpu.memory_space<vmem>>, vector<1x25x32xf32>
    %89 = vector.shape_cast %88 : vector<1x25x32xf32> to vector<25x32xf32>
    %90 = vector.shape_cast %87 : vector<25x32xf32> to vector<1x25x32xf32>
    tpu.vector_store %arg11[%c0_67, %c0_68, %c0_69], %90 {strides = array<i32>} : memref<4x31x32xf32, #tpu.memory_space<vmem>>, vector<1x25x32xf32>,
    %cst_70 = arith.constant 0.000000e+00 : f32
    %91 = vector.broadcast %cst_70 : f32 to vector<25x32xf32>
    %c0_71 = arith.constant 0 : index
    %c62_72 = arith.constant 62 : index
    %c0_73 = arith.constant 0 : index
    %92 = vector.load %arg1[%c0_71, %c62_72, %c0_73] : memref<1x496x8xf32, #tpu.memory_space<vmem>>, vector<1x25x8xf32>
    %93 = vector.shape_cast %92 : vector<1x25x8xf32> to vector<25x8xf32>
    %c0_74 = arith.constant 0 : index
    %c0_75 = arith.constant 0 : index
    %c0_76 = arith.constant 0 : index
    %94 = vector.load %arg2[%c0_74, %c0_75, %c0_76] : memref<9x8x32xf32, #tpu.memory_space<vmem>>, vector<1x8x32xf32>
    %95 = vector.shape_cast %94 : vector<1x8x32xf32> to vector<8x32xf32>
    %cst_77 = arith.constant dense<0.000000e+00> : vector<25x32xf32>
    %96 = tpu.matmul %93, %95, %cst_77 {dimension_numbers = #tpu.dot_dimension_numbers<[1], [0], [0], [1], [0, 0, 1, 1], [], []>} : vector<25x8xf32>, vector<8x32xf32>, vector<25x32xf32> -> vector<25x32xf32>
    %97 = arith.addf %91, %96 : vector<25x32xf32>
    %c0_78 = arith.constant 0 : index
    %c93 = arith.constant 93 : index
    %c0_79 = arith.constant 0 : index
    %98 = vector.load %arg1[%c0_78, %c93, %c0_79] : memref<1x496x8xf32, #tpu.memory_space<vmem>>, vector<1x25x8xf32>
    %99 = vector.shape_cast %98 : vector<1x25x8xf32> to vector<25x8xf32>
    %c1_80 = arith.constant 1 : index
    %c0_81 = arith.constant 0 : index
    %c0_82 = arith.constant 0 : index
    %100 = vector.load %arg2[%c1_80, %c0_81, %c0_82] : memref<9x8x32xf32, #tpu.memory_space<vmem>>, vector<1x8x32xf32>
    %101 = vector.shape_cast %100 : vector<1x8x32xf32> to vector<8x32xf32>
    %cst_83 = arith.constant dense<0.000000e+00> : vector<25x32xf32>
    %102 = tpu.matmul %99, %101, %cst_83 {dimension_numbers = #tpu.dot_dimension_numbers<[1], [0], [0], [1], [0, 0, 1, 1], [], []>} : vector<25x8xf32>, vector<8x32xf32>, vector<25x32xf32> -> vector<25x32xf32>
    %103 = arith.addf %97, %102 : vector<25x32xf32>
    %c0_84 = arith.constant 0 : index
    %c1_85 = arith.constant 1 : index
    %c0_86 = arith.constant 0 : index
    %104 = vector.load %arg1[%c0_84, %c1_85, %c0_86] : memref<1x496x8xf32, #tpu.memory_space<vmem>>, vector<1x25x8xf32>
    %105 = vector.shape_cast %104 : vector<1x25x8xf32> to vector<25x8xf32>
    %c2_87 = arith.constant 2 : index
    %c0_88 = arith.constant 0 : index
    %c0_89 = arith.constant 0 : index
    %106 = vector.load %arg2[%c2_87, %c0_88, %c0_89] : memref<9x8x32xf32, #tpu.memory_space<vmem>>, vector<1x8x32xf32>
    %107 = vector.shape_cast %106 : vector<1x8x32xf32> to vector<8x32xf32>
    %cst_90 = arith.constant dense<0.000000e+00> : vector<25x32xf32>
    %108 = tpu.matmul %105, %107, %cst_90 {dimension_numbers = #tpu.dot_dimension_numbers<[1], [0], [0], [1], [0, 0, 1, 1], [], []>} : vector<25x8xf32>, vector<8x32xf32>, vector<25x32xf32> -> vector<25x32xf32>
    %109 = arith.addf %103, %108 : vector<25x32xf32>
    %c0_91 = arith.constant 0 : index
    %c186_92 = arith.constant 186 : index
    %c0_93 = arith.constant 0 : index
    %110 = vector.load %arg1[%c0_91, %c186_92, %c0_93] : memref<1x496x8xf32, #tpu.memory_space<vmem>>, vector<1x25x8xf32>
    %111 = vector.shape_cast %110 : vector<1x25x8xf32> to vector<25x8xf32>
    %c3_94 = arith.constant 3 : index
    %c0_95 = arith.constant 0 : index
    %c0_96 = arith.constant 0 : index
    %112 = vector.load %arg2[%c3_94, %c0_95, %c0_96] : memref<9x8x32xf32, #tpu.memory_space<vmem>>, vector<1x8x32xf32>
    %113 = vector.shape_cast %112 : vector<1x8x32xf32> to vector<8x32xf32>
    %cst_97 = arith.constant dense<0.000000e+00> : vector<25x32xf32>
    %114 = tpu.matmul %111, %113, %cst_97 {dimension_numbers = #tpu.dot_dimension_numbers<[1], [0], [0], [1], [0, 0, 1, 1], [], []>} : vector<25x8xf32>, vector<8x32xf32>, vector<25x32xf32> -> vector<25x32xf32>
    %115 = arith.addf %109, %114 : vector<25x32xf32>
    %c0_98 = arith.constant 0 : index
    %c217 = arith.constant 217 : index
    %c0_99 = arith.constant 0 : index
    %116 = vector.load %arg1[%c0_98, %c217, %c0_99] : memref<1x496x8xf32, #tpu.memory_space<vmem>>, vector<1x25x8xf32>
    %117 = vector.shape_cast %116 : vector<1x25x8xf32> to vector<25x8xf32>
    %c4_100 = arith.constant 4 : index
    %c0_101 = arith.constant 0 : index
    %c0_102 = arith.constant 0 : index
    %118 = vector.load %arg2[%c4_100, %c0_101, %c0_102] : memref<9x8x32xf32, #tpu.memory_space<vmem>>, vector<1x8x32xf32>
    %119 = vector.shape_cast %118 : vector<1x8x32xf32> to vector<8x32xf32>
    %cst_103 = arith.constant dense<0.000000e+00> : vector<25x32xf32>
    %120 = tpu.matmul %117, %119, %cst_103 {dimension_numbers = #tpu.dot_dimension_numbers<[1], [0], [0], [1], [0, 0, 1, 1], [], []>} : vector<25x8xf32>, vector<8x32xf32>, vector<25x32xf32> -> vector<25x32xf32>
    %121 = arith.addf %115, %120 : vector<25x32xf32>
    %c0_104 = arith.constant 0 : index
    %c125 = arith.constant 125 : index
    %c0_105 = arith.constant 0 : index
    %122 = vector.load %arg1[%c0_104, %c125, %c0_105] : memref<1x496x8xf32, #tpu.memory_space<vmem>>, vector<1x25x8xf32>
    %123 = vector.shape_cast %122 : vector<1x25x8xf32> to vector<25x8xf32>
    %c5_106 = arith.constant 5 : index
    %c0_107 = arith.constant 0 : index
    %c0_108 = arith.constant 0 : index
    %124 = vector.load %arg2[%c5_106, %c0_107, %c0_108] : memref<9x8x32xf32, #tpu.memory_space<vmem>>, vector<1x8x32xf32>
    %125 = vector.shape_cast %124 : vector<1x8x32xf32> to vector<8x32xf32>
    %cst_109 = arith.constant dense<0.000000e+00> : vector<25x32xf32>
    %126 = tpu.matmul %123, %125, %cst_109 {dimension_numbers = #tpu.dot_dimension_numbers<[1], [0], [0], [1], [0, 0, 1, 1], [], []>} : vector<25x8xf32>, vector<8x32xf32>, vector<25x32xf32> -> vector<25x32xf32>
    %127 = arith.addf %121, %126 : vector<25x32xf32>
    %c0_110 = arith.constant 0 : index
    %c310_111 = arith.constant 310 : index
    %c0_112 = arith.constant 0 : index
    %128 = vector.load %arg1[%c0_110, %c310_111, %c0_112] : memref<1x496x8xf32, #tpu.memory_space<vmem>>, vector<1x25x8xf32>
    %129 = vector.shape_cast %128 : vector<1x25x8xf32> to vector<25x8xf32>
    %c6_113 = arith.constant 6 : index
    %c0_114 = arith.constant 0 : index
    %c0_115 = arith.constant 0 : index
    %130 = vector.load %arg2[%c6_113, %c0_114, %c0_115] : memref<9x8x32xf32, #tpu.memory_space<vmem>>, vector<1x8x32xf32>
    %131 = vector.shape_cast %130 : vector<1x8x32xf32> to vector<8x32xf32>
    %cst_116 = arith.constant dense<0.000000e+00> : vector<25x32xf32>
    %132 = tpu.matmul %129, %131, %cst_116 {dimension_numbers = #tpu.dot_dimension_numbers<[1], [0], [0], [1], [0, 0, 1, 1], [], []>} : vector<25x8xf32>, vector<8x32xf32>, vector<25x32xf32> -> vector<25x32xf32>
    %133 = arith.addf %127, %132 : vector<25x32xf32>
    %c0_117 = arith.constant 0 : index
    %c341 = arith.constant 341 : index
    %c0_118 = arith.constant 0 : index
    %134 = vector.load %arg1[%c0_117, %c341, %c0_118] : memref<1x496x8xf32, #tpu.memory_space<vmem>>, vector<1x25x8xf32>
    %135 = vector.shape_cast %134 : vector<1x25x8xf32> to vector<25x8xf32>
    %c7_119 = arith.constant 7 : index
    %c0_120 = arith.constant 0 : index
    %c0_121 = arith.constant 0 : index
    %136 = vector.load %arg2[%c7_119, %c0_120, %c0_121] : memref<9x8x32xf32, #tpu.memory_space<vmem>>, vector<1x8x32xf32>
    %137 = vector.shape_cast %136 : vector<1x8x32xf32> to vector<8x32xf32>
    %cst_122 = arith.constant dense<0.000000e+00> : vector<25x32xf32>
    %138 = tpu.matmul %135, %137, %cst_122 {dimension_numbers = #tpu.dot_dimension_numbers<[1], [0], [0], [1], [0, 0, 1, 1], [], []>} : vector<25x8xf32>, vector<8x32xf32>, vector<25x32xf32> -> vector<25x32xf32>
    %139 = arith.addf %133, %138 : vector<25x32xf32>
    %c0_123 = arith.constant 0 : index
    %c249 = arith.constant 249 : index
    %c0_124 = arith.constant 0 : index
    %140 = vector.load %arg1[%c0_123, %c249, %c0_124] : memref<1x496x8xf32, #tpu.memory_space<vmem>>, vector<1x25x8xf32>
    %141 = vector.shape_cast %140 : vector<1x25x8xf32> to vector<25x8xf32>
    %c8_125 = arith.constant 8 : index
    %c0_126 = arith.constant 0 : index
    %c0_127 = arith.constant 0 : index
    %142 = vector.load %arg2[%c8_125, %c0_126, %c0_127] : memref<9x8x32xf32, #tpu.memory_space<vmem>>, vector<1x8x32xf32>
    %143 = vector.shape_cast %142 : vector<1x8x32xf32> to vector<8x32xf32>
    %cst_128 = arith.constant dense<0.000000e+00> : vector<25x32xf32>
    %144 = tpu.matmul %141, %143, %cst_128 {dimension_numbers = #tpu.dot_dimension_numbers<[1], [0], [0], [1], [0, 0, 1, 1], [], []>} : vector<25x8xf32>, vector<8x32xf32>, vector<25x32xf32> -> vector<25x32xf32>
    %145 = arith.addf %139, %144 : vector<25x32xf32>
    %c0_129 = arith.constant 0 : index
    %c0_130 = arith.constant 0 : index
    %146 = vector.load %arg3[%c0_129, %c0_130] : memref<1x32xf32, #tpu.memory_space<vmem>>, vector<1x32xf32>
    %147 = vector.broadcast %146 : vector<1x32xf32> to vector<25x32xf32>
    %148 = arith.addf %145, %147 : vector<25x32xf32>
    %cst_131 = arith.constant 0.000000e+00 : f32
    %149 = vector.broadcast %cst_131 : f32 to vector<25x32xf32>
    %150 = arith.maximumf %148, %149 : vector<25x32xf32>
    %cst_132 = arith.constant 0.000000e+00 : f32
    %151 = vector.shape_cast %12 : vector<25x1xi1> to vector<25x1xi1>
    %152 = vector.broadcast %151 : vector<25x1xi1> to vector<25x32xi1>
    %153 = vector.broadcast %cst_132 : f32 to vector<25x32xf32>
    %154 = arith.select %152, %150, %153 : vector<25x32xi1>, vector<25x32xf32>
    %c1_133 = arith.constant 1 : index
    %c0_134 = arith.constant 0 : index
    %c0_135 = arith.constant 0 : index
    %155 = vector.load %arg11[%c1_133, %c0_134, %c0_135] : memref<4x31x32xf32, #tpu.memory_space<vmem>>, vector<1x25x32xf32>
    %156 = vector.shape_cast %155 : vector<1x25x32xf32> to vector<25x32xf32>
    %157 = vector.shape_cast %154 : vector<25x32xf32> to vector<1x25x32xf32>
    tpu.vector_store %arg11[%c1_133, %c0_134, %c0_135], %157 {strides = array<i32>} : memref<4x31x32xf32, #tpu.memory_space<vmem>>, vector<1x25x32xf32>,
    %cst_136 = arith.constant 0.000000e+00 : f32
    %158 = vector.broadcast %cst_136 : f32 to vector<25x32xf32>
    %c0_137 = arith.constant 0 : index
    %c248_138 = arith.constant 248 : index
    %c0_139 = arith.constant 0 : index
    %159 = vector.load %arg1[%c0_137, %c248_138, %c0_139] : memref<1x496x8xf32, #tpu.memory_space<vmem>>, vector<1x25x8xf32>
    %160 = vector.shape_cast %159 : vector<1x25x8xf32> to vector<25x8xf32>
    %c0_140 = arith.constant 0 : index
    %c0_141 = arith.constant 0 : index
    %c0_142 = arith.constant 0 : index
    %161 = vector.load %arg2[%c0_140, %c0_141, %c0_142] : memref<9x8x32xf32, #tpu.memory_space<vmem>>, vector<1x8x32xf32>
    %162 = vector.shape_cast %161 : vector<1x8x32xf32> to vector<8x32xf32>
    %cst_143 = arith.constant dense<0.000000e+00> : vector<25x32xf32>
    %163 = tpu.matmul %160, %162, %cst_143 {dimension_numbers = #tpu.dot_dimension_numbers<[1], [0], [0], [1], [0, 0, 1, 1], [], []>} : vector<25x8xf32>, vector<8x32xf32>, vector<25x32xf32> -> vector<25x32xf32>
    %164 = arith.addf %158, %163 : vector<25x32xf32>
    %c0_144 = arith.constant 0 : index
    %c279_145 = arith.constant 279 : index
    %c0_146 = arith.constant 0 : index
    %165 = vector.load %arg1[%c0_144, %c279_145, %c0_146] : memref<1x496x8xf32, #tpu.memory_space<vmem>>, vector<1x25x8xf32>
    %166 = vector.shape_cast %165 : vector<1x25x8xf32> to vector<25x8xf32>
    %c1_147 = arith.constant 1 : index
    %c0_148 = arith.constant 0 : index
    %c0_149 = arith.constant 0 : index
    %167 = vector.load %arg2[%c1_147, %c0_148, %c0_149] : memref<9x8x32xf32, #tpu.memory_space<vmem>>, vector<1x8x32xf32>
    %168 = vector.shape_cast %167 : vector<1x8x32xf32> to vector<8x32xf32>
    %cst_150 = arith.constant dense<0.000000e+00> : vector<25x32xf32>
    %169 = tpu.matmul %166, %168, %cst_150 {dimension_numbers = #tpu.dot_dimension_numbers<[1], [0], [0], [1], [0, 0, 1, 1], [], []>} : vector<25x8xf32>, vector<8x32xf32>, vector<25x32xf32> -> vector<25x32xf32>
    %170 = arith.addf %164, %169 : vector<25x32xf32>
    %c0_151 = arith.constant 0 : index
    %c310_152 = arith.constant 310 : index
    %c0_153 = arith.constant 0 : index
    %171 = vector.load %arg1[%c0_151, %c310_152, %c0_153] : memref<1x496x8xf32, #tpu.memory_space<vmem>>, vector<1x25x8xf32>
    %172 = vector.shape_cast %171 : vector<1x25x8xf32> to vector<25x8xf32>
    %c2_154 = arith.constant 2 : index
    %c0_155 = arith.constant 0 : index
    %c0_156 = arith.constant 0 : index
    %173 = vector.load %arg2[%c2_154, %c0_155, %c0_156] : memref<9x8x32xf32, #tpu.memory_space<vmem>>, vector<1x8x32xf32>
    %174 = vector.shape_cast %173 : vector<1x8x32xf32> to vector<8x32xf32>
    %cst_157 = arith.constant dense<0.000000e+00> : vector<25x32xf32>
    %175 = tpu.matmul %172, %174, %cst_157 {dimension_numbers = #tpu.dot_dimension_numbers<[1], [0], [0], [1], [0, 0, 1, 1], [], []>} : vector<25x8xf32>, vector<8x32xf32>, vector<25x32xf32> -> vector<25x32xf32>
    %176 = arith.addf %170, %175 : vector<25x32xf32>
    %c0_158 = arith.constant 0 : index
    %c372 = arith.constant 372 : index
    %c0_159 = arith.constant 0 : index
    %177 = vector.load %arg1[%c0_158, %c372, %c0_159] : memref<1x496x8xf32, #tpu.memory_space<vmem>>, vector<1x25x8xf32>
    %178 = vector.shape_cast %177 : vector<1x25x8xf32> to vector<25x8xf32>
    %c3_160 = arith.constant 3 : index
    %c0_161 = arith.constant 0 : index
    %c0_162 = arith.constant 0 : index
    %179 = vector.load %arg2[%c3_160, %c0_161, %c0_162] : memref<9x8x32xf32, #tpu.memory_space<vmem>>, vector<1x8x32xf32>
    %180 = vector.shape_cast %179 : vector<1x8x32xf32> to vector<8x32xf32>
    %cst_163 = arith.constant dense<0.000000e+00> : vector<25x32xf32>
    %181 = tpu.matmul %178, %180, %cst_163 {dimension_numbers = #tpu.dot_dimension_numbers<[1], [0], [0], [1], [0, 0, 1, 1], [], []>} : vector<25x8xf32>, vector<8x32xf32>, vector<25x32xf32> -> vector<25x32xf32>
    %182 = arith.addf %176, %181 : vector<25x32xf32>
    %c0_164 = arith.constant 0 : index
    %c403 = arith.constant 403 : index
    %c0_165 = arith.constant 0 : index
    %183 = vector.load %arg1[%c0_164, %c403, %c0_165] : memref<1x496x8xf32, #tpu.memory_space<vmem>>, vector<1x25x8xf32>
    %184 = vector.shape_cast %183 : vector<1x25x8xf32> to vector<25x8xf32>
    %c4_166 = arith.constant 4 : index
    %c0_167 = arith.constant 0 : index
    %c0_168 = arith.constant 0 : index
    %185 = vector.load %arg2[%c4_166, %c0_167, %c0_168] : memref<9x8x32xf32, #tpu.memory_space<vmem>>, vector<1x8x32xf32>
    %186 = vector.shape_cast %185 : vector<1x8x32xf32> to vector<8x32xf32>
    %cst_169 = arith.constant dense<0.000000e+00> : vector<25x32xf32>
    %187 = tpu.matmul %184, %186, %cst_169 {dimension_numbers = #tpu.dot_dimension_numbers<[1], [0], [0], [1], [0, 0, 1, 1], [], []>} : vector<25x8xf32>, vector<8x32xf32>, vector<25x32xf32> -> vector<25x32xf32>
    %188 = arith.addf %182, %187 : vector<25x32xf32>
    %c0_170 = arith.constant 0 : index
    %c434 = arith.constant 434 : index
    %c0_171 = arith.constant 0 : index
    %189 = vector.load %arg1[%c0_170, %c434, %c0_171] : memref<1x496x8xf32, #tpu.memory_space<vmem>>, vector<1x25x8xf32>
    %190 = vector.shape_cast %189 : vector<1x25x8xf32> to vector<25x8xf32>
    %c5_172 = arith.constant 5 : index
    %c0_173 = arith.constant 0 : index
    %c0_174 = arith.constant 0 : index
    %191 = vector.load %arg2[%c5_172, %c0_173, %c0_174] : memref<9x8x32xf32, #tpu.memory_space<vmem>>, vector<1x8x32xf32>
    %192 = vector.shape_cast %191 : vector<1x8x32xf32> to vector<8x32xf32>
    %cst_175 = arith.constant dense<0.000000e+00> : vector<25x32xf32>
    %193 = tpu.matmul %190, %192, %cst_175 {dimension_numbers = #tpu.dot_dimension_numbers<[1], [0], [0], [1], [0, 0, 1, 1], [], []>} : vector<25x8xf32>, vector<8x32xf32>, vector<25x32xf32> -> vector<25x32xf32>
    %194 = arith.addf %188, %193 : vector<25x32xf32>
    %c0_176 = arith.constant 0 : index
    %c5_177 = arith.constant 5 : index
    %c0_178 = arith.constant 0 : index
    %195 = vector.load %arg1[%c0_176, %c5_177, %c0_178] : memref<1x496x8xf32, #tpu.memory_space<vmem>>, vector<1x25x8xf32>
    %196 = vector.shape_cast %195 : vector<1x25x8xf32> to vector<25x8xf32>
    %c6_179 = arith.constant 6 : index
    %c0_180 = arith.constant 0 : index
    %c0_181 = arith.constant 0 : index
    %197 = vector.load %arg2[%c6_179, %c0_180, %c0_181] : memref<9x8x32xf32, #tpu.memory_space<vmem>>, vector<1x8x32xf32>
    %198 = vector.shape_cast %197 : vector<1x8x32xf32> to vector<8x32xf32>
    %cst_182 = arith.constant dense<0.000000e+00> : vector<25x32xf32>
    %199 = tpu.matmul %196, %198, %cst_182 {dimension_numbers = #tpu.dot_dimension_numbers<[1], [0], [0], [1], [0, 0, 1, 1], [], []>} : vector<25x8xf32>, vector<8x32xf32>, vector<25x32xf32> -> vector<25x32xf32>
    %200 = arith.addf %194, %199 : vector<25x32xf32>
    %c0_183 = arith.constant 0 : index
    %c36 = arith.constant 36 : index
    %c0_184 = arith.constant 0 : index
    %201 = vector.load %arg1[%c0_183, %c36, %c0_184] : memref<1x496x8xf32, #tpu.memory_space<vmem>>, vector<1x25x8xf32>
    %202 = vector.shape_cast %201 : vector<1x25x8xf32> to vector<25x8xf32>
    %c7_185 = arith.constant 7 : index
    %c0_186 = arith.constant 0 : index
    %c0_187 = arith.constant 0 : index
    %203 = vector.load %arg2[%c7_185, %c0_186, %c0_187] : memref<9x8x32xf32, #tpu.memory_space<vmem>>, vector<1x8x32xf32>
    %204 = vector.shape_cast %203 : vector<1x8x32xf32> to vector<8x32xf32>
    %cst_188 = arith.constant dense<0.000000e+00> : vector<25x32xf32>
    %205 = tpu.matmul %202, %204, %cst_188 {dimension_numbers = #tpu.dot_dimension_numbers<[1], [0], [0], [1], [0, 0, 1, 1], [], []>} : vector<25x8xf32>, vector<8x32xf32>, vector<25x32xf32> -> vector<25x32xf32>
    %206 = arith.addf %200, %205 : vector<25x32xf32>
    %c0_189 = arith.constant 0 : index
    %c67 = arith.constant 67 : index
    %c0_190 = arith.constant 0 : index
    %207 = vector.load %arg1[%c0_189, %c67, %c0_190] : memref<1x496x8xf32, #tpu.memory_space<vmem>>, vector<1x25x8xf32>
    %208 = vector.shape_cast %207 : vector<1x25x8xf32> to vector<25x8xf32>
    %c8_191 = arith.constant 8 : index
    %c0_192 = arith.constant 0 : index
    %c0_193 = arith.constant 0 : index
    %209 = vector.load %arg2[%c8_191, %c0_192, %c0_193] : memref<9x8x32xf32, #tpu.memory_space<vmem>>, vector<1x8x32xf32>
    %210 = vector.shape_cast %209 : vector<1x8x32xf32> to vector<8x32xf32>
    %cst_194 = arith.constant dense<0.000000e+00> : vector<25x32xf32>
    %211 = tpu.matmul %208, %210, %cst_194 {dimension_numbers = #tpu.dot_dimension_numbers<[1], [0], [0], [1], [0, 0, 1, 1], [], []>} : vector<25x8xf32>, vector<8x32xf32>, vector<25x32xf32> -> vector<25x32xf32>
    %212 = arith.addf %206, %211 : vector<25x32xf32>
    %c0_195 = arith.constant 0 : index
    %c0_196 = arith.constant 0 : index
    %213 = vector.load %arg3[%c0_195, %c0_196] : memref<1x32xf32, #tpu.memory_space<vmem>>, vector<1x32xf32>
    %214 = vector.broadcast %213 : vector<1x32xf32> to vector<25x32xf32>
    %215 = arith.addf %212, %214 : vector<25x32xf32>
    %cst_197 = arith.constant 0.000000e+00 : f32
    %216 = vector.broadcast %cst_197 : f32 to vector<25x32xf32>
    %217 = arith.maximumf %215, %216 : vector<25x32xf32>
    %cst_198 = arith.constant 0.000000e+00 : f32
    %218 = vector.shape_cast %12 : vector<25x1xi1> to vector<25x1xi1>
    %219 = vector.broadcast %218 : vector<25x1xi1> to vector<25x32xi1>
    %220 = vector.broadcast %cst_198 : f32 to vector<25x32xf32>
    %221 = arith.select %219, %217, %220 : vector<25x32xi1>, vector<25x32xf32>
    %c2_199 = arith.constant 2 : index
    %c0_200 = arith.constant 0 : index
    %c0_201 = arith.constant 0 : index
    %222 = vector.load %arg11[%c2_199, %c0_200, %c0_201] : memref<4x31x32xf32, #tpu.memory_space<vmem>>, vector<1x25x32xf32>
    %223 = vector.shape_cast %222 : vector<1x25x32xf32> to vector<25x32xf32>
    %224 = vector.shape_cast %221 : vector<25x32xf32> to vector<1x25x32xf32>
    tpu.vector_store %arg11[%c2_199, %c0_200, %c0_201], %224 {strides = array<i32>} : memref<4x31x32xf32, #tpu.memory_space<vmem>>, vector<1x25x32xf32>,
    %cst_202 = arith.constant 0.000000e+00 : f32
    %225 = vector.broadcast %cst_202 : f32 to vector<25x32xf32>
    %c0_203 = arith.constant 0 : index
    %c310_204 = arith.constant 310 : index
    %c0_205 = arith.constant 0 : index
    %226 = vector.load %arg1[%c0_203, %c310_204, %c0_205] : memref<1x496x8xf32, #tpu.memory_space<vmem>>, vector<1x25x8xf32>
    %227 = vector.shape_cast %226 : vector<1x25x8xf32> to vector<25x8xf32>
    %c0_206 = arith.constant 0 : index
    %c0_207 = arith.constant 0 : index
    %c0_208 = arith.constant 0 : index
    %228 = vector.load %arg2[%c0_206, %c0_207, %c0_208] : memref<9x8x32xf32, #tpu.memory_space<vmem>>, vector<1x8x32xf32>
    %229 = vector.shape_cast %228 : vector<1x8x32xf32> to vector<8x32xf32>
    %cst_209 = arith.constant dense<0.000000e+00> : vector<25x32xf32>
    %230 = tpu.matmul %227, %229, %cst_209 {dimension_numbers = #tpu.dot_dimension_numbers<[1], [0], [0], [1], [0, 0, 1, 1], [], []>} : vector<25x8xf32>, vector<8x32xf32>, vector<25x32xf32> -> vector<25x32xf32>
    %231 = arith.addf %225, %230 : vector<25x32xf32>
    %c0_210 = arith.constant 0 : index
    %c341_211 = arith.constant 341 : index
    %c0_212 = arith.constant 0 : index
    %232 = vector.load %arg1[%c0_210, %c341_211, %c0_212] : memref<1x496x8xf32, #tpu.memory_space<vmem>>, vector<1x25x8xf32>
    %233 = vector.shape_cast %232 : vector<1x25x8xf32> to vector<25x8xf32>
    %c1_213 = arith.constant 1 : index
    %c0_214 = arith.constant 0 : index
    %c0_215 = arith.constant 0 : index
    %234 = vector.load %arg2[%c1_213, %c0_214, %c0_215] : memref<9x8x32xf32, #tpu.memory_space<vmem>>, vector<1x8x32xf32>
    %235 = vector.shape_cast %234 : vector<1x8x32xf32> to vector<8x32xf32>
    %cst_216 = arith.constant dense<0.000000e+00> : vector<25x32xf32>
    %236 = tpu.matmul %233, %235, %cst_216 {dimension_numbers = #tpu.dot_dimension_numbers<[1], [0], [0], [1], [0, 0, 1, 1], [], []>} : vector<25x8xf32>, vector<8x32xf32>, vector<25x32xf32> -> vector<25x32xf32>
    %237 = arith.addf %231, %236 : vector<25x32xf32>
    %c0_217 = arith.constant 0 : index
    %c249_218 = arith.constant 249 : index
    %c0_219 = arith.constant 0 : index
    %238 = vector.load %arg1[%c0_217, %c249_218, %c0_219] : memref<1x496x8xf32, #tpu.memory_space<vmem>>, vector<1x25x8xf32>
    %239 = vector.shape_cast %238 : vector<1x25x8xf32> to vector<25x8xf32>
    %c2_220 = arith.constant 2 : index
    %c0_221 = arith.constant 0 : index
    %c0_222 = arith.constant 0 : index
    %240 = vector.load %arg2[%c2_220, %c0_221, %c0_222] : memref<9x8x32xf32, #tpu.memory_space<vmem>>, vector<1x8x32xf32>
    %241 = vector.shape_cast %240 : vector<1x8x32xf32> to vector<8x32xf32>
    %cst_223 = arith.constant dense<0.000000e+00> : vector<25x32xf32>
    %242 = tpu.matmul %239, %241, %cst_223 {dimension_numbers = #tpu.dot_dimension_numbers<[1], [0], [0], [1], [0, 0, 1, 1], [], []>} : vector<25x8xf32>, vector<8x32xf32>, vector<25x32xf32> -> vector<25x32xf32>
    %243 = arith.addf %237, %242 : vector<25x32xf32>
    %c0_224 = arith.constant 0 : index
    %c434_225 = arith.constant 434 : index
    %c0_226 = arith.constant 0 : index
    %244 = vector.load %arg1[%c0_224, %c434_225, %c0_226] : memref<1x496x8xf32, #tpu.memory_space<vmem>>, vector<1x25x8xf32>
    %245 = vector.shape_cast %244 : vector<1x25x8xf32> to vector<25x8xf32>
    %c3_227 = arith.constant 3 : index
    %c0_228 = arith.constant 0 : index
    %c0_229 = arith.constant 0 : index
    %246 = vector.load %arg2[%c3_227, %c0_228, %c0_229] : memref<9x8x32xf32, #tpu.memory_space<vmem>>, vector<1x8x32xf32>
    %247 = vector.shape_cast %246 : vector<1x8x32xf32> to vector<8x32xf32>
    %cst_230 = arith.constant dense<0.000000e+00> : vector<25x32xf32>
    %248 = tpu.matmul %245, %247, %cst_230 {dimension_numbers = #tpu.dot_dimension_numbers<[1], [0], [0], [1], [0, 0, 1, 1], [], []>} : vector<25x8xf32>, vector<8x32xf32>, vector<25x32xf32> -> vector<25x32xf32>
    %249 = arith.addf %243, %248 : vector<25x32xf32>
    %c0_231 = arith.constant 0 : index
    %c465 = arith.constant 465 : index
    %c0_232 = arith.constant 0 : index
    %250 = vector.load %arg1[%c0_231, %c465, %c0_232] : memref<1x496x8xf32, #tpu.memory_space<vmem>>, vector<1x25x8xf32>
    %251 = vector.shape_cast %250 : vector<1x25x8xf32> to vector<25x8xf32>
    %c4_233 = arith.constant 4 : index
    %c0_234 = arith.constant 0 : index
    %c0_235 = arith.constant 0 : index
    %252 = vector.load %arg2[%c4_233, %c0_234, %c0_235] : memref<9x8x32xf32, #tpu.memory_space<vmem>>, vector<1x8x32xf32>
    %253 = vector.shape_cast %252 : vector<1x8x32xf32> to vector<8x32xf32>
    %cst_236 = arith.constant dense<0.000000e+00> : vector<25x32xf32>
    %254 = tpu.matmul %251, %253, %cst_236 {dimension_numbers = #tpu.dot_dimension_numbers<[1], [0], [0], [1], [0, 0, 1, 1], [], []>} : vector<25x8xf32>, vector<8x32xf32>, vector<25x32xf32> -> vector<25x32xf32>
    %255 = arith.addf %249, %254 : vector<25x32xf32>
    %c0_237 = arith.constant 0 : index
    %c373 = arith.constant 373 : index
    %c0_238 = arith.constant 0 : index
    %256 = vector.load %arg1[%c0_237, %c373, %c0_238] : memref<1x496x8xf32, #tpu.memory_space<vmem>>, vector<1x25x8xf32>
    %257 = vector.shape_cast %256 : vector<1x25x8xf32> to vector<25x8xf32>
    %c5_239 = arith.constant 5 : index
    %c0_240 = arith.constant 0 : index
    %c0_241 = arith.constant 0 : index
    %258 = vector.load %arg2[%c5_239, %c0_240, %c0_241] : memref<9x8x32xf32, #tpu.memory_space<vmem>>, vector<1x8x32xf32>
    %259 = vector.shape_cast %258 : vector<1x8x32xf32> to vector<8x32xf32>
    %cst_242 = arith.constant dense<0.000000e+00> : vector<25x32xf32>
    %260 = tpu.matmul %257, %259, %cst_242 {dimension_numbers = #tpu.dot_dimension_numbers<[1], [0], [0], [1], [0, 0, 1, 1], [], []>} : vector<25x8xf32>, vector<8x32xf32>, vector<25x32xf32> -> vector<25x32xf32>
    %261 = arith.addf %255, %260 : vector<25x32xf32>
    %c0_243 = arith.constant 0 : index
    %c67_244 = arith.constant 67 : index
    %c0_245 = arith.constant 0 : index
    %262 = vector.load %arg1[%c0_243, %c67_244, %c0_245] : memref<1x496x8xf32, #tpu.memory_space<vmem>>, vector<1x25x8xf32>
    %263 = vector.shape_cast %262 : vector<1x25x8xf32> to vector<25x8xf32>
    %c6_246 = arith.constant 6 : index
    %c0_247 = arith.constant 0 : index
    %c0_248 = arith.constant 0 : index
    %264 = vector.load %arg2[%c6_246, %c0_247, %c0_248] : memref<9x8x32xf32, #tpu.memory_space<vmem>>, vector<1x8x32xf32>
    %265 = vector.shape_cast %264 : vector<1x8x32xf32> to vector<8x32xf32>
    %cst_249 = arith.constant dense<0.000000e+00> : vector<25x32xf32>
    %266 = tpu.matmul %263, %265, %cst_249 {dimension_numbers = #tpu.dot_dimension_numbers<[1], [0], [0], [1], [0, 0, 1, 1], [], []>} : vector<25x8xf32>, vector<8x32xf32>, vector<25x32xf32> -> vector<25x32xf32>
    %267 = arith.addf %261, %266 : vector<25x32xf32>
    %c0_250 = arith.constant 0 : index
    %c98 = arith.constant 98 : index
    %c0_251 = arith.constant 0 : index
    %268 = vector.load %arg1[%c0_250, %c98, %c0_251] : memref<1x496x8xf32, #tpu.memory_space<vmem>>, vector<1x25x8xf32>
    %269 = vector.shape_cast %268 : vector<1x25x8xf32> to vector<25x8xf32>
    %c7_252 = arith.constant 7 : index
    %c0_253 = arith.constant 0 : index
    %c0_254 = arith.constant 0 : index
    %270 = vector.load %arg2[%c7_252, %c0_253, %c0_254] : memref<9x8x32xf32, #tpu.memory_space<vmem>>, vector<1x8x32xf32>
    %271 = vector.shape_cast %270 : vector<1x8x32xf32> to vector<8x32xf32>
    %cst_255 = arith.constant dense<0.000000e+00> : vector<25x32xf32>
    %272 = tpu.matmul %269, %271, %cst_255 {dimension_numbers = #tpu.dot_dimension_numbers<[1], [0], [0], [1], [0, 0, 1, 1], [], []>} : vector<25x8xf32>, vector<8x32xf32>, vector<25x32xf32> -> vector<25x32xf32>
    %273 = arith.addf %267, %272 : vector<25x32xf32>
    %c0_256 = arith.constant 0 : index
    %c6_257 = arith.constant 6 : index
    %c0_258 = arith.constant 0 : index
    %274 = vector.load %arg1[%c0_256, %c6_257, %c0_258] : memref<1x496x8xf32, #tpu.memory_space<vmem>>, vector<1x25x8xf32>
    %275 = vector.shape_cast %274 : vector<1x25x8xf32> to vector<25x8xf32>
    %c8_259 = arith.constant 8 : index
    %c0_260 = arith.constant 0 : index
    %c0_261 = arith.constant 0 : index
    %276 = vector.load %arg2[%c8_259, %c0_260, %c0_261] : memref<9x8x32xf32, #tpu.memory_space<vmem>>, vector<1x8x32xf32>
    %277 = vector.shape_cast %276 : vector<1x8x32xf32> to vector<8x32xf32>
    %cst_262 = arith.constant dense<0.000000e+00> : vector<25x32xf32>
    %278 = tpu.matmul %275, %277, %cst_262 {dimension_numbers = #tpu.dot_dimension_numbers<[1], [0], [0], [1], [0, 0, 1, 1], [], []>} : vector<25x8xf32>, vector<8x32xf32>, vector<25x32xf32> -> vector<25x32xf32>
    %279 = arith.addf %273, %278 : vector<25x32xf32>
    %c0_263 = arith.constant 0 : index
    %c0_264 = arith.constant 0 : index
    %280 = vector.load %arg3[%c0_263, %c0_264] : memref<1x32xf32, #tpu.memory_space<vmem>>, vector<1x32xf32>
    %281 = vector.broadcast %280 : vector<1x32xf32> to vector<25x32xf32>
    %282 = arith.addf %279, %281 : vector<25x32xf32>
    %cst_265 = arith.constant 0.000000e+00 : f32
    %283 = vector.broadcast %cst_265 : f32 to vector<25x32xf32>
    %284 = arith.maximumf %282, %283 : vector<25x32xf32>
    %cst_266 = arith.constant 0.000000e+00 : f32
    %285 = vector.shape_cast %12 : vector<25x1xi1> to vector<25x1xi1>
    %286 = vector.broadcast %285 : vector<25x1xi1> to vector<25x32xi1>
    %287 = vector.broadcast %cst_266 : f32 to vector<25x32xf32>
    %288 = arith.select %286, %284, %287 : vector<25x32xi1>, vector<25x32xf32>
    %c3_267 = arith.constant 3 : index
    %c0_268 = arith.constant 0 : index
    %c0_269 = arith.constant 0 : index
    %289 = vector.load %arg11[%c3_267, %c0_268, %c0_269] : memref<4x31x32xf32, #tpu.memory_space<vmem>>, vector<1x25x32xf32>
    %290 = vector.shape_cast %289 : vector<1x25x32xf32> to vector<25x32xf32>
    %291 = vector.shape_cast %288 : vector<25x32xf32> to vector<1x25x32xf32>
    tpu.vector_store %arg11[%c3_267, %c0_268, %c0_269], %291 {strides = array<i32>} : memref<4x31x32xf32, #tpu.memory_space<vmem>>, vector<1x25x32xf32>,
    %cst_270 = arith.constant 0.000000e+00 : f32
    %292 = vector.broadcast %cst_270 : f32 to vector<25x64xf32>
    %c3_271 = arith.constant 3 : index
    %c0_272 = arith.constant 0 : index
    %c0_273 = arith.constant 0 : index
    %293 = vector.load %arg11[%c3_271, %c0_272, %c0_273] : memref<4x31x32xf32, #tpu.memory_space<vmem>>, vector<1x25x32xf32>
    %294 = vector.shape_cast %293 : vector<1x25x32xf32> to vector<25x32xf32>
    %c0_274 = arith.constant 0 : index
    %c0_275 = arith.constant 0 : index
    %c0_276 = arith.constant 0 : index
    %295 = vector.load %arg4[%c0_274, %c0_275, %c0_276] : memref<9x32x64xf32, #tpu.memory_space<vmem>>, vector<1x32x64xf32>
    %296 = vector.shape_cast %295 : vector<1x32x64xf32> to vector<32x64xf32>
    %cst_277 = arith.constant dense<0.000000e+00> : vector<25x64xf32>
    %297 = tpu.matmul %294, %296, %cst_277 {dimension_numbers = #tpu.dot_dimension_numbers<[1], [0], [0], [1], [0, 0, 1, 1], [], []>} : vector<25x32xf32>, vector<32x64xf32>, vector<25x64xf32> -> vector<25x64xf32>
    %298 = arith.addf %292, %297 : vector<25x64xf32>
    %c2_278 = arith.constant 2 : index
    %c1_279 = arith.constant 1 : index
    %c0_280 = arith.constant 0 : index
    %299 = vector.load %arg11[%c2_278, %c1_279, %c0_280] : memref<4x31x32xf32, #tpu.memory_space<vmem>>, vector<1x25x32xf32>
    %300 = vector.shape_cast %299 : vector<1x25x32xf32> to vector<25x32xf32>
    %c1_281 = arith.constant 1 : index
    %c0_282 = arith.constant 0 : index
    %c0_283 = arith.constant 0 : index
    %301 = vector.load %arg4[%c1_281, %c0_282, %c0_283] : memref<9x32x64xf32, #tpu.memory_space<vmem>>, vector<1x32x64xf32>
    %302 = vector.shape_cast %301 : vector<1x32x64xf32> to vector<32x64xf32>
    %cst_284 = arith.constant dense<0.000000e+00> : vector<25x64xf32>
    %303 = tpu.matmul %300, %302, %cst_284 {dimension_numbers = #tpu.dot_dimension_numbers<[1], [0], [0], [1], [0, 0, 1, 1], [], []>} : vector<25x32xf32>, vector<32x64xf32>, vector<25x64xf32> -> vector<25x64xf32>
    %304 = arith.addf %298, %303 : vector<25x64xf32>
    %c3_285 = arith.constant 3 : index
    %c1_286 = arith.constant 1 : index
    %c0_287 = arith.constant 0 : index
    %305 = vector.load %arg11[%c3_285, %c1_286, %c0_287] : memref<4x31x32xf32, #tpu.memory_space<vmem>>, vector<1x25x32xf32>
    %306 = vector.shape_cast %305 : vector<1x25x32xf32> to vector<25x32xf32>
    %c2_288 = arith.constant 2 : index
    %c0_289 = arith.constant 0 : index
    %c0_290 = arith.constant 0 : index
    %307 = vector.load %arg4[%c2_288, %c0_289, %c0_290] : memref<9x32x64xf32, #tpu.memory_space<vmem>>, vector<1x32x64xf32>
    %308 = vector.shape_cast %307 : vector<1x32x64xf32> to vector<32x64xf32>
    %cst_291 = arith.constant dense<0.000000e+00> : vector<25x64xf32>
    %309 = tpu.matmul %306, %308, %cst_291 {dimension_numbers = #tpu.dot_dimension_numbers<[1], [0], [0], [1], [0, 0, 1, 1], [], []>} : vector<25x32xf32>, vector<32x64xf32>, vector<25x64xf32> -> vector<25x64xf32>
    %310 = arith.addf %304, %309 : vector<25x64xf32>
    %c1_292 = arith.constant 1 : index
    %c5_293 = arith.constant 5 : index
    %c0_294 = arith.constant 0 : index
    %311 = vector.load %arg11[%c1_292, %c5_293, %c0_294] : memref<4x31x32xf32, #tpu.memory_space<vmem>>, vector<1x25x32xf32>
    %312 = vector.shape_cast %311 : vector<1x25x32xf32> to vector<25x32xf32>
    %c3_295 = arith.constant 3 : index
    %c0_296 = arith.constant 0 : index
    %c0_297 = arith.constant 0 : index
    %313 = vector.load %arg4[%c3_295, %c0_296, %c0_297] : memref<9x32x64xf32, #tpu.memory_space<vmem>>, vector<1x32x64xf32>
    %314 = vector.shape_cast %313 : vector<1x32x64xf32> to vector<32x64xf32>
    %cst_298 = arith.constant dense<0.000000e+00> : vector<25x64xf32>
    %315 = tpu.matmul %312, %314, %cst_298 {dimension_numbers = #tpu.dot_dimension_numbers<[1], [0], [0], [1], [0, 0, 1, 1], [], []>} : vector<25x32xf32>, vector<32x64xf32>, vector<25x64xf32> -> vector<25x64xf32>
    %316 = arith.addf %310, %315 : vector<25x64xf32>
    %c0_299 = arith.constant 0 : index
    %c6_300 = arith.constant 6 : index
    %c0_301 = arith.constant 0 : index
    %317 = vector.load %arg11[%c0_299, %c6_300, %c0_301] : memref<4x31x32xf32, #tpu.memory_space<vmem>>, vector<1x25x32xf32>
    %318 = vector.shape_cast %317 : vector<1x25x32xf32> to vector<25x32xf32>
    %c4_302 = arith.constant 4 : index
    %c0_303 = arith.constant 0 : index
    %c0_304 = arith.constant 0 : index
    %319 = vector.load %arg4[%c4_302, %c0_303, %c0_304] : memref<9x32x64xf32, #tpu.memory_space<vmem>>, vector<1x32x64xf32>
    %320 = vector.shape_cast %319 : vector<1x32x64xf32> to vector<32x64xf32>
    %cst_305 = arith.constant dense<0.000000e+00> : vector<25x64xf32>
    %321 = tpu.matmul %318, %320, %cst_305 {dimension_numbers = #tpu.dot_dimension_numbers<[1], [0], [0], [1], [0, 0, 1, 1], [], []>} : vector<25x32xf32>, vector<32x64xf32>, vector<25x64xf32> -> vector<25x64xf32>
    %322 = arith.addf %316, %321 : vector<25x64xf32>
    %c1_306 = arith.constant 1 : index
    %c6_307 = arith.constant 6 : index
    %c0_308 = arith.constant 0 : index
    %323 = vector.load %arg11[%c1_306, %c6_307, %c0_308] : memref<4x31x32xf32, #tpu.memory_space<vmem>>, vector<1x25x32xf32>
    %324 = vector.shape_cast %323 : vector<1x25x32xf32> to vector<25x32xf32>
    %c5_309 = arith.constant 5 : index
    %c0_310 = arith.constant 0 : index
    %c0_311 = arith.constant 0 : index
    %325 = vector.load %arg4[%c5_309, %c0_310, %c0_311] : memref<9x32x64xf32, #tpu.memory_space<vmem>>, vector<1x32x64xf32>
    %326 = vector.shape_cast %325 : vector<1x32x64xf32> to vector<32x64xf32>
    %cst_312 = arith.constant dense<0.000000e+00> : vector<25x64xf32>
    %327 = tpu.matmul %324, %326, %cst_312 {dimension_numbers = #tpu.dot_dimension_numbers<[1], [0], [0], [1], [0, 0, 1, 1], [], []>} : vector<25x32xf32>, vector<32x64xf32>, vector<25x64xf32> -> vector<25x64xf32>
    %328 = arith.addf %322, %327 : vector<25x64xf32>
    %c3_313 = arith.constant 3 : index
    %c5_314 = arith.constant 5 : index
    %c0_315 = arith.constant 0 : index
    %329 = vector.load %arg11[%c3_313, %c5_314, %c0_315] : memref<4x31x32xf32, #tpu.memory_space<vmem>>, vector<1x25x32xf32>
    %330 = vector.shape_cast %329 : vector<1x25x32xf32> to vector<25x32xf32>
    %c6_316 = arith.constant 6 : index
    %c0_317 = arith.constant 0 : index
    %c0_318 = arith.constant 0 : index
    %331 = vector.load %arg4[%c6_316, %c0_317, %c0_318] : memref<9x32x64xf32, #tpu.memory_space<vmem>>, vector<1x32x64xf32>
    %332 = vector.shape_cast %331 : vector<1x32x64xf32> to vector<32x64xf32>
    %cst_319 = arith.constant dense<0.000000e+00> : vector<25x64xf32>
    %333 = tpu.matmul %330, %332, %cst_319 {dimension_numbers = #tpu.dot_dimension_numbers<[1], [0], [0], [1], [0, 0, 1, 1], [], []>} : vector<25x32xf32>, vector<32x64xf32>, vector<25x64xf32> -> vector<25x64xf32>
    %334 = arith.addf %328, %333 : vector<25x64xf32>
    %c2_320 = arith.constant 2 : index
    %c6_321 = arith.constant 6 : index
    %c0_322 = arith.constant 0 : index
    %335 = vector.load %arg11[%c2_320, %c6_321, %c0_322] : memref<4x31x32xf32, #tpu.memory_space<vmem>>, vector<1x25x32xf32>
    %336 = vector.shape_cast %335 : vector<1x25x32xf32> to vector<25x32xf32>
    %c7_323 = arith.constant 7 : index
    %c0_324 = arith.constant 0 : index
    %c0_325 = arith.constant 0 : index
    %337 = vector.load %arg4[%c7_323, %c0_324, %c0_325] : memref<9x32x64xf32, #tpu.memory_space<vmem>>, vector<1x32x64xf32>
    %338 = vector.shape_cast %337 : vector<1x32x64xf32> to vector<32x64xf32>
    %cst_326 = arith.constant dense<0.000000e+00> : vector<25x64xf32>
    %339 = tpu.matmul %336, %338, %cst_326 {dimension_numbers = #tpu.dot_dimension_numbers<[1], [0], [0], [1], [0, 0, 1, 1], [], []>} : vector<25x32xf32>, vector<32x64xf32>, vector<25x64xf32> -> vector<25x64xf32>
    %340 = arith.addf %334, %339 : vector<25x64xf32>
    %c3_327 = arith.constant 3 : index
    %c6_328 = arith.constant 6 : index
    %c0_329 = arith.constant 0 : index
    %341 = vector.load %arg11[%c3_327, %c6_328, %c0_329] : memref<4x31x32xf32, #tpu.memory_space<vmem>>, vector<1x25x32xf32>
    %342 = vector.shape_cast %341 : vector<1x25x32xf32> to vector<25x32xf32>
    %c8_330 = arith.constant 8 : index
    %c0_331 = arith.constant 0 : index
    %c0_332 = arith.constant 0 : index
    %343 = vector.load %arg4[%c8_330, %c0_331, %c0_332] : memref<9x32x64xf32, #tpu.memory_space<vmem>>, vector<1x32x64xf32>
    %344 = vector.shape_cast %343 : vector<1x32x64xf32> to vector<32x64xf32>
    %cst_333 = arith.constant dense<0.000000e+00> : vector<25x64xf32>
    %345 = tpu.matmul %342, %344, %cst_333 {dimension_numbers = #tpu.dot_dimension_numbers<[1], [0], [0], [1], [0, 0, 1, 1], [], []>} : vector<25x32xf32>, vector<32x64xf32>, vector<25x64xf32> -> vector<25x64xf32>
    %346 = arith.addf %340, %345 : vector<25x64xf32>
    %c0_334 = arith.constant 0 : index
    %c0_335 = arith.constant 0 : index
    %347 = vector.load %arg5[%c0_334, %c0_335] : memref<1x64xf32, #tpu.memory_space<vmem>>, vector<1x64xf32>
    %348 = vector.broadcast %347 : vector<1x64xf32> to vector<25x64xf32>
    %349 = arith.addf %346, %348 : vector<25x64xf32>
    %cst_336 = arith.constant 0.000000e+00 : f32
    %350 = vector.broadcast %cst_336 : f32 to vector<25x64xf32>
    %351 = arith.maximumf %349, %350 : vector<25x64xf32>
    %cst_337 = arith.constant 0.000000e+00 : f32
    %352 = vector.shape_cast %17 : vector<25x1xi1> to vector<25x1xi1>
    %353 = vector.broadcast %352 : vector<25x1xi1> to vector<25x64xi1>
    %354 = vector.broadcast %cst_337 : f32 to vector<25x64xf32>
    %355 = arith.select %353, %351, %354 : vector<25x64xi1>, vector<25x64xf32>
    %c0_338 = arith.constant 0 : index
    %c0_339 = arith.constant 0 : index
    %356 = vector.load %arg12[%c0_338, %c0_339] : memref<31x64xf32, #tpu.memory_space<vmem>>, vector<25x64xf32>
    tpu.vector_store %arg12[%c0_338, %c0_339], %355 {strides = array<i32>} : memref<31x64xf32, #tpu.memory_space<vmem>>, vector<25x64xf32>,
    %cst_340 = arith.constant 0.000000e+00 : f32
    %357 = vector.broadcast %cst_340 : f32 to vector<25x32xf32>
    %c0_341 = arith.constant 0 : index
    %c0_342 = arith.constant 0 : index
    %358 = vector.load %arg12[%c0_341, %c0_342] : memref<31x64xf32, #tpu.memory_space<vmem>>, vector<25x64xf32>
    %c4_343 = arith.constant 4 : index
    %c0_344 = arith.constant 0 : index
    %c0_345 = arith.constant 0 : index
    %359 = vector.load %arg6[%c4_343, %c0_344, %c0_345] : memref<9x64x32xf32, #tpu.memory_space<vmem>>, vector<1x64x32xf32>
    %360 = vector.shape_cast %359 : vector<1x64x32xf32> to vector<64x32xf32>
    %cst_346 = arith.constant dense<0.000000e+00> : vector<25x32xf32>
    %361 = tpu.matmul %358, %360, %cst_346 {dimension_numbers = #tpu.dot_dimension_numbers<[1], [0], [0], [1], [0, 0, 1, 1], [], []>} : vector<25x64xf32>, vector<64x32xf32>, vector<25x32xf32> -> vector<25x32xf32>
    %362 = arith.addf %357, %361 : vector<25x32xf32>
    %c0_347 = arith.constant 0 : index
    %c0_348 = arith.constant 0 : index
    %363 = vector.load %arg7[%c0_347, %c0_348] : memref<1x32xf32, #tpu.memory_space<vmem>>, vector<1x32xf32>
    %364 = vector.broadcast %363 : vector<1x32xf32> to vector<25x32xf32>
    %365 = arith.addf %362, %364 : vector<25x32xf32>
    %cst_349 = arith.constant 0.000000e+00 : f32
    %366 = vector.broadcast %cst_349 : f32 to vector<25x32xf32>
    %367 = arith.maximumf %365, %366 : vector<25x32xf32>
    %cst_350 = arith.constant 0.000000e+00 : f32
    %368 = vector.shape_cast %17 : vector<25x1xi1> to vector<25x1xi1>
    %369 = vector.broadcast %368 : vector<25x1xi1> to vector<25x32xi1>
    %370 = vector.broadcast %cst_350 : f32 to vector<25x32xf32>
    %371 = arith.select %369, %367, %370 : vector<25x32xi1>, vector<25x32xf32>
    %c0_351 = arith.constant 0 : index
    %c0_352 = arith.constant 0 : index
    %c0_353 = arith.constant 0 : index
    %372 = vector.load %arg13[%c0_351, %c0_352, %c0_353] : memref<4x31x32xf32, #tpu.memory_space<vmem>>, vector<1x25x32xf32>
    %373 = vector.shape_cast %372 : vector<1x25x32xf32> to vector<25x32xf32>
    %374 = vector.shape_cast %371 : vector<25x32xf32> to vector<1x25x32xf32>
    tpu.vector_store %arg13[%c0_351, %c0_352, %c0_353], %374 {strides = array<i32>} : memref<4x31x32xf32, #tpu.memory_space<vmem>>, vector<1x25x32xf32>,
    %cst_354 = arith.constant 0.000000e+00 : f32
    %375 = vector.broadcast %cst_354 : f32 to vector<25x32xf32>
    %c1_355 = arith.constant 1 : index
    %c0_356 = arith.constant 0 : index
    %376 = vector.load %arg12[%c1_355, %c0_356] : memref<31x64xf32, #tpu.memory_space<vmem>>, vector<25x64xf32>
    %c3_357 = arith.constant 3 : index
    %c0_358 = arith.constant 0 : index
    %c0_359 = arith.constant 0 : index
    %377 = vector.load %arg6[%c3_357, %c0_358, %c0_359] : memref<9x64x32xf32, #tpu.memory_space<vmem>>, vector<1x64x32xf32>
    %378 = vector.shape_cast %377 : vector<1x64x32xf32> to vector<64x32xf32>
    %cst_360 = arith.constant dense<0.000000e+00> : vector<25x32xf32>
    %379 = tpu.matmul %376, %378, %cst_360 {dimension_numbers = #tpu.dot_dimension_numbers<[1], [0], [0], [1], [0, 0, 1, 1], [], []>} : vector<25x64xf32>, vector<64x32xf32>, vector<25x32xf32> -> vector<25x32xf32>
    %380 = arith.addf %375, %379 : vector<25x32xf32>
    %c0_361 = arith.constant 0 : index
    %c0_362 = arith.constant 0 : index
    %381 = vector.load %arg12[%c0_361, %c0_362] : memref<31x64xf32, #tpu.memory_space<vmem>>, vector<25x64xf32>
    %c5_363 = arith.constant 5 : index
    %c0_364 = arith.constant 0 : index
    %c0_365 = arith.constant 0 : index
    %382 = vector.load %arg6[%c5_363, %c0_364, %c0_365] : memref<9x64x32xf32, #tpu.memory_space<vmem>>, vector<1x64x32xf32>
    %383 = vector.shape_cast %382 : vector<1x64x32xf32> to vector<64x32xf32>
    %cst_366 = arith.constant dense<0.000000e+00> : vector<25x32xf32>
    %384 = tpu.matmul %381, %383, %cst_366 {dimension_numbers = #tpu.dot_dimension_numbers<[1], [0], [0], [1], [0, 0, 1, 1], [], []>} : vector<25x64xf32>, vector<64x32xf32>, vector<25x32xf32> -> vector<25x32xf32>
    %385 = arith.addf %380, %384 : vector<25x32xf32>
    %c0_367 = arith.constant 0 : index
    %c0_368 = arith.constant 0 : index
    %386 = vector.load %arg7[%c0_367, %c0_368] : memref<1x32xf32, #tpu.memory_space<vmem>>, vector<1x32xf32>
    %387 = vector.broadcast %386 : vector<1x32xf32> to vector<25x32xf32>
    %388 = arith.addf %385, %387 : vector<25x32xf32>
    %cst_369 = arith.constant 0.000000e+00 : f32
    %389 = vector.broadcast %cst_369 : f32 to vector<25x32xf32>
    %390 = arith.maximumf %388, %389 : vector<25x32xf32>
    %cst_370 = arith.constant 0.000000e+00 : f32
    %391 = vector.shape_cast %17 : vector<25x1xi1> to vector<25x1xi1>
    %392 = vector.broadcast %391 : vector<25x1xi1> to vector<25x32xi1>
    %393 = vector.broadcast %cst_370 : f32 to vector<25x32xf32>
    %394 = arith.select %392, %390, %393 : vector<25x32xi1>, vector<25x32xf32>
    %c1_371 = arith.constant 1 : index
    %c0_372 = arith.constant 0 : index
    %c0_373 = arith.constant 0 : index
    %395 = vector.load %arg13[%c1_371, %c0_372, %c0_373] : memref<4x31x32xf32, #tpu.memory_space<vmem>>, vector<1x25x32xf32>
    %396 = vector.shape_cast %395 : vector<1x25x32xf32> to vector<25x32xf32>
    %397 = vector.shape_cast %394 : vector<25x32xf32> to vector<1x25x32xf32>
    tpu.vector_store %arg13[%c1_371, %c0_372, %c0_373], %397 {strides = array<i32>} : memref<4x31x32xf32, #tpu.memory_space<vmem>>, vector<1x25x32xf32>,
    %cst_374 = arith.constant 0.000000e+00 : f32
    %398 = vector.broadcast %cst_374 : f32 to vector<25x32xf32>
    %c5_375 = arith.constant 5 : index
    %c0_376 = arith.constant 0 : index
    %399 = vector.load %arg12[%c5_375, %c0_376] : memref<31x64xf32, #tpu.memory_space<vmem>>, vector<25x64xf32>
    %c1_377 = arith.constant 1 : index
    %c0_378 = arith.constant 0 : index
    %c0_379 = arith.constant 0 : index
    %400 = vector.load %arg6[%c1_377, %c0_378, %c0_379] : memref<9x64x32xf32, #tpu.memory_space<vmem>>, vector<1x64x32xf32>
    %401 = vector.shape_cast %400 : vector<1x64x32xf32> to vector<64x32xf32>
    %cst_380 = arith.constant dense<0.000000e+00> : vector<25x32xf32>
    %402 = tpu.matmul %399, %401, %cst_380 {dimension_numbers = #tpu.dot_dimension_numbers<[1], [0], [0], [1], [0, 0, 1, 1], [], []>} : vector<25x64xf32>, vector<64x32xf32>, vector<25x32xf32> -> vector<25x32xf32>
    %403 = arith.addf %398, %402 : vector<25x32xf32>
    %c0_381 = arith.constant 0 : index
    %c0_382 = arith.constant 0 : index
    %404 = vector.load %arg12[%c0_381, %c0_382] : memref<31x64xf32, #tpu.memory_space<vmem>>, vector<25x64xf32>
    %c7_383 = arith.constant 7 : index
    %c0_384 = arith.constant 0 : index
    %c0_385 = arith.constant 0 : index
    %405 = vector.load %arg6[%c7_383, %c0_384, %c0_385] : memref<9x64x32xf32, #tpu.memory_space<vmem>>, vector<1x64x32xf32>
    %406 = vector.shape_cast %405 : vector<1x64x32xf32> to vector<64x32xf32>
    %cst_386 = arith.constant dense<0.000000e+00> : vector<25x32xf32>
    %407 = tpu.matmul %404, %406, %cst_386 {dimension_numbers = #tpu.dot_dimension_numbers<[1], [0], [0], [1], [0, 0, 1, 1], [], []>} : vector<25x64xf32>, vector<64x32xf32>, vector<25x32xf32> -> vector<25x32xf32>
    %408 = arith.addf %403, %407 : vector<25x32xf32>
    %c0_387 = arith.constant 0 : index
    %c0_388 = arith.constant 0 : index
    %409 = vector.load %arg7[%c0_387, %c0_388] : memref<1x32xf32, #tpu.memory_space<vmem>>, vector<1x32xf32>
    %410 = vector.broadcast %409 : vector<1x32xf32> to vector<25x32xf32>
    %411 = arith.addf %408, %410 : vector<25x32xf32>
    %cst_389 = arith.constant 0.000000e+00 : f32
    %412 = vector.broadcast %cst_389 : f32 to vector<25x32xf32>
    %413 = arith.maximumf %411, %412 : vector<25x32xf32>
    %cst_390 = arith.constant 0.000000e+00 : f32
    %414 = vector.shape_cast %17 : vector<25x1xi1> to vector<25x1xi1>
    %415 = vector.broadcast %414 : vector<25x1xi1> to vector<25x32xi1>
    %416 = vector.broadcast %cst_390 : f32 to vector<25x32xf32>
    %417 = arith.select %415, %413, %416 : vector<25x32xi1>, vector<25x32xf32>
    %c2_391 = arith.constant 2 : index
    %c0_392 = arith.constant 0 : index
    %c0_393 = arith.constant 0 : index
    %418 = vector.load %arg13[%c2_391, %c0_392, %c0_393] : memref<4x31x32xf32, #tpu.memory_space<vmem>>, vector<1x25x32xf32>
    %419 = vector.shape_cast %418 : vector<1x25x32xf32> to vector<25x32xf32>
    %420 = vector.shape_cast %417 : vector<25x32xf32> to vector<1x25x32xf32>
    tpu.vector_store %arg13[%c2_391, %c0_392, %c0_393], %420 {strides = array<i32>} : memref<4x31x32xf32, #tpu.memory_space<vmem>>, vector<1x25x32xf32>,
    %cst_394 = arith.constant 0.000000e+00 : f32
    %421 = vector.broadcast %cst_394 : f32 to vector<25x32xf32>
    %c6_395 = arith.constant 6 : index
    %c0_396 = arith.constant 0 : index
    %422 = vector.load %arg12[%c6_395, %c0_396] : memref<31x64xf32, #tpu.memory_space<vmem>>, vector<25x64xf32>
    %c0_397 = arith.constant 0 : index
    %c0_398 = arith.constant 0 : index
    %c0_399 = arith.constant 0 : index
    %423 = vector.load %arg6[%c0_397, %c0_398, %c0_399] : memref<9x64x32xf32, #tpu.memory_space<vmem>>, vector<1x64x32xf32>
    %424 = vector.shape_cast %423 : vector<1x64x32xf32> to vector<64x32xf32>
    %cst_400 = arith.constant dense<0.000000e+00> : vector<25x32xf32>
    %425 = tpu.matmul %422, %424, %cst_400 {dimension_numbers = #tpu.dot_dimension_numbers<[1], [0], [0], [1], [0, 0, 1, 1], [], []>} : vector<25x64xf32>, vector<64x32xf32>, vector<25x32xf32> -> vector<25x32xf32>
    %426 = arith.addf %421, %425 : vector<25x32xf32>
    %c5_401 = arith.constant 5 : index
    %c0_402 = arith.constant 0 : index
    %427 = vector.load %arg12[%c5_401, %c0_402] : memref<31x64xf32, #tpu.memory_space<vmem>>, vector<25x64xf32>
    %c2_403 = arith.constant 2 : index
    %c0_404 = arith.constant 0 : index
    %c0_405 = arith.constant 0 : index
    %428 = vector.load %arg6[%c2_403, %c0_404, %c0_405] : memref<9x64x32xf32, #tpu.memory_space<vmem>>, vector<1x64x32xf32>
    %429 = vector.shape_cast %428 : vector<1x64x32xf32> to vector<64x32xf32>
    %cst_406 = arith.constant dense<0.000000e+00> : vector<25x32xf32>
    %430 = tpu.matmul %427, %429, %cst_406 {dimension_numbers = #tpu.dot_dimension_numbers<[1], [0], [0], [1], [0, 0, 1, 1], [], []>} : vector<25x64xf32>, vector<64x32xf32>, vector<25x32xf32> -> vector<25x32xf32>
    %431 = arith.addf %426, %430 : vector<25x32xf32>
    %c1_407 = arith.constant 1 : index
    %c0_408 = arith.constant 0 : index
    %432 = vector.load %arg12[%c1_407, %c0_408] : memref<31x64xf32, #tpu.memory_space<vmem>>, vector<25x64xf32>
    %c6_409 = arith.constant 6 : index
    %c0_410 = arith.constant 0 : index
    %c0_411 = arith.constant 0 : index
    %433 = vector.load %arg6[%c6_409, %c0_410, %c0_411] : memref<9x64x32xf32, #tpu.memory_space<vmem>>, vector<1x64x32xf32>
    %434 = vector.shape_cast %433 : vector<1x64x32xf32> to vector<64x32xf32>
    %cst_412 = arith.constant dense<0.000000e+00> : vector<25x32xf32>
    %435 = tpu.matmul %432, %434, %cst_412 {dimension_numbers = #tpu.dot_dimension_numbers<[1], [0], [0], [1], [0, 0, 1, 1], [], []>} : vector<25x64xf32>, vector<64x32xf32>, vector<25x32xf32> -> vector<25x32xf32>
    %436 = arith.addf %431, %435 : vector<25x32xf32>
    %c0_413 = arith.constant 0 : index
    %c0_414 = arith.constant 0 : index
    %437 = vector.load %arg12[%c0_413, %c0_414] : memref<31x64xf32, #tpu.memory_space<vmem>>, vector<25x64xf32>
    %c8_415 = arith.constant 8 : index
    %c0_416 = arith.constant 0 : index
    %c0_417 = arith.constant 0 : index
    %438 = vector.load %arg6[%c8_415, %c0_416, %c0_417] : memref<9x64x32xf32, #tpu.memory_space<vmem>>, vector<1x64x32xf32>
    %439 = vector.shape_cast %438 : vector<1x64x32xf32> to vector<64x32xf32>
    %cst_418 = arith.constant dense<0.000000e+00> : vector<25x32xf32>
    %440 = tpu.matmul %437, %439, %cst_418 {dimension_numbers = #tpu.dot_dimension_numbers<[1], [0], [0], [1], [0, 0, 1, 1], [], []>} : vector<25x64xf32>, vector<64x32xf32>, vector<25x32xf32> -> vector<25x32xf32>
    %441 = arith.addf %436, %440 : vector<25x32xf32>
    %c0_419 = arith.constant 0 : index
    %c0_420 = arith.constant 0 : index
    %442 = vector.load %arg7[%c0_419, %c0_420] : memref<1x32xf32, #tpu.memory_space<vmem>>, vector<1x32xf32>
    %443 = vector.broadcast %442 : vector<1x32xf32> to vector<25x32xf32>
    %444 = arith.addf %441, %443 : vector<25x32xf32>
    %cst_421 = arith.constant 0.000000e+00 : f32
    %445 = vector.broadcast %cst_421 : f32 to vector<25x32xf32>
    %446 = arith.maximumf %444, %445 : vector<25x32xf32>
    %cst_422 = arith.constant 0.000000e+00 : f32
    %447 = vector.shape_cast %17 : vector<25x1xi1> to vector<25x1xi1>
    %448 = vector.broadcast %447 : vector<25x1xi1> to vector<25x32xi1>
    %449 = vector.broadcast %cst_422 : f32 to vector<25x32xf32>
    %450 = arith.select %448, %446, %449 : vector<25x32xi1>, vector<25x32xf32>
    %c3_423 = arith.constant 3 : index
    %c0_424 = arith.constant 0 : index
    %c0_425 = arith.constant 0 : index
    %451 = vector.load %arg13[%c3_423, %c0_424, %c0_425] : memref<4x31x32xf32, #tpu.memory_space<vmem>>, vector<1x25x32xf32>
    %452 = vector.shape_cast %451 : vector<1x25x32xf32> to vector<25x32xf32>
    %453 = vector.shape_cast %450 : vector<25x32xf32> to vector<1x25x32xf32>
    tpu.vector_store %arg13[%c3_423, %c0_424, %c0_425], %453 {strides = array<i32>} : memref<4x31x32xf32, #tpu.memory_space<vmem>>, vector<1x25x32xf32>,
    %cst_426 = arith.constant 0.000000e+00 : f32
    %454 = vector.broadcast %cst_426 : f32 to vector<25x8xf32>
    %c0_427 = arith.constant 0 : index
    %c0_428 = arith.constant 0 : index
    %c0_429 = arith.constant 0 : index
    %455 = vector.load %arg13[%c0_427, %c0_428, %c0_429] : memref<4x31x32xf32, #tpu.memory_space<vmem>>, vector<1x25x32xf32>
    %456 = vector.shape_cast %455 : vector<1x25x32xf32> to vector<25x32xf32>
    %c4_430 = arith.constant 4 : index
    %c0_431 = arith.constant 0 : index
    %c0_432 = arith.constant 0 : index
    %457 = vector.load %arg8[%c4_430, %c0_431, %c0_432] : memref<9x32x8xf32, #tpu.memory_space<vmem>>, vector<1x32x8xf32>
    %458 = vector.shape_cast %457 : vector<1x32x8xf32> to vector<32x8xf32>
    %cst_433 = arith.constant dense<0.000000e+00> : vector<25x8xf32>
    %459 = tpu.matmul %456, %458, %cst_433 {dimension_numbers = #tpu.dot_dimension_numbers<[1], [0], [0], [1], [0, 0, 1, 1], [], []>} : vector<25x32xf32>, vector<32x8xf32>, vector<25x8xf32> -> vector<25x8xf32>
    %460 = arith.addf %454, %459 : vector<25x8xf32>
    %c0_434 = arith.constant 0 : index
    %c0_435 = arith.constant 0 : index
    %461 = vector.load %arg9[%c0_434, %c0_435] : memref<1x8xf32, #tpu.memory_space<vmem>>, vector<1x8xf32>
    %462 = vector.broadcast %461 : vector<1x8xf32> to vector<25x8xf32>
    %463 = arith.addf %460, %462 : vector<25x8xf32>
    %c0_436 = arith.constant 0 : index
    %c0_437 = arith.constant 0 : index
    %c0_438 = arith.constant 0 : index
    %c0_439 = arith.constant 0 : index
    %464 = vector.load %arg10[%c0_436, %c0_437, %c0_438, %c0_439] : memref<1x16x25x8xf32, #tpu.memory_space<vmem>>, vector<1x1x25x8xf32>
    %465 = vector.shape_cast %464 : vector<1x1x25x8xf32> to vector<25x8xf32>
    %466 = vector.shape_cast %463 : vector<25x8xf32> to vector<1x1x25x8xf32>
    tpu.vector_store %arg10[%c0_436, %c0_437, %c0_438, %c0_439], %466 {strides = array<i32>} : memref<1x16x25x8xf32, #tpu.memory_space<vmem>>, vector<1x1x25x8xf32>,
    %cst_440 = arith.constant 0.000000e+00 : f32
    %467 = vector.broadcast %cst_440 : f32 to vector<25x8xf32>
    %c1_441 = arith.constant 1 : index
    %c0_442 = arith.constant 0 : index
    %c0_443 = arith.constant 0 : index
    %468 = vector.load %arg13[%c1_441, %c0_442, %c0_443] : memref<4x31x32xf32, #tpu.memory_space<vmem>>, vector<1x25x32xf32>
    %469 = vector.shape_cast %468 : vector<1x25x32xf32> to vector<25x32xf32>
    %c4_444 = arith.constant 4 : index
    %c0_445 = arith.constant 0 : index
    %c0_446 = arith.constant 0 : index
    %470 = vector.load %arg8[%c4_444, %c0_445, %c0_446] : memref<9x32x8xf32, #tpu.memory_space<vmem>>, vector<1x32x8xf32>
    %471 = vector.shape_cast %470 : vector<1x32x8xf32> to vector<32x8xf32>
    %cst_447 = arith.constant dense<0.000000e+00> : vector<25x8xf32>
    %472 = tpu.matmul %469, %471, %cst_447 {dimension_numbers = #tpu.dot_dimension_numbers<[1], [0], [0], [1], [0, 0, 1, 1], [], []>} : vector<25x32xf32>, vector<32x8xf32>, vector<25x8xf32> -> vector<25x8xf32>
    %473 = arith.addf %467, %472 : vector<25x8xf32>
    %c0_448 = arith.constant 0 : index
    %c0_449 = arith.constant 0 : index
    %474 = vector.load %arg9[%c0_448, %c0_449] : memref<1x8xf32, #tpu.memory_space<vmem>>, vector<1x8xf32>
    %475 = vector.broadcast %474 : vector<1x8xf32> to vector<25x8xf32>
    %476 = arith.addf %473, %475 : vector<25x8xf32>
    %c0_450 = arith.constant 0 : index
    %c2_451 = arith.constant 2 : index
    %c0_452 = arith.constant 0 : index
    %c0_453 = arith.constant 0 : index
    %477 = vector.load %arg10[%c0_450, %c2_451, %c0_452, %c0_453] : memref<1x16x25x8xf32, #tpu.memory_space<vmem>>, vector<1x1x25x8xf32>
    %478 = vector.shape_cast %477 : vector<1x1x25x8xf32> to vector<25x8xf32>
    %479 = vector.shape_cast %476 : vector<25x8xf32> to vector<1x1x25x8xf32>
    tpu.vector_store %arg10[%c0_450, %c2_451, %c0_452, %c0_453], %479 {strides = array<i32>} : memref<1x16x25x8xf32, #tpu.memory_space<vmem>>, vector<1x1x25x8xf32>,
    %cst_454 = arith.constant 0.000000e+00 : f32
    %480 = vector.broadcast %cst_454 : f32 to vector<25x8xf32>
    %c2_455 = arith.constant 2 : index
    %c0_456 = arith.constant 0 : index
    %c0_457 = arith.constant 0 : index
    %481 = vector.load %arg13[%c2_455, %c0_456, %c0_457] : memref<4x31x32xf32, #tpu.memory_space<vmem>>, vector<1x25x32xf32>
    %482 = vector.shape_cast %481 : vector<1x25x32xf32> to vector<25x32xf32>
    %c4_458 = arith.constant 4 : index
    %c0_459 = arith.constant 0 : index
    %c0_460 = arith.constant 0 : index
    %483 = vector.load %arg8[%c4_458, %c0_459, %c0_460] : memref<9x32x8xf32, #tpu.memory_space<vmem>>, vector<1x32x8xf32>
    %484 = vector.shape_cast %483 : vector<1x32x8xf32> to vector<32x8xf32>
    %cst_461 = arith.constant dense<0.000000e+00> : vector<25x8xf32>
    %485 = tpu.matmul %482, %484, %cst_461 {dimension_numbers = #tpu.dot_dimension_numbers<[1], [0], [0], [1], [0, 0, 1, 1], [], []>} : vector<25x32xf32>, vector<32x8xf32>, vector<25x8xf32> -> vector<25x8xf32>
    %486 = arith.addf %480, %485 : vector<25x8xf32>
    %c0_462 = arith.constant 0 : index
    %c0_463 = arith.constant 0 : index
    %487 = vector.load %arg9[%c0_462, %c0_463] : memref<1x8xf32, #tpu.memory_space<vmem>>, vector<1x8xf32>
    %488 = vector.broadcast %487 : vector<1x8xf32> to vector<25x8xf32>
    %489 = arith.addf %486, %488 : vector<25x8xf32>
    %c0_464 = arith.constant 0 : index
    %c8_465 = arith.constant 8 : index
    %c0_466 = arith.constant 0 : index
    %c0_467 = arith.constant 0 : index
    %490 = vector.load %arg10[%c0_464, %c8_465, %c0_466, %c0_467] : memref<1x16x25x8xf32, #tpu.memory_space<vmem>>, vector<1x1x25x8xf32>
    %491 = vector.shape_cast %490 : vector<1x1x25x8xf32> to vector<25x8xf32>
    %492 = vector.shape_cast %489 : vector<25x8xf32> to vector<1x1x25x8xf32>
    tpu.vector_store %arg10[%c0_464, %c8_465, %c0_466, %c0_467], %492 {strides = array<i32>} : memref<1x16x25x8xf32, #tpu.memory_space<vmem>>, vector<1x1x25x8xf32>,
    %cst_468 = arith.constant 0.000000e+00 : f32
    %493 = vector.broadcast %cst_468 : f32 to vector<25x8xf32>
    %c3_469 = arith.constant 3 : index
    %c0_470 = arith.constant 0 : index
    %c0_471 = arith.constant 0 : index
    %494 = vector.load %arg13[%c3_469, %c0_470, %c0_471] : memref<4x31x32xf32, #tpu.memory_space<vmem>>, vector<1x25x32xf32>
    %495 = vector.shape_cast %494 : vector<1x25x32xf32> to vector<25x32xf32>
    %c4_472 = arith.constant 4 : index
    %c0_473 = arith.constant 0 : index
    %c0_474 = arith.constant 0 : index
    %496 = vector.load %arg8[%c4_472, %c0_473, %c0_474] : memref<9x32x8xf32, #tpu.memory_space<vmem>>, vector<1x32x8xf32>
    %497 = vector.shape_cast %496 : vector<1x32x8xf32> to vector<32x8xf32>
    %cst_475 = arith.constant dense<0.000000e+00> : vector<25x8xf32>
    %498 = tpu.matmul %495, %497, %cst_475 {dimension_numbers = #tpu.dot_dimension_numbers<[1], [0], [0], [1], [0, 0, 1, 1], [], []>} : vector<25x32xf32>, vector<32x8xf32>, vector<25x8xf32> -> vector<25x8xf32>
    %499 = arith.addf %493, %498 : vector<25x8xf32>
    %c0_476 = arith.constant 0 : index
    %c0_477 = arith.constant 0 : index
    %500 = vector.load %arg9[%c0_476, %c0_477] : memref<1x8xf32, #tpu.memory_space<vmem>>, vector<1x8xf32>
    %501 = vector.broadcast %500 : vector<1x8xf32> to vector<25x8xf32>
    %502 = arith.addf %499, %501 : vector<25x8xf32>
    %c0_478 = arith.constant 0 : index
    %c10 = arith.constant 10 : index
    %c0_479 = arith.constant 0 : index
    %c0_480 = arith.constant 0 : index
    %503 = vector.load %arg10[%c0_478, %c10, %c0_479, %c0_480] : memref<1x16x25x8xf32, #tpu.memory_space<vmem>>, vector<1x1x25x8xf32>
    %504 = vector.shape_cast %503 : vector<1x1x25x8xf32> to vector<25x8xf32>
    %505 = vector.shape_cast %502 : vector<25x8xf32> to vector<1x1x25x8xf32>
    tpu.vector_store %arg10[%c0_478, %c10, %c0_479, %c0_480], %505 {strides = array<i32>} : memref<1x16x25x8xf32, #tpu.memory_space<vmem>>, vector<1x1x25x8xf32>,
    %cst_481 = arith.constant 0.000000e+00 : f32
    %506 = vector.broadcast %cst_481 : f32 to vector<25x8xf32>
    %c1_482 = arith.constant 1 : index
    %c0_483 = arith.constant 0 : index
    %c0_484 = arith.constant 0 : index
    %507 = vector.load %arg13[%c1_482, %c0_483, %c0_484] : memref<4x31x32xf32, #tpu.memory_space<vmem>>, vector<1x25x32xf32>
    %508 = vector.shape_cast %507 : vector<1x25x32xf32> to vector<25x32xf32>
    %c3_485 = arith.constant 3 : index
    %c0_486 = arith.constant 0 : index
    %c0_487 = arith.constant 0 : index
    %509 = vector.load %arg8[%c3_485, %c0_486, %c0_487] : memref<9x32x8xf32, #tpu.memory_space<vmem>>, vector<1x32x8xf32>
    %510 = vector.shape_cast %509 : vector<1x32x8xf32> to vector<32x8xf32>
    %cst_488 = arith.constant dense<0.000000e+00> : vector<25x8xf32>
    %511 = tpu.matmul %508, %510, %cst_488 {dimension_numbers = #tpu.dot_dimension_numbers<[1], [0], [0], [1], [0, 0, 1, 1], [], []>} : vector<25x32xf32>, vector<32x8xf32>, vector<25x8xf32> -> vector<25x8xf32>
    %512 = arith.addf %506, %511 : vector<25x8xf32>
    %c0_489 = arith.constant 0 : index
    %c0_490 = arith.constant 0 : index
    %c0_491 = arith.constant 0 : index
    %513 = vector.load %arg13[%c0_489, %c0_490, %c0_491] : memref<4x31x32xf32, #tpu.memory_space<vmem>>, vector<1x25x32xf32>
    %514 = vector.shape_cast %513 : vector<1x25x32xf32> to vector<25x32xf32>
    %c5_492 = arith.constant 5 : index
    %c0_493 = arith.constant 0 : index
    %c0_494 = arith.constant 0 : index
    %515 = vector.load %arg8[%c5_492, %c0_493, %c0_494] : memref<9x32x8xf32, #tpu.memory_space<vmem>>, vector<1x32x8xf32>
    %516 = vector.shape_cast %515 : vector<1x32x8xf32> to vector<32x8xf32>
    %cst_495 = arith.constant dense<0.000000e+00> : vector<25x8xf32>
    %517 = tpu.matmul %514, %516, %cst_495 {dimension_numbers = #tpu.dot_dimension_numbers<[1], [0], [0], [1], [0, 0, 1, 1], [], []>} : vector<25x32xf32>, vector<32x8xf32>, vector<25x8xf32> -> vector<25x8xf32>
    %518 = arith.addf %512, %517 : vector<25x8xf32>
    %c0_496 = arith.constant 0 : index
    %c0_497 = arith.constant 0 : index
    %519 = vector.load %arg9[%c0_496, %c0_497] : memref<1x8xf32, #tpu.memory_space<vmem>>, vector<1x8xf32>
    %520 = vector.broadcast %519 : vector<1x8xf32> to vector<25x8xf32>
    %521 = arith.addf %518, %520 : vector<25x8xf32>
    %c0_498 = arith.constant 0 : index
    %c1_499 = arith.constant 1 : index
    %c0_500 = arith.constant 0 : index
    %c0_501 = arith.constant 0 : index
    %522 = vector.load %arg10[%c0_498, %c1_499, %c0_500, %c0_501] : memref<1x16x25x8xf32, #tpu.memory_space<vmem>>, vector<1x1x25x8xf32>
    %523 = vector.shape_cast %522 : vector<1x1x25x8xf32> to vector<25x8xf32>
    %524 = vector.shape_cast %521 : vector<25x8xf32> to vector<1x1x25x8xf32>
    tpu.vector_store %arg10[%c0_498, %c1_499, %c0_500, %c0_501], %524 {strides = array<i32>} : memref<1x16x25x8xf32, #tpu.memory_space<vmem>>, vector<1x1x25x8xf32>,
    %cst_502 = arith.constant 0.000000e+00 : f32
    %525 = vector.broadcast %cst_502 : f32 to vector<25x8xf32>
    %c0_503 = arith.constant 0 : index
    %c1_504 = arith.constant 1 : index
    %c0_505 = arith.constant 0 : index
    %526 = vector.load %arg13[%c0_503, %c1_504, %c0_505] : memref<4x31x32xf32, #tpu.memory_space<vmem>>, vector<1x25x32xf32>
    %527 = vector.shape_cast %526 : vector<1x25x32xf32> to vector<25x32xf32>
    %c3_506 = arith.constant 3 : index
    %c0_507 = arith.constant 0 : index
    %c0_508 = arith.constant 0 : index
    %528 = vector.load %arg8[%c3_506, %c0_507, %c0_508] : memref<9x32x8xf32, #tpu.memory_space<vmem>>, vector<1x32x8xf32>
    %529 = vector.shape_cast %528 : vector<1x32x8xf32> to vector<32x8xf32>
    %cst_509 = arith.constant dense<0.000000e+00> : vector<25x8xf32>
    %530 = tpu.matmul %527, %529, %cst_509 {dimension_numbers = #tpu.dot_dimension_numbers<[1], [0], [0], [1], [0, 0, 1, 1], [], []>} : vector<25x32xf32>, vector<32x8xf32>, vector<25x8xf32> -> vector<25x8xf32>
    %531 = arith.addf %525, %530 : vector<25x8xf32>
    %c1_510 = arith.constant 1 : index
    %c0_511 = arith.constant 0 : index
    %c0_512 = arith.constant 0 : index
    %532 = vector.load %arg13[%c1_510, %c0_511, %c0_512] : memref<4x31x32xf32, #tpu.memory_space<vmem>>, vector<1x25x32xf32>
    %533 = vector.shape_cast %532 : vector<1x25x32xf32> to vector<25x32xf32>
    %c5_513 = arith.constant 5 : index
    %c0_514 = arith.constant 0 : index
    %c0_515 = arith.constant 0 : index
    %534 = vector.load %arg8[%c5_513, %c0_514, %c0_515] : memref<9x32x8xf32, #tpu.memory_space<vmem>>, vector<1x32x8xf32>
    %535 = vector.shape_cast %534 : vector<1x32x8xf32> to vector<32x8xf32>
    %cst_516 = arith.constant dense<0.000000e+00> : vector<25x8xf32>
    %536 = tpu.matmul %533, %535, %cst_516 {dimension_numbers = #tpu.dot_dimension_numbers<[1], [0], [0], [1], [0, 0, 1, 1], [], []>} : vector<25x32xf32>, vector<32x8xf32>, vector<25x8xf32> -> vector<25x8xf32>
    %537 = arith.addf %531, %536 : vector<25x8xf32>
    %c0_517 = arith.constant 0 : index
    %c0_518 = arith.constant 0 : index
    %538 = vector.load %arg9[%c0_517, %c0_518] : memref<1x8xf32, #tpu.memory_space<vmem>>, vector<1x8xf32>
    %539 = vector.broadcast %538 : vector<1x8xf32> to vector<25x8xf32>
    %540 = arith.addf %537, %539 : vector<25x8xf32>
    %c0_519 = arith.constant 0 : index
    %c3_520 = arith.constant 3 : index
    %c0_521 = arith.constant 0 : index
    %c0_522 = arith.constant 0 : index
    %541 = vector.load %arg10[%c0_519, %c3_520, %c0_521, %c0_522] : memref<1x16x25x8xf32, #tpu.memory_space<vmem>>, vector<1x1x25x8xf32>
    %542 = vector.shape_cast %541 : vector<1x1x25x8xf32> to vector<25x8xf32>
    %543 = vector.shape_cast %540 : vector<25x8xf32> to vector<1x1x25x8xf32>
    tpu.vector_store %arg10[%c0_519, %c3_520, %c0_521, %c0_522], %543 {strides = array<i32>} : memref<1x16x25x8xf32, #tpu.memory_space<vmem>>, vector<1x1x25x8xf32>,
    %cst_523 = arith.constant 0.000000e+00 : f32
    %544 = vector.broadcast %cst_523 : f32 to vector<25x8xf32>
    %c3_524 = arith.constant 3 : index
    %c0_525 = arith.constant 0 : index
    %c0_526 = arith.constant 0 : index
    %545 = vector.load %arg13[%c3_524, %c0_525, %c0_526] : memref<4x31x32xf32, #tpu.memory_space<vmem>>, vector<1x25x32xf32>
    %546 = vector.shape_cast %545 : vector<1x25x32xf32> to vector<25x32xf32>
    %c3_527 = arith.constant 3 : index
    %c0_528 = arith.constant 0 : index
    %c0_529 = arith.constant 0 : index
    %547 = vector.load %arg8[%c3_527, %c0_528, %c0_529] : memref<9x32x8xf32, #tpu.memory_space<vmem>>, vector<1x32x8xf32>
    %548 = vector.shape_cast %547 : vector<1x32x8xf32> to vector<32x8xf32>
    %cst_530 = arith.constant dense<0.000000e+00> : vector<25x8xf32>
    %549 = tpu.matmul %546, %548, %cst_530 {dimension_numbers = #tpu.dot_dimension_numbers<[1], [0], [0], [1], [0, 0, 1, 1], [], []>} : vector<25x32xf32>, vector<32x8xf32>, vector<25x8xf32> -> vector<25x8xf32>
    %550 = arith.addf %544, %549 : vector<25x8xf32>
    %c2_531 = arith.constant 2 : index
    %c0_532 = arith.constant 0 : index
    %c0_533 = arith.constant 0 : index
    %551 = vector.load %arg13[%c2_531, %c0_532, %c0_533] : memref<4x31x32xf32, #tpu.memory_space<vmem>>, vector<1x25x32xf32>
    %552 = vector.shape_cast %551 : vector<1x25x32xf32> to vector<25x32xf32>
    %c5_534 = arith.constant 5 : index
    %c0_535 = arith.constant 0 : index
    %c0_536 = arith.constant 0 : index
    %553 = vector.load %arg8[%c5_534, %c0_535, %c0_536] : memref<9x32x8xf32, #tpu.memory_space<vmem>>, vector<1x32x8xf32>
    %554 = vector.shape_cast %553 : vector<1x32x8xf32> to vector<32x8xf32>
    %cst_537 = arith.constant dense<0.000000e+00> : vector<25x8xf32>
    %555 = tpu.matmul %552, %554, %cst_537 {dimension_numbers = #tpu.dot_dimension_numbers<[1], [0], [0], [1], [0, 0, 1, 1], [], []>} : vector<25x32xf32>, vector<32x8xf32>, vector<25x8xf32> -> vector<25x8xf32>
    %556 = arith.addf %550, %555 : vector<25x8xf32>
    %c0_538 = arith.constant 0 : index
    %c0_539 = arith.constant 0 : index
    %557 = vector.load %arg9[%c0_538, %c0_539] : memref<1x8xf32, #tpu.memory_space<vmem>>, vector<1x8xf32>
    %558 = vector.broadcast %557 : vector<1x8xf32> to vector<25x8xf32>
    %559 = arith.addf %556, %558 : vector<25x8xf32>
    %c0_540 = arith.constant 0 : index
    %c9 = arith.constant 9 : index
    %c0_541 = arith.constant 0 : index
    %c0_542 = arith.constant 0 : index
    %560 = vector.load %arg10[%c0_540, %c9, %c0_541, %c0_542] : memref<1x16x25x8xf32, #tpu.memory_space<vmem>>, vector<1x1x25x8xf32>
    %561 = vector.shape_cast %560 : vector<1x1x25x8xf32> to vector<25x8xf32>
    %562 = vector.shape_cast %559 : vector<25x8xf32> to vector<1x1x25x8xf32>
    tpu.vector_store %arg10[%c0_540, %c9, %c0_541, %c0_542], %562 {strides = array<i32>} : memref<1x16x25x8xf32, #tpu.memory_space<vmem>>, vector<1x1x25x8xf32>,
    %cst_543 = arith.constant 0.000000e+00 : f32
    %563 = vector.broadcast %cst_543 : f32 to vector<25x8xf32>
    %c2_544 = arith.constant 2 : index
    %c1_545 = arith.constant 1 : index
    %c0_546 = arith.constant 0 : index
    %564 = vector.load %arg13[%c2_544, %c1_545, %c0_546] : memref<4x31x32xf32, #tpu.memory_space<vmem>>, vector<1x25x32xf32>
    %565 = vector.shape_cast %564 : vector<1x25x32xf32> to vector<25x32xf32>
    %c3_547 = arith.constant 3 : index
    %c0_548 = arith.constant 0 : index
    %c0_549 = arith.constant 0 : index
    %566 = vector.load %arg8[%c3_547, %c0_548, %c0_549] : memref<9x32x8xf32, #tpu.memory_space<vmem>>, vector<1x32x8xf32>
    %567 = vector.shape_cast %566 : vector<1x32x8xf32> to vector<32x8xf32>
    %cst_550 = arith.constant dense<0.000000e+00> : vector<25x8xf32>
    %568 = tpu.matmul %565, %567, %cst_550 {dimension_numbers = #tpu.dot_dimension_numbers<[1], [0], [0], [1], [0, 0, 1, 1], [], []>} : vector<25x32xf32>, vector<32x8xf32>, vector<25x8xf32> -> vector<25x8xf32>
    %569 = arith.addf %563, %568 : vector<25x8xf32>
    %c3_551 = arith.constant 3 : index
    %c0_552 = arith.constant 0 : index
    %c0_553 = arith.constant 0 : index
    %570 = vector.load %arg13[%c3_551, %c0_552, %c0_553] : memref<4x31x32xf32, #tpu.memory_space<vmem>>, vector<1x25x32xf32>
    %571 = vector.shape_cast %570 : vector<1x25x32xf32> to vector<25x32xf32>
    %c5_554 = arith.constant 5 : index
    %c0_555 = arith.constant 0 : index
    %c0_556 = arith.constant 0 : index
    %572 = vector.load %arg8[%c5_554, %c0_555, %c0_556] : memref<9x32x8xf32, #tpu.memory_space<vmem>>, vector<1x32x8xf32>
    %573 = vector.shape_cast %572 : vector<1x32x8xf32> to vector<32x8xf32>
    %cst_557 = arith.constant dense<0.000000e+00> : vector<25x8xf32>
    %574 = tpu.matmul %571, %573, %cst_557 {dimension_numbers = #tpu.dot_dimension_numbers<[1], [0], [0], [1], [0, 0, 1, 1], [], []>} : vector<25x32xf32>, vector<32x8xf32>, vector<25x8xf32> -> vector<25x8xf32>
    %575 = arith.addf %569, %574 : vector<25x8xf32>
    %c0_558 = arith.constant 0 : index
    %c0_559 = arith.constant 0 : index
    %576 = vector.load %arg9[%c0_558, %c0_559] : memref<1x8xf32, #tpu.memory_space<vmem>>, vector<1x8xf32>
    %577 = vector.broadcast %576 : vector<1x8xf32> to vector<25x8xf32>
    %578 = arith.addf %575, %577 : vector<25x8xf32>
    %c0_560 = arith.constant 0 : index
    %c11 = arith.constant 11 : index
    %c0_561 = arith.constant 0 : index
    %c0_562 = arith.constant 0 : index
    %579 = vector.load %arg10[%c0_560, %c11, %c0_561, %c0_562] : memref<1x16x25x8xf32, #tpu.memory_space<vmem>>, vector<1x1x25x8xf32>
    %580 = vector.shape_cast %579 : vector<1x1x25x8xf32> to vector<25x8xf32>
    %581 = vector.shape_cast %578 : vector<25x8xf32> to vector<1x1x25x8xf32>
    tpu.vector_store %arg10[%c0_560, %c11, %c0_561, %c0_562], %581 {strides = array<i32>} : memref<1x16x25x8xf32, #tpu.memory_space<vmem>>, vector<1x1x25x8xf32>,
    %cst_563 = arith.constant 0.000000e+00 : f32
    %582 = vector.broadcast %cst_563 : f32 to vector<25x8xf32>
    %c2_564 = arith.constant 2 : index
    %c0_565 = arith.constant 0 : index
    %c0_566 = arith.constant 0 : index
    %583 = vector.load %arg13[%c2_564, %c0_565, %c0_566] : memref<4x31x32xf32, #tpu.memory_space<vmem>>, vector<1x25x32xf32>
    %584 = vector.shape_cast %583 : vector<1x25x32xf32> to vector<25x32xf32>
    %c1_567 = arith.constant 1 : index
    %c0_568 = arith.constant 0 : index
    %c0_569 = arith.constant 0 : index
    %585 = vector.load %arg8[%c1_567, %c0_568, %c0_569] : memref<9x32x8xf32, #tpu.memory_space<vmem>>, vector<1x32x8xf32>
    %586 = vector.shape_cast %585 : vector<1x32x8xf32> to vector<32x8xf32>
    %cst_570 = arith.constant dense<0.000000e+00> : vector<25x8xf32>
    %587 = tpu.matmul %584, %586, %cst_570 {dimension_numbers = #tpu.dot_dimension_numbers<[1], [0], [0], [1], [0, 0, 1, 1], [], []>} : vector<25x32xf32>, vector<32x8xf32>, vector<25x8xf32> -> vector<25x8xf32>
    %588 = arith.addf %582, %587 : vector<25x8xf32>
    %c0_571 = arith.constant 0 : index
    %c0_572 = arith.constant 0 : index
    %c0_573 = arith.constant 0 : index
    %589 = vector.load %arg13[%c0_571, %c0_572, %c0_573] : memref<4x31x32xf32, #tpu.memory_space<vmem>>, vector<1x25x32xf32>
    %590 = vector.shape_cast %589 : vector<1x25x32xf32> to vector<25x32xf32>
    %c7_574 = arith.constant 7 : index
    %c0_575 = arith.constant 0 : index
    %c0_576 = arith.constant 0 : index
    %591 = vector.load %arg8[%c7_574, %c0_575, %c0_576] : memref<9x32x8xf32, #tpu.memory_space<vmem>>, vector<1x32x8xf32>
    %592 = vector.shape_cast %591 : vector<1x32x8xf32> to vector<32x8xf32>
    %cst_577 = arith.constant dense<0.000000e+00> : vector<25x8xf32>
    %593 = tpu.matmul %590, %592, %cst_577 {dimension_numbers = #tpu.dot_dimension_numbers<[1], [0], [0], [1], [0, 0, 1, 1], [], []>} : vector<25x32xf32>, vector<32x8xf32>, vector<25x8xf32> -> vector<25x8xf32>
    %594 = arith.addf %588, %593 : vector<25x8xf32>
    %c0_578 = arith.constant 0 : index
    %c0_579 = arith.constant 0 : index
    %595 = vector.load %arg9[%c0_578, %c0_579] : memref<1x8xf32, #tpu.memory_space<vmem>>, vector<1x8xf32>
    %596 = vector.broadcast %595 : vector<1x8xf32> to vector<25x8xf32>
    %597 = arith.addf %594, %596 : vector<25x8xf32>
    %c0_580 = arith.constant 0 : index
    %c4_581 = arith.constant 4 : index
    %c0_582 = arith.constant 0 : index
    %c0_583 = arith.constant 0 : index
    %598 = vector.load %arg10[%c0_580, %c4_581, %c0_582, %c0_583] : memref<1x16x25x8xf32, #tpu.memory_space<vmem>>, vector<1x1x25x8xf32>
    %599 = vector.shape_cast %598 : vector<1x1x25x8xf32> to vector<25x8xf32>
    %600 = vector.shape_cast %597 : vector<25x8xf32> to vector<1x1x25x8xf32>
    tpu.vector_store %arg10[%c0_580, %c4_581, %c0_582, %c0_583], %600 {strides = array<i32>} : memref<1x16x25x8xf32, #tpu.memory_space<vmem>>, vector<1x1x25x8xf32>,
    %cst_584 = arith.constant 0.000000e+00 : f32
    %601 = vector.broadcast %cst_584 : f32 to vector<25x8xf32>
    %c3_585 = arith.constant 3 : index
    %c0_586 = arith.constant 0 : index
    %c0_587 = arith.constant 0 : index
    %602 = vector.load %arg13[%c3_585, %c0_586, %c0_587] : memref<4x31x32xf32, #tpu.memory_space<vmem>>, vector<1x25x32xf32>
    %603 = vector.shape_cast %602 : vector<1x25x32xf32> to vector<25x32xf32>
    %c1_588 = arith.constant 1 : index
    %c0_589 = arith.constant 0 : index
    %c0_590 = arith.constant 0 : index
    %604 = vector.load %arg8[%c1_588, %c0_589, %c0_590] : memref<9x32x8xf32, #tpu.memory_space<vmem>>, vector<1x32x8xf32>
    %605 = vector.shape_cast %604 : vector<1x32x8xf32> to vector<32x8xf32>
    %cst_591 = arith.constant dense<0.000000e+00> : vector<25x8xf32>
    %606 = tpu.matmul %603, %605, %cst_591 {dimension_numbers = #tpu.dot_dimension_numbers<[1], [0], [0], [1], [0, 0, 1, 1], [], []>} : vector<25x32xf32>, vector<32x8xf32>, vector<25x8xf32> -> vector<25x8xf32>
    %607 = arith.addf %601, %606 : vector<25x8xf32>
    %c1_592 = arith.constant 1 : index
    %c0_593 = arith.constant 0 : index
    %c0_594 = arith.constant 0 : index
    %608 = vector.load %arg13[%c1_592, %c0_593, %c0_594] : memref<4x31x32xf32, #tpu.memory_space<vmem>>, vector<1x25x32xf32>
    %609 = vector.shape_cast %608 : vector<1x25x32xf32> to vector<25x32xf32>
    %c7_595 = arith.constant 7 : index
    %c0_596 = arith.constant 0 : index
    %c0_597 = arith.constant 0 : index
    %610 = vector.load %arg8[%c7_595, %c0_596, %c0_597] : memref<9x32x8xf32, #tpu.memory_space<vmem>>, vector<1x32x8xf32>
    %611 = vector.shape_cast %610 : vector<1x32x8xf32> to vector<32x8xf32>
    %cst_598 = arith.constant dense<0.000000e+00> : vector<25x8xf32>
    %612 = tpu.matmul %609, %611, %cst_598 {dimension_numbers = #tpu.dot_dimension_numbers<[1], [0], [0], [1], [0, 0, 1, 1], [], []>} : vector<25x32xf32>, vector<32x8xf32>, vector<25x8xf32> -> vector<25x8xf32>
    %613 = arith.addf %607, %612 : vector<25x8xf32>
    %c0_599 = arith.constant 0 : index
    %c0_600 = arith.constant 0 : index
    %614 = vector.load %arg9[%c0_599, %c0_600] : memref<1x8xf32, #tpu.memory_space<vmem>>, vector<1x8xf32>
    %615 = vector.broadcast %614 : vector<1x8xf32> to vector<25x8xf32>
    %616 = arith.addf %613, %615 : vector<25x8xf32>
    %c0_601 = arith.constant 0 : index
    %c6_602 = arith.constant 6 : index
    %c0_603 = arith.constant 0 : index
    %c0_604 = arith.constant 0 : index
    %617 = vector.load %arg10[%c0_601, %c6_602, %c0_603, %c0_604] : memref<1x16x25x8xf32, #tpu.memory_space<vmem>>, vector<1x1x25x8xf32>
    %618 = vector.shape_cast %617 : vector<1x1x25x8xf32> to vector<25x8xf32>
    %619 = vector.shape_cast %616 : vector<25x8xf32> to vector<1x1x25x8xf32>
    tpu.vector_store %arg10[%c0_601, %c6_602, %c0_603, %c0_604], %619 {strides = array<i32>} : memref<1x16x25x8xf32, #tpu.memory_space<vmem>>, vector<1x1x25x8xf32>,
    %cst_605 = arith.constant 0.000000e+00 : f32
    %620 = vector.broadcast %cst_605 : f32 to vector<25x8xf32>
    %c0_606 = arith.constant 0 : index
    %c5_607 = arith.constant 5 : index
    %c0_608 = arith.constant 0 : index
    %621 = vector.load %arg13[%c0_606, %c5_607, %c0_608] : memref<4x31x32xf32, #tpu.memory_space<vmem>>, vector<1x25x32xf32>
    %622 = vector.shape_cast %621 : vector<1x25x32xf32> to vector<25x32xf32>
    %c1_609 = arith.constant 1 : index
    %c0_610 = arith.constant 0 : index
    %c0_611 = arith.constant 0 : index
    %623 = vector.load %arg8[%c1_609, %c0_610, %c0_611] : memref<9x32x8xf32, #tpu.memory_space<vmem>>, vector<1x32x8xf32>
    %624 = vector.shape_cast %623 : vector<1x32x8xf32> to vector<32x8xf32>
    %cst_612 = arith.constant dense<0.000000e+00> : vector<25x8xf32>
    %625 = tpu.matmul %622, %624, %cst_612 {dimension_numbers = #tpu.dot_dimension_numbers<[1], [0], [0], [1], [0, 0, 1, 1], [], []>} : vector<25x32xf32>, vector<32x8xf32>, vector<25x8xf32> -> vector<25x8xf32>
    %626 = arith.addf %620, %625 : vector<25x8xf32>
    %c2_613 = arith.constant 2 : index
    %c0_614 = arith.constant 0 : index
    %c0_615 = arith.constant 0 : index
    %627 = vector.load %arg13[%c2_613, %c0_614, %c0_615] : memref<4x31x32xf32, #tpu.memory_space<vmem>>, vector<1x25x32xf32>
    %628 = vector.shape_cast %627 : vector<1x25x32xf32> to vector<25x32xf32>
    %c7_616 = arith.constant 7 : index
    %c0_617 = arith.constant 0 : index
    %c0_618 = arith.constant 0 : index
    %629 = vector.load %arg8[%c7_616, %c0_617, %c0_618] : memref<9x32x8xf32, #tpu.memory_space<vmem>>, vector<1x32x8xf32>
    %630 = vector.shape_cast %629 : vector<1x32x8xf32> to vector<32x8xf32>
    %cst_619 = arith.constant dense<0.000000e+00> : vector<25x8xf32>
    %631 = tpu.matmul %628, %630, %cst_619 {dimension_numbers = #tpu.dot_dimension_numbers<[1], [0], [0], [1], [0, 0, 1, 1], [], []>} : vector<25x32xf32>, vector<32x8xf32>, vector<25x8xf32> -> vector<25x8xf32>
    %632 = arith.addf %626, %631 : vector<25x8xf32>
    %c0_620 = arith.constant 0 : index
    %c0_621 = arith.constant 0 : index
    %633 = vector.load %arg9[%c0_620, %c0_621] : memref<1x8xf32, #tpu.memory_space<vmem>>, vector<1x8xf32>
    %634 = vector.broadcast %633 : vector<1x8xf32> to vector<25x8xf32>
    %635 = arith.addf %632, %634 : vector<25x8xf32>
    %c0_622 = arith.constant 0 : index
    %c12 = arith.constant 12 : index
    %c0_623 = arith.constant 0 : index
    %c0_624 = arith.constant 0 : index
    %636 = vector.load %arg10[%c0_622, %c12, %c0_623, %c0_624] : memref<1x16x25x8xf32, #tpu.memory_space<vmem>>, vector<1x1x25x8xf32>
    %637 = vector.shape_cast %636 : vector<1x1x25x8xf32> to vector<25x8xf32>
    %638 = vector.shape_cast %635 : vector<25x8xf32> to vector<1x1x25x8xf32>
    tpu.vector_store %arg10[%c0_622, %c12, %c0_623, %c0_624], %638 {strides = array<i32>} : memref<1x16x25x8xf32, #tpu.memory_space<vmem>>, vector<1x1x25x8xf32>,
    %cst_625 = arith.constant 0.000000e+00 : f32
    %639 = vector.broadcast %cst_625 : f32 to vector<25x8xf32>
    %c1_626 = arith.constant 1 : index
    %c5_627 = arith.constant 5 : index
    %c0_628 = arith.constant 0 : index
    %640 = vector.load %arg13[%c1_626, %c5_627, %c0_628] : memref<4x31x32xf32, #tpu.memory_space<vmem>>, vector<1x25x32xf32>
    %641 = vector.shape_cast %640 : vector<1x25x32xf32> to vector<25x32xf32>
    %c1_629 = arith.constant 1 : index
    %c0_630 = arith.constant 0 : index
    %c0_631 = arith.constant 0 : index
    %642 = vector.load %arg8[%c1_629, %c0_630, %c0_631] : memref<9x32x8xf32, #tpu.memory_space<vmem>>, vector<1x32x8xf32>
    %643 = vector.shape_cast %642 : vector<1x32x8xf32> to vector<32x8xf32>
    %cst_632 = arith.constant dense<0.000000e+00> : vector<25x8xf32>
    %644 = tpu.matmul %641, %643, %cst_632 {dimension_numbers = #tpu.dot_dimension_numbers<[1], [0], [0], [1], [0, 0, 1, 1], [], []>} : vector<25x32xf32>, vector<32x8xf32>, vector<25x8xf32> -> vector<25x8xf32>
    %645 = arith.addf %639, %644 : vector<25x8xf32>
    %c3_633 = arith.constant 3 : index
    %c0_634 = arith.constant 0 : index
    %c0_635 = arith.constant 0 : index
    %646 = vector.load %arg13[%c3_633, %c0_634, %c0_635] : memref<4x31x32xf32, #tpu.memory_space<vmem>>, vector<1x25x32xf32>
    %647 = vector.shape_cast %646 : vector<1x25x32xf32> to vector<25x32xf32>
    %c7_636 = arith.constant 7 : index
    %c0_637 = arith.constant 0 : index
    %c0_638 = arith.constant 0 : index
    %648 = vector.load %arg8[%c7_636, %c0_637, %c0_638] : memref<9x32x8xf32, #tpu.memory_space<vmem>>, vector<1x32x8xf32>
    %649 = vector.shape_cast %648 : vector<1x32x8xf32> to vector<32x8xf32>
    %cst_639 = arith.constant dense<0.000000e+00> : vector<25x8xf32>
    %650 = tpu.matmul %647, %649, %cst_639 {dimension_numbers = #tpu.dot_dimension_numbers<[1], [0], [0], [1], [0, 0, 1, 1], [], []>} : vector<25x32xf32>, vector<32x8xf32>, vector<25x8xf32> -> vector<25x8xf32>
    %651 = arith.addf %645, %650 : vector<25x8xf32>
    %c0_640 = arith.constant 0 : index
    %c0_641 = arith.constant 0 : index
    %652 = vector.load %arg9[%c0_640, %c0_641] : memref<1x8xf32, #tpu.memory_space<vmem>>, vector<1x8xf32>
    %653 = vector.broadcast %652 : vector<1x8xf32> to vector<25x8xf32>
    %654 = arith.addf %651, %653 : vector<25x8xf32>
    %c0_642 = arith.constant 0 : index
    %c14 = arith.constant 14 : index
    %c0_643 = arith.constant 0 : index
    %c0_644 = arith.constant 0 : index
    %655 = vector.load %arg10[%c0_642, %c14, %c0_643, %c0_644] : memref<1x16x25x8xf32, #tpu.memory_space<vmem>>, vector<1x1x25x8xf32>
    %656 = vector.shape_cast %655 : vector<1x1x25x8xf32> to vector<25x8xf32>
    %657 = vector.shape_cast %654 : vector<25x8xf32> to vector<1x1x25x8xf32>
    tpu.vector_store %arg10[%c0_642, %c14, %c0_643, %c0_644], %657 {strides = array<i32>} : memref<1x16x25x8xf32, #tpu.memory_space<vmem>>, vector<1x1x25x8xf32>,
    %cst_645 = arith.constant 0.000000e+00 : f32
    %658 = vector.broadcast %cst_645 : f32 to vector<25x8xf32>
    %c3_646 = arith.constant 3 : index
    %c0_647 = arith.constant 0 : index
    %c0_648 = arith.constant 0 : index
    %659 = vector.load %arg13[%c3_646, %c0_647, %c0_648] : memref<4x31x32xf32, #tpu.memory_space<vmem>>, vector<1x25x32xf32>
    %660 = vector.shape_cast %659 : vector<1x25x32xf32> to vector<25x32xf32>
    %c0_649 = arith.constant 0 : index
    %c0_650 = arith.constant 0 : index
    %c0_651 = arith.constant 0 : index
    %661 = vector.load %arg8[%c0_649, %c0_650, %c0_651] : memref<9x32x8xf32, #tpu.memory_space<vmem>>, vector<1x32x8xf32>
    %662 = vector.shape_cast %661 : vector<1x32x8xf32> to vector<32x8xf32>
    %cst_652 = arith.constant dense<0.000000e+00> : vector<25x8xf32>
    %663 = tpu.matmul %660, %662, %cst_652 {dimension_numbers = #tpu.dot_dimension_numbers<[1], [0], [0], [1], [0, 0, 1, 1], [], []>} : vector<25x32xf32>, vector<32x8xf32>, vector<25x8xf32> -> vector<25x8xf32>
    %664 = arith.addf %658, %663 : vector<25x8xf32>
    %c2_653 = arith.constant 2 : index
    %c0_654 = arith.constant 0 : index
    %c0_655 = arith.constant 0 : index
    %665 = vector.load %arg13[%c2_653, %c0_654, %c0_655] : memref<4x31x32xf32, #tpu.memory_space<vmem>>, vector<1x25x32xf32>
    %666 = vector.shape_cast %665 : vector<1x25x32xf32> to vector<25x32xf32>
    %c2_656 = arith.constant 2 : index
    %c0_657 = arith.constant 0 : index
    %c0_658 = arith.constant 0 : index
    %667 = vector.load %arg8[%c2_656, %c0_657, %c0_658] : memref<9x32x8xf32, #tpu.memory_space<vmem>>, vector<1x32x8xf32>
    %668 = vector.shape_cast %667 : vector<1x32x8xf32> to vector<32x8xf32>
    %cst_659 = arith.constant dense<0.000000e+00> : vector<25x8xf32>
    %669 = tpu.matmul %666, %668, %cst_659 {dimension_numbers = #tpu.dot_dimension_numbers<[1], [0], [0], [1], [0, 0, 1, 1], [], []>} : vector<25x32xf32>, vector<32x8xf32>, vector<25x8xf32> -> vector<25x8xf32>
    %670 = arith.addf %664, %669 : vector<25x8xf32>
    %c1_660 = arith.constant 1 : index
    %c0_661 = arith.constant 0 : index
    %c0_662 = arith.constant 0 : index
    %671 = vector.load %arg13[%c1_660, %c0_661, %c0_662] : memref<4x31x32xf32, #tpu.memory_space<vmem>>, vector<1x25x32xf32>
    %672 = vector.shape_cast %671 : vector<1x25x32xf32> to vector<25x32xf32>
    %c6_663 = arith.constant 6 : index
    %c0_664 = arith.constant 0 : index
    %c0_665 = arith.constant 0 : index
    %673 = vector.load %arg8[%c6_663, %c0_664, %c0_665] : memref<9x32x8xf32, #tpu.memory_space<vmem>>, vector<1x32x8xf32>
    %674 = vector.shape_cast %673 : vector<1x32x8xf32> to vector<32x8xf32>
    %cst_666 = arith.constant dense<0.000000e+00> : vector<25x8xf32>
    %675 = tpu.matmul %672, %674, %cst_666 {dimension_numbers = #tpu.dot_dimension_numbers<[1], [0], [0], [1], [0, 0, 1, 1], [], []>} : vector<25x32xf32>, vector<32x8xf32>, vector<25x8xf32> -> vector<25x8xf32>
    %676 = arith.addf %670, %675 : vector<25x8xf32>
    %c0_667 = arith.constant 0 : index
    %c0_668 = arith.constant 0 : index
    %c0_669 = arith.constant 0 : index
    %677 = vector.load %arg13[%c0_667, %c0_668, %c0_669] : memref<4x31x32xf32, #tpu.memory_space<vmem>>, vector<1x25x32xf32>
    %678 = vector.shape_cast %677 : vector<1x25x32xf32> to vector<25x32xf32>
    %c8_670 = arith.constant 8 : index
    %c0_671 = arith.constant 0 : index
    %c0_672 = arith.constant 0 : index
    %679 = vector.load %arg8[%c8_670, %c0_671, %c0_672] : memref<9x32x8xf32, #tpu.memory_space<vmem>>, vector<1x32x8xf32>
    %680 = vector.shape_cast %679 : vector<1x32x8xf32> to vector<32x8xf32>
    %cst_673 = arith.constant dense<0.000000e+00> : vector<25x8xf32>
    %681 = tpu.matmul %678, %680, %cst_673 {dimension_numbers = #tpu.dot_dimension_numbers<[1], [0], [0], [1], [0, 0, 1, 1], [], []>} : vector<25x32xf32>, vector<32x8xf32>, vector<25x8xf32> -> vector<25x8xf32>
    %682 = arith.addf %676, %681 : vector<25x8xf32>
    %c0_674 = arith.constant 0 : index
    %c0_675 = arith.constant 0 : index
    %683 = vector.load %arg9[%c0_674, %c0_675] : memref<1x8xf32, #tpu.memory_space<vmem>>, vector<1x8xf32>
    %684 = vector.broadcast %683 : vector<1x8xf32> to vector<25x8xf32>
    %685 = arith.addf %682, %684 : vector<25x8xf32>
    %c0_676 = arith.constant 0 : index
    %c5_677 = arith.constant 5 : index
    %c0_678 = arith.constant 0 : index
    %c0_679 = arith.constant 0 : index
    %686 = vector.load %arg10[%c0_676, %c5_677, %c0_678, %c0_679] : memref<1x16x25x8xf32, #tpu.memory_space<vmem>>, vector<1x1x25x8xf32>
    %687 = vector.shape_cast %686 : vector<1x1x25x8xf32> to vector<25x8xf32>
    %688 = vector.shape_cast %685 : vector<25x8xf32> to vector<1x1x25x8xf32>
    tpu.vector_store %arg10[%c0_676, %c5_677, %c0_678, %c0_679], %688 {strides = array<i32>} : memref<1x16x25x8xf32, #tpu.memory_space<vmem>>, vector<1x1x25x8xf32>,
    %cst_680 = arith.constant 0.000000e+00 : f32
    %689 = vector.broadcast %cst_680 : f32 to vector<25x8xf32>
    %c2_681 = arith.constant 2 : index
    %c1_682 = arith.constant 1 : index
    %c0_683 = arith.constant 0 : index
    %690 = vector.load %arg13[%c2_681, %c1_682, %c0_683] : memref<4x31x32xf32, #tpu.memory_space<vmem>>, vector<1x25x32xf32>
    %691 = vector.shape_cast %690 : vector<1x25x32xf32> to vector<25x32xf32>
    %c0_684 = arith.constant 0 : index
    %c0_685 = arith.constant 0 : index
    %c0_686 = arith.constant 0 : index
    %692 = vector.load %arg8[%c0_684, %c0_685, %c0_686] : memref<9x32x8xf32, #tpu.memory_space<vmem>>, vector<1x32x8xf32>
    %693 = vector.shape_cast %692 : vector<1x32x8xf32> to vector<32x8xf32>
    %cst_687 = arith.constant dense<0.000000e+00> : vector<25x8xf32>
    %694 = tpu.matmul %691, %693, %cst_687 {dimension_numbers = #tpu.dot_dimension_numbers<[1], [0], [0], [1], [0, 0, 1, 1], [], []>} : vector<25x32xf32>, vector<32x8xf32>, vector<25x8xf32> -> vector<25x8xf32>
    %695 = arith.addf %689, %694 : vector<25x8xf32>
    %c3_688 = arith.constant 3 : index
    %c0_689 = arith.constant 0 : index
    %c0_690 = arith.constant 0 : index
    %696 = vector.load %arg13[%c3_688, %c0_689, %c0_690] : memref<4x31x32xf32, #tpu.memory_space<vmem>>, vector<1x25x32xf32>
    %697 = vector.shape_cast %696 : vector<1x25x32xf32> to vector<25x32xf32>
    %c2_691 = arith.constant 2 : index
    %c0_692 = arith.constant 0 : index
    %c0_693 = arith.constant 0 : index
    %698 = vector.load %arg8[%c2_691, %c0_692, %c0_693] : memref<9x32x8xf32, #tpu.memory_space<vmem>>, vector<1x32x8xf32>
    %699 = vector.shape_cast %698 : vector<1x32x8xf32> to vector<32x8xf32>
    %cst_694 = arith.constant dense<0.000000e+00> : vector<25x8xf32>
    %700 = tpu.matmul %697, %699, %cst_694 {dimension_numbers = #tpu.dot_dimension_numbers<[1], [0], [0], [1], [0, 0, 1, 1], [], []>} : vector<25x32xf32>, vector<32x8xf32>, vector<25x8xf32> -> vector<25x8xf32>
    %701 = arith.addf %695, %700 : vector<25x8xf32>
    %c0_695 = arith.constant 0 : index
    %c1_696 = arith.constant 1 : index
    %c0_697 = arith.constant 0 : index
    %702 = vector.load %arg13[%c0_695, %c1_696, %c0_697] : memref<4x31x32xf32, #tpu.memory_space<vmem>>, vector<1x25x32xf32>
    %703 = vector.shape_cast %702 : vector<1x25x32xf32> to vector<25x32xf32>
    %c6_698 = arith.constant 6 : index
    %c0_699 = arith.constant 0 : index
    %c0_700 = arith.constant 0 : index
    %704 = vector.load %arg8[%c6_698, %c0_699, %c0_700] : memref<9x32x8xf32, #tpu.memory_space<vmem>>, vector<1x32x8xf32>
    %705 = vector.shape_cast %704 : vector<1x32x8xf32> to vector<32x8xf32>
    %cst_701 = arith.constant dense<0.000000e+00> : vector<25x8xf32>
    %706 = tpu.matmul %703, %705, %cst_701 {dimension_numbers = #tpu.dot_dimension_numbers<[1], [0], [0], [1], [0, 0, 1, 1], [], []>} : vector<25x32xf32>, vector<32x8xf32>, vector<25x8xf32> -> vector<25x8xf32>
    %707 = arith.addf %701, %706 : vector<25x8xf32>
    %c1_702 = arith.constant 1 : index
    %c0_703 = arith.constant 0 : index
    %c0_704 = arith.constant 0 : index
    %708 = vector.load %arg13[%c1_702, %c0_703, %c0_704] : memref<4x31x32xf32, #tpu.memory_space<vmem>>, vector<1x25x32xf32>
    %709 = vector.shape_cast %708 : vector<1x25x32xf32> to vector<25x32xf32>
    %c8_705 = arith.constant 8 : index
    %c0_706 = arith.constant 0 : index
    %c0_707 = arith.constant 0 : index
    %710 = vector.load %arg8[%c8_705, %c0_706, %c0_707] : memref<9x32x8xf32, #tpu.memory_space<vmem>>, vector<1x32x8xf32>
    %711 = vector.shape_cast %710 : vector<1x32x8xf32> to vector<32x8xf32>
    %cst_708 = arith.constant dense<0.000000e+00> : vector<25x8xf32>
    %712 = tpu.matmul %709, %711, %cst_708 {dimension_numbers = #tpu.dot_dimension_numbers<[1], [0], [0], [1], [0, 0, 1, 1], [], []>} : vector<25x32xf32>, vector<32x8xf32>, vector<25x8xf32> -> vector<25x8xf32>
    %713 = arith.addf %707, %712 : vector<25x8xf32>
    %c0_709 = arith.constant 0 : index
    %c0_710 = arith.constant 0 : index
    %714 = vector.load %arg9[%c0_709, %c0_710] : memref<1x8xf32, #tpu.memory_space<vmem>>, vector<1x8xf32>
    %715 = vector.broadcast %714 : vector<1x8xf32> to vector<25x8xf32>
    %716 = arith.addf %713, %715 : vector<25x8xf32>
    %c0_711 = arith.constant 0 : index
    %c7_712 = arith.constant 7 : index
    %c0_713 = arith.constant 0 : index
    %c0_714 = arith.constant 0 : index
    %717 = vector.load %arg10[%c0_711, %c7_712, %c0_713, %c0_714] : memref<1x16x25x8xf32, #tpu.memory_space<vmem>>, vector<1x1x25x8xf32>
    %718 = vector.shape_cast %717 : vector<1x1x25x8xf32> to vector<25x8xf32>
    %719 = vector.shape_cast %716 : vector<25x8xf32> to vector<1x1x25x8xf32>
    tpu.vector_store %arg10[%c0_711, %c7_712, %c0_713, %c0_714], %719 {strides = array<i32>} : memref<1x16x25x8xf32, #tpu.memory_space<vmem>>, vector<1x1x25x8xf32>,
    %cst_715 = arith.constant 0.000000e+00 : f32
    %720 = vector.broadcast %cst_715 : f32 to vector<25x8xf32>
    %c1_716 = arith.constant 1 : index
    %c5_717 = arith.constant 5 : index
    %c0_718 = arith.constant 0 : index
    %721 = vector.load %arg13[%c1_716, %c5_717, %c0_718] : memref<4x31x32xf32, #tpu.memory_space<vmem>>, vector<1x25x32xf32>
    %722 = vector.shape_cast %721 : vector<1x25x32xf32> to vector<25x32xf32>
    %c0_719 = arith.constant 0 : index
    %c0_720 = arith.constant 0 : index
    %c0_721 = arith.constant 0 : index
    %723 = vector.load %arg8[%c0_719, %c0_720, %c0_721] : memref<9x32x8xf32, #tpu.memory_space<vmem>>, vector<1x32x8xf32>
    %724 = vector.shape_cast %723 : vector<1x32x8xf32> to vector<32x8xf32>
    %cst_722 = arith.constant dense<0.000000e+00> : vector<25x8xf32>
    %725 = tpu.matmul %722, %724, %cst_722 {dimension_numbers = #tpu.dot_dimension_numbers<[1], [0], [0], [1], [0, 0, 1, 1], [], []>} : vector<25x32xf32>, vector<32x8xf32>, vector<25x8xf32> -> vector<25x8xf32>
    %726 = arith.addf %720, %725 : vector<25x8xf32>
    %c0_723 = arith.constant 0 : index
    %c5_724 = arith.constant 5 : index
    %c0_725 = arith.constant 0 : index
    %727 = vector.load %arg13[%c0_723, %c5_724, %c0_725] : memref<4x31x32xf32, #tpu.memory_space<vmem>>, vector<1x25x32xf32>
    %728 = vector.shape_cast %727 : vector<1x25x32xf32> to vector<25x32xf32>
    %c2_726 = arith.constant 2 : index
    %c0_727 = arith.constant 0 : index
    %c0_728 = arith.constant 0 : index
    %729 = vector.load %arg8[%c2_726, %c0_727, %c0_728] : memref<9x32x8xf32, #tpu.memory_space<vmem>>, vector<1x32x8xf32>
    %730 = vector.shape_cast %729 : vector<1x32x8xf32> to vector<32x8xf32>
    %cst_729 = arith.constant dense<0.000000e+00> : vector<25x8xf32>
    %731 = tpu.matmul %728, %730, %cst_729 {dimension_numbers = #tpu.dot_dimension_numbers<[1], [0], [0], [1], [0, 0, 1, 1], [], []>} : vector<25x32xf32>, vector<32x8xf32>, vector<25x8xf32> -> vector<25x8xf32>
    %732 = arith.addf %726, %731 : vector<25x8xf32>
    %c3_730 = arith.constant 3 : index
    %c0_731 = arith.constant 0 : index
    %c0_732 = arith.constant 0 : index
    %733 = vector.load %arg13[%c3_730, %c0_731, %c0_732] : memref<4x31x32xf32, #tpu.memory_space<vmem>>, vector<1x25x32xf32>
    %734 = vector.shape_cast %733 : vector<1x25x32xf32> to vector<25x32xf32>
    %c6_733 = arith.constant 6 : index
    %c0_734 = arith.constant 0 : index
    %c0_735 = arith.constant 0 : index
    %735 = vector.load %arg8[%c6_733, %c0_734, %c0_735] : memref<9x32x8xf32, #tpu.memory_space<vmem>>, vector<1x32x8xf32>
    %736 = vector.shape_cast %735 : vector<1x32x8xf32> to vector<32x8xf32>
    %cst_736 = arith.constant dense<0.000000e+00> : vector<25x8xf32>
    %737 = tpu.matmul %734, %736, %cst_736 {dimension_numbers = #tpu.dot_dimension_numbers<[1], [0], [0], [1], [0, 0, 1, 1], [], []>} : vector<25x32xf32>, vector<32x8xf32>, vector<25x8xf32> -> vector<25x8xf32>
    %738 = arith.addf %732, %737 : vector<25x8xf32>
    %c2_737 = arith.constant 2 : index
    %c0_738 = arith.constant 0 : index
    %c0_739 = arith.constant 0 : index
    %739 = vector.load %arg13[%c2_737, %c0_738, %c0_739] : memref<4x31x32xf32, #tpu.memory_space<vmem>>, vector<1x25x32xf32>
    %740 = vector.shape_cast %739 : vector<1x25x32xf32> to vector<25x32xf32>
    %c8_740 = arith.constant 8 : index
    %c0_741 = arith.constant 0 : index
    %c0_742 = arith.constant 0 : index
    %741 = vector.load %arg8[%c8_740, %c0_741, %c0_742] : memref<9x32x8xf32, #tpu.memory_space<vmem>>, vector<1x32x8xf32>
    %742 = vector.shape_cast %741 : vector<1x32x8xf32> to vector<32x8xf32>
    %cst_743 = arith.constant dense<0.000000e+00> : vector<25x8xf32>
    %743 = tpu.matmul %740, %742, %cst_743 {dimension_numbers = #tpu.dot_dimension_numbers<[1], [0], [0], [1], [0, 0, 1, 1], [], []>} : vector<25x32xf32>, vector<32x8xf32>, vector<25x8xf32> -> vector<25x8xf32>
    %744 = arith.addf %738, %743 : vector<25x8xf32>
    %c0_744 = arith.constant 0 : index
    %c0_745 = arith.constant 0 : index
    %745 = vector.load %arg9[%c0_744, %c0_745] : memref<1x8xf32, #tpu.memory_space<vmem>>, vector<1x8xf32>
    %746 = vector.broadcast %745 : vector<1x8xf32> to vector<25x8xf32>
    %747 = arith.addf %744, %746 : vector<25x8xf32>
    %c0_746 = arith.constant 0 : index
    %c13 = arith.constant 13 : index
    %c0_747 = arith.constant 0 : index
    %c0_748 = arith.constant 0 : index
    %748 = vector.load %arg10[%c0_746, %c13, %c0_747, %c0_748] : memref<1x16x25x8xf32, #tpu.memory_space<vmem>>, vector<1x1x25x8xf32>
    %749 = vector.shape_cast %748 : vector<1x1x25x8xf32> to vector<25x8xf32>
    %750 = vector.shape_cast %747 : vector<25x8xf32> to vector<1x1x25x8xf32>
    tpu.vector_store %arg10[%c0_746, %c13, %c0_747, %c0_748], %750 {strides = array<i32>} : memref<1x16x25x8xf32, #tpu.memory_space<vmem>>, vector<1x1x25x8xf32>,
    %cst_749 = arith.constant 0.000000e+00 : f32
    %751 = vector.broadcast %cst_749 : f32 to vector<25x8xf32>
    %c0_750 = arith.constant 0 : index
    %c6_751 = arith.constant 6 : index
    %c0_752 = arith.constant 0 : index
    %752 = vector.load %arg13[%c0_750, %c6_751, %c0_752] : memref<4x31x32xf32, #tpu.memory_space<vmem>>, vector<1x25x32xf32>
    %753 = vector.shape_cast %752 : vector<1x25x32xf32> to vector<25x32xf32>
    %c0_753 = arith.constant 0 : index
    %c0_754 = arith.constant 0 : index
    %c0_755 = arith.constant 0 : index
    %754 = vector.load %arg8[%c0_753, %c0_754, %c0_755] : memref<9x32x8xf32, #tpu.memory_space<vmem>>, vector<1x32x8xf32>
    %755 = vector.shape_cast %754 : vector<1x32x8xf32> to vector<32x8xf32>
    %cst_756 = arith.constant dense<0.000000e+00> : vector<25x8xf32>
    %756 = tpu.matmul %753, %755, %cst_756 {dimension_numbers = #tpu.dot_dimension_numbers<[1], [0], [0], [1], [0, 0, 1, 1], [], []>} : vector<25x32xf32>, vector<32x8xf32>, vector<25x8xf32> -> vector<25x8xf32>
    %757 = arith.addf %751, %756 : vector<25x8xf32>
    %c1_757 = arith.constant 1 : index
    %c5_758 = arith.constant 5 : index
    %c0_759 = arith.constant 0 : index
    %758 = vector.load %arg13[%c1_757, %c5_758, %c0_759] : memref<4x31x32xf32, #tpu.memory_space<vmem>>, vector<1x25x32xf32>
    %759 = vector.shape_cast %758 : vector<1x25x32xf32> to vector<25x32xf32>
    %c2_760 = arith.constant 2 : index
    %c0_761 = arith.constant 0 : index
    %c0_762 = arith.constant 0 : index
    %760 = vector.load %arg8[%c2_760, %c0_761, %c0_762] : memref<9x32x8xf32, #tpu.memory_space<vmem>>, vector<1x32x8xf32>
    %761 = vector.shape_cast %760 : vector<1x32x8xf32> to vector<32x8xf32>
    %cst_763 = arith.constant dense<0.000000e+00> : vector<25x8xf32>
    %762 = tpu.matmul %759, %761, %cst_763 {dimension_numbers = #tpu.dot_dimension_numbers<[1], [0], [0], [1], [0, 0, 1, 1], [], []>} : vector<25x32xf32>, vector<32x8xf32>, vector<25x8xf32> -> vector<25x8xf32>
    %763 = arith.addf %757, %762 : vector<25x8xf32>
    %c2_764 = arith.constant 2 : index
    %c1_765 = arith.constant 1 : index
    %c0_766 = arith.constant 0 : index
    %764 = vector.load %arg13[%c2_764, %c1_765, %c0_766] : memref<4x31x32xf32, #tpu.memory_space<vmem>>, vector<1x25x32xf32>
    %765 = vector.shape_cast %764 : vector<1x25x32xf32> to vector<25x32xf32>
    %c6_767 = arith.constant 6 : index
    %c0_768 = arith.constant 0 : index
    %c0_769 = arith.constant 0 : index
    %766 = vector.load %arg8[%c6_767, %c0_768, %c0_769] : memref<9x32x8xf32, #tpu.memory_space<vmem>>, vector<1x32x8xf32>
    %767 = vector.shape_cast %766 : vector<1x32x8xf32> to vector<32x8xf32>
    %cst_770 = arith.constant dense<0.000000e+00> : vector<25x8xf32>
    %768 = tpu.matmul %765, %767, %cst_770 {dimension_numbers = #tpu.dot_dimension_numbers<[1], [0], [0], [1], [0, 0, 1, 1], [], []>} : vector<25x32xf32>, vector<32x8xf32>, vector<25x8xf32> -> vector<25x8xf32>
    %769 = arith.addf %763, %768 : vector<25x8xf32>
    %c3_771 = arith.constant 3 : index
    %c0_772 = arith.constant 0 : index
    %c0_773 = arith.constant 0 : index
    %770 = vector.load %arg13[%c3_771, %c0_772, %c0_773] : memref<4x31x32xf32, #tpu.memory_space<vmem>>, vector<1x25x32xf32>
    %771 = vector.shape_cast %770 : vector<1x25x32xf32> to vector<25x32xf32>
    %c8_774 = arith.constant 8 : index
    %c0_775 = arith.constant 0 : index
    %c0_776 = arith.constant 0 : index
    %772 = vector.load %arg8[%c8_774, %c0_775, %c0_776] : memref<9x32x8xf32, #tpu.memory_space<vmem>>, vector<1x32x8xf32>
    %773 = vector.shape_cast %772 : vector<1x32x8xf32> to vector<32x8xf32>
    %cst_777 = arith.constant dense<0.000000e+00> : vector<25x8xf32>
    %774 = tpu.matmul %771, %773, %cst_777 {dimension_numbers = #tpu.dot_dimension_numbers<[1], [0], [0], [1], [0, 0, 1, 1], [], []>} : vector<25x32xf32>, vector<32x8xf32>, vector<25x8xf32> -> vector<25x8xf32>
    %775 = arith.addf %769, %774 : vector<25x8xf32>
    %c0_778 = arith.constant 0 : index
    %c0_779 = arith.constant 0 : index
    %776 = vector.load %arg9[%c0_778, %c0_779] : memref<1x8xf32, #tpu.memory_space<vmem>>, vector<1x8xf32>
    %777 = vector.broadcast %776 : vector<1x8xf32> to vector<25x8xf32>
    %778 = arith.addf %775, %777 : vector<25x8xf32>
    %c0_780 = arith.constant 0 : index
    %c15 = arith.constant 15 : index
    %c0_781 = arith.constant 0 : index
    %c0_782 = arith.constant 0 : index
    %779 = vector.load %arg10[%c0_780, %c15, %c0_781, %c0_782] : memref<1x16x25x8xf32, #tpu.memory_space<vmem>>, vector<1x1x25x8xf32>
    %780 = vector.shape_cast %779 : vector<1x1x25x8xf32> to vector<25x8xf32>
    %781 = vector.shape_cast %778 : vector<25x8xf32> to vector<1x1x25x8xf32>
    tpu.vector_store %arg10[%c0_780, %c15, %c0_781, %c0_782], %781 {strides = array<i32>} : memref<1x16x25x8xf32, #tpu.memory_space<vmem>>, vector<1x1x25x8xf32>,
    return
  }
  func.func @transform_0(%arg0: i32) -> (i32, i32, i32) {
    %c0_i32 = arith.constant 0 : i32
    %c0_i32_0 = arith.constant 0 : i32
    %c0_i32_1 = arith.constant 0 : i32
    return %arg0, %c0_i32, %c0_i32_0 : i32, i32, i32
  }
  func.func @transform_1(%arg0: i32) -> (i32, i32, i32) {
    %c0_i32 = arith.constant 0 : i32
    %c0_i32_0 = arith.constant 0 : i32
    %c0_i32_1 = arith.constant 0 : i32
    %c0_i32_2 = arith.constant 0 : i32
    return %c0_i32, %c0_i32_0, %c0_i32_1 : i32, i32, i32
  }
  func.func @transform_2(%arg0: i32) -> (i32, i32) {
    %c0_i32 = arith.constant 0 : i32
    %c0_i32_0 = arith.constant 0 : i32
    %c0_i32_1 = arith.constant 0 : i32
    return %c0_i32, %c0_i32_0 : i32, i32
  }
  func.func @transform_3(%arg0: i32) -> (i32, i32, i32) {
    %c0_i32 = arith.constant 0 : i32
    %c0_i32_0 = arith.constant 0 : i32
    %c0_i32_1 = arith.constant 0 : i32
    %c0_i32_2 = arith.constant 0 : i32
    return %c0_i32, %c0_i32_0, %c0_i32_1 : i32, i32, i32
  }
  func.func @transform_4(%arg0: i32) -> (i32, i32) {
    %c0_i32 = arith.constant 0 : i32
    %c0_i32_0 = arith.constant 0 : i32
    %c0_i32_1 = arith.constant 0 : i32
    return %c0_i32, %c0_i32_0 : i32, i32
  }
  func.func @transform_5(%arg0: i32) -> (i32, i32, i32) {
    %c0_i32 = arith.constant 0 : i32
    %c0_i32_0 = arith.constant 0 : i32
    %c0_i32_1 = arith.constant 0 : i32
    %c0_i32_2 = arith.constant 0 : i32
    return %c0_i32, %c0_i32_0, %c0_i32_1 : i32, i32, i32
  }
  func.func @transform_6(%arg0: i32) -> (i32, i32) {
    %c0_i32 = arith.constant 0 : i32
    %c0_i32_0 = arith.constant 0 : i32
    %c0_i32_1 = arith.constant 0 : i32
    return %c0_i32, %c0_i32_0 : i32, i32
  }
  func.func @transform_7(%arg0: i32) -> (i32, i32, i32) {
    %c0_i32 = arith.constant 0 : i32
    %c0_i32_0 = arith.constant 0 : i32
    %c0_i32_1 = arith.constant 0 : i32
    %c0_i32_2 = arith.constant 0 : i32
    return %c0_i32, %c0_i32_0, %c0_i32_1 : i32, i32, i32
  }
  func.func @transform_8(%arg0: i32) -> (i32, i32) {
    %c0_i32 = arith.constant 0 : i32
    %c0_i32_0 = arith.constant 0 : i32
    %c0_i32_1 = arith.constant 0 : i32
    return %c0_i32, %c0_i32_0 : i32, i32
  }
  func.func @transform_9(%arg0: i32) -> (i32, i32, i32, i32) {
    %c0_i32 = arith.constant 0 : i32
    %c0_i32_0 = arith.constant 0 : i32
    %c0_i32_1 = arith.constant 0 : i32
    %c0_i32_2 = arith.constant 0 : i32
    return %arg0, %c0_i32, %c0_i32_0, %c0_i32_1 : i32, i32, i32, i32
  }
}

</mosaic_0001>

<llo_original>
// kernel: autoencoder_forward.1
$region0: #{autoencoder_forward.1}
  #allocation0 [shape = 'u32[]', space=smem, size = 0x4, offset = 0x4, fixed_abs, tag = 'smem constant byte address 0x4 - core index']
  #allocation1 [shape = 'u32[72,128]{1,0:T(1,128)}', space=vmem, size = 0x9000, scoped, tag = 'internal scratch']
  #allocation2 [shape = 'f32[4,31,32]{2,1,0:T(8,128)}', space=vmem, size = 0x10000, scoped, tag = 'scratch operand']
  #allocation3 [shape = 'f32[31,64]{1,0:T(8,128)}', space=vmem, size = 0x4000, scoped, tag = 'scratch operand']
  #allocation4 [shape = 'f32[4,31,32]{2,1,0:T(8,128)}', space=vmem, size = 0x10000, scoped, tag = 'scratch operand']
  %s0 = inlined_call_operand.vmem [shape: f32[2,496,8], index: 0, kind: input, shape index: {}]
  %s1 = inlined_call_operand.vmem [shape: f32[9,8,32], index: 1, kind: input, shape index: {}]
  %s2 = inlined_call_operand.vmem [shape: f32[1,32], index: 2, kind: input, shape index: {}]
  %s3 = inlined_call_operand.vmem [shape: f32[9,32,64], index: 3, kind: input, shape index: {}]
  %s4 = inlined_call_operand.vmem [shape: f32[1,64], index: 4, kind: input, shape index: {}]
  %s5 = inlined_call_operand.vmem [shape: f32[9,64,32], index: 5, kind: input, shape index: {}]
  %s6 = inlined_call_operand.vmem [shape: f32[1,32], index: 6, kind: input, shape index: {}]
  %s7 = inlined_call_operand.vmem [shape: f32[9,32,8], index: 7, kind: input, shape index: {}]
  %s8 = inlined_call_operand.vmem [shape: f32[1,8], index: 8, kind: input, shape index: {}]
  %s9 = inlined_call_operand.vmem [shape: f32[2,16,25,8], index: 9, kind: output, shape index: {}]
  %s10 = sld [smem:[#allocation0]]
  $region69: #{autoencoder_forward.1} parent=0
    _
  %s12 = ssub.s32 1, %s10
  %s13 = scalar_select 0, %s12, %s10
  loop: start=0, step=1, limit=4
  $region2: #{autoencoder_forward.1} parent=0 // loop_pre_header
    _
  $region3: #{autoencoder_forward.1} parent=0 // loop_header
    %s15 = sphi 0, %s19
    %p16 = scmp.ge.s32.totalorder %s15, 4
    %s25 = sphi 0, %s27
    %s28 = sphi 0, %s25
    %s29 = sphi 0, %s28
    %s45 = sphi 0, %s29
    %s49 = sphi 0, %s49
    %s51 = sphi 0, %s49
    %s52 = sphi 0, %s51
    %s66 = sphi 0, %s52
    %s70 = sphi 0, %s70
    %s72 = sphi 0, %s70
    %s73 = sphi 0, %s72
    %s87 = sphi 0, %s73
    %s91 = sphi 0, %s91
    %s93 = sphi 0, %s91
    %s94 = sphi 0, %s93
    %s108 = sphi 0, %s94
    %s112 = sphi 0, %s112
    %s114 = sphi 0, %s112
    %s115 = sphi 0, %s114
    %s129 = sphi 0, %s115
    %s133 = sphi 0, %s133
    %s135 = sphi 0, %s133
    %s136 = sphi 0, %s135
    %s150 = sphi 0, %s136
    %s154 = sphi 0, %s154
    %s156 = sphi 0, %s154
    %s157 = sphi 0, %s156
    %s171 = sphi 0, %s157
    %s175 = sphi 0, %s175
    %s177 = sphi 0, %s175
    %s178 = sphi 0, %s177
    %s192 = sphi 0, %s178
    %s196 = sphi 0, %s196
    %s198 = sphi 0, %s196
    %s199 = sphi 0, %s198
    %s213 = sphi 0, %s199
    %s219 = sphi 0, %s221
    %s222 = sphi 0, %s219
    %s223 = sphi 0, %s222
    %s239 = sphi 0, %s223
  $region4: #{autoencoder_forward.1} parent=0 // loop_header_branch
    %18 = sbr.rel (%p16) target = $region8
  $region5: #{autoencoder_forward.1} parent=0 // loop_body
    %s20 = ssub.s32 %s15, 1
    %s21 = ssub.s32 %s15, 2
    %s22 = sadd.s32 %s15, 1
    %s23 = ssub.s32 %s15, %s22
    %p24 = scmp.eq.s32.totalorder %s23, 0
    %s26 = sadd.s32 %s25, 1
    %s27 = scalar_select %p24, %s25, %s26
    %p30 = pneg %p24
    %p31 = scmp.eq.s32.totalorder %s15, 1
    %p32 = por %p30, %p31
    %p33 = scmp.ne.s32.totalorder %s25, %s28
    %p34 = scmp.eq.s32.totalorder %s15, 0
    %p35 = por %p33, %p34
    %p36 = scmp.ne.s32.totalorder %s25, %s28
    %p37 = scmp.eq.s32.totalorder %s20, 1
    %p38 = por %p36, %p37
    %p39 = scmp.ne.s32.totalorder %s28, %s29
    %p40 = scmp.eq.s32.totalorder %s20, 0
    %p41 = por %p39, %p40
    %p42 = scmp.ne.s32.totalorder %s28, %s29
    %p43 = scmp.eq.s32.totalorder %s21, 1
    %p44 = por %p42, %p43
    %p46 = scmp.ne.s32.totalorder %s29, %s45
    %p47 = scmp.eq.s32.totalorder %s21, 0
    %p48 = por %p46, %p47
    %s50 = sadd.s32 %s49, 1
    %p53 = scmp.eq.s32.totalorder %s15, 1
    %p54 = scmp.ne.s32.totalorder %s49, %s51
    %p55 = scmp.eq.s32.totalorder %s15, 0
    %p56 = por %p54, %p55
    %p57 = scmp.ne.s32.totalorder %s49, %s51
    %p58 = scmp.eq.s32.totalorder %s20, 1
    %p59 = por %p57, %p58
    %p60 = scmp.ne.s32.totalorder %s51, %s52
    %p61 = scmp.eq.s32.totalorder %s20, 0
    %p62 = por %p60, %p61
    %p63 = scmp.ne.s32.totalorder %s51, %s52
    %p64 = scmp.eq.s32.totalorder %s21, 1
    %p65 = por %p63, %p64
    %p67 = scmp.ne.s32.totalorder %s52, %s66
    %p68 = scmp.eq.s32.totalorder %s21, 0
    %p69 = por %p67, %p68
    %s71 = sadd.s32 %s70, 1
    %p74 = scmp.eq.s32.totalorder %s15, 1
    %p75 = scmp.ne.s32.totalorder %s70, %s72
    %p76 = scmp.eq.s32.totalorder %s15, 0
    %p77 = por %p75, %p76
    %p78 = scmp.ne.s32.totalorder %s70, %s72
    %p79 = scmp.eq.s32.totalorder %s20, 1
    %p80 = por %p78, %p79
    %p81 = scmp.ne.s32.totalorder %s72, %s73
    %p82 = scmp.eq.s32.totalorder %s20, 0
    %p83 = por %p81, %p82
    %p84 = scmp.ne.s32.totalorder %s72, %s73
    %p85 = scmp.eq.s32.totalorder %s21, 1
    %p86 = por %p84, %p85
    %p88 = scmp.ne.s32.totalorder %s73, %s87
    %p89 = scmp.eq.s32.totalorder %s21, 0
    %p90 = por %p88, %p89
    %s92 = sadd.s32 %s91, 1
    %p95 = scmp.eq.s32.totalorder %s15, 1
    %p96 = scmp.ne.s32.totalorder %s91, %s93
    %p97 = scmp.eq.s32.totalorder %s15, 0
    %p98 = por %p96, %p97
    %p99 = scmp.ne.s32.totalorder %s91, %s93
    %p100 = scmp.eq.s32.totalorder %s20, 1
    %p101 = por %p99, %p100
    %p102 = scmp.ne.s32.totalorder %s93, %s94
    %p103 = scmp.eq.s32.totalorder %s20, 0
    %p104 = por %p102, %p103
    %p105 = scmp.ne.s32.totalorder %s93, %s94
    %p106 = scmp.eq.s32.totalorder %s21, 1
    %p107 = por %p105, %p106
    %p109 = scmp.ne.s32.totalorder %s94, %s108
    %p110 = scmp.eq.s32.totalorder %s21, 0
    %p111 = por %p109, %p110
    %s113 = sadd.s32 %s112, 1
    %p116 = scmp.eq.s32.totalorder %s15, 1
    %p117 = scmp.ne.s32.totalorder %s112, %s114
    %p118 = scmp.eq.s32.totalorder %s15, 0
    %p119 = por %p117, %p118
    %p120 = scmp.ne.s32.totalorder %s112, %s114
    %p121 = scmp.eq.s32.totalorder %s20, 1
    %p122 = por %p120, %p121
    %p123 = scmp.ne.s32.totalorder %s114, %s115
    %p124 = scmp.eq.s32.totalorder %s20, 0
    %p125 = por %p123, %p124
    %p126 = scmp.ne.s32.totalorder %s114, %s115
    %p127 = scmp.eq.s32.totalorder %s21, 1
    %p128 = por %p126, %p127
    %p130 = scmp.ne.s32.totalorder %s115, %s129
    %p131 = scmp.eq.s32.totalorder %s21, 0
    %p132 = por %p130, %p131
    %s134 = sadd.s32 %s133, 1
    %p137 = scmp.eq.s32.totalorder %s15, 1
    %p138 = scmp.ne.s32.totalorder %s133, %s135
    %p139 = scmp.eq.s32.totalorder %s15, 0
    %p140 = por %p138, %p139
    %p141 = scmp.ne.s32.totalorder %s133, %s135
    %p142 = scmp.eq.s32.totalorder %s20, 1
    %p143 = por %p141, %p142
    %p144 = scmp.ne.s32.totalorder %s135, %s136
    %p145 = scmp.eq.s32.totalorder %s20, 0
    %p146 = por %p144, %p145
    %p147 = scmp.ne.s32.totalorder %s135, %s136
    %p148 = scmp.eq.s32.totalorder %s21, 1
    %p149 = por %p147, %p148
    %p151 = scmp.ne.s32.totalorder %s136, %s150
    %p152 = scmp.eq.s32.totalorder %s21, 0
    %p153 = por %p151, %p152
    %s155 = sadd.s32 %s154, 1
    %p158 = scmp.eq.s32.totalorder %s15, 1
    %p159 = scmp.ne.s32.totalorder %s154, %s156
    %p160 = scmp.eq.s32.totalorder %s15, 0
    %p161 = por %p159, %p160
    %p162 = scmp.ne.s32.totalorder %s154, %s156
    %p163 = scmp.eq.s32.totalorder %s20, 1
    %p164 = por %p162, %p163
    %p165 = scmp.ne.s32.totalorder %s156, %s157
    %p166 = scmp.eq.s32.totalorder %s20, 0
    %p167 = por %p165, %p166
    %p168 = scmp.ne.s32.totalorder %s156, %s157
    %p169 = scmp.eq.s32.totalorder %s21, 1
    %p170 = por %p168, %p169
    %p172 = scmp.ne.s32.totalorder %s157, %s171
    %p173 = scmp.eq.s32.totalorder %s21, 0
    %p174 = por %p172, %p173
    %s176 = sadd.s32 %s175, 1
    %p179 = scmp.eq.s32.totalorder %s15, 1
    %p180 = scmp.ne.s32.totalorder %s175, %s177
    %p181 = scmp.eq.s32.totalorder %s15, 0
    %p182 = por %p180, %p181
    %p183 = scmp.ne.s32.totalorder %s175, %s177
    %p184 = scmp.eq.s32.totalorder %s20, 1
    %p185 = por %p183, %p184
    %p186 = scmp.ne.s32.totalorder %s177, %s178
    %p187 = scmp.eq.s32.totalorder %s20, 0
    %p188 = por %p186, %p187
    %p189 = scmp.ne.s32.totalorder %s177, %s178
    %p190 = scmp.eq.s32.totalorder %s21, 1
    %p191 = por %p189, %p190
    %p193 = scmp.ne.s32.totalorder %s178, %s192
    %p194 = scmp.eq.s32.totalorder %s21, 0
    %p195 = por %p193, %p194
    %s197 = sadd.s32 %s196, 1
    %p200 = scmp.eq.s32.totalorder %s15, 1
    %p201 = scmp.ne.s32.totalorder %s196, %s198
    %p202 = scmp.eq.s32.totalorder %s15, 0
    %p203 = por %p201, %p202
    %p204 = scmp.ne.s32.totalorder %s196, %s198
    %p205 = scmp.eq.s32.totalorder %s20, 1
    %p206 = por %p204, %p205
    %p207 = scmp.ne.s32.totalorder %s198, %s199
    %p208 = scmp.eq.s32.totalorder %s20, 0
    %p209 = por %p207, %p208
    %p210 = scmp.ne.s32.totalorder %s198, %s199
    %p211 = scmp.eq.s32.totalorder %s21, 1
    %p212 = por %p210, %p211
    %p214 = scmp.ne.s32.totalorder %s199, %s213
    %p215 = scmp.eq.s32.totalorder %s21, 0
    %p216 = por %p214, %p215
    %s217 = ssub.s32 %s15, %s22
    %p218 = scmp.eq.s32.totalorder %s217, 0
    %s220 = sadd.s32 %s219, 1
    %s221 = scalar_select %p218, %s219, %s220
    %p224 = pneg %p218
    %p225 = scmp.eq.s32.totalorder %s15, 1
    %p226 = por %p224, %p225
    %p227 = scmp.ne.s32.totalorder %s219, %s222
    %p228 = scmp.eq.s32.totalorder %s15, 0
    %p229 = por %p227, %p228
    %p230 = scmp.ne.s32.totalorder %s219, %s222
    %p231 = scmp.eq.s32.totalorder %s20, 1
    %p232 = por %p230, %p231
    %p233 = scmp.ne.s32.totalorder %s222, %s223
    %p234 = scmp.eq.s32.totalorder %s20, 0
    %p235 = por %p233, %p234
    %p236 = scmp.ne.s32.totalorder %s222, %s223
    %p237 = scmp.eq.s32.totalorder %s21, 1
    %p238 = por %p236, %p237
    %p240 = scmp.ne.s32.totalorder %s223, %s239
    %p241 = scmp.eq.s32.totalorder %s21, 0
    %p242 = por %p240, %p241
    %p243 = scmp.le.s32.totalorder 1, %s15
    %p244 = scmp.lt.s32.totalorder %s15, 3
    %p245 = pnand %p243, %p244
    %p246 = pneg %p245
    // Predicated region
    $region9: #{autoencoder_forward.1} parent=5 // pred_check
      _
    $region10: #{autoencoder_forward.1} parent=5 // pred_check_branch
      %248 = sbr.rel (%p245) target = $region12
    $region11: #{autoencoder_forward.1} parent=5 // pred_region
      %s249 = ssub.s32 %s15, 1
      // Predicated region
      $region13: #{autoencoder_forward.1} parent=11 // pred_check
        %p250 = pneg %p62
      $region14: #{autoencoder_forward.1} parent=11 // pred_check_branch
        %252 = sbr.rel (%p250) target = $region16
      $region15: #{autoencoder_forward.1} parent=11 // pred_region
        _
      $region16: #{autoencoder_forward.1} parent=11 // pred_fallthru
        _
      // Predicated region
      $region17: #{autoencoder_forward.1} parent=11 // pred_check
        %p253 = pneg %p83
      $region18: #{autoencoder_forward.1} parent=11 // pred_check_branch
        %255 = sbr.rel (%p253) target = $region20
      $region19: #{autoencoder_forward.1} parent=11 // pred_region
        _
      $region20: #{autoencoder_forward.1} parent=11 // pred_fallthru
        _
      // Predicated region
      $region21: #{autoencoder_forward.1} parent=11 // pred_check
        %p256 = pneg %p104
      $region22: #{autoencoder_forward.1} parent=11 // pred_check_branch
        %258 = sbr.rel (%p256) target = $region24
      $region23: #{autoencoder_forward.1} parent=11 // pred_region
        _
      $region24: #{autoencoder_forward.1} parent=11 // pred_fallthru
        _
      // Predicated region
      $region25: #{autoencoder_forward.1} parent=11 // pred_check
        %p259 = pneg %p125
      $region26: #{autoencoder_forward.1} parent=11 // pred_check_branch
        %261 = sbr.rel (%p259) target = $region28
      $region27: #{autoencoder_forward.1} parent=11 // pred_region
        _
      $region28: #{autoencoder_forward.1} parent=11 // pred_fallthru
        _
      // Predicated region
      $region29: #{autoencoder_forward.1} parent=11 // pred_check
        %p262 = pneg %p146
      $region30: #{autoencoder_forward.1} parent=11 // pred_check_branch
        %264 = sbr.rel (%p262) target = $region32
      $region31: #{autoencoder_forward.1} parent=11 // pred_region
        _
      $region32: #{autoencoder_forward.1} parent=11 // pred_fallthru
        _
      // Predicated region
      $region33: #{autoencoder_forward.1} parent=11 // pred_check
        %p265 = pneg %p167
      $region34: #{autoencoder_forward.1} parent=11 // pred_check_branch
        %267 = sbr.rel (%p265) target = $region36
      $region35: #{autoencoder_forward.1} parent=11 // pred_region
        _
      $region36: #{autoencoder_forward.1} parent=11 // pred_fallthru
        _
      // Predicated region
      $region37: #{autoencoder_forward.1} parent=11 // pred_check
        %p268 = pneg %p188
      $region38: #{autoencoder_forward.1} parent=11 // pred_check_branch
        %270 = sbr.rel (%p268) target = $region40
      $region39: #{autoencoder_forward.1} parent=11 // pred_region
        _
      $region40: #{autoencoder_forward.1} parent=11 // pred_fallthru
        _
      // Predicated region
      $region41: #{autoencoder_forward.1} parent=11 // pred_check
        %p271 = pneg %p209
      $region42: #{autoencoder_forward.1} parent=11 // pred_check_branch
        %273 = sbr.rel (%p271) target = $region44
      $region43: #{autoencoder_forward.1} parent=11 // pred_region
        _
      $region44: #{autoencoder_forward.1} parent=11 // pred_fallthru
        _
    $region12: #{autoencoder_forward.1} parent=5 // pred_fallthru
      _
    %p274 = scmp.lt.s32.totalorder %s15, 2
    // Predicated region
    $region45: #{autoencoder_forward.1} parent=5 // pred_check
      %p275 = pneg %p274
    $region46: #{autoencoder_forward.1} parent=5 // pred_check_branch
      %277 = sbr.rel (%p275) target = $region48
    $region47: #{autoencoder_forward.1} parent=5 // pred_region
      // Predicated region
      $region49: #{autoencoder_forward.1} parent=47 // pred_check
        %p278 = pneg %p35
      $region50: #{autoencoder_forward.1} parent=47 // pred_check_branch
        %280 = sbr.rel (%p278) target = $region52
      $region51: #{autoencoder_forward.1} parent=47 // pred_region
        %p281 = scmp.lt.s32.totalorder %s15, 1
        %s282 = scalar_select %p281, %s15, 1
        %s283 = smul.addr %s282, 62
        %s284 = smul.addr %s283, 8
        %s285 = scalar_lea.vmem %s0, %s284
      $region52: #{autoencoder_forward.1} parent=47 // pred_fallthru
        _
    $region48: #{autoencoder_forward.1} parent=5 // pred_fallthru
      _
    %p286 = scmp.le.s32.totalorder 1, %s15
    %p287 = scmp.lt.s32.totalorder %s15, 3
    %p288 = pnand %p286, %p287
    %p289 = pneg %p288
    // Predicated region
    $region53: #{autoencoder_forward.1} parent=5 // pred_check
      _
    $region54: #{autoencoder_forward.1} parent=5 // pred_check_branch
      %291 = sbr.rel (%p288) target = $region56
    $region55: #{autoencoder_forward.1} parent=5 // pred_region
      %s292 = ssub.s32 %s15, 1
      %p293 = scmp.lt.s32.totalorder %s20, 1
      %s294 = scalar_select %p293, %s20, 1
      %s295 = smul.addr %s294, 62
      %s296 = smul.addr %s295, 8
      %s297 = scalar_lea.vmem %s0, %s296
      %p298 = pneg %p41
      %p299 = pneg %p38
      %p300 = pneg %p62
      %p301 = pneg %p59
      %p302 = pneg %p83
      %p303 = pneg %p80
      %p304 = pneg %p104
      %p305 = pneg %p101
      %p306 = pneg %p125
      %p307 = pneg %p122
      %p308 = pneg %p146
      %p309 = pneg %p143
      %p310 = pneg %p167
      %p311 = pneg %p164
      %p312 = pneg %p188
      %p313 = pneg %p185
      %p314 = pneg %p209
      %p315 = pneg %p206
      %p316 = pneg %p235
      %p317 = pneg %p232
      %p318 = scmp.lt.s32.totalorder %s20, 1
      %s319 = scalar_select %p318, %s20, 1
      %s320 = smul.addr %s319, 64
      %s321 = smul.addr %s320, 8
      %s322 = scalar_lea.vmem %s9, %s321
      %p323 = scmp.lt.s32.totalorder %s20, 1
      %s324 = scalar_select %p323, %s20, 1
      %s325 = smul.addr %s324, 62
      %s326 = smul.addr %s325, 8
      %s327 = scalar_lea.vmem %s0, %s326
      %p328 = scmp.lt.s32.totalorder %s20, 1
      %s329 = scalar_select %p328, %s20, 1
      %s330 = smul.addr %s329, 64
      %s331 = smul.addr %s330, 8
      %s332 = scalar_lea.vmem %s9, %s331
      %v333 = vlaneseq
      %v334 = vshrl.u32 %v333, 7
      %v335 = vadd.s32 %v334, 8
      %v336 = vadd.s32 %v334, 16
      %v337 = vadd.s32 %v334, 24
      %v338 = vcvt.s32.f32 %v334
      %v339 = vcvt.s32.f32 %v335
      %v340 = vcvt.s32.f32 %v336
      %v341 = vcvt.s32.f32 %v337
      %v342 = vrcp.pop 5.0
      %v343 = vmul.f32 5.0, %v342
      %v344 = vsub.f32 1.0, %v343
      %v345 = vmul.f32 %v342, %v344
      %v346 = vadd.f32 %v342, %v345
      %vm347 = vweird.f32 %v342
      %v348 = vsel %vm347, %v342, %v346
      %v349 = vmul.f32 %v338, %v348
      %v350 = vmul.f32 %v339, %v348
      %v351 = vmul.f32 %v340, %v348
      %v352 = vmul.f32 %v341, %v348
      %v353 = vfloor.f32 %v349
      %v354 = vfloor.f32 %v350
      %v355 = vfloor.f32 %v351
      %v356 = vfloor.f32 %v352
      %v357 = vmul.f32 %v353, 5.0
      %v358 = vmul.f32 %v354, 5.0
      %v359 = vmul.f32 %v355, 5.0
      %v360 = vmul.f32 %v356, 5.0
      %v361 = vsub.f32 %v338, %v357
      %v362 = vsub.f32 %v339, %v358
      %v363 = vsub.f32 %v340, %v359
      %v364 = vsub.f32 %v341, %v360
      %vm365 = vcmp.ge.f32.partialorder %v353, 1.0
      %vm366 = vcmp.ge.f32.partialorder %v354, 1.0
      %vm367 = vcmp.ge.f32.partialorder %v355, 1.0
      %vm368 = vcmp.ge.f32.partialorder %v356, 1.0
      %vm369 = vcmp.ge.f32.partialorder %v361, 1.0
      %vm370 = vcmp.ge.f32.partialorder %v362, 1.0
      %vm371 = vcmp.ge.f32.partialorder %v363, 1.0
      %vm372 = vcmp.ge.f32.partialorder %v364, 1.0
      %vm373 = vmand %vm365, %vm369
      %vm374 = vmand %vm366, %vm370
      %vm375 = vmand %vm367, %vm371
      %vm376 = vmand %vm368, %vm372
      %vm377 = vcmp.lt.f32.partialorder %v353, 4.0
      %vm378 = vcmp.lt.f32.partialorder %v354, 4.0
      %vm379 = vcmp.lt.f32.partialorder %v355, 4.0
      %vm380 = vcmp.lt.f32.partialorder %v356, 4.0
      %vm381 = vcmp.lt.f32.partialorder %v361, 4.0
      %vm382 = vcmp.lt.f32.partialorder %v362, 4.0
      %vm383 = vcmp.lt.f32.partialorder %v363, 4.0
      %vm384 = vcmp.lt.f32.partialorder %v364, 4.0
      %vm385 = vmand %vm377, %vm381
      %vm386 = vmand %vm378, %vm382
      %vm387 = vmand %vm379, %vm383
      %vm388 = vmand %vm380, %vm384
      %vm389 = vcmask 261120
      %390 = vst.msk [vmem:[#allocation2] sm:$0xff] %vm389, 0.0
      %391 = vst.msk [vmem:[#allocation2 + $0x8] sm:$0xff] %vm389, 0.0
      %392 = vst.msk [vmem:[#allocation2 + $0x10] sm:$0xff] %vm389, 0.0
      %vm393 = vcmask 260096
      %394 = vst.msk [vmem:[#allocation2 + $0x18] sm:$0x7f] %vm393, 0.0
      %395 = vst.msk [vmem:[#allocation2 + $0x20] sm:$0xff] %vm389, 0.0
      %396 = vst.msk [vmem:[#allocation2 + $0x28] sm:$0xff] %vm389, 0.0
      %397 = vst.msk [vmem:[#allocation2 + $0x30] sm:$0xff] %vm389, 0.0
      %398 = vst.msk [vmem:[#allocation2 + $0x38] sm:$0x7f] %vm393, 0.0
      %399 = vst.msk [vmem:[#allocation2 + $0x40] sm:$0xff] %vm389, 0.0
      %400 = vst.msk [vmem:[#allocation2 + $0x48] sm:$0xff] %vm389, 0.0
      %401 = vst.msk [vmem:[#allocation2 + $0x50] sm:$0xff] %vm389, 0.0
      %402 = vst.msk [vmem:[#allocation2 + $0x58] sm:$0x7f] %vm393, 0.0
      %403 = vst.msk [vmem:[#allocation2 + $0x60] sm:$0xff] %vm389, 0.0
      %404 = vst.msk [vmem:[#allocation2 + $0x68] sm:$0xff] %vm389, 0.0
      %405 = vst.msk [vmem:[#allocation2 + $0x70] sm:$0xff] %vm389, 0.0
      %406 = vst.msk [vmem:[#allocation2 + $0x78] sm:$0x7f] %vm393, 0.0
      %vm407 = vcmask 523264
      %408 = vst.msk [vmem:[#allocation3] sm:$0xff] %vm407, 0.0
      %409 = vst.msk [vmem:[#allocation3 + $0x8] sm:$0xff] %vm407, 0.0
      %410 = vst.msk [vmem:[#allocation3 + $0x10] sm:$0xff] %vm407, 0.0
      %vm411 = vcmask 522240
      %412 = vst.msk [vmem:[#allocation3 + $0x18] sm:$0x7f] %vm411, 0.0
      %413 = vst.msk [vmem:[#allocation4] sm:$0xff] %vm389, 0.0
      %414 = vst.msk [vmem:[#allocation4 + $0x8] sm:$0xff] %vm389, 0.0
      %415 = vst.msk [vmem:[#allocation4 + $0x10] sm:$0xff] %vm389, 0.0
      %416 = vst.msk [vmem:[#allocation4 + $0x18] sm:$0x7f] %vm393, 0.0
      %417 = vst.msk [vmem:[#allocation4 + $0x20] sm:$0xff] %vm389, 0.0
      %418 = vst.msk [vmem:[#allocation4 + $0x28] sm:$0xff] %vm389, 0.0
      %419 = vst.msk [vmem:[#allocation4 + $0x30] sm:$0xff] %vm389, 0.0
      %420 = vst.msk [vmem:[#allocation4 + $0x38] sm:$0x7f] %vm393, 0.0
      %421 = vst.msk [vmem:[#allocation4 + $0x40] sm:$0xff] %vm389, 0.0
      %422 = vst.msk [vmem:[#allocation4 + $0x48] sm:$0xff] %vm389, 0.0
      %423 = vst.msk [vmem:[#allocation4 + $0x50] sm:$0xff] %vm389, 0.0
      %424 = vst.msk [vmem:[#allocation4 + $0x58] sm:$0x7f] %vm393, 0.0
      %425 = vst.msk [vmem:[#allocation4 + $0x60] sm:$0xff] %vm389, 0.0
      %426 = vst.msk [vmem:[#allocation4 + $0x68] sm:$0xff] %vm389, 0.0
      %427 = vst.msk [vmem:[#allocation4 + $0x70] sm:$0xff] %vm389, 0.0
      %428 = vst.msk [vmem:[#allocation4 + $0x78] sm:$0x7f] %vm393, 0.0
      %v429 = vld [vmem:[%s327] sm:$0xff]
      %v430 = vld [vmem:[%s327 + $0x8] sm:$0xff]
      %v431 = vld [vmem:[%s327 + $0x10] sm:$0xff]
      %v432 = vld [vmem:[%s327 + $0x18] sm:$0x1]
      %v433 = vld [vmem:[%s1] sm:$0xff]
      %v434 = vld [vmem:[%s327 + $0x1f] sm:$0xff]
      %v435 = vld [vmem:[%s327 + $0x27] sm:$0xff]
      %v436 = vld [vmem:[%s327 + $0x2f] sm:$0xff]
      %v437 = vld [vmem:[%s327 + $0x37] sm:$0x1]
      %s438 = scalar_lea.vmem %s1, 8
      %v439 = vld [vmem:[%s438] sm:$0xff]
      %vm440 = vcmask 64512
      %v442 = vsel %vm440, %v434, 0
      %v445 = vsel %vm440, %v435, 0
      %v448 = vsel %vm440, %v436, 0
      %v451 = vsel %vm440, %v437, 0
      %453 = vmatpush.msra.mxu0 0.0
      %454 = vmatpush.msra.mxu0 0.0
      %455 = vmatpush.msra.mxu0 0.0
      %456 = vmatpush.msra.mxu0 0.0
      %457 = vmatpush.msra.mxu0 0.0
      %458 = vmatpush.msra.mxu0 0.0
      %459 = vmatpush.msra.mxu0 0.0
      %460 = vmatpush.msra.mxu0 0.0
      %461 = vmatpush.msra.mxu0 0.0
      %462 = vmatpush.msra.mxu0 0.0
      %463 = vmatpush.msra.mxu0 0.0
      %464 = vmatpush.msra.mxu0 0.0
      %465 = vmatpush.msra.mxu0 0.0
      %466 = vmatpush.msra.mxu0 0.0
      %467 = vmatpush.msra.mxu0 0.0
      %468 = vmatpush.msra.mxu0 %v439
      %469 = vmatmul.f32.gmra.mxu0 %v442
      %v470 = vpop.f32.mrf.mxu0
      %v471 = vadd.f32 0.0, %v470
      %472 = vmatmul.f32.gmra.mxu0 %v445
      %v473 = vpop.f32.mrf.mxu0
      %v474 = vadd.f32 0.0, %v473
      %475 = vmatmul.f32.gmra.mxu0 %v448
      %v476 = vpop.f32.mrf.mxu0
      %v477 = vadd.f32 0.0, %v476
      %478 = vmatmul.f32.gmra.mxu0 %v451
      %v479 = vpop.f32.mrf.mxu0
      %v480 = vadd.f32 0.0, %v479
      %481 = vdwg.mxu0
      %v483 = vsel %vm440, %v429, 0
      %v486 = vsel %vm440, %v430, 0
      %v489 = vsel %vm440, %v431, 0
      %v492 = vsel %vm440, %v432, 0
      %494 = vmatpush.msra.mxu0 0.0
      %495 = vmatpush.msra.mxu0 0.0
      %496 = vmatpush.msra.mxu0 0.0
      %497 = vmatpush.msra.mxu0 0.0
      %498 = vmatpush.msra.mxu0 0.0
      %499 = vmatpush.msra.mxu0 0.0
      %500 = vmatpush.msra.mxu0 0.0
      %501 = vmatpush.msra.mxu0 0.0
      %502 = vmatpush.msra.mxu0 0.0
      %503 = vmatpush.msra.mxu0 0.0
      %504 = vmatpush.msra.mxu0 0.0
      %505 = vmatpush.msra.mxu0 0.0
      %506 = vmatpush.msra.mxu0 0.0
      %507 = vmatpush.msra.mxu0 0.0
      %508 = vmatpush.msra.mxu0 0.0
      %509 = vmatpush.msra.mxu0 %v433
      %510 = vmatmul.f32.gmra.mxu0 %v483
      %v511 = vpop.f32.mrf.mxu0
      %v512 = vadd.f32 %v471, %v511
      %513 = vmatmul.f32.gmra.mxu0 %v486
      %v514 = vpop.f32.mrf.mxu0
      %v515 = vadd.f32 %v474, %v514
      %516 = vmatmul.f32.gmra.mxu0 %v489
      %v517 = vpop.f32.mrf.mxu0
      %v518 = vadd.f32 %v477, %v517
      %519 = vmatmul.f32.gmra.mxu0 %v492
      %v520 = vpop.f32.mrf.mxu0
      %v521 = vadd.f32 %v480, %v520
      %522 = vdwg.mxu0
      %v523 = vld [vmem:[%s327 + $0x3e] sm:$0xff]
      %v524 = vld [vmem:[%s327 + $0x46] sm:$0xff]
      %v525 = vld [vmem:[%s327 + $0x4e] sm:$0xff]
      %v526 = vld [vmem:[%s327 + $0x56] sm:$0x1]
      %s527 = scalar_lea.vmem %s1, 16
      %v528 = vld [vmem:[%s527] sm:$0xff]
      %v530 = vsel %vm440, %v523, 0
      %v533 = vsel %vm440, %v524, 0
      %v536 = vsel %vm440, %v525, 0
      %v539 = vsel %vm440, %v526, 0
      %541 = vmatpush.msra.mxu0 0.0
      %542 = vmatpush.msra.mxu0 0.0
      %543 = vmatpush.msra.mxu0 0.0
      %544 = vmatpush.msra.mxu0 0.0
      %545 = vmatpush.msra.mxu0 0.0
      %546 = vmatpush.msra.mxu0 0.0
      %547 = vmatpush.msra.mxu0 0.0
      %548 = vmatpush.msra.mxu0 0.0
      %549 = vmatpush.msra.mxu0 0.0
      %550 = vmatpush.msra.mxu0 0.0
      %551 = vmatpush.msra.mxu0 0.0
      %552 = vmatpush.msra.mxu0 0.0
      %553 = vmatpush.msra.mxu0 0.0
      %554 = vmatpush.msra.mxu0 0.0
      %555 = vmatpush.msra.mxu0 0.0
      %556 = vmatpush.msra.mxu0 %v528
      %557 = vmatmul.f32.gmra.mxu0 %v530
      %v558 = vpop.f32.mrf.mxu0
      %v559 = vadd.f32 0.0, %v558
      %560 = vmatmul.f32.gmra.mxu0 %v533
      %v561 = vpop.f32.mrf.mxu0
      %v562 = vadd.f32 0.0, %v561
      %563 = vmatmul.f32.gmra.mxu0 %v536
      %v564 = vpop.f32.mrf.mxu0
      %v565 = vadd.f32 0.0, %v564
      %566 = vmatmul.f32.gmra.mxu0 %v539
      %v567 = vpop.f32.mrf.mxu0
      %v568 = vadd.f32 0.0, %v567
      %569 = vdwg.mxu0
      %v570 = vadd.f32 %v512, %v559
      %v571 = vadd.f32 %v515, %v562
      %v572 = vadd.f32 %v518, %v565
      %v573 = vadd.f32 %v521, %v568
      %v574 = vld [vmem:[%s327 + $0x7c] sm:$0xff]
      %v575 = vld [vmem:[%s327 + $0x84] sm:$0xff]
      %v576 = vld [vmem:[%s327 + $0x8c] sm:$0xff]
      %v577 = vld [vmem:[%s327 + $0x94] sm:$0x1]
      %s578 = scalar_lea.vmem %s1, 24
      %v579 = vld [vmem:[%s578] sm:$0xff]
      %v581 = vsel %vm440, %v574, 0
      %v584 = vsel %vm440, %v575, 0
      %v587 = vsel %vm440, %v576, 0
      %v590 = vsel %vm440, %v577, 0
      %592 = vmatpush.msra.mxu0 0.0
      %593 = vmatpush.msra.mxu0 0.0
      %594 = vmatpush.msra.mxu0 0.0
      %595 = vmatpush.msra.mxu0 0.0
      %596 = vmatpush.msra.mxu0 0.0
      %597 = vmatpush.msra.mxu0 0.0
      %598 = vmatpush.msra.mxu0 0.0
      %599 = vmatpush.msra.mxu0 0.0
      %600 = vmatpush.msra.mxu0 0.0
      %601 = vmatpush.msra.mxu0 0.0
      %602 = vmatpush.msra.mxu0 0.0
      %603 = vmatpush.msra.mxu0 0.0
      %604 = vmatpush.msra.mxu0 0.0
      %605 = vmatpush.msra.mxu0 0.0
      %606 = vmatpush.msra.mxu0 0.0
      %607 = vmatpush.msra.mxu0 %v579
      %608 = vmatmul.f32.gmra.mxu0 %v581
      %v609 = vpop.f32.mrf.mxu0
      %v610 = vadd.f32 0.0, %v609
      %611 = vmatmul.f32.gmra.mxu0 %v584
      %v612 = vpop.f32.mrf.mxu0
      %v613 = vadd.f32 0.0, %v612
      %614 = vmatmul.f32.gmra.mxu0 %v587
      %v615 = vpop.f32.mrf.mxu0
      %v616 = vadd.f32 0.0, %v615
      %617 = vmatmul.f32.gmra.mxu0 %v590
      %v618 = vpop.f32.mrf.mxu0
      %v619 = vadd.f32 0.0, %v618
      %620 = vdwg.mxu0
      %v621 = vadd.f32 %v570, %v610
      %v622 = vadd.f32 %v571, %v613
      %v623 = vadd.f32 %v572, %v616
      %v624 = vadd.f32 %v573, %v619
      %v625 = vld [vmem:[%s327 + $0x9b] sm:$0xff]
      %v626 = vld [vmem:[%s327 + $0xa3] sm:$0xff]
      %v627 = vld [vmem:[%s327 + $0xab] sm:$0xff]
      %v628 = vld [vmem:[%s327 + $0xb3] sm:$0x1]
      %s629 = scalar_lea.vmem %s1, 32
      %v630 = vld [vmem:[%s629] sm:$0xff]
      %v632 = vsel %vm440, %v625, 0
      %v635 = vsel %vm440, %v626, 0
      %v638 = vsel %vm440, %v627, 0
      %v641 = vsel %vm440, %v628, 0
      %643 = vmatpush.msra.mxu0 0.0
      %644 = vmatpush.msra.mxu0 0.0
      %645 = vmatpush.msra.mxu0 0.0
      %646 = vmatpush.msra.mxu0 0.0
      %647 = vmatpush.msra.mxu0 0.0
      %648 = vmatpush.msra.mxu0 0.0
      %649 = vmatpush.msra.mxu0 0.0
      %650 = vmatpush.msra.mxu0 0.0
      %651 = vmatpush.msra.mxu0 0.0
      %652 = vmatpush.msra.mxu0 0.0
      %653 = vmatpush.msra.mxu0 0.0
      %654 = vmatpush.msra.mxu0 0.0
      %655 = vmatpush.msra.mxu0 0.0
      %656 = vmatpush.msra.mxu0 0.0
      %657 = vmatpush.msra.mxu0 0.0
      %658 = vmatpush.msra.mxu0 %v630
      %659 = vmatmul.f32.gmra.mxu0 %v632
      %v660 = vpop.f32.mrf.mxu0
      %v661 = vadd.f32 0.0, %v660
      %662 = vmatmul.f32.gmra.mxu0 %v635
      %v663 = vpop.f32.mrf.mxu0
      %v664 = vadd.f32 0.0, %v663
      %665 = vmatmul.f32.gmra.mxu0 %v638
      %v666 = vpop.f32.mrf.mxu0
      %v667 = vadd.f32 0.0, %v666
      %668 = vmatmul.f32.gmra.mxu0 %v641
      %v669 = vpop.f32.mrf.mxu0
      %v670 = vadd.f32 0.0, %v669
      %671 = vdwg.mxu0
      %v672 = vadd.f32 %v621, %v661
      %v673 = vadd.f32 %v622, %v664
      %v674 = vadd.f32 %v623, %v667
      %v675 = vadd.f32 %v624, %v670
      %v676 = vld [vmem:[%s327 + $0xba] sm:$0xff]
      %v677 = vld [vmem:[%s327 + $0xc2] sm:$0xff]
      %v678 = vld [vmem:[%s327 + $0xca] sm:$0xff]
      %v679 = vld [vmem:[%s327 + $0xd2] sm:$0x1]
      %s680 = scalar_lea.vmem %s1, 40
      %v681 = vld [vmem:[%s680] sm:$0xff]
      %v683 = vsel %vm440, %v676, 0
      %v686 = vsel %vm440, %v677, 0
      %v689 = vsel %vm440, %v678, 0
      %v692 = vsel %vm440, %v679, 0
      %694 = vmatpush.msra.mxu0 0.0
      %695 = vmatpush.msra.mxu0 0.0
      %696 = vmatpush.msra.mxu0 0.0
      %697 = vmatpush.msra.mxu0 0.0
      %698 = vmatpush.msra.mxu0 0.0
      %699 = vmatpush.msra.mxu0 0.0
      %700 = vmatpush.msra.mxu0 0.0
      %701 = vmatpush.msra.mxu0 0.0
      %702 = vmatpush.msra.mxu0 0.0
      %703 = vmatpush.msra.mxu0 0.0
      %704 = vmatpush.msra.mxu0 0.0
      %705 = vmatpush.msra.mxu0 0.0
      %706 = vmatpush.msra.mxu0 0.0
      %707 = vmatpush.msra.mxu0 0.0
      %708 = vmatpush.msra.mxu0 0.0
      %709 = vmatpush.msra.mxu0 %v681
      %710 = vmatmul.f32.gmra.mxu0 %v683
      %v711 = vpop.f32.mrf.mxu0
      %v712 = vadd.f32 0.0, %v711
      %713 = vmatmul.f32.gmra.mxu0 %v686
      %v714 = vpop.f32.mrf.mxu0
      %v715 = vadd.f32 0.0, %v714
      %716 = vmatmul.f32.gmra.mxu0 %v689
      %v717 = vpop.f32.mrf.mxu0
      %v718 = vadd.f32 0.0, %v717
      %719 = vmatmul.f32.gmra.mxu0 %v692
      %v720 = vpop.f32.mrf.mxu0
      %v721 = vadd.f32 0.0, %v720
      %722 = vdwg.mxu0
      %v723 = vadd.f32 %v672, %v712
      %v724 = vadd.f32 %v673, %v715
      %v725 = vadd.f32 %v674, %v718
      %v726 = vadd.f32 %v675, %v721
      %v727 = vld [vmem:[%s327 + $0xf8] sm:$0xff]
      %v728 = vld [vmem:[%s327 + $0x100] sm:$0xff]
      %v729 = vld [vmem:[%s327 + $0x108] sm:$0xff]
      %v730 = vld [vmem:[%s327 + $0x110] sm:$0x1]
      %s731 = scalar_lea.vmem %s1, 48
      %v732 = vld [vmem:[%s731] sm:$0xff]
      %v734 = vsel %vm440, %v727, 0
      %v737 = vsel %vm440, %v728, 0
      %v740 = vsel %vm440, %v729, 0
      %v743 = vsel %vm440, %v730, 0
      %745 = vmatpush.msra.mxu0 0.0
      %746 = vmatpush.msra.mxu0 0.0
      %747 = vmatpush.msra.mxu0 0.0
      %748 = vmatpush.msra.mxu0 0.0
      %749 = vmatpush.msra.mxu0 0.0
      %750 = vmatpush.msra.mxu0 0.0
      %751 = vmatpush.msra.mxu0 0.0
      %752 = vmatpush.msra.mxu0 0.0
      %753 = vmatpush.msra.mxu0 0.0
      %754 = vmatpush.msra.mxu0 0.0
      %755 = vmatpush.msra.mxu0 0.0
      %756 = vmatpush.msra.mxu0 0.0
      %757 = vmatpush.msra.mxu0 0.0
      %758 = vmatpush.msra.mxu0 0.0
      %759 = vmatpush.msra.mxu0 0.0
      %760 = vmatpush.msra.mxu0 %v732
      %761 = vmatmul.f32.gmra.mxu0 %v734
      %v762 = vpop.f32.mrf.mxu0
      %v763 = vadd.f32 0.0, %v762
      %764 = vmatmul.f32.gmra.mxu0 %v737
      %v765 = vpop.f32.mrf.mxu0
      %v766 = vadd.f32 0.0, %v765
      %767 = vmatmul.f32.gmra.mxu0 %v740
      %v768 = vpop.f32.mrf.mxu0
      %v769 = vadd.f32 0.0, %v768
      %770 = vmatmul.f32.gmra.mxu0 %v743
      %v771 = vpop.f32.mrf.mxu0
      %v772 = vadd.f32 0.0, %v771
      %773 = vdwg.mxu0
      %v774 = vadd.f32 %v723, %v763
      %v775 = vadd.f32 %v724, %v766
      %v776 = vadd.f32 %v725, %v769
      %v777 = vadd.f32 %v726, %v772
      %v778 = vld [vmem:[%s327 + $0x117] sm:$0xff]
      %v779 = vld [vmem:[%s327 + $0x11f] sm:$0xff]
      %v780 = vld [vmem:[%s327 + $0x127] sm:$0xff]
      %v781 = vld [vmem:[%s327 + $0x12f] sm:$0x1]
      %s782 = scalar_lea.vmem %s1, 56
      %v783 = vld [vmem:[%s782] sm:$0xff]
      %v785 = vsel %vm440, %v778, 0
      %v788 = vsel %vm440, %v779, 0
      %v791 = vsel %vm440, %v780, 0
      %v794 = vsel %vm440, %v781, 0
      %796 = vmatpush.msra.mxu0 0.0
      %797 = vmatpush.msra.mxu0 0.0
      %798 = vmatpush.msra.mxu0 0.0
      %799 = vmatpush.msra.mxu0 0.0
      %800 = vmatpush.msra.mxu0 0.0
      %801 = vmatpush.msra.mxu0 0.0
      %802 = vmatpush.msra.mxu0 0.0
      %803 = vmatpush.msra.mxu0 0.0
      %804 = vmatpush.msra.mxu0 0.0
      %805 = vmatpush.msra.mxu0 0.0
      %806 = vmatpush.msra.mxu0 0.0
      %807 = vmatpush.msra.mxu0 0.0
      %808 = vmatpush.msra.mxu0 0.0
      %809 = vmatpush.msra.mxu0 0.0
      %810 = vmatpush.msra.mxu0 0.0
      %811 = vmatpush.msra.mxu0 %v783
      %812 = vmatmul.f32.gmra.mxu0 %v785
      %v813 = vpop.f32.mrf.mxu0
      %v814 = vadd.f32 0.0, %v813
      %815 = vmatmul.f32.gmra.mxu0 %v788
      %v816 = vpop.f32.mrf.mxu0
      %v817 = vadd.f32 0.0, %v816
      %818 = vmatmul.f32.gmra.mxu0 %v791
      %v819 = vpop.f32.mrf.mxu0
      %v820 = vadd.f32 0.0, %v819
      %821 = vmatmul.f32.gmra.mxu0 %v794
      %v822 = vpop.f32.mrf.mxu0
      %v823 = vadd.f32 0.0, %v822
      %824 = vdwg.mxu0
      %v825 = vadd.f32 %v774, %v814
      %v826 = vadd.f32 %v775, %v817
      %v827 = vadd.f32 %v776, %v820
      %v828 = vadd.f32 %v777, %v823
      %v829 = vld [vmem:[%s327 + $0x136] sm:$0xff]
      %v830 = vld [vmem:[%s327 + $0x13e] sm:$0xff]
      %v831 = vld [vmem:[%s327 + $0x146] sm:$0xff]
      %v832 = vld [vmem:[%s327 + $0x14e] sm:$0x1]
      %s833 = scalar_lea.vmem %s1, 64
      %v834 = vld [vmem:[%s833] sm:$0xff]
      %v836 = vsel %vm440, %v829, 0
      %v839 = vsel %vm440, %v830, 0
      %v842 = vsel %vm440, %v831, 0
      %v845 = vsel %vm440, %v832, 0
      %847 = vmatpush.msra.mxu0 0.0
      %848 = vmatpush.msra.mxu0 0.0
      %849 = vmatpush.msra.mxu0 0.0
      %850 = vmatpush.msra.mxu0 0.0
      %851 = vmatpush.msra.mxu0 0.0
      %852 = vmatpush.msra.mxu0 0.0
      %853 = vmatpush.msra.mxu0 0.0
      %854 = vmatpush.msra.mxu0 0.0
      %855 = vmatpush.msra.mxu0 0.0
      %856 = vmatpush.msra.mxu0 0.0
      %857 = vmatpush.msra.mxu0 0.0
      %858 = vmatpush.msra.mxu0 0.0
      %859 = vmatpush.msra.mxu0 0.0
      %860 = vmatpush.msra.mxu0 0.0
      %861 = vmatpush.msra.mxu0 0.0
      %862 = vmatpush.msra.mxu0 %v834
      %863 = vmatmul.f32.gmra.mxu0 %v836
      %v864 = vpop.f32.mrf.mxu0
      %v865 = vadd.f32 0.0, %v864
      %866 = vmatmul.f32.gmra.mxu0 %v839
      %v867 = vpop.f32.mrf.mxu0
      %v868 = vadd.f32 0.0, %v867
      %869 = vmatmul.f32.gmra.mxu0 %v842
      %v870 = vpop.f32.mrf.mxu0
      %v871 = vadd.f32 0.0, %v870
      %872 = vmatmul.f32.gmra.mxu0 %v845
      %v873 = vpop.f32.mrf.mxu0
      %v874 = vadd.f32 0.0, %v873
      %875 = vdwg.mxu0
      %v876 = vadd.f32 %v825, %v865
      %v877 = vadd.f32 %v826, %v868
      %v878 = vadd.f32 %v827, %v871
      %v879 = vadd.f32 %v828, %v874
      %v880 = vld [vmem:[%s2] sm:$0x1]
      %v882 = vperm.slane %v880, 0
      %v884 = vadd.f32 %v876, %v882
      %v885 = vadd.f32 %v877, %v882
      %v886 = vadd.f32 %v878, %v882
      %v887 = vadd.f32 %v879, %v882
      %v888 = vmax.f32 %v884, 0.0
      %v889 = vmax.f32 %v885, 0.0
      %v890 = vmax.f32 %v886, 0.0
      %v891 = vmax.f32 %v887, 0.0
      %v892 = vsel %vm373, 1, 0
      %v893 = vsel %vm374, 1, 0
      %v894 = vsel %vm375, 1, 0
      %v895 = vsel %vm376, 1, 0
      %vm896 = vcmp.eq.s32.totalorder %v892, 1
      %vm897 = vcmp.eq.s32.totalorder %v893, 1
      %vm898 = vcmp.eq.s32.totalorder %v894, 1
      %vm899 = vcmp.eq.s32.totalorder %v895, 1
      %v900 = vsel %vm896, %v888, 0.0
      %v901 = vsel %vm897, %v889, 0.0
      %v902 = vsel %vm898, %v890, 0.0
      %v903 = vsel %vm899, %v891, 0.0
      %904 = vst.msk [vmem:[#allocation2] sm:$0xff] %vm389, %v900
      %905 = vst.msk [vmem:[#allocation2 + $0x8] sm:$0xff] %vm389, %v901
      %906 = vst.msk [vmem:[#allocation2 + $0x10] sm:$0xff] %vm389, %v902
      %vm907 = vcmask 253952
      %908 = vst.msk [vmem:[#allocation2 + $0x18] sm:$0x1] %vm907, %v903
      %v909 = vld [vmem:[%s327 + $0x3e] sm:$0xff]
      %v910 = vld [vmem:[%s327 + $0x46] sm:$0xff]
      %v911 = vld [vmem:[%s327 + $0x4e] sm:$0xff]
      %v912 = vld [vmem:[%s327 + $0x56] sm:$0x1]
      %v913 = vld [vmem:[%s1] sm:$0xff]
      %v914 = vld [vmem:[%s327 + $0x5d] sm:$0xff]
      %v915 = vld [vmem:[%s327 + $0x65] sm:$0xff]
      %v916 = vld [vmem:[%s327 + $0x6d] sm:$0xff]
      %v917 = vld [vmem:[%s327 + $0x75] sm:$0x1]
      %v918 = vld [vmem:[%s438] sm:$0xff]
      %v920 = vsel %vm440, %v914, 0
      %v923 = vsel %vm440, %v915, 0
      %v926 = vsel %vm440, %v916, 0
      %v929 = vsel %vm440, %v917, 0
      %931 = vmatpush.msra.mxu0 0.0
      %932 = vmatpush.msra.mxu0 0.0
      %933 = vmatpush.msra.mxu0 0.0
      %934 = vmatpush.msra.mxu0 0.0
      %935 = vmatpush.msra.mxu0 0.0
      %936 = vmatpush.msra.mxu0 0.0
      %937 = vmatpush.msra.mxu0 0.0
      %938 = vmatpush.msra.mxu0 0.0
      %939 = vmatpush.msra.mxu0 0.0
      %940 = vmatpush.msra.mxu0 0.0
      %941 = vmatpush.msra.mxu0 0.0
      %942 = vmatpush.msra.mxu0 0.0
      %943 = vmatpush.msra.mxu0 0.0
      %944 = vmatpush.msra.mxu0 0.0
      %945 = vmatpush.msra.mxu0 0.0
      %946 = vmatpush.msra.mxu0 %v918
      %947 = vmatmul.f32.gmra.mxu0 %v920
      %v948 = vpop.f32.mrf.mxu0
      %v949 = vadd.f32 0.0, %v948
      %950 = vmatmul.f32.gmra.mxu0 %v923
      %v951 = vpop.f32.mrf.mxu0
      %v952 = vadd.f32 0.0, %v951
      %953 = vmatmul.f32.gmra.mxu0 %v926
      %v954 = vpop.f32.mrf.mxu0
      %v955 = vadd.f32 0.0, %v954
      %956 = vmatmul.f32.gmra.mxu0 %v929
      %v957 = vpop.f32.mrf.mxu0
      %v958 = vadd.f32 0.0, %v957
      %959 = vdwg.mxu0
      %v961 = vsel %vm440, %v909, 0
      %v964 = vsel %vm440, %v910, 0
      %v967 = vsel %vm440, %v911, 0
      %v970 = vsel %vm440, %v912, 0
      %972 = vmatpush.msra.mxu0 0.0
      %973 = vmatpush.msra.mxu0 0.0
      %974 = vmatpush.msra.mxu0 0.0
      %975 = vmatpush.msra.mxu0 0.0
      %976 = vmatpush.msra.mxu0 0.0
      %977 = vmatpush.msra.mxu0 0.0
      %978 = vmatpush.msra.mxu0 0.0
      %979 = vmatpush.msra.mxu0 0.0
      %980 = vmatpush.msra.mxu0 0.0
      %981 = vmatpush.msra.mxu0 0.0
      %982 = vmatpush.msra.mxu0 0.0
      %983 = vmatpush.msra.mxu0 0.0
      %984 = vmatpush.msra.mxu0 0.0
      %985 = vmatpush.msra.mxu0 0.0
      %986 = vmatpush.msra.mxu0 0.0
      %987 = vmatpush.msra.mxu0 %v913
      %988 = vmatmul.f32.gmra.mxu0 %v961
      %v989 = vpop.f32.mrf.mxu0
      %v990 = vadd.f32 %v949, %v989
      %991 = vmatmul.f32.gmra.mxu0 %v964
      %v992 = vpop.f32.mrf.mxu0
      %v993 = vadd.f32 %v952, %v992
      %994 = vmatmul.f32.gmra.mxu0 %v967
      %v995 = vpop.f32.mrf.mxu0
      %v996 = vadd.f32 %v955, %v995
      %997 = vmatmul.f32.gmra.mxu0 %v970
      %v998 = vpop.f32.mrf.mxu0
      %v999 = vadd.f32 %v958, %v998
      %1000 = vdwg.mxu0
      %v1001 = vld [vmem:[%s327 + $0x1] sm:$0xff]
      %v1002 = vld [vmem:[%s327 + $0x9] sm:$0xff]
      %v1003 = vld [vmem:[%s327 + $0x11] sm:$0xff]
      %v1004 = vld [vmem:[%s327 + $0x19] sm:$0x1]
      %v1005 = vld [vmem:[%s527] sm:$0xff]
      %v1007 = vsel %vm440, %v1001, 0
      %v1010 = vsel %vm440, %v1002, 0
      %v1013 = vsel %vm440, %v1003, 0
      %v1016 = vsel %vm440, %v1004, 0
      %1018 = vmatpush.msra.mxu0 0.0
      %1019 = vmatpush.msra.mxu0 0.0
      %1020 = vmatpush.msra.mxu0 0.0
      %1021 = vmatpush.msra.mxu0 0.0
      %1022 = vmatpush.msra.mxu0 0.0
      %1023 = vmatpush.msra.mxu0 0.0
      %1024 = vmatpush.msra.mxu0 0.0
      %1025 = vmatpush.msra.mxu0 0.0
      %1026 = vmatpush.msra.mxu0 0.0
      %1027 = vmatpush.msra.mxu0 0.0
      %1028 = vmatpush.msra.mxu0 0.0
      %1029 = vmatpush.msra.mxu0 0.0
      %1030 = vmatpush.msra.mxu0 0.0
      %1031 = vmatpush.msra.mxu0 0.0
      %1032 = vmatpush.msra.mxu0 0.0
      %1033 = vmatpush.msra.mxu0 %v1005
      %1034 = vmatmul.f32.gmra.mxu0 %v1007
      %v1035 = vpop.f32.mrf.mxu0
      %v1036 = vadd.f32 0.0, %v1035
      %1037 = vmatmul.f32.gmra.mxu0 %v1010
      %v1038 = vpop.f32.mrf.mxu0
      %v1039 = vadd.f32 0.0, %v1038
      %1040 = vmatmul.f32.gmra.mxu0 %v1013
      %v1041 = vpop.f32.mrf.mxu0
      %v1042 = vadd.f32 0.0, %v1041
      %1043 = vmatmul.f32.gmra.mxu0 %v1016
      %v1044 = vpop.f32.mrf.mxu0
      %v1045 = vadd.f32 0.0, %v1044
      %1046 = vdwg.mxu0
      %v1047 = vadd.f32 %v990, %v1036
      %v1048 = vadd.f32 %v993, %v1039
      %v1049 = vadd.f32 %v996, %v1042
      %v1050 = vadd.f32 %v999, %v1045
      %v1051 = vld [vmem:[%s327 + $0xba] sm:$0xff]
      %v1052 = vld [vmem:[%s327 + $0xc2] sm:$0xff]
      %v1053 = vld [vmem:[%s327 + $0xca] sm:$0xff]
      %v1054 = vld [vmem:[%s327 + $0xd2] sm:$0x1]
      %v1055 = vld [vmem:[%s578] sm:$0xff]
      %v1057 = vsel %vm440, %v1051, 0
      %v1060 = vsel %vm440, %v1052, 0
      %v1063 = vsel %vm440, %v1053, 0
      %v1066 = vsel %vm440, %v1054, 0
      %1068 = vmatpush.msra.mxu0 0.0
      %1069 = vmatpush.msra.mxu0 0.0
      %1070 = vmatpush.msra.mxu0 0.0
      %1071 = vmatpush.msra.mxu0 0.0
      %1072 = vmatpush.msra.mxu0 0.0
      %1073 = vmatpush.msra.mxu0 0.0
      %1074 = vmatpush.msra.mxu0 0.0
      %1075 = vmatpush.msra.mxu0 0.0
      %1076 = vmatpush.msra.mxu0 0.0
      %1077 = vmatpush.msra.mxu0 0.0
      %1078 = vmatpush.msra.mxu0 0.0
      %1079 = vmatpush.msra.mxu0 0.0
      %1080 = vmatpush.msra.mxu0 0.0
      %1081 = vmatpush.msra.mxu0 0.0
      %1082 = vmatpush.msra.mxu0 0.0
      %1083 = vmatpush.msra.mxu0 %v1055
      %1084 = vmatmul.f32.gmra.mxu0 %v1057
      %v1085 = vpop.f32.mrf.mxu0
      %v1086 = vadd.f32 0.0, %v1085
      %1087 = vmatmul.f32.gmra.mxu0 %v1060
      %v1088 = vpop.f32.mrf.mxu0
      %v1089 = vadd.f32 0.0, %v1088
      %1090 = vmatmul.f32.gmra.mxu0 %v1063
      %v1091 = vpop.f32.mrf.mxu0
      %v1092 = vadd.f32 0.0, %v1091
      %1093 = vmatmul.f32.gmra.mxu0 %v1066
      %v1094 = vpop.f32.mrf.mxu0
      %v1095 = vadd.f32 0.0, %v1094
      %1096 = vdwg.mxu0
      %v1097 = vadd.f32 %v1047, %v1086
      %v1098 = vadd.f32 %v1048, %v1089
      %v1099 = vadd.f32 %v1049, %v1092
      %v1100 = vadd.f32 %v1050, %v1095
      %v1101 = vld [vmem:[%s327 + $0xd9] sm:$0xff]
      %v1102 = vld [vmem:[%s327 + $0xe1] sm:$0xff]
      %v1103 = vld [vmem:[%s327 + $0xe9] sm:$0xff]
      %v1104 = vld [vmem:[%s327 + $0xf1] sm:$0x1]
      %v1105 = vld [vmem:[%s629] sm:$0xff]
      %v1107 = vsel %vm440, %v1101, 0
      %v1110 = vsel %vm440, %v1102, 0
      %v1113 = vsel %vm440, %v1103, 0
      %v1116 = vsel %vm440, %v1104, 0
      %1118 = vmatpush.msra.mxu0 0.0
      %1119 = vmatpush.msra.mxu0 0.0
      %1120 = vmatpush.msra.mxu0 0.0
      %1121 = vmatpush.msra.mxu0 0.0
      %1122 = vmatpush.msra.mxu0 0.0
      %1123 = vmatpush.msra.mxu0 0.0
      %1124 = vmatpush.msra.mxu0 0.0
      %1125 = vmatpush.msra.mxu0 0.0
      %1126 = vmatpush.msra.mxu0 0.0
      %1127 = vmatpush.msra.mxu0 0.0
      %1128 = vmatpush.msra.mxu0 0.0
      %1129 = vmatpush.msra.mxu0 0.0
      %1130 = vmatpush.msra.mxu0 0.0
      %1131 = vmatpush.msra.mxu0 0.0
      %1132 = vmatpush.msra.mxu0 0.0
      %1133 = vmatpush.msra.mxu0 %v1105
      %1134 = vmatmul.f32.gmra.mxu0 %v1107
      %v1135 = vpop.f32.mrf.mxu0
      %v1136 = vadd.f32 0.0, %v1135
      %1137 = vmatmul.f32.gmra.mxu0 %v1110
      %v1138 = vpop.f32.mrf.mxu0
      %v1139 = vadd.f32 0.0, %v1138
      %1140 = vmatmul.f32.gmra.mxu0 %v1113
      %v1141 = vpop.f32.mrf.mxu0
      %v1142 = vadd.f32 0.0, %v1141
      %1143 = vmatmul.f32.gmra.mxu0 %v1116
      %v1144 = vpop.f32.mrf.mxu0
      %v1145 = vadd.f32 0.0, %v1144
      %1146 = vdwg.mxu0
      %v1147 = vadd.f32 %v1097, %v1136
      %v1148 = vadd.f32 %v1098, %v1139
      %v1149 = vadd.f32 %v1099, %v1142
      %v1150 = vadd.f32 %v1100, %v1145
      %v1151 = vld [vmem:[%s327 + $0x7d] sm:$0xff]
      %v1152 = vld [vmem:[%s327 + $0x85] sm:$0xff]
      %v1153 = vld [vmem:[%s327 + $0x8d] sm:$0xff]
      %v1154 = vld [vmem:[%s327 + $0x95] sm:$0x1]
      %v1155 = vld [vmem:[%s680] sm:$0xff]
      %v1157 = vsel %vm440, %v1151, 0
      %v1160 = vsel %vm440, %v1152, 0
      %v1163 = vsel %vm440, %v1153, 0
      %v1166 = vsel %vm440, %v1154, 0
      %1168 = vmatpush.msra.mxu0 0.0
      %1169 = vmatpush.msra.mxu0 0.0
      %1170 = vmatpush.msra.mxu0 0.0
      %1171 = vmatpush.msra.mxu0 0.0
      %1172 = vmatpush.msra.mxu0 0.0
      %1173 = vmatpush.msra.mxu0 0.0
      %1174 = vmatpush.msra.mxu0 0.0
      %1175 = vmatpush.msra.mxu0 0.0
      %1176 = vmatpush.msra.mxu0 0.0
      %1177 = vmatpush.msra.mxu0 0.0
      %1178 = vmatpush.msra.mxu0 0.0
      %1179 = vmatpush.msra.mxu0 0.0
      %1180 = vmatpush.msra.mxu0 0.0
      %1181 = vmatpush.msra.mxu0 0.0
      %1182 = vmatpush.msra.mxu0 0.0
      %1183 = vmatpush.msra.mxu0 %v1155
      %1184 = vmatmul.f32.gmra.mxu0 %v1157
      %v1185 = vpop.f32.mrf.mxu0
      %v1186 = vadd.f32 0.0, %v1185
      %1187 = vmatmul.f32.gmra.mxu0 %v1160
      %v1188 = vpop.f32.mrf.mxu0
      %v1189 = vadd.f32 0.0, %v1188
      %1190 = vmatmul.f32.gmra.mxu0 %v1163
      %v1191 = vpop.f32.mrf.mxu0
      %v1192 = vadd.f32 0.0, %v1191
      %1193 = vmatmul.f32.gmra.mxu0 %v1166
      %v1194 = vpop.f32.mrf.mxu0
      %v1195 = vadd.f32 0.0, %v1194
      %1196 = vdwg.mxu0
      %v1197 = vadd.f32 %v1147, %v1186
      %v1198 = vadd.f32 %v1148, %v1189
      %v1199 = vadd.f32 %v1149, %v1192
      %v1200 = vadd.f32 %v1150, %v1195
      %v1201 = vld [vmem:[%s327 + $0x136] sm:$0xff]
      %v1202 = vld [vmem:[%s327 + $0x13e] sm:$0xff]
      %v1203 = vld [vmem:[%s327 + $0x146] sm:$0xff]
      %v1204 = vld [vmem:[%s327 + $0x14e] sm:$0x1]
      %v1205 = vld [vmem:[%s731] sm:$0xff]
      %v1207 = vsel %vm440, %v1201, 0
      %v1210 = vsel %vm440, %v1202, 0
      %v1213 = vsel %vm440, %v1203, 0
      %v1216 = vsel %vm440, %v1204, 0
      %1218 = vmatpush.msra.mxu0 0.0
      %1219 = vmatpush.msra.mxu0 0.0
      %1220 = vmatpush.msra.mxu0 0.0
      %1221 = vmatpush.msra.mxu0 0.0
      %1222 = vmatpush.msra.mxu0 0.0
      %1223 = vmatpush.msra.mxu0 0.0
      %1224 = vmatpush.msra.mxu0 0.0
      %1225 = vmatpush.msra.mxu0 0.0
      %1226 = vmatpush.msra.mxu0 0.0
      %1227 = vmatpush.msra.mxu0 0.0
      %1228 = vmatpush.msra.mxu0 0.0
      %1229 = vmatpush.msra.mxu0 0.0
      %1230 = vmatpush.msra.mxu0 0.0
      %1231 = vmatpush.msra.mxu0 0.0
      %1232 = vmatpush.msra.mxu0 0.0
      %1233 = vmatpush.msra.mxu0 %v1205
      %1234 = vmatmul.f32.gmra.mxu0 %v1207
      %v1235 = vpop.f32.mrf.mxu0
      %v1236 = vadd.f32 0.0, %v1235
      %1237 = vmatmul.f32.gmra.mxu0 %v1210
      %v1238 = vpop.f32.mrf.mxu0
      %v1239 = vadd.f32 0.0, %v1238
      %1240 = vmatmul.f32.gmra.mxu0 %v1213
      %v1241 = vpop.f32.mrf.mxu0
      %v1242 = vadd.f32 0.0, %v1241
      %1243 = vmatmul.f32.gmra.mxu0 %v1216
      %v1244 = vpop.f32.mrf.mxu0
      %v1245 = vadd.f32 0.0, %v1244
      %1246 = vdwg.mxu0
      %v1247 = vadd.f32 %v1197, %v1236
      %v1248 = vadd.f32 %v1198, %v1239
      %v1249 = vadd.f32 %v1199, %v1242
      %v1250 = vadd.f32 %v1200, %v1245
      %v1251 = vld [vmem:[%s327 + $0x155] sm:$0xff]
      %v1252 = vld [vmem:[%s327 + $0x15d] sm:$0xff]
      %v1253 = vld [vmem:[%s327 + $0x165] sm:$0xff]
      %v1254 = vld [vmem:[%s327 + $0x16d] sm:$0x1]
      %v1255 = vld [vmem:[%s782] sm:$0xff]
      %v1257 = vsel %vm440, %v1251, 0
      %v1260 = vsel %vm440, %v1252, 0
      %v1263 = vsel %vm440, %v1253, 0
      %v1266 = vsel %vm440, %v1254, 0
      %1268 = vmatpush.msra.mxu0 0.0
      %1269 = vmatpush.msra.mxu0 0.0
      %1270 = vmatpush.msra.mxu0 0.0
      %1271 = vmatpush.msra.mxu0 0.0
      %1272 = vmatpush.msra.mxu0 0.0
      %1273 = vmatpush.msra.mxu0 0.0
      %1274 = vmatpush.msra.mxu0 0.0
      %1275 = vmatpush.msra.mxu0 0.0
      %1276 = vmatpush.msra.mxu0 0.0
      %1277 = vmatpush.msra.mxu0 0.0
      %1278 = vmatpush.msra.mxu0 0.0
      %1279 = vmatpush.msra.mxu0 0.0
      %1280 = vmatpush.msra.mxu0 0.0
      %1281 = vmatpush.msra.mxu0 0.0
      %1282 = vmatpush.msra.mxu0 0.0
      %1283 = vmatpush.msra.mxu0 %v1255
      %1284 = vmatmul.f32.gmra.mxu0 %v1257
      %v1285 = vpop.f32.mrf.mxu0
      %v1286 = vadd.f32 0.0, %v1285
      %1287 = vmatmul.f32.gmra.mxu0 %v1260
      %v1288 = vpop.f32.mrf.mxu0
      %v1289 = vadd.f32 0.0, %v1288
      %1290 = vmatmul.f32.gmra.mxu0 %v1263
      %v1291 = vpop.f32.mrf.mxu0
      %v1292 = vadd.f32 0.0, %v1291
      %1293 = vmatmul.f32.gmra.mxu0 %v1266
      %v1294 = vpop.f32.mrf.mxu0
      %v1295 = vadd.f32 0.0, %v1294
      %1296 = vdwg.mxu0
      %v1297 = vadd.f32 %v1247, %v1286
      %v1298 = vadd.f32 %v1248, %v1289
      %v1299 = vadd.f32 %v1249, %v1292
      %v1300 = vadd.f32 %v1250, %v1295
      %v1301 = vld [vmem:[%s327 + $0xf9] sm:$0xff]
      %v1302 = vld [vmem:[%s327 + $0x101] sm:$0xff]
      %v1303 = vld [vmem:[%s327 + $0x109] sm:$0xff]
      %v1304 = vld [vmem:[%s327 + $0x111] sm:$0x1]
      %v1305 = vld [vmem:[%s833] sm:$0xff]
      %v1307 = vsel %vm440, %v1301, 0
      %v1310 = vsel %vm440, %v1302, 0
      %v1313 = vsel %vm440, %v1303, 0
      %v1316 = vsel %vm440, %v1304, 0
      %1318 = vmatpush.msra.mxu0 0.0
      %1319 = vmatpush.msra.mxu0 0.0
      %1320 = vmatpush.msra.mxu0 0.0
      %1321 = vmatpush.msra.mxu0 0.0
      %1322 = vmatpush.msra.mxu0 0.0
      %1323 = vmatpush.msra.mxu0 0.0
      %1324 = vmatpush.msra.mxu0 0.0
      %1325 = vmatpush.msra.mxu0 0.0
      %1326 = vmatpush.msra.mxu0 0.0
      %1327 = vmatpush.msra.mxu0 0.0
      %1328 = vmatpush.msra.mxu0 0.0
      %1329 = vmatpush.msra.mxu0 0.0
      %1330 = vmatpush.msra.mxu0 0.0
      %1331 = vmatpush.msra.mxu0 0.0
      %1332 = vmatpush.msra.mxu0 0.0
      %1333 = vmatpush.msra.mxu0 %v1305
      %1334 = vmatmul.f32.gmra.mxu0 %v1307
      %v1335 = vpop.f32.mrf.mxu0
      %v1336 = vadd.f32 0.0, %v1335
      %1337 = vmatmul.f32.gmra.mxu0 %v1310
      %v1338 = vpop.f32.mrf.mxu0
      %v1339 = vadd.f32 0.0, %v1338
      %1340 = vmatmul.f32.gmra.mxu0 %v1313
      %v1341 = vpop.f32.mrf.mxu0
      %v1342 = vadd.f32 0.0, %v1341
      %1343 = vmatmul.f32.gmra.mxu0 %v1316
      %v1344 = vpop.f32.mrf.mxu0
      %v1345 = vadd.f32 0.0, %v1344
      %1346 = vdwg.mxu0
      %v1347 = vadd.f32 %v1297, %v1336
      %v1348 = vadd.f32 %v1298, %v1339
      %v1349 = vadd.f32 %v1299, %v1342
      %v1350 = vadd.f32 %v1300, %v1345
      %v1351 = vld [vmem:[%s2] sm:$0x1]
      %v1353 = vperm.slane %v1351, 0
      %v1355 = vadd.f32 %v1347, %v1353
      %v1356 = vadd.f32 %v1348, %v1353
      %v1357 = vadd.f32 %v1349, %v1353
      %v1358 = vadd.f32 %v1350, %v1353
      %v1359 = vmax.f32 %v1355, 0.0
      %v1360 = vmax.f32 %v1356, 0.0
      %v1361 = vmax.f32 %v1357, 0.0
      %v1362 = vmax.f32 %v1358, 0.0
      %v1363 = vsel %vm896, %v1359, 0.0
      %v1364 = vsel %vm897, %v1360, 0.0
      %v1365 = vsel %vm898, %v1361, 0.0
      %v1366 = vsel %vm899, %v1362, 0.0
      %s1367 = scalar_lea.vmem [#allocation2], 32
      %1368 = vst.msk [vmem:[%s1367] sm:$0xff] %vm389, %v1363
      %1369 = vst.msk [vmem:[%s1367 + $0x8] sm:$0xff] %vm389, %v1364
      %1370 = vst.msk [vmem:[%s1367 + $0x10] sm:$0xff] %vm389, %v1365
      %1371 = vst.msk [vmem:[%s1367 + $0x18] sm:$0x1] %vm907, %v1366
      %v1372 = vld [vmem:[%s327 + $0xf8] sm:$0xff]
      %v1373 = vld [vmem:[%s327 + $0x100] sm:$0xff]
      %v1374 = vld [vmem:[%s327 + $0x108] sm:$0xff]
      %v1375 = vld [vmem:[%s327 + $0x110] sm:$0x1]
      %v1376 = vld [vmem:[%s1] sm:$0xff]
      %v1377 = vld [vmem:[%s327 + $0x117] sm:$0xff]
      %v1378 = vld [vmem:[%s327 + $0x11f] sm:$0xff]
      %v1379 = vld [vmem:[%s327 + $0x127] sm:$0xff]
      %v1380 = vld [vmem:[%s327 + $0x12f] sm:$0x1]
      %v1381 = vld [vmem:[%s438] sm:$0xff]
      %v1383 = vsel %vm440, %v1377, 0
      %v1386 = vsel %vm440, %v1378, 0
      %v1389 = vsel %vm440, %v1379, 0
      %v1392 = vsel %vm440, %v1380, 0
      %1394 = vmatpush.msra.mxu0 0.0
      %1395 = vmatpush.msra.mxu0 0.0
      %1396 = vmatpush.msra.mxu0 0.0
      %1397 = vmatpush.msra.mxu0 0.0
      %1398 = vmatpush.msra.mxu0 0.0
      %1399 = vmatpush.msra.mxu0 0.0
      %1400 = vmatpush.msra.mxu0 0.0
      %1401 = vmatpush.msra.mxu0 0.0
      %1402 = vmatpush.msra.mxu0 0.0
      %1403 = vmatpush.msra.mxu0 0.0
      %1404 = vmatpush.msra.mxu0 0.0
      %1405 = vmatpush.msra.mxu0 0.0
      %1406 = vmatpush.msra.mxu0 0.0
      %1407 = vmatpush.msra.mxu0 0.0
      %1408 = vmatpush.msra.mxu0 0.0
      %1409 = vmatpush.msra.mxu0 %v1381
      %1410 = vmatmul.f32.gmra.mxu0 %v1383
      %v1411 = vpop.f32.mrf.mxu0
      %v1412 = vadd.f32 0.0, %v1411
      %1413 = vmatmul.f32.gmra.mxu0 %v1386
      %v1414 = vpop.f32.mrf.mxu0
      %v1415 = vadd.f32 0.0, %v1414
      %1416 = vmatmul.f32.gmra.mxu0 %v1389
      %v1417 = vpop.f32.mrf.mxu0
      %v1418 = vadd.f32 0.0, %v1417
      %1419 = vmatmul.f32.gmra.mxu0 %v1392
      %v1420 = vpop.f32.mrf.mxu0
      %v1421 = vadd.f32 0.0, %v1420
      %1422 = vdwg.mxu0
      %v1424 = vsel %vm440, %v1372, 0
      %v1427 = vsel %vm440, %v1373, 0
      %v1430 = vsel %vm440, %v1374, 0
      %v1433 = vsel %vm440, %v1375, 0
      %1435 = vmatpush.msra.mxu0 0.0
      %1436 = vmatpush.msra.mxu0 0.0
      %1437 = vmatpush.msra.mxu0 0.0
      %1438 = vmatpush.msra.mxu0 0.0
      %1439 = vmatpush.msra.mxu0 0.0
      %1440 = vmatpush.msra.mxu0 0.0
      %1441 = vmatpush.msra.mxu0 0.0
      %1442 = vmatpush.msra.mxu0 0.0
      %1443 = vmatpush.msra.mxu0 0.0
      %1444 = vmatpush.msra.mxu0 0.0
      %1445 = vmatpush.msra.mxu0 0.0
      %1446 = vmatpush.msra.mxu0 0.0
      %1447 = vmatpush.msra.mxu0 0.0
      %1448 = vmatpush.msra.mxu0 0.0
      %1449 = vmatpush.msra.mxu0 0.0
      %1450 = vmatpush.msra.mxu0 %v1376
      %1451 = vmatmul.f32.gmra.mxu0 %v1424
      %v1452 = vpop.f32.mrf.mxu0
      %v1453 = vadd.f32 %v1412, %v1452
      %1454 = vmatmul.f32.gmra.mxu0 %v1427
      %v1455 = vpop.f32.mrf.mxu0
      %v1456 = vadd.f32 %v1415, %v1455
      %1457 = vmatmul.f32.gmra.mxu0 %v1430
      %v1458 = vpop.f32.mrf.mxu0
      %v1459 = vadd.f32 %v1418, %v1458
      %1460 = vmatmul.f32.gmra.mxu0 %v1433
      %v1461 = vpop.f32.mrf.mxu0
      %v1462 = vadd.f32 %v1421, %v1461
      %1463 = vdwg.mxu0
      %v1464 = vld [vmem:[%s327 + $0x136] sm:$0xff]
      %v1465 = vld [vmem:[%s327 + $0x13e] sm:$0xff]
      %v1466 = vld [vmem:[%s327 + $0x146] sm:$0xff]
      %v1467 = vld [vmem:[%s327 + $0x14e] sm:$0x1]
      %v1468 = vld [vmem:[%s527] sm:$0xff]
      %v1470 = vsel %vm440, %v1464, 0
      %v1473 = vsel %vm440, %v1465, 0
      %v1476 = vsel %vm440, %v1466, 0
      %v1479 = vsel %vm440, %v1467, 0
      %1481 = vmatpush.msra.mxu0 0.0
      %1482 = vmatpush.msra.mxu0 0.0
      %1483 = vmatpush.msra.mxu0 0.0
      %1484 = vmatpush.msra.mxu0 0.0
      %1485 = vmatpush.msra.mxu0 0.0
      %1486 = vmatpush.msra.mxu0 0.0
      %1487 = vmatpush.msra.mxu0 0.0
      %1488 = vmatpush.msra.mxu0 0.0
      %1489 = vmatpush.msra.mxu0 0.0
      %1490 = vmatpush.msra.mxu0 0.0
      %1491 = vmatpush.msra.mxu0 0.0
      %1492 = vmatpush.msra.mxu0 0.0
      %1493 = vmatpush.msra.mxu0 0.0
      %1494 = vmatpush.msra.mxu0 0.0
      %1495 = vmatpush.msra.mxu0 0.0
      %1496 = vmatpush.msra.mxu0 %v1468
      %1497 = vmatmul.f32.gmra.mxu0 %v1470
      %v1498 = vpop.f32.mrf.mxu0
      %v1499 = vadd.f32 0.0, %v1498
      %1500 = vmatmul.f32.gmra.mxu0 %v1473
      %v1501 = vpop.f32.mrf.mxu0
      %v1502 = vadd.f32 0.0, %v1501
      %1503 = vmatmul.f32.gmra.mxu0 %v1476
      %v1504 = vpop.f32.mrf.mxu0
      %v1505 = vadd.f32 0.0, %v1504
      %1506 = vmatmul.f32.gmra.mxu0 %v1479
      %v1507 = vpop.f32.mrf.mxu0
      %v1508 = vadd.f32 0.0, %v1507
      %1509 = vdwg.mxu0
      %v1510 = vadd.f32 %v1453, %v1499
      %v1511 = vadd.f32 %v1456, %v1502
      %v1512 = vadd.f32 %v1459, %v1505
      %v1513 = vadd.f32 %v1462, %v1508
      %v1514 = vld [vmem:[%s327 + $0x174] sm:$0xff]
      %v1515 = vld [vmem:[%s327 + $0x17c] sm:$0xff]
      %v1516 = vld [vmem:[%s327 + $0x184] sm:$0xff]
      %v1517 = vld [vmem:[%s327 + $0x18c] sm:$0x1]
      %v1518 = vld [vmem:[%s578] sm:$0xff]
      %v1520 = vsel %vm440, %v1514, 0
      %v1523 = vsel %vm440, %v1515, 0
      %v1526 = vsel %vm440, %v1516, 0
      %v1529 = vsel %vm440, %v1517, 0
      %1531 = vmatpush.msra.mxu0 0.0
      %1532 = vmatpush.msra.mxu0 0.0
      %1533 = vmatpush.msra.mxu0 0.0
      %1534 = vmatpush.msra.mxu0 0.0
      %1535 = vmatpush.msra.mxu0 0.0
      %1536 = vmatpush.msra.mxu0 0.0
      %1537 = vmatpush.msra.mxu0 0.0
      %1538 = vmatpush.msra.mxu0 0.0
      %1539 = vmatpush.msra.mxu0 0.0
      %1540 = vmatpush.msra.mxu0 0.0
      %1541 = vmatpush.msra.mxu0 0.0
      %1542 = vmatpush.msra.mxu0 0.0
      %1543 = vmatpush.msra.mxu0 0.0
      %1544 = vmatpush.msra.mxu0 0.0
      %1545 = vmatpush.msra.mxu0 0.0
      %1546 = vmatpush.msra.mxu0 %v1518
      %1547 = vmatmul.f32.gmra.mxu0 %v1520
      %v1548 = vpop.f32.mrf.mxu0
      %v1549 = vadd.f32 0.0, %v1548
      %1550 = vmatmul.f32.gmra.mxu0 %v1523
      %v1551 = vpop.f32.mrf.mxu0
      %v1552 = vadd.f32 0.0, %v1551
      %1553 = vmatmul.f32.gmra.mxu0 %v1526
      %v1554 = vpop.f32.mrf.mxu0
      %v1555 = vadd.f32 0.0, %v1554
      %1556 = vmatmul.f32.gmra.mxu0 %v1529
      %v1557 = vpop.f32.mrf.mxu0
      %v1558 = vadd.f32 0.0, %v1557
      %1559 = vdwg.mxu0
      %v1560 = vadd.f32 %v1510, %v1549
      %v1561 = vadd.f32 %v1511, %v1552
      %v1562 = vadd.f32 %v1512, %v1555
      %v1563 = vadd.f32 %v1513, %v1558
      %v1564 = vld [vmem:[%s327 + $0x193] sm:$0xff]
      %v1565 = vld [vmem:[%s327 + $0x19b] sm:$0xff]
      %v1566 = vld [vmem:[%s327 + $0x1a3] sm:$0xff]
      %v1567 = vld [vmem:[%s327 + $0x1ab] sm:$0x1]
      %v1568 = vld [vmem:[%s629] sm:$0xff]
      %v1570 = vsel %vm440, %v1564, 0
      %v1573 = vsel %vm440, %v1565, 0
      %v1576 = vsel %vm440, %v1566, 0
      %v1579 = vsel %vm440, %v1567, 0
      %1581 = vmatpush.msra.mxu0 0.0
      %1582 = vmatpush.msra.mxu0 0.0
      %1583 = vmatpush.msra.mxu0 0.0
      %1584 = vmatpush.msra.mxu0 0.0
      %1585 = vmatpush.msra.mxu0 0.0
      %1586 = vmatpush.msra.mxu0 0.0
      %1587 = vmatpush.msra.mxu0 0.0
      %1588 = vmatpush.msra.mxu0 0.0
      %1589 = vmatpush.msra.mxu0 0.0
      %1590 = vmatpush.msra.mxu0 0.0
      %1591 = vmatpush.msra.mxu0 0.0
      %1592 = vmatpush.msra.mxu0 0.0
      %1593 = vmatpush.msra.mxu0 0.0
      %1594 = vmatpush.msra.mxu0 0.0
      %1595 = vmatpush.msra.mxu0 0.0
      %1596 = vmatpush.msra.mxu0 %v1568
      %1597 = vmatmul.f32.gmra.mxu0 %v1570
      %v1598 = vpop.f32.mrf.mxu0
      %v1599 = vadd.f32 0.0, %v1598
      %1600 = vmatmul.f32.gmra.mxu0 %v1573
      %v1601 = vpop.f32.mrf.mxu0
      %v1602 = vadd.f32 0.0, %v1601
      %1603 = vmatmul.f32.gmra.mxu0 %v1576
      %v1604 = vpop.f32.mrf.mxu0
      %v1605 = vadd.f32 0.0, %v1604
      %1606 = vmatmul.f32.gmra.mxu0 %v1579
      %v1607 = vpop.f32.mrf.mxu0
      %v1608 = vadd.f32 0.0, %v1607
      %1609 = vdwg.mxu0
      %v1610 = vadd.f32 %v1560, %v1599
      %v1611 = vadd.f32 %v1561, %v1602
      %v1612 = vadd.f32 %v1562, %v1605
      %v1613 = vadd.f32 %v1563, %v1608
      %v1614 = vld [vmem:[%s327 + $0x1b2] sm:$0xff]
      %v1615 = vld [vmem:[%s327 + $0x1ba] sm:$0xff]
      %v1616 = vld [vmem:[%s327 + $0x1c2] sm:$0xff]
      %v1617 = vld [vmem:[%s327 + $0x1ca] sm:$0x1]
      %v1618 = vld [vmem:[%s680] sm:$0xff]
      %v1620 = vsel %vm440, %v1614, 0
      %v1623 = vsel %vm440, %v1615, 0
      %v1626 = vsel %vm440, %v1616, 0
      %v1629 = vsel %vm440, %v1617, 0
      %1631 = vmatpush.msra.mxu0 0.0
      %1632 = vmatpush.msra.mxu0 0.0
      %1633 = vmatpush.msra.mxu0 0.0
      %1634 = vmatpush.msra.mxu0 0.0
      %1635 = vmatpush.msra.mxu0 0.0
      %1636 = vmatpush.msra.mxu0 0.0
      %1637 = vmatpush.msra.mxu0 0.0
      %1638 = vmatpush.msra.mxu0 0.0
      %1639 = vmatpush.msra.mxu0 0.0
      %1640 = vmatpush.msra.mxu0 0.0
      %1641 = vmatpush.msra.mxu0 0.0
      %1642 = vmatpush.msra.mxu0 0.0
      %1643 = vmatpush.msra.mxu0 0.0
      %1644 = vmatpush.msra.mxu0 0.0
      %1645 = vmatpush.msra.mxu0 0.0
      %1646 = vmatpush.msra.mxu0 %v1618
      %1647 = vmatmul.f32.gmra.mxu0 %v1620
      %v1648 = vpop.f32.mrf.mxu0
      %v1649 = vadd.f32 0.0, %v1648
      %1650 = vmatmul.f32.gmra.mxu0 %v1623
      %v1651 = vpop.f32.mrf.mxu0
      %v1652 = vadd.f32 0.0, %v1651
      %1653 = vmatmul.f32.gmra.mxu0 %v1626
      %v1654 = vpop.f32.mrf.mxu0
      %v1655 = vadd.f32 0.0, %v1654
      %1656 = vmatmul.f32.gmra.mxu0 %v1629
      %v1657 = vpop.f32.mrf.mxu0
      %v1658 = vadd.f32 0.0, %v1657
      %1659 = vdwg.mxu0
      %v1660 = vadd.f32 %v1610, %v1649
      %v1661 = vadd.f32 %v1611, %v1652
      %v1662 = vadd.f32 %v1612, %v1655
      %v1663 = vadd.f32 %v1613, %v1658
      %v1664 = vld [vmem:[%s327 + $0x5] sm:$0xff]
      %v1665 = vld [vmem:[%s327 + $0xd] sm:$0xff]
      %v1666 = vld [vmem:[%s327 + $0x15] sm:$0xff]
      %v1667 = vld [vmem:[%s327 + $0x1d] sm:$0x1]
      %v1668 = vld [vmem:[%s731] sm:$0xff]
      %v1670 = vsel %vm440, %v1664, 0
      %v1673 = vsel %vm440, %v1665, 0
      %v1676 = vsel %vm440, %v1666, 0
      %v1679 = vsel %vm440, %v1667, 0
      %1681 = vmatpush.msra.mxu0 0.0
      %1682 = vmatpush.msra.mxu0 0.0
      %1683 = vmatpush.msra.mxu0 0.0
      %1684 = vmatpush.msra.mxu0 0.0
      %1685 = vmatpush.msra.mxu0 0.0
      %1686 = vmatpush.msra.mxu0 0.0
      %1687 = vmatpush.msra.mxu0 0.0
      %1688 = vmatpush.msra.mxu0 0.0
      %1689 = vmatpush.msra.mxu0 0.0
      %1690 = vmatpush.msra.mxu0 0.0
      %1691 = vmatpush.msra.mxu0 0.0
      %1692 = vmatpush.msra.mxu0 0.0
      %1693 = vmatpush.msra.mxu0 0.0
      %1694 = vmatpush.msra.mxu0 0.0
      %1695 = vmatpush.msra.mxu0 0.0
      %1696 = vmatpush.msra.mxu0 %v1668
      %1697 = vmatmul.f32.gmra.mxu0 %v1670
      %v1698 = vpop.f32.mrf.mxu0
      %v1699 = vadd.f32 0.0, %v1698
      %1700 = vmatmul.f32.gmra.mxu0 %v1673
      %v1701 = vpop.f32.mrf.mxu0
      %v1702 = vadd.f32 0.0, %v1701
      %1703 = vmatmul.f32.gmra.mxu0 %v1676
      %v1704 = vpop.f32.mrf.mxu0
      %v1705 = vadd.f32 0.0, %v1704
      %1706 = vmatmul.f32.gmra.mxu0 %v1679
      %v1707 = vpop.f32.mrf.mxu0
      %v1708 = vadd.f32 0.0, %v1707
      %1709 = vdwg.mxu0
      %v1710 = vadd.f32 %v1660, %v1699
      %v1711 = vadd.f32 %v1661, %v1702
      %v1712 = vadd.f32 %v1662, %v1705
      %v1713 = vadd.f32 %v1663, %v1708
      %v1714 = vld [vmem:[%s327 + $0x24] sm:$0xff]
      %v1715 = vld [vmem:[%s327 + $0x2c] sm:$0xff]
      %v1716 = vld [vmem:[%s327 + $0x34] sm:$0xff]
      %v1717 = vld [vmem:[%s327 + $0x3c] sm:$0x1]
      %v1718 = vld [vmem:[%s782] sm:$0xff]
      %v1720 = vsel %vm440, %v1714, 0
      %v1723 = vsel %vm440, %v1715, 0
      %v1726 = vsel %vm440, %v1716, 0
      %v1729 = vsel %vm440, %v1717, 0
      %1731 = vmatpush.msra.mxu0 0.0
      %1732 = vmatpush.msra.mxu0 0.0
      %1733 = vmatpush.msra.mxu0 0.0
      %1734 = vmatpush.msra.mxu0 0.0
      %1735 = vmatpush.msra.mxu0 0.0
      %1736 = vmatpush.msra.mxu0 0.0
      %1737 = vmatpush.msra.mxu0 0.0
      %1738 = vmatpush.msra.mxu0 0.0
      %1739 = vmatpush.msra.mxu0 0.0
      %1740 = vmatpush.msra.mxu0 0.0
      %1741 = vmatpush.msra.mxu0 0.0
      %1742 = vmatpush.msra.mxu0 0.0
      %1743 = vmatpush.msra.mxu0 0.0
      %1744 = vmatpush.msra.mxu0 0.0
      %1745 = vmatpush.msra.mxu0 0.0
      %1746 = vmatpush.msra.mxu0 %v1718
      %1747 = vmatmul.f32.gmra.mxu0 %v1720
      %v1748 = vpop.f32.mrf.mxu0
      %v1749 = vadd.f32 0.0, %v1748
      %1750 = vmatmul.f32.gmra.mxu0 %v1723
      %v1751 = vpop.f32.mrf.mxu0
      %v1752 = vadd.f32 0.0, %v1751
      %1753 = vmatmul.f32.gmra.mxu0 %v1726
      %v1754 = vpop.f32.mrf.mxu0
      %v1755 = vadd.f32 0.0, %v1754
      %1756 = vmatmul.f32.gmra.mxu0 %v1729
      %v1757 = vpop.f32.mrf.mxu0
      %v1758 = vadd.f32 0.0, %v1757
      %1759 = vdwg.mxu0
      %v1760 = vadd.f32 %v1710, %v1749
      %v1761 = vadd.f32 %v1711, %v1752
      %v1762 = vadd.f32 %v1712, %v1755
      %v1763 = vadd.f32 %v1713, %v1758
      %v1764 = vld [vmem:[%s327 + $0x43] sm:$0xff]
      %v1765 = vld [vmem:[%s327 + $0x4b] sm:$0xff]
      %v1766 = vld [vmem:[%s327 + $0x53] sm:$0xff]
      %v1767 = vld [vmem:[%s327 + $0x5b] sm:$0x1]
      %v1768 = vld [vmem:[%s833] sm:$0xff]
      %v1770 = vsel %vm440, %v1764, 0
      %v1773 = vsel %vm440, %v1765, 0
      %v1776 = vsel %vm440, %v1766, 0
      %v1779 = vsel %vm440, %v1767, 0
      %1781 = vmatpush.msra.mxu0 0.0
      %1782 = vmatpush.msra.mxu0 0.0
      %1783 = vmatpush.msra.mxu0 0.0
      %1784 = vmatpush.msra.mxu0 0.0
      %1785 = vmatpush.msra.mxu0 0.0
      %1786 = vmatpush.msra.mxu0 0.0
      %1787 = vmatpush.msra.mxu0 0.0
      %1788 = vmatpush.msra.mxu0 0.0
      %1789 = vmatpush.msra.mxu0 0.0
      %1790 = vmatpush.msra.mxu0 0.0
      %1791 = vmatpush.msra.mxu0 0.0
      %1792 = vmatpush.msra.mxu0 0.0
      %1793 = vmatpush.msra.mxu0 0.0
      %1794 = vmatpush.msra.mxu0 0.0
      %1795 = vmatpush.msra.mxu0 0.0
      %1796 = vmatpush.msra.mxu0 %v1768
      %1797 = vmatmul.f32.gmra.mxu0 %v1770
      %v1798 = vpop.f32.mrf.mxu0
      %v1799 = vadd.f32 0.0, %v1798
      %1800 = vmatmul.f32.gmra.mxu0 %v1773
      %v1801 = vpop.f32.mrf.mxu0
      %v1802 = vadd.f32 0.0, %v1801
      %1803 = vmatmul.f32.gmra.mxu0 %v1776
      %v1804 = vpop.f32.mrf.mxu0
      %v1805 = vadd.f32 0.0, %v1804
      %1806 = vmatmul.f32.gmra.mxu0 %v1779
      %v1807 = vpop.f32.mrf.mxu0
      %v1808 = vadd.f32 0.0, %v1807
      %1809 = vdwg.mxu0
      %v1810 = vadd.f32 %v1760, %v1799
      %v1811 = vadd.f32 %v1761, %v1802
      %v1812 = vadd.f32 %v1762, %v1805
      %v1813 = vadd.f32 %v1763, %v1808
      %v1814 = vld [vmem:[%s2] sm:$0x1]
      %v1816 = vperm.slane %v1814, 0
      %v1818 = vadd.f32 %v1810, %v1816
      %v1819 = vadd.f32 %v1811, %v1816
      %v1820 = vadd.f32 %v1812, %v1816
      %v1821 = vadd.f32 %v1813, %v1816
      %v1822 = vmax.f32 %v1818, 0.0
      %v1823 = vmax.f32 %v1819, 0.0
      %v1824 = vmax.f32 %v1820, 0.0
      %v1825 = vmax.f32 %v1821, 0.0
      %v1826 = vsel %vm896, %v1822, 0.0
      %v1827 = vsel %vm897, %v1823, 0.0
      %v1828 = vsel %vm898, %v1824, 0.0
      %v1829 = vsel %vm899, %v1825, 0.0
      %s1830 = scalar_lea.vmem [#allocation2], 64
      %1831 = vst.msk [vmem:[%s1830] sm:$0xff] %vm389, %v1826
      %1832 = vst.msk [vmem:[%s1830 + $0x8] sm:$0xff] %vm389, %v1827
      %1833 = vst.msk [vmem:[%s1830 + $0x10] sm:$0xff] %vm389, %v1828
      %1834 = vst.msk [vmem:[%s1830 + $0x18] sm:$0x1] %vm907, %v1829
      %v1835 = vld [vmem:[%s327 + $0x136] sm:$0xff]
      %v1836 = vld [vmem:[%s327 + $0x13e] sm:$0xff]
      %v1837 = vld [vmem:[%s327 + $0x146] sm:$0xff]
      %v1838 = vld [vmem:[%s327 + $0x14e] sm:$0x1]
      %v1839 = vld [vmem:[%s1] sm:$0xff]
      %v1840 = vld [vmem:[%s327 + $0x155] sm:$0xff]
      %v1841 = vld [vmem:[%s327 + $0x15d] sm:$0xff]
      %v1842 = vld [vmem:[%s327 + $0x165] sm:$0xff]
      %v1843 = vld [vmem:[%s327 + $0x16d] sm:$0x1]
      %v1844 = vld [vmem:[%s438] sm:$0xff]
      %v1846 = vsel %vm440, %v1840, 0
      %v1849 = vsel %vm440, %v1841, 0
      %v1852 = vsel %vm440, %v1842, 0
      %v1855 = vsel %vm440, %v1843, 0
      %1857 = vmatpush.msra.mxu0 0.0
      %1858 = vmatpush.msra.mxu0 0.0
      %1859 = vmatpush.msra.mxu0 0.0
      %1860 = vmatpush.msra.mxu0 0.0
      %1861 = vmatpush.msra.mxu0 0.0
      %1862 = vmatpush.msra.mxu0 0.0
      %1863 = vmatpush.msra.mxu0 0.0
      %1864 = vmatpush.msra.mxu0 0.0
      %1865 = vmatpush.msra.mxu0 0.0
      %1866 = vmatpush.msra.mxu0 0.0
      %1867 = vmatpush.msra.mxu0 0.0
      %1868 = vmatpush.msra.mxu0 0.0
      %1869 = vmatpush.msra.mxu0 0.0
      %1870 = vmatpush.msra.mxu0 0.0
      %1871 = vmatpush.msra.mxu0 0.0
      %1872 = vmatpush.msra.mxu0 %v1844
      %1873 = vmatmul.f32.gmra.mxu0 %v1846
      %v1874 = vpop.f32.mrf.mxu0
      %v1875 = vadd.f32 0.0, %v1874
      %1876 = vmatmul.f32.gmra.mxu0 %v1849
      %v1877 = vpop.f32.mrf.mxu0
      %v1878 = vadd.f32 0.0, %v1877
      %1879 = vmatmul.f32.gmra.mxu0 %v1852
      %v1880 = vpop.f32.mrf.mxu0
      %v1881 = vadd.f32 0.0, %v1880
      %1882 = vmatmul.f32.gmra.mxu0 %v1855
      %v1883 = vpop.f32.mrf.mxu0
      %v1884 = vadd.f32 0.0, %v1883
      %1885 = vdwg.mxu0
      %v1887 = vsel %vm440, %v1835, 0
      %v1890 = vsel %vm440, %v1836, 0
      %v1893 = vsel %vm440, %v1837, 0
      %v1896 = vsel %vm440, %v1838, 0
      %1898 = vmatpush.msra.mxu0 0.0
      %1899 = vmatpush.msra.mxu0 0.0
      %1900 = vmatpush.msra.mxu0 0.0
      %1901 = vmatpush.msra.mxu0 0.0
      %1902 = vmatpush.msra.mxu0 0.0
      %1903 = vmatpush.msra.mxu0 0.0
      %1904 = vmatpush.msra.mxu0 0.0
      %1905 = vmatpush.msra.mxu0 0.0
      %1906 = vmatpush.msra.mxu0 0.0
      %1907 = vmatpush.msra.mxu0 0.0
      %1908 = vmatpush.msra.mxu0 0.0
      %1909 = vmatpush.msra.mxu0 0.0
      %1910 = vmatpush.msra.mxu0 0.0
      %1911 = vmatpush.msra.mxu0 0.0
      %1912 = vmatpush.msra.mxu0 0.0
      %1913 = vmatpush.msra.mxu0 %v1839
      %1914 = vmatmul.f32.gmra.mxu0 %v1887
      %v1915 = vpop.f32.mrf.mxu0
      %v1916 = vadd.f32 %v1875, %v1915
      %1917 = vmatmul.f32.gmra.mxu0 %v1890
      %v1918 = vpop.f32.mrf.mxu0
      %v1919 = vadd.f32 %v1878, %v1918
      %1920 = vmatmul.f32.gmra.mxu0 %v1893
      %v1921 = vpop.f32.mrf.mxu0
      %v1922 = vadd.f32 %v1881, %v1921
      %1923 = vmatmul.f32.gmra.mxu0 %v1896
      %v1924 = vpop.f32.mrf.mxu0
      %v1925 = vadd.f32 %v1884, %v1924
      %1926 = vdwg.mxu0
      %v1927 = vld [vmem:[%s327 + $0xf9] sm:$0xff]
      %v1928 = vld [vmem:[%s327 + $0x101] sm:$0xff]
      %v1929 = vld [vmem:[%s327 + $0x109] sm:$0xff]
      %v1930 = vld [vmem:[%s327 + $0x111] sm:$0x1]
      %v1931 = vld [vmem:[%s527] sm:$0xff]
      %v1933 = vsel %vm440, %v1927, 0
      %v1936 = vsel %vm440, %v1928, 0
      %v1939 = vsel %vm440, %v1929, 0
      %v1942 = vsel %vm440, %v1930, 0
      %1944 = vmatpush.msra.mxu0 0.0
      %1945 = vmatpush.msra.mxu0 0.0
      %1946 = vmatpush.msra.mxu0 0.0
      %1947 = vmatpush.msra.mxu0 0.0
      %1948 = vmatpush.msra.mxu0 0.0
      %1949 = vmatpush.msra.mxu0 0.0
      %1950 = vmatpush.msra.mxu0 0.0
      %1951 = vmatpush.msra.mxu0 0.0
      %1952 = vmatpush.msra.mxu0 0.0
      %1953 = vmatpush.msra.mxu0 0.0
      %1954 = vmatpush.msra.mxu0 0.0
      %1955 = vmatpush.msra.mxu0 0.0
      %1956 = vmatpush.msra.mxu0 0.0
      %1957 = vmatpush.msra.mxu0 0.0
      %1958 = vmatpush.msra.mxu0 0.0
      %1959 = vmatpush.msra.mxu0 %v1931
      %1960 = vmatmul.f32.gmra.mxu0 %v1933
      %v1961 = vpop.f32.mrf.mxu0
      %v1962 = vadd.f32 0.0, %v1961
      %1963 = vmatmul.f32.gmra.mxu0 %v1936
      %v1964 = vpop.f32.mrf.mxu0
      %v1965 = vadd.f32 0.0, %v1964
      %1966 = vmatmul.f32.gmra.mxu0 %v1939
      %v1967 = vpop.f32.mrf.mxu0
      %v1968 = vadd.f32 0.0, %v1967
      %1969 = vmatmul.f32.gmra.mxu0 %v1942
      %v1970 = vpop.f32.mrf.mxu0
      %v1971 = vadd.f32 0.0, %v1970
      %1972 = vdwg.mxu0
      %v1973 = vadd.f32 %v1916, %v1962
      %v1974 = vadd.f32 %v1919, %v1965
      %v1975 = vadd.f32 %v1922, %v1968
      %v1976 = vadd.f32 %v1925, %v1971
      %v1977 = vld [vmem:[%s327 + $0x1b2] sm:$0xff]
      %v1978 = vld [vmem:[%s327 + $0x1ba] sm:$0xff]
      %v1979 = vld [vmem:[%s327 + $0x1c2] sm:$0xff]
      %v1980 = vld [vmem:[%s327 + $0x1ca] sm:$0x1]
      %v1981 = vld [vmem:[%s578] sm:$0xff]
      %v1983 = vsel %vm440, %v1977, 0
      %v1986 = vsel %vm440, %v1978, 0
      %v1989 = vsel %vm440, %v1979, 0
      %v1992 = vsel %vm440, %v1980, 0
      %1994 = vmatpush.msra.mxu0 0.0
      %1995 = vmatpush.msra.mxu0 0.0
      %1996 = vmatpush.msra.mxu0 0.0
      %1997 = vmatpush.msra.mxu0 0.0
      %1998 = vmatpush.msra.mxu0 0.0
      %1999 = vmatpush.msra.mxu0 0.0
      %2000 = vmatpush.msra.mxu0 0.0
      %2001 = vmatpush.msra.mxu0 0.0
      %2002 = vmatpush.msra.mxu0 0.0
      %2003 = vmatpush.msra.mxu0 0.0
      %2004 = vmatpush.msra.mxu0 0.0
      %2005 = vmatpush.msra.mxu0 0.0
      %2006 = vmatpush.msra.mxu0 0.0
      %2007 = vmatpush.msra.mxu0 0.0
      %2008 = vmatpush.msra.mxu0 0.0
      %2009 = vmatpush.msra.mxu0 %v1981
      %2010 = vmatmul.f32.gmra.mxu0 %v1983
      %v2011 = vpop.f32.mrf.mxu0
      %v2012 = vadd.f32 0.0, %v2011
      %2013 = vmatmul.f32.gmra.mxu0 %v1986
      %v2014 = vpop.f32.mrf.mxu0
      %v2015 = vadd.f32 0.0, %v2014
      %2016 = vmatmul.f32.gmra.mxu0 %v1989
      %v2017 = vpop.f32.mrf.mxu0
      %v2018 = vadd.f32 0.0, %v2017
      %2019 = vmatmul.f32.gmra.mxu0 %v1992
      %v2020 = vpop.f32.mrf.mxu0
      %v2021 = vadd.f32 0.0, %v2020
      %2022 = vdwg.mxu0
      %v2023 = vadd.f32 %v1973, %v2012
      %v2024 = vadd.f32 %v1974, %v2015
      %v2025 = vadd.f32 %v1975, %v2018
      %v2026 = vadd.f32 %v1976, %v2021
      %v2027 = vld [vmem:[%s327 + $0x1d1] sm:$0xff]
      %v2028 = vld [vmem:[%s327 + $0x1d9] sm:$0xff]
      %v2029 = vld [vmem:[%s327 + $0x1e1] sm:$0xff]
      %v2030 = vld [vmem:[%s327 + $0x1e9] sm:$0x1]
      %v2031 = vld [vmem:[%s629] sm:$0xff]
      %v2033 = vsel %vm440, %v2027, 0
      %v2036 = vsel %vm440, %v2028, 0
      %v2039 = vsel %vm440, %v2029, 0
      %v2042 = vsel %vm440, %v2030, 0
      %2044 = vmatpush.msra.mxu0 0.0
      %2045 = vmatpush.msra.mxu0 0.0
      %2046 = vmatpush.msra.mxu0 0.0
      %2047 = vmatpush.msra.mxu0 0.0
      %2048 = vmatpush.msra.mxu0 0.0
      %2049 = vmatpush.msra.mxu0 0.0
      %2050 = vmatpush.msra.mxu0 0.0
      %2051 = vmatpush.msra.mxu0 0.0
      %2052 = vmatpush.msra.mxu0 0.0
      %2053 = vmatpush.msra.mxu0 0.0
      %2054 = vmatpush.msra.mxu0 0.0
      %2055 = vmatpush.msra.mxu0 0.0
      %2056 = vmatpush.msra.mxu0 0.0
      %2057 = vmatpush.msra.mxu0 0.0
      %2058 = vmatpush.msra.mxu0 0.0
      %2059 = vmatpush.msra.mxu0 %v2031
      %2060 = vmatmul.f32.gmra.mxu0 %v2033
      %v2061 = vpop.f32.mrf.mxu0
      %v2062 = vadd.f32 0.0, %v2061
      %2063 = vmatmul.f32.gmra.mxu0 %v2036
      %v2064 = vpop.f32.mrf.mxu0
      %v2065 = vadd.f32 0.0, %v2064
      %2066 = vmatmul.f32.gmra.mxu0 %v2039
      %v2067 = vpop.f32.mrf.mxu0
      %v2068 = vadd.f32 0.0, %v2067
      %2069 = vmatmul.f32.gmra.mxu0 %v2042
      %v2070 = vpop.f32.mrf.mxu0
      %v2071 = vadd.f32 0.0, %v2070
      %2072 = vdwg.mxu0
      %v2073 = vadd.f32 %v2023, %v2062
      %v2074 = vadd.f32 %v2024, %v2065
      %v2075 = vadd.f32 %v2025, %v2068
      %v2076 = vadd.f32 %v2026, %v2071
      %v2077 = vld [vmem:[%s327 + $0x175] sm:$0xff]
      %v2078 = vld [vmem:[%s327 + $0x17d] sm:$0xff]
      %v2079 = vld [vmem:[%s327 + $0x185] sm:$0xff]
      %v2080 = vld [vmem:[%s327 + $0x18d] sm:$0x1]
      %v2081 = vld [vmem:[%s680] sm:$0xff]
      %v2083 = vsel %vm440, %v2077, 0
      %v2086 = vsel %vm440, %v2078, 0
      %v2089 = vsel %vm440, %v2079, 0
      %v2092 = vsel %vm440, %v2080, 0
      %2094 = vmatpush.msra.mxu0 0.0
      %2095 = vmatpush.msra.mxu0 0.0
      %2096 = vmatpush.msra.mxu0 0.0
      %2097 = vmatpush.msra.mxu0 0.0
      %2098 = vmatpush.msra.mxu0 0.0
      %2099 = vmatpush.msra.mxu0 0.0
      %2100 = vmatpush.msra.mxu0 0.0
      %2101 = vmatpush.msra.mxu0 0.0
      %2102 = vmatpush.msra.mxu0 0.0
      %2103 = vmatpush.msra.mxu0 0.0
      %2104 = vmatpush.msra.mxu0 0.0
      %2105 = vmatpush.msra.mxu0 0.0
      %2106 = vmatpush.msra.mxu0 0.0
      %2107 = vmatpush.msra.mxu0 0.0
      %2108 = vmatpush.msra.mxu0 0.0
      %2109 = vmatpush.msra.mxu0 %v2081
      %2110 = vmatmul.f32.gmra.mxu0 %v2083
      %v2111 = vpop.f32.mrf.mxu0
      %v2112 = vadd.f32 0.0, %v2111
      %2113 = vmatmul.f32.gmra.mxu0 %v2086
      %v2114 = vpop.f32.mrf.mxu0
      %v2115 = vadd.f32 0.0, %v2114
      %2116 = vmatmul.f32.gmra.mxu0 %v2089
      %v2117 = vpop.f32.mrf.mxu0
      %v2118 = vadd.f32 0.0, %v2117
      %2119 = vmatmul.f32.gmra.mxu0 %v2092
      %v2120 = vpop.f32.mrf.mxu0
      %v2121 = vadd.f32 0.0, %v2120
      %2122 = vdwg.mxu0
      %v2123 = vadd.f32 %v2073, %v2112
      %v2124 = vadd.f32 %v2074, %v2115
      %v2125 = vadd.f32 %v2075, %v2118
      %v2126 = vadd.f32 %v2076, %v2121
      %v2127 = vld [vmem:[%s327 + $0x43] sm:$0xff]
      %v2128 = vld [vmem:[%s327 + $0x4b] sm:$0xff]
      %v2129 = vld [vmem:[%s327 + $0x53] sm:$0xff]
      %v2130 = vld [vmem:[%s327 + $0x5b] sm:$0x1]
      %v2131 = vld [vmem:[%s731] sm:$0xff]
      %v2133 = vsel %vm440, %v2127, 0
      %v2136 = vsel %vm440, %v2128, 0
      %v2139 = vsel %vm440, %v2129, 0
      %v2142 = vsel %vm440, %v2130, 0
      %2144 = vmatpush.msra.mxu0 0.0
      %2145 = vmatpush.msra.mxu0 0.0
      %2146 = vmatpush.msra.mxu0 0.0
      %2147 = vmatpush.msra.mxu0 0.0
      %2148 = vmatpush.msra.mxu0 0.0
      %2149 = vmatpush.msra.mxu0 0.0
      %2150 = vmatpush.msra.mxu0 0.0
      %2151 = vmatpush.msra.mxu0 0.0
      %2152 = vmatpush.msra.mxu0 0.0
      %2153 = vmatpush.msra.mxu0 0.0
      %2154 = vmatpush.msra.mxu0 0.0
      %2155 = vmatpush.msra.mxu0 0.0
      %2156 = vmatpush.msra.mxu0 0.0
      %2157 = vmatpush.msra.mxu0 0.0
      %2158 = vmatpush.msra.mxu0 0.0
      %2159 = vmatpush.msra.mxu0 %v2131
      %2160 = vmatmul.f32.gmra.mxu0 %v2133
      %v2161 = vpop.f32.mrf.mxu0
      %v2162 = vadd.f32 0.0, %v2161
      %2163 = vmatmul.f32.gmra.mxu0 %v2136
      %v2164 = vpop.f32.mrf.mxu0
      %v2165 = vadd.f32 0.0, %v2164
      %2166 = vmatmul.f32.gmra.mxu0 %v2139
      %v2167 = vpop.f32.mrf.mxu0
      %v2168 = vadd.f32 0.0, %v2167
      %2169 = vmatmul.f32.gmra.mxu0 %v2142
      %v2170 = vpop.f32.mrf.mxu0
      %v2171 = vadd.f32 0.0, %v2170
      %2172 = vdwg.mxu0
      %v2173 = vadd.f32 %v2123, %v2162
      %v2174 = vadd.f32 %v2124, %v2165
      %v2175 = vadd.f32 %v2125, %v2168
      %v2176 = vadd.f32 %v2126, %v2171
      %v2177 = vld [vmem:[%s327 + $0x62] sm:$0xff]
      %v2178 = vld [vmem:[%s327 + $0x6a] sm:$0xff]
      %v2179 = vld [vmem:[%s327 + $0x72] sm:$0xff]
      %v2180 = vld [vmem:[%s327 + $0x7a] sm:$0x1]
      %v2181 = vld [vmem:[%s782] sm:$0xff]
      %v2183 = vsel %vm440, %v2177, 0
      %v2186 = vsel %vm440, %v2178, 0
      %v2189 = vsel %vm440, %v2179, 0
      %v2192 = vsel %vm440, %v2180, 0
      %2194 = vmatpush.msra.mxu0 0.0
      %2195 = vmatpush.msra.mxu0 0.0
      %2196 = vmatpush.msra.mxu0 0.0
      %2197 = vmatpush.msra.mxu0 0.0
      %2198 = vmatpush.msra.mxu0 0.0
      %2199 = vmatpush.msra.mxu0 0.0
      %2200 = vmatpush.msra.mxu0 0.0
      %2201 = vmatpush.msra.mxu0 0.0
      %2202 = vmatpush.msra.mxu0 0.0
      %2203 = vmatpush.msra.mxu0 0.0
      %2204 = vmatpush.msra.mxu0 0.0
      %2205 = vmatpush.msra.mxu0 0.0
      %2206 = vmatpush.msra.mxu0 0.0
      %2207 = vmatpush.msra.mxu0 0.0
      %2208 = vmatpush.msra.mxu0 0.0
      %2209 = vmatpush.msra.mxu0 %v2181
      %2210 = vmatmul.f32.gmra.mxu0 %v2183
      %v2211 = vpop.f32.mrf.mxu0
      %v2212 = vadd.f32 0.0, %v2211
      %2213 = vmatmul.f32.gmra.mxu0 %v2186
      %v2214 = vpop.f32.mrf.mxu0
      %v2215 = vadd.f32 0.0, %v2214
      %2216 = vmatmul.f32.gmra.mxu0 %v2189
      %v2217 = vpop.f32.mrf.mxu0
      %v2218 = vadd.f32 0.0, %v2217
      %2219 = vmatmul.f32.gmra.mxu0 %v2192
      %v2220 = vpop.f32.mrf.mxu0
      %v2221 = vadd.f32 0.0, %v2220
      %2222 = vdwg.mxu0
      %v2223 = vadd.f32 %v2173, %v2212
      %v2224 = vadd.f32 %v2174, %v2215
      %v2225 = vadd.f32 %v2175, %v2218
      %v2226 = vadd.f32 %v2176, %v2221
      %v2227 = vld [vmem:[%s327 + $0x6] sm:$0xff]
      %v2228 = vld [vmem:[%s327 + $0xe] sm:$0xff]
      %v2229 = vld [vmem:[%s327 + $0x16] sm:$0xff]
      %v2230 = vld [vmem:[%s327 + $0x1e] sm:$0x1]
      %v2231 = vld [vmem:[%s833] sm:$0xff]
      %v2233 = vsel %vm440, %v2227, 0
      %v2236 = vsel %vm440, %v2228, 0
      %v2239 = vsel %vm440, %v2229, 0
      %v2242 = vsel %vm440, %v2230, 0
      %2244 = vmatpush.msra.mxu0 0.0
      %2245 = vmatpush.msra.mxu0 0.0
      %2246 = vmatpush.msra.mxu0 0.0
      %2247 = vmatpush.msra.mxu0 0.0
      %2248 = vmatpush.msra.mxu0 0.0
      %2249 = vmatpush.msra.mxu0 0.0
      %2250 = vmatpush.msra.mxu0 0.0
      %2251 = vmatpush.msra.mxu0 0.0
      %2252 = vmatpush.msra.mxu0 0.0
      %2253 = vmatpush.msra.mxu0 0.0
      %2254 = vmatpush.msra.mxu0 0.0
      %2255 = vmatpush.msra.mxu0 0.0
      %2256 = vmatpush.msra.mxu0 0.0
      %2257 = vmatpush.msra.mxu0 0.0
      %2258 = vmatpush.msra.mxu0 0.0
      %2259 = vmatpush.msra.mxu0 %v2231
      %2260 = vmatmul.f32.gmra.mxu0 %v2233
      %v2261 = vpop.f32.mrf.mxu0
      %v2262 = vadd.f32 0.0, %v2261
      %2263 = vmatmul.f32.gmra.mxu0 %v2236
      %v2264 = vpop.f32.mrf.mxu0
      %v2265 = vadd.f32 0.0, %v2264
      %2266 = vmatmul.f32.gmra.mxu0 %v2239
      %v2267 = vpop.f32.mrf.mxu0
      %v2268 = vadd.f32 0.0, %v2267
      %2269 = vmatmul.f32.gmra.mxu0 %v2242
      %v2270 = vpop.f32.mrf.mxu0
      %v2271 = vadd.f32 0.0, %v2270
      %2272 = vdwg.mxu0
      %v2273 = vadd.f32 %v2223, %v2262
      %v2274 = vadd.f32 %v2224, %v2265
      %v2275 = vadd.f32 %v2225, %v2268
      %v2276 = vadd.f32 %v2226, %v2271
      %v2277 = vld [vmem:[%s2] sm:$0x1]
      %v2279 = vperm.slane %v2277, 0
      %v2281 = vadd.f32 %v2273, %v2279
      %v2282 = vadd.f32 %v2274, %v2279
      %v2283 = vadd.f32 %v2275, %v2279
      %v2284 = vadd.f32 %v2276, %v2279
      %v2285 = vmax.f32 %v2281, 0.0
      %v2286 = vmax.f32 %v2282, 0.0
      %v2287 = vmax.f32 %v2283, 0.0
      %v2288 = vmax.f32 %v2284, 0.0
      %v2289 = vsel %vm896, %v2285, 0.0
      %v2290 = vsel %vm897, %v2286, 0.0
      %v2291 = vsel %vm898, %v2287, 0.0
      %v2292 = vsel %vm899, %v2288, 0.0
      %s2293 = scalar_lea.vmem [#allocation2], 96
      %2294 = vst.msk [vmem:[%s2293] sm:$0xff] %vm389, %v2289
      %2295 = vst.msk [vmem:[%s2293 + $0x8] sm:$0xff] %vm389, %v2290
      %2296 = vst.msk [vmem:[%s2293 + $0x10] sm:$0xff] %vm389, %v2291
      %2297 = vst.msk [vmem:[%s2293 + $0x18] sm:$0x1] %vm907, %v2292
      %v2298 = vld [vmem:[%s2293] sm:$0xff]
      %v2299 = vld [vmem:[%s2293 + $0x8] sm:$0xff]
      %v2300 = vld [vmem:[%s2293 + $0x10] sm:$0xff]
      %v2301 = vld [vmem:[%s2293 + $0x18] sm:$0x1]
      %v2302 = vld [vmem:[%s3] sm:$0xff]
      %v2303 = vld [vmem:[%s3 + $0x8] sm:$0xff]
      %v2304 = vld [vmem:[%s3 + $0x10] sm:$0xff]
      %v2305 = vld [vmem:[%s3 + $0x18] sm:$0xff]
      %v2306 = vld [vmem:[%s1830 + $0x1] sm:$0xff]
      %v2307 = vld [vmem:[%s1830 + $0x9] sm:$0xff]
      %v2308 = vld [vmem:[%s1830 + $0x11] sm:$0xff]
      %v2309 = vld [vmem:[%s1830 + $0x19] sm:$0x1]
      %s2310 = scalar_lea.vmem %s3, 32
      %v2311 = vld [vmem:[%s2310] sm:$0xff]
      %v2312 = vld [vmem:[%s2310 + $0x8] sm:$0xff]
      %v2313 = vld [vmem:[%s2310 + $0x10] sm:$0xff]
      %v2314 = vld [vmem:[%s2310 + $0x18] sm:$0xff]
      %v2316 = vsel %vm389, %v2306, 0
      %v2319 = vsel %vm389, %v2307, 0
      %v2322 = vsel %vm389, %v2308, 0
      %v2325 = vsel %vm389, %v2309, 0
      %2327 = vmatpush.msra.mxu0 0.0
      %2328 = vmatpush.msra.mxu0 0.0
      %2329 = vmatpush.msra.mxu0 0.0
      %2330 = vmatpush.msra.mxu0 0.0
      %2331 = vmatpush.msra.mxu0 0.0
      %2332 = vmatpush.msra.mxu0 0.0
      %2333 = vmatpush.msra.mxu0 0.0
      %2334 = vmatpush.msra.mxu0 0.0
      %2335 = vmatpush.msra.mxu0 0.0
      %2336 = vmatpush.msra.mxu0 0.0
      %2337 = vmatpush.msra.mxu0 0.0
      %2338 = vmatpush.msra.mxu0 0.0
      %2339 = vmatpush.msra.mxu0 %v2314
      %2340 = vmatpush.msra.mxu0 %v2313
      %2341 = vmatpush.msra.mxu0 %v2312
      %2342 = vmatpush.msra.mxu0 %v2311
      %2343 = vmatmul.f32.gmra.mxu0 %v2316
      %v2344 = vpop.f32.mrf.mxu0
      %v2345 = vadd.f32 0.0, %v2344
      %2346 = vmatmul.f32.gmra.mxu0 %v2319
      %v2347 = vpop.f32.mrf.mxu0
      %v2348 = vadd.f32 0.0, %v2347
      %2349 = vmatmul.f32.gmra.mxu0 %v2322
      %v2350 = vpop.f32.mrf.mxu0
      %v2351 = vadd.f32 0.0, %v2350
      %2352 = vmatmul.f32.gmra.mxu0 %v2325
      %v2353 = vpop.f32.mrf.mxu0
      %v2354 = vadd.f32 0.0, %v2353
      %2355 = vdwg.mxu0
      %v2357 = vsel %vm389, %v2298, 0
      %v2360 = vsel %vm389, %v2299, 0
      %v2363 = vsel %vm389, %v2300, 0
      %v2366 = vsel %vm389, %v2301, 0
      %2368 = vmatpush.msra.mxu0 0.0
      %2369 = vmatpush.msra.mxu0 0.0
      %2370 = vmatpush.msra.mxu0 0.0
      %2371 = vmatpush.msra.mxu0 0.0
      %2372 = vmatpush.msra.mxu0 0.0
      %2373 = vmatpush.msra.mxu0 0.0
      %2374 = vmatpush.msra.mxu0 0.0
      %2375 = vmatpush.msra.mxu0 0.0
      %2376 = vmatpush.msra.mxu0 0.0
      %2377 = vmatpush.msra.mxu0 0.0
      %2378 = vmatpush.msra.mxu0 0.0
      %2379 = vmatpush.msra.mxu0 0.0
      %2380 = vmatpush.msra.mxu0 %v2305
      %2381 = vmatpush.msra.mxu0 %v2304
      %2382 = vmatpush.msra.mxu0 %v2303
      %2383 = vmatpush.msra.mxu0 %v2302
      %2384 = vmatmul.f32.gmra.mxu0 %v2357
      %v2385 = vpop.f32.mrf.mxu0
      %v2386 = vadd.f32 %v2345, %v2385
      %2387 = vmatmul.f32.gmra.mxu0 %v2360
      %v2388 = vpop.f32.mrf.mxu0
      %v2389 = vadd.f32 %v2348, %v2388
      %2390 = vmatmul.f32.gmra.mxu0 %v2363
      %v2391 = vpop.f32.mrf.mxu0
      %v2392 = vadd.f32 %v2351, %v2391
      %2393 = vmatmul.f32.gmra.mxu0 %v2366
      %v2394 = vpop.f32.mrf.mxu0
      %v2395 = vadd.f32 %v2354, %v2394
      %2396 = vdwg.mxu0
      %v2397 = vld [vmem:[%s2293 + $0x1] sm:$0xff]
      %v2398 = vld [vmem:[%s2293 + $0x9] sm:$0xff]
      %v2399 = vld [vmem:[%s2293 + $0x11] sm:$0xff]
      %v2400 = vld [vmem:[%s2293 + $0x19] sm:$0x1]
      %s2401 = scalar_lea.vmem %s3, 64
      %v2402 = vld [vmem:[%s2401] sm:$0xff]
      %v2403 = vld [vmem:[%s2401 + $0x8] sm:$0xff]
      %v2404 = vld [vmem:[%s2401 + $0x10] sm:$0xff]
      %v2405 = vld [vmem:[%s2401 + $0x18] sm:$0xff]
      %v2407 = vsel %vm389, %v2397, 0
      %v2410 = vsel %vm389, %v2398, 0
      %v2413 = vsel %vm389, %v2399, 0
      %v2416 = vsel %vm389, %v2400, 0
      %2418 = vmatpush.msra.mxu0 0.0
      %2419 = vmatpush.msra.mxu0 0.0
      %2420 = vmatpush.msra.mxu0 0.0
      %2421 = vmatpush.msra.mxu0 0.0
      %2422 = vmatpush.msra.mxu0 0.0
      %2423 = vmatpush.msra.mxu0 0.0
      %2424 = vmatpush.msra.mxu0 0.0
      %2425 = vmatpush.msra.mxu0 0.0
      %2426 = vmatpush.msra.mxu0 0.0
      %2427 = vmatpush.msra.mxu0 0.0
      %2428 = vmatpush.msra.mxu0 0.0
      %2429 = vmatpush.msra.mxu0 0.0
      %2430 = vmatpush.msra.mxu0 %v2405
      %2431 = vmatpush.msra.mxu0 %v2404
      %2432 = vmatpush.msra.mxu0 %v2403
      %2433 = vmatpush.msra.mxu0 %v2402
      %2434 = vmatmul.f32.gmra.mxu0 %v2407
      %v2435 = vpop.f32.mrf.mxu0
      %v2436 = vadd.f32 0.0, %v2435
      %2437 = vmatmul.f32.gmra.mxu0 %v2410
      %v2438 = vpop.f32.mrf.mxu0
      %v2439 = vadd.f32 0.0, %v2438
      %2440 = vmatmul.f32.gmra.mxu0 %v2413
      %v2441 = vpop.f32.mrf.mxu0
      %v2442 = vadd.f32 0.0, %v2441
      %2443 = vmatmul.f32.gmra.mxu0 %v2416
      %v2444 = vpop.f32.mrf.mxu0
      %v2445 = vadd.f32 0.0, %v2444
      %2446 = vdwg.mxu0
      %v2447 = vadd.f32 %v2386, %v2436
      %v2448 = vadd.f32 %v2389, %v2439
      %v2449 = vadd.f32 %v2392, %v2442
      %v2450 = vadd.f32 %v2395, %v2445
      %v2451 = vld [vmem:[%s1367 + $0x5] sm:$0xff]
      %v2452 = vld [vmem:[%s1367 + $0xd] sm:$0xff]
      %v2453 = vld [vmem:[%s1367 + $0x15] sm:$0xff]
      %v2454 = vld [vmem:[%s1367 + $0x1d] sm:$0x1]
      %s2455 = scalar_lea.vmem %s3, 96
      %v2456 = vld [vmem:[%s2455] sm:$0xff]
      %v2457 = vld [vmem:[%s2455 + $0x8] sm:$0xff]
      %v2458 = vld [vmem:[%s2455 + $0x10] sm:$0xff]
      %v2459 = vld [vmem:[%s2455 + $0x18] sm:$0xff]
      %v2461 = vsel %vm389, %v2451, 0
      %v2464 = vsel %vm389, %v2452, 0
      %v2467 = vsel %vm389, %v2453, 0
      %v2470 = vsel %vm389, %v2454, 0
      %2472 = vmatpush.msra.mxu0 0.0
      %2473 = vmatpush.msra.mxu0 0.0
      %2474 = vmatpush.msra.mxu0 0.0
      %2475 = vmatpush.msra.mxu0 0.0
      %2476 = vmatpush.msra.mxu0 0.0
      %2477 = vmatpush.msra.mxu0 0.0
      %2478 = vmatpush.msra.mxu0 0.0
      %2479 = vmatpush.msra.mxu0 0.0
      %2480 = vmatpush.msra.mxu0 0.0
      %2481 = vmatpush.msra.mxu0 0.0
      %2482 = vmatpush.msra.mxu0 0.0
      %2483 = vmatpush.msra.mxu0 0.0
      %2484 = vmatpush.msra.mxu0 %v2459
      %2485 = vmatpush.msra.mxu0 %v2458
      %2486 = vmatpush.msra.mxu0 %v2457
      %2487 = vmatpush.msra.mxu0 %v2456
      %2488 = vmatmul.f32.gmra.mxu0 %v2461
      %v2489 = vpop.f32.mrf.mxu0
      %v2490 = vadd.f32 0.0, %v2489
      %2491 = vmatmul.f32.gmra.mxu0 %v2464
      %v2492 = vpop.f32.mrf.mxu0
      %v2493 = vadd.f32 0.0, %v2492
      %2494 = vmatmul.f32.gmra.mxu0 %v2467
      %v2495 = vpop.f32.mrf.mxu0
      %v2496 = vadd.f32 0.0, %v2495
      %2497 = vmatmul.f32.gmra.mxu0 %v2470
      %v2498 = vpop.f32.mrf.mxu0
      %v2499 = vadd.f32 0.0, %v2498
      %2500 = vdwg.mxu0
      %v2501 = vadd.f32 %v2447, %v2490
      %v2502 = vadd.f32 %v2448, %v2493
      %v2503 = vadd.f32 %v2449, %v2496
      %v2504 = vadd.f32 %v2450, %v2499
      %v2505 = vld [vmem:[#allocation2 + $0x6] sm:$0xff]
      %v2506 = vld [vmem:[#allocation2 + $0xe] sm:$0xff]
      %v2507 = vld [vmem:[#allocation2 + $0x16] sm:$0xff]
      %v2508 = vld [vmem:[#allocation2 + $0x1e] sm:$0x1]
      %s2509 = scalar_lea.vmem %s3, 128
      %v2510 = vld [vmem:[%s2509] sm:$0xff]
      %v2511 = vld [vmem:[%s2509 + $0x8] sm:$0xff]
      %v2512 = vld [vmem:[%s2509 + $0x10] sm:$0xff]
      %v2513 = vld [vmem:[%s2509 + $0x18] sm:$0xff]
      %v2515 = vsel %vm389, %v2505, 0
      %v2518 = vsel %vm389, %v2506, 0
      %v2521 = vsel %vm389, %v2507, 0
      %v2524 = vsel %vm389, %v2508, 0
      %2526 = vmatpush.msra.mxu0 0.0
      %2527 = vmatpush.msra.mxu0 0.0
      %2528 = vmatpush.msra.mxu0 0.0
      %2529 = vmatpush.msra.mxu0 0.0
      %2530 = vmatpush.msra.mxu0 0.0
      %2531 = vmatpush.msra.mxu0 0.0
      %2532 = vmatpush.msra.mxu0 0.0
      %2533 = vmatpush.msra.mxu0 0.0
      %2534 = vmatpush.msra.mxu0 0.0
      %2535 = vmatpush.msra.mxu0 0.0
      %2536 = vmatpush.msra.mxu0 0.0
      %2537 = vmatpush.msra.mxu0 0.0
      %2538 = vmatpush.msra.mxu0 %v2513
      %2539 = vmatpush.msra.mxu0 %v2512
      %2540 = vmatpush.msra.mxu0 %v2511
      %2541 = vmatpush.msra.mxu0 %v2510
      %2542 = vmatmul.f32.gmra.mxu0 %v2515
      %v2543 = vpop.f32.mrf.mxu0
      %v2544 = vadd.f32 0.0, %v2543
      %2545 = vmatmul.f32.gmra.mxu0 %v2518
      %v2546 = vpop.f32.mrf.mxu0
      %v2547 = vadd.f32 0.0, %v2546
      %2548 = vmatmul.f32.gmra.mxu0 %v2521
      %v2549 = vpop.f32.mrf.mxu0
      %v2550 = vadd.f32 0.0, %v2549
      %2551 = vmatmul.f32.gmra.mxu0 %v2524
      %v2552 = vpop.f32.mrf.mxu0
      %v2553 = vadd.f32 0.0, %v2552
      %2554 = vdwg.mxu0
      %v2555 = vadd.f32 %v2501, %v2544
      %v2556 = vadd.f32 %v2502, %v2547
      %v2557 = vadd.f32 %v2503, %v2550
      %v2558 = vadd.f32 %v2504, %v2553
      %v2559 = vld [vmem:[%s1367 + $0x6] sm:$0xff]
      %v2560 = vld [vmem:[%s1367 + $0xe] sm:$0xff]
      %v2561 = vld [vmem:[%s1367 + $0x16] sm:$0xff]
      %v2562 = vld [vmem:[%s1367 + $0x1e] sm:$0x1]
      %s2563 = scalar_lea.vmem %s3, 160
      %v2564 = vld [vmem:[%s2563] sm:$0xff]
      %v2565 = vld [vmem:[%s2563 + $0x8] sm:$0xff]
      %v2566 = vld [vmem:[%s2563 + $0x10] sm:$0xff]
      %v2567 = vld [vmem:[%s2563 + $0x18] sm:$0xff]
      %v2569 = vsel %vm389, %v2559, 0
      %v2572 = vsel %vm389, %v2560, 0
      %v2575 = vsel %vm389, %v2561, 0
      %v2578 = vsel %vm389, %v2562, 0
      %2580 = vmatpush.msra.mxu0 0.0
      %2581 = vmatpush.msra.mxu0 0.0
      %2582 = vmatpush.msra.mxu0 0.0
      %2583 = vmatpush.msra.mxu0 0.0
      %2584 = vmatpush.msra.mxu0 0.0
      %2585 = vmatpush.msra.mxu0 0.0
      %2586 = vmatpush.msra.mxu0 0.0
      %2587 = vmatpush.msra.mxu0 0.0
      %2588 = vmatpush.msra.mxu0 0.0
      %2589 = vmatpush.msra.mxu0 0.0
      %2590 = vmatpush.msra.mxu0 0.0
      %2591 = vmatpush.msra.mxu0 0.0
      %2592 = vmatpush.msra.mxu0 %v2567
      %2593 = vmatpush.msra.mxu0 %v2566
      %2594 = vmatpush.msra.mxu0 %v2565
      %2595 = vmatpush.msra.mxu0 %v2564
      %2596 = vmatmul.f32.gmra.mxu0 %v2569
      %v2597 = vpop.f32.mrf.mxu0
      %v2598 = vadd.f32 0.0, %v2597
      %2599 = vmatmul.f32.gmra.mxu0 %v2572
      %v2600 = vpop.f32.mrf.mxu0
      %v2601 = vadd.f32 0.0, %v2600
      %2602 = vmatmul.f32.gmra.mxu0 %v2575
      %v2603 = vpop.f32.mrf.mxu0
      %v2604 = vadd.f32 0.0, %v2603
      %2605 = vmatmul.f32.gmra.mxu0 %v2578
      %v2606 = vpop.f32.mrf.mxu0
      %v2607 = vadd.f32 0.0, %v2606
      %2608 = vdwg.mxu0
      %v2609 = vadd.f32 %v2555, %v2598
      %v2610 = vadd.f32 %v2556, %v2601
      %v2611 = vadd.f32 %v2557, %v2604
      %v2612 = vadd.f32 %v2558, %v2607
      %v2613 = vld [vmem:[%s2293 + $0x5] sm:$0xff]
      %v2614 = vld [vmem:[%s2293 + $0xd] sm:$0xff]
      %v2615 = vld [vmem:[%s2293 + $0x15] sm:$0xff]
      %v2616 = vld [vmem:[%s2293 + $0x1d] sm:$0x1]
      %s2617 = scalar_lea.vmem %s3, 192
      %v2618 = vld [vmem:[%s2617] sm:$0xff]
      %v2619 = vld [vmem:[%s2617 + $0x8] sm:$0xff]
      %v2620 = vld [vmem:[%s2617 + $0x10] sm:$0xff]
      %v2621 = vld [vmem:[%s2617 + $0x18] sm:$0xff]
      %v2623 = vsel %vm389, %v2613, 0
      %v2626 = vsel %vm389, %v2614, 0
      %v2629 = vsel %vm389, %v2615, 0
      %v2632 = vsel %vm389, %v2616, 0
      %2634 = vmatpush.msra.mxu0 0.0
      %2635 = vmatpush.msra.mxu0 0.0
      %2636 = vmatpush.msra.mxu0 0.0
      %2637 = vmatpush.msra.mxu0 0.0
      %2638 = vmatpush.msra.mxu0 0.0
      %2639 = vmatpush.msra.mxu0 0.0
      %2640 = vmatpush.msra.mxu0 0.0
      %2641 = vmatpush.msra.mxu0 0.0
      %2642 = vmatpush.msra.mxu0 0.0
      %2643 = vmatpush.msra.mxu0 0.0
      %2644 = vmatpush.msra.mxu0 0.0
      %2645 = vmatpush.msra.mxu0 0.0
      %2646 = vmatpush.msra.mxu0 %v2621
      %2647 = vmatpush.msra.mxu0 %v2620
      %2648 = vmatpush.msra.mxu0 %v2619
      %2649 = vmatpush.msra.mxu0 %v2618
      %2650 = vmatmul.f32.gmra.mxu0 %v2623
      %v2651 = vpop.f32.mrf.mxu0
      %v2652 = vadd.f32 0.0, %v2651
      %2653 = vmatmul.f32.gmra.mxu0 %v2626
      %v2654 = vpop.f32.mrf.mxu0
      %v2655 = vadd.f32 0.0, %v2654
      %2656 = vmatmul.f32.gmra.mxu0 %v2629
      %v2657 = vpop.f32.mrf.mxu0
      %v2658 = vadd.f32 0.0, %v2657
      %2659 = vmatmul.f32.gmra.mxu0 %v2632
      %v2660 = vpop.f32.mrf.mxu0
      %v2661 = vadd.f32 0.0, %v2660
      %2662 = vdwg.mxu0
      %v2663 = vadd.f32 %v2609, %v2652
      %v2664 = vadd.f32 %v2610, %v2655
      %v2665 = vadd.f32 %v2611, %v2658
      %v2666 = vadd.f32 %v2612, %v2661
      %v2667 = vld [vmem:[%s1830 + $0x6] sm:$0xff]
      %v2668 = vld [vmem:[%s1830 + $0xe] sm:$0xff]
      %v2669 = vld [vmem:[%s1830 + $0x16] sm:$0xff]
      %v2670 = vld [vmem:[%s1830 + $0x1e] sm:$0x1]
      %s2671 = scalar_lea.vmem %s3, 224
      %v2672 = vld [vmem:[%s2671] sm:$0xff]
      %v2673 = vld [vmem:[%s2671 + $0x8] sm:$0xff]
      %v2674 = vld [vmem:[%s2671 + $0x10] sm:$0xff]
      %v2675 = vld [vmem:[%s2671 + $0x18] sm:$0xff]
      %v2677 = vsel %vm389, %v2667, 0
      %v2680 = vsel %vm389, %v2668, 0
      %v2683 = vsel %vm389, %v2669, 0
      %v2686 = vsel %vm389, %v2670, 0
      %2688 = vmatpush.msra.mxu0 0.0
      %2689 = vmatpush.msra.mxu0 0.0
      %2690 = vmatpush.msra.mxu0 0.0
      %2691 = vmatpush.msra.mxu0 0.0
      %2692 = vmatpush.msra.mxu0 0.0
      %2693 = vmatpush.msra.mxu0 0.0
      %2694 = vmatpush.msra.mxu0 0.0
      %2695 = vmatpush.msra.mxu0 0.0
      %2696 = vmatpush.msra.mxu0 0.0
      %2697 = vmatpush.msra.mxu0 0.0
      %2698 = vmatpush.msra.mxu0 0.0
      %2699 = vmatpush.msra.mxu0 0.0
      %2700 = vmatpush.msra.mxu0 %v2675
      %2701 = vmatpush.msra.mxu0 %v2674
      %2702 = vmatpush.msra.mxu0 %v2673
      %2703 = vmatpush.msra.mxu0 %v2672
      %2704 = vmatmul.f32.gmra.mxu0 %v2677
      %v2705 = vpop.f32.mrf.mxu0
      %v2706 = vadd.f32 0.0, %v2705
      %2707 = vmatmul.f32.gmra.mxu0 %v2680
      %v2708 = vpop.f32.mrf.mxu0
      %v2709 = vadd.f32 0.0, %v2708
      %2710 = vmatmul.f32.gmra.mxu0 %v2683
      %v2711 = vpop.f32.mrf.mxu0
      %v2712 = vadd.f32 0.0, %v2711
      %2713 = vmatmul.f32.gmra.mxu0 %v2686
      %v2714 = vpop.f32.mrf.mxu0
      %v2715 = vadd.f32 0.0, %v2714
      %2716 = vdwg.mxu0
      %v2717 = vadd.f32 %v2663, %v2706
      %v2718 = vadd.f32 %v2664, %v2709
      %v2719 = vadd.f32 %v2665, %v2712
      %v2720 = vadd.f32 %v2666, %v2715
      %v2721 = vld [vmem:[%s2293 + $0x6] sm:$0xff]
      %v2722 = vld [vmem:[%s2293 + $0xe] sm:$0xff]
      %v2723 = vld [vmem:[%s2293 + $0x16] sm:$0xff]
      %v2724 = vld [vmem:[%s2293 + $0x1e] sm:$0x1]
      %s2725 = scalar_lea.vmem %s3, 256
      %v2726 = vld [vmem:[%s2725] sm:$0xff]
      %v2727 = vld [vmem:[%s2725 + $0x8] sm:$0xff]
      %v2728 = vld [vmem:[%s2725 + $0x10] sm:$0xff]
      %v2729 = vld [vmem:[%s2725 + $0x18] sm:$0xff]
      %v2731 = vsel %vm389, %v2721, 0
      %v2734 = vsel %vm389, %v2722, 0
      %v2737 = vsel %vm389, %v2723, 0
      %v2740 = vsel %vm389, %v2724, 0
      %2742 = vmatpush.msra.mxu0 0.0
      %2743 = vmatpush.msra.mxu0 0.0
      %2744 = vmatpush.msra.mxu0 0.0
      %2745 = vmatpush.msra.mxu0 0.0
      %2746 = vmatpush.msra.mxu0 0.0
      %2747 = vmatpush.msra.mxu0 0.0
      %2748 = vmatpush.msra.mxu0 0.0
      %2749 = vmatpush.msra.mxu0 0.0
      %2750 = vmatpush.msra.mxu0 0.0
      %2751 = vmatpush.msra.mxu0 0.0
      %2752 = vmatpush.msra.mxu0 0.0
      %2753 = vmatpush.msra.mxu0 0.0
      %2754 = vmatpush.msra.mxu0 %v2729
      %2755 = vmatpush.msra.mxu0 %v2728
      %2756 = vmatpush.msra.mxu0 %v2727
      %2757 = vmatpush.msra.mxu0 %v2726
      %2758 = vmatmul.f32.gmra.mxu0 %v2731
      %v2759 = vpop.f32.mrf.mxu0
      %v2760 = vadd.f32 0.0, %v2759
      %2761 = vmatmul.f32.gmra.mxu0 %v2734
      %v2762 = vpop.f32.mrf.mxu0
      %v2763 = vadd.f32 0.0, %v2762
      %2764 = vmatmul.f32.gmra.mxu0 %v2737
      %v2765 = vpop.f32.mrf.mxu0
      %v2766 = vadd.f32 0.0, %v2765
      %2767 = vmatmul.f32.gmra.mxu0 %v2740
      %v2768 = vpop.f32.mrf.mxu0
      %v2769 = vadd.f32 0.0, %v2768
      %2770 = vdwg.mxu0
      %v2771 = vadd.f32 %v2717, %v2760
      %v2772 = vadd.f32 %v2718, %v2763
      %v2773 = vadd.f32 %v2719, %v2766
      %v2774 = vadd.f32 %v2720, %v2769
      %v2775 = vld [vmem:[%s4] sm:$0x1]
      %v2777 = vperm.slane %v2775, 0
      %v2779 = vadd.f32 %v2771, %v2777
      %v2780 = vadd.f32 %v2772, %v2777
      %v2781 = vadd.f32 %v2773, %v2777
      %v2782 = vadd.f32 %v2774, %v2777
      %v2783 = vmax.f32 %v2779, 0.0
      %v2784 = vmax.f32 %v2780, 0.0
      %v2785 = vmax.f32 %v2781, 0.0
      %v2786 = vmax.f32 %v2782, 0.0
      %v2787 = vsel %vm385, 1, 0
      %v2788 = vsel %vm386, 1, 0
      %v2789 = vsel %vm387, 1, 0
      %v2790 = vsel %vm388, 1, 0
      %vm2791 = vcmp.eq.s32.totalorder %v2787, 1
      %vm2792 = vcmp.eq.s32.totalorder %v2788, 1
      %vm2793 = vcmp.eq.s32.totalorder %v2789, 1
      %vm2794 = vcmp.eq.s32.totalorder %v2790, 1
      %v2795 = vsel %vm2791, %v2783, 0.0
      %v2796 = vsel %vm2792, %v2784, 0.0
      %v2797 = vsel %vm2793, %v2785, 0.0
      %v2798 = vsel %vm2794, %v2786, 0.0
      %2799 = vst.msk [vmem:[#allocation3] sm:$0xff] %vm407, %v2795
      %2800 = vst.msk [vmem:[#allocation3 + $0x8] sm:$0xff] %vm407, %v2796
      %2801 = vst.msk [vmem:[#allocation3 + $0x10] sm:$0xff] %vm407, %v2797
      %vm2802 = vcmask 516096
      %2803 = vst.msk [vmem:[#allocation3 + $0x18] sm:$0x1] %vm2802, %v2798
      %v2804 = vld [vmem:[#allocation3] sm:$0xff]
      %v2805 = vld [vmem:[#allocation3 + $0x8] sm:$0xff]
      %v2806 = vld [vmem:[#allocation3 + $0x10] sm:$0xff]
      %v2807 = vld [vmem:[#allocation3 + $0x18] sm:$0x1]
      %s2808 = scalar_lea.vmem %s5, 256
      %v2809 = vld [vmem:[%s2808] sm:$0xff]
      %v2810 = vld [vmem:[%s2808 + $0x8] sm:$0xff]
      %v2811 = vld [vmem:[%s2808 + $0x10] sm:$0xff]
      %v2812 = vld [vmem:[%s2808 + $0x18] sm:$0xff]
      %v2813 = vld [vmem:[%s2808 + $0x20] sm:$0xff]
      %v2814 = vld [vmem:[%s2808 + $0x28] sm:$0xff]
      %v2815 = vld [vmem:[%s2808 + $0x30] sm:$0xff]
      %v2816 = vld [vmem:[%s2808 + $0x38] sm:$0xff]
      %v2817 = vld [vmem:[%s6] sm:$0x1]
      %v2819 = vperm.slane %v2817, 0
      %v2822 = vsel %vm407, %v2804, 0
      %v2825 = vsel %vm407, %v2805, 0
      %v2828 = vsel %vm407, %v2806, 0
      %v2831 = vsel %vm407, %v2807, 0
      %2833 = vmatpush.msra.mxu0 0.0
      %2834 = vmatpush.msra.mxu0 0.0
      %2835 = vmatpush.msra.mxu0 0.0
      %2836 = vmatpush.msra.mxu0 0.0
      %2837 = vmatpush.msra.mxu0 0.0
      %2838 = vmatpush.msra.mxu0 0.0
      %2839 = vmatpush.msra.mxu0 0.0
      %2840 = vmatpush.msra.mxu0 0.0
      %2841 = vmatpush.msra.mxu0 %v2816
      %2842 = vmatpush.msra.mxu0 %v2815
      %2843 = vmatpush.msra.mxu0 %v2814
      %2844 = vmatpush.msra.mxu0 %v2813
      %2845 = vmatpush.msra.mxu0 %v2812
      %2846 = vmatpush.msra.mxu0 %v2811
      %2847 = vmatpush.msra.mxu0 %v2810
      %2848 = vmatpush.msra.mxu0 %v2809
      %2849 = vmatmul.f32.gmra.mxu0 %v2822
      %v2850 = vpop.f32.mrf.mxu0
      %v2851 = vadd.f32 %v2819, %v2850
      %2852 = vmatmul.f32.gmra.mxu0 %v2825
      %v2853 = vpop.f32.mrf.mxu0
      %v2854 = vadd.f32 %v2819, %v2853
      %2855 = vmatmul.f32.gmra.mxu0 %v2828
      %v2856 = vpop.f32.mrf.mxu0
      %v2857 = vadd.f32 %v2819, %v2856
      %2858 = vmatmul.f32.gmra.mxu0 %v2831
      %v2859 = vpop.f32.mrf.mxu0
      %v2860 = vadd.f32 %v2819, %v2859
      %2861 = vdwg.mxu0
      %v2862 = vmax.f32 %v2851, 0.0
      %v2863 = vmax.f32 %v2854, 0.0
      %v2864 = vmax.f32 %v2857, 0.0
      %v2865 = vmax.f32 %v2860, 0.0
      %v2866 = vsel %vm2791, %v2862, 0.0
      %v2867 = vsel %vm2792, %v2863, 0.0
      %v2868 = vsel %vm2793, %v2864, 0.0
      %v2869 = vsel %vm2794, %v2865, 0.0
      %2870 = vst.msk [vmem:[#allocation4] sm:$0xff] %vm389, %v2866
      %2871 = vst.msk [vmem:[#allocation4 + $0x8] sm:$0xff] %vm389, %v2867
      %2872 = vst.msk [vmem:[#allocation4 + $0x10] sm:$0xff] %vm389, %v2868
      %2873 = vst.msk [vmem:[#allocation4 + $0x18] sm:$0x1] %vm907, %v2869
      %v2874 = vld [vmem:[#allocation3 + $0x1] sm:$0xff]
      %v2875 = vld [vmem:[#allocation3 + $0x9] sm:$0xff]
      %v2876 = vld [vmem:[#allocation3 + $0x11] sm:$0xff]
      %v2877 = vld [vmem:[#allocation3 + $0x19] sm:$0x1]
      %s2878 = scalar_lea.vmem %s5, 192
      %v2879 = vld [vmem:[%s2878] sm:$0xff]
      %v2880 = vld [vmem:[%s2878 + $0x8] sm:$0xff]
      %v2881 = vld [vmem:[%s2878 + $0x10] sm:$0xff]
      %v2882 = vld [vmem:[%s2878 + $0x18] sm:$0xff]
      %v2883 = vld [vmem:[%s2878 + $0x20] sm:$0xff]
      %v2884 = vld [vmem:[%s2878 + $0x28] sm:$0xff]
      %v2885 = vld [vmem:[%s2878 + $0x30] sm:$0xff]
      %v2886 = vld [vmem:[%s2878 + $0x38] sm:$0xff]
      %v2887 = vld [vmem:[#allocation3] sm:$0xff]
      %v2888 = vld [vmem:[#allocation3 + $0x8] sm:$0xff]
      %v2889 = vld [vmem:[#allocation3 + $0x10] sm:$0xff]
      %v2890 = vld [vmem:[#allocation3 + $0x18] sm:$0x1]
      %s2891 = scalar_lea.vmem %s5, 320
      %v2892 = vld [vmem:[%s2891] sm:$0xff]
      %v2893 = vld [vmem:[%s2891 + $0x8] sm:$0xff]
      %v2894 = vld [vmem:[%s2891 + $0x10] sm:$0xff]
      %v2895 = vld [vmem:[%s2891 + $0x18] sm:$0xff]
      %v2896 = vld [vmem:[%s2891 + $0x20] sm:$0xff]
      %v2897 = vld [vmem:[%s2891 + $0x28] sm:$0xff]
      %v2898 = vld [vmem:[%s2891 + $0x30] sm:$0xff]
      %v2899 = vld [vmem:[%s2891 + $0x38] sm:$0xff]
      %v2901 = vsel %vm407, %v2887, 0
      %v2904 = vsel %vm407, %v2888, 0
      %v2907 = vsel %vm407, %v2889, 0
      %v2910 = vsel %vm407, %v2890, 0
      %2912 = vmatpush.msra.mxu0 0.0
      %2913 = vmatpush.msra.mxu0 0.0
      %2914 = vmatpush.msra.mxu0 0.0
      %2915 = vmatpush.msra.mxu0 0.0
      %2916 = vmatpush.msra.mxu0 0.0
      %2917 = vmatpush.msra.mxu0 0.0
      %2918 = vmatpush.msra.mxu0 0.0
      %2919 = vmatpush.msra.mxu0 0.0
      %2920 = vmatpush.msra.mxu0 %v2899
      %2921 = vmatpush.msra.mxu0 %v2898
      %2922 = vmatpush.msra.mxu0 %v2897
      %2923 = vmatpush.msra.mxu0 %v2896
      %2924 = vmatpush.msra.mxu0 %v2895
      %2925 = vmatpush.msra.mxu0 %v2894
      %2926 = vmatpush.msra.mxu0 %v2893
      %2927 = vmatpush.msra.mxu0 %v2892
      %2928 = vmatmul.f32.gmra.mxu0 %v2901
      %v2929 = vpop.f32.mrf.mxu0
      %v2930 = vadd.f32 0.0, %v2929
      %2931 = vmatmul.f32.gmra.mxu0 %v2904
      %v2932 = vpop.f32.mrf.mxu0
      %v2933 = vadd.f32 0.0, %v2932
      %2934 = vmatmul.f32.gmra.mxu0 %v2907
      %v2935 = vpop.f32.mrf.mxu0
      %v2936 = vadd.f32 0.0, %v2935
      %2937 = vmatmul.f32.gmra.mxu0 %v2910
      %v2938 = vpop.f32.mrf.mxu0
      %v2939 = vadd.f32 0.0, %v2938
      %2940 = vdwg.mxu0
      %v2942 = vsel %vm407, %v2874, 0
      %v2945 = vsel %vm407, %v2875, 0
      %v2948 = vsel %vm407, %v2876, 0
      %v2951 = vsel %vm407, %v2877, 0
      %2953 = vmatpush.msra.mxu0 0.0
      %2954 = vmatpush.msra.mxu0 0.0
      %2955 = vmatpush.msra.mxu0 0.0
      %2956 = vmatpush.msra.mxu0 0.0
      %2957 = vmatpush.msra.mxu0 0.0
      %2958 = vmatpush.msra.mxu0 0.0
      %2959 = vmatpush.msra.mxu0 0.0
      %2960 = vmatpush.msra.mxu0 0.0
      %2961 = vmatpush.msra.mxu0 %v2886
      %2962 = vmatpush.msra.mxu0 %v2885
      %2963 = vmatpush.msra.mxu0 %v2884
      %2964 = vmatpush.msra.mxu0 %v2883
      %2965 = vmatpush.msra.mxu0 %v2882
      %2966 = vmatpush.msra.mxu0 %v2881
      %2967 = vmatpush.msra.mxu0 %v2880
      %2968 = vmatpush.msra.mxu0 %v2879
      %2969 = vmatmul.f32.gmra.mxu0 %v2942
      %v2970 = vpop.f32.mrf.mxu0
      %v2971 = vadd.f32 %v2930, %v2970
      %2972 = vmatmul.f32.gmra.mxu0 %v2945
      %v2973 = vpop.f32.mrf.mxu0
      %v2974 = vadd.f32 %v2933, %v2973
      %2975 = vmatmul.f32.gmra.mxu0 %v2948
      %v2976 = vpop.f32.mrf.mxu0
      %v2977 = vadd.f32 %v2936, %v2976
      %2978 = vmatmul.f32.gmra.mxu0 %v2951
      %v2979 = vpop.f32.mrf.mxu0
      %v2980 = vadd.f32 %v2939, %v2979
      %2981 = vdwg.mxu0
      %v2982 = vld [vmem:[%s6] sm:$0x1]
      %v2984 = vperm.slane %v2982, 0
      %v2986 = vadd.f32 %v2971, %v2984
      %v2987 = vadd.f32 %v2974, %v2984
      %v2988 = vadd.f32 %v2977, %v2984
      %v2989 = vadd.f32 %v2980, %v2984
      %v2990 = vmax.f32 %v2986, 0.0
      %v2991 = vmax.f32 %v2987, 0.0
      %v2992 = vmax.f32 %v2988, 0.0
      %v2993 = vmax.f32 %v2989, 0.0
      %v2994 = vsel %vm2791, %v2990, 0.0
      %v2995 = vsel %vm2792, %v2991, 0.0
      %v2996 = vsel %vm2793, %v2992, 0.0
      %v2997 = vsel %vm2794, %v2993, 0.0
      %s2998 = scalar_lea.vmem [#allocation4], 32
      %2999 = vst.msk [vmem:[%s2998] sm:$0xff] %vm389, %v2994
      %3000 = vst.msk [vmem:[%s2998 + $0x8] sm:$0xff] %vm389, %v2995
      %3001 = vst.msk [vmem:[%s2998 + $0x10] sm:$0xff] %vm389, %v2996
      %3002 = vst.msk [vmem:[%s2998 + $0x18] sm:$0x1] %vm907, %v2997
      %v3003 = vld [vmem:[#allocation3 + $0x5] sm:$0xff]
      %v3004 = vld [vmem:[#allocation3 + $0xd] sm:$0xff]
      %v3005 = vld [vmem:[#allocation3 + $0x15] sm:$0xff]
      %v3006 = vld [vmem:[#allocation3 + $0x1d] sm:$0x1]
      %s3007 = scalar_lea.vmem %s5, 64
      %v3008 = vld [vmem:[%s3007] sm:$0xff]
      %v3009 = vld [vmem:[%s3007 + $0x8] sm:$0xff]
      %v3010 = vld [vmem:[%s3007 + $0x10] sm:$0xff]
      %v3011 = vld [vmem:[%s3007 + $0x18] sm:$0xff]
      %v3012 = vld [vmem:[%s3007 + $0x20] sm:$0xff]
      %v3013 = vld [vmem:[%s3007 + $0x28] sm:$0xff]
      %v3014 = vld [vmem:[%s3007 + $0x30] sm:$0xff]
      %v3015 = vld [vmem:[%s3007 + $0x38] sm:$0xff]
      %v3016 = vld [vmem:[#allocation3] sm:$0xff]
      %v3017 = vld [vmem:[#allocation3 + $0x8] sm:$0xff]
      %v3018 = vld [vmem:[#allocation3 + $0x10] sm:$0xff]
      %v3019 = vld [vmem:[#allocation3 + $0x18] sm:$0x1]
      %s3020 = scalar_lea.vmem %s5, 448
      %v3021 = vld [vmem:[%s3020] sm:$0xff]
      %v3022 = vld [vmem:[%s3020 + $0x8] sm:$0xff]
      %v3023 = vld [vmem:[%s3020 + $0x10] sm:$0xff]
      %v3024 = vld [vmem:[%s3020 + $0x18] sm:$0xff]
      %v3025 = vld [vmem:[%s3020 + $0x20] sm:$0xff]
      %v3026 = vld [vmem:[%s3020 + $0x28] sm:$0xff]
      %v3027 = vld [vmem:[%s3020 + $0x30] sm:$0xff]
      %v3028 = vld [vmem:[%s3020 + $0x38] sm:$0xff]
      %v3030 = vsel %vm407, %v3016, 0
      %v3033 = vsel %vm407, %v3017, 0
      %v3036 = vsel %vm407, %v3018, 0
      %v3039 = vsel %vm407, %v3019, 0
      %3041 = vmatpush.msra.mxu0 0.0
      %3042 = vmatpush.msra.mxu0 0.0
      %3043 = vmatpush.msra.mxu0 0.0
      %3044 = vmatpush.msra.mxu0 0.0
      %3045 = vmatpush.msra.mxu0 0.0
      %3046 = vmatpush.msra.mxu0 0.0
      %3047 = vmatpush.msra.mxu0 0.0
      %3048 = vmatpush.msra.mxu0 0.0
      %3049 = vmatpush.msra.mxu0 %v3028
      %3050 = vmatpush.msra.mxu0 %v3027
      %3051 = vmatpush.msra.mxu0 %v3026
      %3052 = vmatpush.msra.mxu0 %v3025
      %3053 = vmatpush.msra.mxu0 %v3024
      %3054 = vmatpush.msra.mxu0 %v3023
      %3055 = vmatpush.msra.mxu0 %v3022
      %3056 = vmatpush.msra.mxu0 %v3021
      %3057 = vmatmul.f32.gmra.mxu0 %v3030
      %v3058 = vpop.f32.mrf.mxu0
      %v3059 = vadd.f32 0.0, %v3058
      %3060 = vmatmul.f32.gmra.mxu0 %v3033
      %v3061 = vpop.f32.mrf.mxu0
      %v3062 = vadd.f32 0.0, %v3061
      %3063 = vmatmul.f32.gmra.mxu0 %v3036
      %v3064 = vpop.f32.mrf.mxu0
      %v3065 = vadd.f32 0.0, %v3064
      %3066 = vmatmul.f32.gmra.mxu0 %v3039
      %v3067 = vpop.f32.mrf.mxu0
      %v3068 = vadd.f32 0.0, %v3067
      %3069 = vdwg.mxu0
      %v3071 = vsel %vm407, %v3003, 0
      %v3074 = vsel %vm407, %v3004, 0
      %v3077 = vsel %vm407, %v3005, 0
      %v3080 = vsel %vm407, %v3006, 0
      %3082 = vmatpush.msra.mxu0 0.0
      %3083 = vmatpush.msra.mxu0 0.0
      %3084 = vmatpush.msra.mxu0 0.0
      %3085 = vmatpush.msra.mxu0 0.0
      %3086 = vmatpush.msra.mxu0 0.0
      %3087 = vmatpush.msra.mxu0 0.0
      %3088 = vmatpush.msra.mxu0 0.0
      %3089 = vmatpush.msra.mxu0 0.0
      %3090 = vmatpush.msra.mxu0 %v3015
      %3091 = vmatpush.msra.mxu0 %v3014
      %3092 = vmatpush.msra.mxu0 %v3013
      %3093 = vmatpush.msra.mxu0 %v3012
      %3094 = vmatpush.msra.mxu0 %v3011
      %3095 = vmatpush.msra.mxu0 %v3010
      %3096 = vmatpush.msra.mxu0 %v3009
      %3097 = vmatpush.msra.mxu0 %v3008
      %3098 = vmatmul.f32.gmra.mxu0 %v3071
      %v3099 = vpop.f32.mrf.mxu0
      %v3100 = vadd.f32 %v3059, %v3099
      %3101 = vmatmul.f32.gmra.mxu0 %v3074
      %v3102 = vpop.f32.mrf.mxu0
      %v3103 = vadd.f32 %v3062, %v3102
      %3104 = vmatmul.f32.gmra.mxu0 %v3077
      %v3105 = vpop.f32.mrf.mxu0
      %v3106 = vadd.f32 %v3065, %v3105
      %3107 = vmatmul.f32.gmra.mxu0 %v3080
      %v3108 = vpop.f32.mrf.mxu0
      %v3109 = vadd.f32 %v3068, %v3108
      %3110 = vdwg.mxu0
      %v3111 = vld [vmem:[%s6] sm:$0x1]
      %v3113 = vperm.slane %v3111, 0
      %v3115 = vadd.f32 %v3100, %v3113
      %v3116 = vadd.f32 %v3103, %v3113
      %v3117 = vadd.f32 %v3106, %v3113
      %v3118 = vadd.f32 %v3109, %v3113
      %v3119 = vmax.f32 %v3115, 0.0
      %v3120 = vmax.f32 %v3116, 0.0
      %v3121 = vmax.f32 %v3117, 0.0
      %v3122 = vmax.f32 %v3118, 0.0
      %v3123 = vsel %vm2791, %v3119, 0.0
      %v3124 = vsel %vm2792, %v3120, 0.0
      %v3125 = vsel %vm2793, %v3121, 0.0
      %v3126 = vsel %vm2794, %v3122, 0.0
      %s3127 = scalar_lea.vmem [#allocation4], 64
      %3128 = vst.msk [vmem:[%s3127] sm:$0xff] %vm389, %v3123
      %3129 = vst.msk [vmem:[%s3127 + $0x8] sm:$0xff] %vm389, %v3124
      %3130 = vst.msk [vmem:[%s3127 + $0x10] sm:$0xff] %vm389, %v3125
      %3131 = vst.msk [vmem:[%s3127 + $0x18] sm:$0x1] %vm907, %v3126
      %v3132 = vld [vmem:[#allocation3 + $0x6] sm:$0xff]
      %v3133 = vld [vmem:[#allocation3 + $0xe] sm:$0xff]
      %v3134 = vld [vmem:[#allocation3 + $0x16] sm:$0xff]
      %v3135 = vld [vmem:[#allocation3 + $0x1e] sm:$0x1]
      %v3136 = vld [vmem:[%s5] sm:$0xff]
      %v3137 = vld [vmem:[%s5 + $0x8] sm:$0xff]
      %v3138 = vld [vmem:[%s5 + $0x10] sm:$0xff]
      %v3139 = vld [vmem:[%s5 + $0x18] sm:$0xff]
      %v3140 = vld [vmem:[%s5 + $0x20] sm:$0xff]
      %v3141 = vld [vmem:[%s5 + $0x28] sm:$0xff]
      %v3142 = vld [vmem:[%s5 + $0x30] sm:$0xff]
      %v3143 = vld [vmem:[%s5 + $0x38] sm:$0xff]
      %v3144 = vld [vmem:[#allocation3 + $0x5] sm:$0xff]
      %v3145 = vld [vmem:[#allocation3 + $0xd] sm:$0xff]
      %v3146 = vld [vmem:[#allocation3 + $0x15] sm:$0xff]
      %v3147 = vld [vmem:[#allocation3 + $0x1d] sm:$0x1]
      %s3148 = scalar_lea.vmem %s5, 128
      %v3149 = vld [vmem:[%s3148] sm:$0xff]
      %v3150 = vld [vmem:[%s3148 + $0x8] sm:$0xff]
      %v3151 = vld [vmem:[%s3148 + $0x10] sm:$0xff]
      %v3152 = vld [vmem:[%s3148 + $0x18] sm:$0xff]
      %v3153 = vld [vmem:[%s3148 + $0x20] sm:$0xff]
      %v3154 = vld [vmem:[%s3148 + $0x28] sm:$0xff]
      %v3155 = vld [vmem:[%s3148 + $0x30] sm:$0xff]
      %v3156 = vld [vmem:[%s3148 + $0x38] sm:$0xff]
      %v3158 = vsel %vm407, %v3144, 0
      %v3161 = vsel %vm407, %v3145, 0
      %v3164 = vsel %vm407, %v3146, 0
      %v3167 = vsel %vm407, %v3147, 0
      %3169 = vmatpush.msra.mxu0 0.0
      %3170 = vmatpush.msra.mxu0 0.0
      %3171 = vmatpush.msra.mxu0 0.0
      %3172 = vmatpush.msra.mxu0 0.0
      %3173 = vmatpush.msra.mxu0 0.0
      %3174 = vmatpush.msra.mxu0 0.0
      %3175 = vmatpush.msra.mxu0 0.0
      %3176 = vmatpush.msra.mxu0 0.0
      %3177 = vmatpush.msra.mxu0 %v3156
      %3178 = vmatpush.msra.mxu0 %v3155
      %3179 = vmatpush.msra.mxu0 %v3154
      %3180 = vmatpush.msra.mxu0 %v3153
      %3181 = vmatpush.msra.mxu0 %v3152
      %3182 = vmatpush.msra.mxu0 %v3151
      %3183 = vmatpush.msra.mxu0 %v3150
      %3184 = vmatpush.msra.mxu0 %v3149
      %3185 = vmatmul.f32.gmra.mxu0 %v3158
      %v3186 = vpop.f32.mrf.mxu0
      %v3187 = vadd.f32 0.0, %v3186
      %3188 = vmatmul.f32.gmra.mxu0 %v3161
      %v3189 = vpop.f32.mrf.mxu0
      %v3190 = vadd.f32 0.0, %v3189
      %3191 = vmatmul.f32.gmra.mxu0 %v3164
      %v3192 = vpop.f32.mrf.mxu0
      %v3193 = vadd.f32 0.0, %v3192
      %3194 = vmatmul.f32.gmra.mxu0 %v3167
      %v3195 = vpop.f32.mrf.mxu0
      %v3196 = vadd.f32 0.0, %v3195
      %3197 = vdwg.mxu0
      %v3199 = vsel %vm407, %v3132, 0
      %v3202 = vsel %vm407, %v3133, 0
      %v3205 = vsel %vm407, %v3134, 0
      %v3208 = vsel %vm407, %v3135, 0
      %3210 = vmatpush.msra.mxu0 0.0
      %3211 = vmatpush.msra.mxu0 0.0
      %3212 = vmatpush.msra.mxu0 0.0
      %3213 = vmatpush.msra.mxu0 0.0
      %3214 = vmatpush.msra.mxu0 0.0
      %3215 = vmatpush.msra.mxu0 0.0
      %3216 = vmatpush.msra.mxu0 0.0
      %3217 = vmatpush.msra.mxu0 0.0
      %3218 = vmatpush.msra.mxu0 %v3143
      %3219 = vmatpush.msra.mxu0 %v3142
      %3220 = vmatpush.msra.mxu0 %v3141
      %3221 = vmatpush.msra.mxu0 %v3140
      %3222 = vmatpush.msra.mxu0 %v3139
      %3223 = vmatpush.msra.mxu0 %v3138
      %3224 = vmatpush.msra.mxu0 %v3137
      %3225 = vmatpush.msra.mxu0 %v3136
      %3226 = vmatmul.f32.gmra.mxu0 %v3199
      %v3227 = vpop.f32.mrf.mxu0
      %v3228 = vadd.f32 %v3187, %v3227
      %3229 = vmatmul.f32.gmra.mxu0 %v3202
      %v3230 = vpop.f32.mrf.mxu0
      %v3231 = vadd.f32 %v3190, %v3230
      %3232 = vmatmul.f32.gmra.mxu0 %v3205
      %v3233 = vpop.f32.mrf.mxu0
      %v3234 = vadd.f32 %v3193, %v3233
      %3235 = vmatmul.f32.gmra.mxu0 %v3208
      %v3236 = vpop.f32.mrf.mxu0
      %v3237 = vadd.f32 %v3196, %v3236
      %3238 = vdwg.mxu0
      %v3239 = vld [vmem:[#allocation3 + $0x1] sm:$0xff]
      %v3240 = vld [vmem:[#allocation3 + $0x9] sm:$0xff]
      %v3241 = vld [vmem:[#allocation3 + $0x11] sm:$0xff]
      %v3242 = vld [vmem:[#allocation3 + $0x19] sm:$0x1]
      %s3243 = scalar_lea.vmem %s5, 384
      %v3244 = vld [vmem:[%s3243] sm:$0xff]
      %v3245 = vld [vmem:[%s3243 + $0x8] sm:$0xff]
      %v3246 = vld [vmem:[%s3243 + $0x10] sm:$0xff]
      %v3247 = vld [vmem:[%s3243 + $0x18] sm:$0xff]
      %v3248 = vld [vmem:[%s3243 + $0x20] sm:$0xff]
      %v3249 = vld [vmem:[%s3243 + $0x28] sm:$0xff]
      %v3250 = vld [vmem:[%s3243 + $0x30] sm:$0xff]
      %v3251 = vld [vmem:[%s3243 + $0x38] sm:$0xff]
      %v3253 = vsel %vm407, %v3239, 0
      %v3256 = vsel %vm407, %v3240, 0
      %v3259 = vsel %vm407, %v3241, 0
      %v3262 = vsel %vm407, %v3242, 0
      %3264 = vmatpush.msra.mxu0 0.0
      %3265 = vmatpush.msra.mxu0 0.0
      %3266 = vmatpush.msra.mxu0 0.0
      %3267 = vmatpush.msra.mxu0 0.0
      %3268 = vmatpush.msra.mxu0 0.0
      %3269 = vmatpush.msra.mxu0 0.0
      %3270 = vmatpush.msra.mxu0 0.0
      %3271 = vmatpush.msra.mxu0 0.0
      %3272 = vmatpush.msra.mxu0 %v3251
      %3273 = vmatpush.msra.mxu0 %v3250
      %3274 = vmatpush.msra.mxu0 %v3249
      %3275 = vmatpush.msra.mxu0 %v3248
      %3276 = vmatpush.msra.mxu0 %v3247
      %3277 = vmatpush.msra.mxu0 %v3246
      %3278 = vmatpush.msra.mxu0 %v3245
      %3279 = vmatpush.msra.mxu0 %v3244
      %3280 = vmatmul.f32.gmra.mxu0 %v3253
      %v3281 = vpop.f32.mrf.mxu0
      %v3282 = vadd.f32 0.0, %v3281
      %3283 = vmatmul.f32.gmra.mxu0 %v3256
      %v3284 = vpop.f32.mrf.mxu0
      %v3285 = vadd.f32 0.0, %v3284
      %3286 = vmatmul.f32.gmra.mxu0 %v3259
      %v3287 = vpop.f32.mrf.mxu0
      %v3288 = vadd.f32 0.0, %v3287
      %3289 = vmatmul.f32.gmra.mxu0 %v3262
      %v3290 = vpop.f32.mrf.mxu0
      %v3291 = vadd.f32 0.0, %v3290
      %3292 = vdwg.mxu0
      %v3293 = vadd.f32 %v3228, %v3282
      %v3294 = vadd.f32 %v3231, %v3285
      %v3295 = vadd.f32 %v3234, %v3288
      %v3296 = vadd.f32 %v3237, %v3291
      %v3297 = vld [vmem:[#allocation3] sm:$0xff]
      %v3298 = vld [vmem:[#allocation3 + $0x8] sm:$0xff]
      %v3299 = vld [vmem:[#allocation3 + $0x10] sm:$0xff]
      %v3300 = vld [vmem:[#allocation3 + $0x18] sm:$0x1]
      %s3301 = scalar_lea.vmem %s5, 512
      %v3302 = vld [vmem:[%s3301] sm:$0xff]
      %v3303 = vld [vmem:[%s3301 + $0x8] sm:$0xff]
      %v3304 = vld [vmem:[%s3301 + $0x10] sm:$0xff]
      %v3305 = vld [vmem:[%s3301 + $0x18] sm:$0xff]
      %v3306 = vld [vmem:[%s3301 + $0x20] sm:$0xff]
      %v3307 = vld [vmem:[%s3301 + $0x28] sm:$0xff]
      %v3308 = vld [vmem:[%s3301 + $0x30] sm:$0xff]
      %v3309 = vld [vmem:[%s3301 + $0x38] sm:$0xff]
      %v3311 = vsel %vm407, %v3297, 0
      %v3314 = vsel %vm407, %v3298, 0
      %v3317 = vsel %vm407, %v3299, 0
      %v3320 = vsel %vm407, %v3300, 0
      %3322 = vmatpush.msra.mxu0 0.0
      %3323 = vmatpush.msra.mxu0 0.0
      %3324 = vmatpush.msra.mxu0 0.0
      %3325 = vmatpush.msra.mxu0 0.0
      %3326 = vmatpush.msra.mxu0 0.0
      %3327 = vmatpush.msra.mxu0 0.0
      %3328 = vmatpush.msra.mxu0 0.0
      %3329 = vmatpush.msra.mxu0 0.0
      %3330 = vmatpush.msra.mxu0 %v3309
      %3331 = vmatpush.msra.mxu0 %v3308
      %3332 = vmatpush.msra.mxu0 %v3307
      %3333 = vmatpush.msra.mxu0 %v3306
      %3334 = vmatpush.msra.mxu0 %v3305
      %3335 = vmatpush.msra.mxu0 %v3304
      %3336 = vmatpush.msra.mxu0 %v3303
      %3337 = vmatpush.msra.mxu0 %v3302
      %3338 = vmatmul.f32.gmra.mxu0 %v3311
      %v3339 = vpop.f32.mrf.mxu0
      %v3340 = vadd.f32 0.0, %v3339
      %3341 = vmatmul.f32.gmra.mxu0 %v3314
      %v3342 = vpop.f32.mrf.mxu0
      %v3343 = vadd.f32 0.0, %v3342
      %3344 = vmatmul.f32.gmra.mxu0 %v3317
      %v3345 = vpop.f32.mrf.mxu0
      %v3346 = vadd.f32 0.0, %v3345
      %3347 = vmatmul.f32.gmra.mxu0 %v3320
      %v3348 = vpop.f32.mrf.mxu0
      %v3349 = vadd.f32 0.0, %v3348
      %3350 = vdwg.mxu0
      %v3351 = vadd.f32 %v3293, %v3340
      %v3352 = vadd.f32 %v3294, %v3343
      %v3353 = vadd.f32 %v3295, %v3346
      %v3354 = vadd.f32 %v3296, %v3349
      %v3355 = vld [vmem:[%s6] sm:$0x1]
      %v3357 = vperm.slane %v3355, 0
      %v3359 = vadd.f32 %v3351, %v3357
      %v3360 = vadd.f32 %v3352, %v3357
      %v3361 = vadd.f32 %v3353, %v3357
      %v3362 = vadd.f32 %v3354, %v3357
      %v3363 = vmax.f32 %v3359, 0.0
      %v3364 = vmax.f32 %v3360, 0.0
      %v3365 = vmax.f32 %v3361, 0.0
      %v3366 = vmax.f32 %v3362, 0.0
      %v3367 = vsel %vm2791, %v3363, 0.0
      %v3368 = vsel %vm2792, %v3364, 0.0
      %v3369 = vsel %vm2793, %v3365, 0.0
      %v3370 = vsel %vm2794, %v3366, 0.0
      %s3371 = scalar_lea.vmem [#allocation4], 96
      %3372 = vst.msk [vmem:[%s3371] sm:$0xff] %vm389, %v3367
      %3373 = vst.msk [vmem:[%s3371 + $0x8] sm:$0xff] %vm389, %v3368
      %3374 = vst.msk [vmem:[%s3371 + $0x10] sm:$0xff] %vm389, %v3369
      %3375 = vst.msk [vmem:[%s3371 + $0x18] sm:$0x1] %vm907, %v3370
      %v3376 = vld [vmem:[#allocation4] sm:$0xff]
      %v3377 = vld [vmem:[#allocation4 + $0x8] sm:$0xff]
      %v3378 = vld [vmem:[#allocation4 + $0x10] sm:$0xff]
      %v3379 = vld [vmem:[#allocation4 + $0x18] sm:$0x1]
      %s3380 = scalar_lea.vmem %s7, 128
      %v3381 = vld [vmem:[%s3380] sm:$0xff]
      %v3382 = vld [vmem:[%s3380 + $0x8] sm:$0xff]
      %v3383 = vld [vmem:[%s3380 + $0x10] sm:$0xff]
      %v3384 = vld [vmem:[%s3380 + $0x18] sm:$0xff]
      %v3385 = vld [vmem:[%s8] sm:$0x1]
      %v3387 = vperm.slane %v3385, 0
      %v3390 = vsel %vm389, %v3376, 0
      %v3393 = vsel %vm389, %v3377, 0
      %v3396 = vsel %vm389, %v3378, 0
      %v3399 = vsel %vm389, %v3379, 0
      %3401 = vmatpush.msra.mxu0 0.0
      %3402 = vmatpush.msra.mxu0 0.0
      %3403 = vmatpush.msra.mxu0 0.0
      %3404 = vmatpush.msra.mxu0 0.0
      %3405 = vmatpush.msra.mxu0 0.0
      %3406 = vmatpush.msra.mxu0 0.0
      %3407 = vmatpush.msra.mxu0 0.0
      %3408 = vmatpush.msra.mxu0 0.0
      %3409 = vmatpush.msra.mxu0 0.0
      %3410 = vmatpush.msra.mxu0 0.0
      %3411 = vmatpush.msra.mxu0 0.0
      %3412 = vmatpush.msra.mxu0 0.0
      %3413 = vmatpush.msra.mxu0 %v3384
      %3414 = vmatpush.msra.mxu0 %v3383
      %3415 = vmatpush.msra.mxu0 %v3382
      %3416 = vmatpush.msra.mxu0 %v3381
      %3417 = vmatmul.f32.gmra.mxu0 %v3390
      %v3418 = vpop.f32.mrf.mxu0
      %v3419 = vadd.f32 %v3387, %v3418
      %3420 = vmatmul.f32.gmra.mxu0 %v3393
      %v3421 = vpop.f32.mrf.mxu0
      %v3422 = vadd.f32 %v3387, %v3421
      %3423 = vmatmul.f32.gmra.mxu0 %v3396
      %v3424 = vpop.f32.mrf.mxu0
      %v3425 = vadd.f32 %v3387, %v3424
      %3426 = vmatmul.f32.gmra.mxu0 %v3399
      %v3427 = vpop.f32.mrf.mxu0
      %v3428 = vadd.f32 %v3387, %v3427
      %3429 = vdwg.mxu0
      %3430 = vst.msk [vmem:[%s332] sm:$0xff] %vm440, %v3419
      %3431 = vst.msk [vmem:[%s332 + $0x8] sm:$0xff] %vm440, %v3422
      %3432 = vst.msk [vmem:[%s332 + $0x10] sm:$0xff] %vm440, %v3425
      %vm3433 = vcmask 57344
      %3434 = vst.msk [vmem:[%s332 + $0x18] sm:$0x1] %vm3433, %v3428
      %v3435 = vld [vmem:[%s2998] sm:$0xff]
      %v3436 = vld [vmem:[%s2998 + $0x8] sm:$0xff]
      %v3437 = vld [vmem:[%s2998 + $0x10] sm:$0xff]
      %v3438 = vld [vmem:[%s2998 + $0x18] sm:$0x1]
      %v3439 = vld [vmem:[%s3380] sm:$0xff]
      %v3440 = vld [vmem:[%s3380 + $0x8] sm:$0xff]
      %v3441 = vld [vmem:[%s3380 + $0x10] sm:$0xff]
      %v3442 = vld [vmem:[%s3380 + $0x18] sm:$0xff]
      %v3443 = vld [vmem:[%s8] sm:$0x1]
      %v3445 = vperm.slane %v3443, 0
      %v3448 = vsel %vm389, %v3435, 0
      %v3451 = vsel %vm389, %v3436, 0
      %v3454 = vsel %vm389, %v3437, 0
      %v3457 = vsel %vm389, %v3438, 0
      %3459 = vmatpush.msra.mxu0 0.0
      %3460 = vmatpush.msra.mxu0 0.0
      %3461 = vmatpush.msra.mxu0 0.0
      %3462 = vmatpush.msra.mxu0 0.0
      %3463 = vmatpush.msra.mxu0 0.0
      %3464 = vmatpush.msra.mxu0 0.0
      %3465 = vmatpush.msra.mxu0 0.0
      %3466 = vmatpush.msra.mxu0 0.0
      %3467 = vmatpush.msra.mxu0 0.0
      %3468 = vmatpush.msra.mxu0 0.0
      %3469 = vmatpush.msra.mxu0 0.0
      %3470 = vmatpush.msra.mxu0 0.0
      %3471 = vmatpush.msra.mxu0 %v3442
      %3472 = vmatpush.msra.mxu0 %v3441
      %3473 = vmatpush.msra.mxu0 %v3440
      %3474 = vmatpush.msra.mxu0 %v3439
      %3475 = vmatmul.f32.gmra.mxu0 %v3448
      %v3476 = vpop.f32.mrf.mxu0
      %v3477 = vadd.f32 %v3445, %v3476
      %3478 = vmatmul.f32.gmra.mxu0 %v3451
      %v3479 = vpop.f32.mrf.mxu0
      %v3480 = vadd.f32 %v3445, %v3479
      %3481 = vmatmul.f32.gmra.mxu0 %v3454
      %v3482 = vpop.f32.mrf.mxu0
      %v3483 = vadd.f32 %v3445, %v3482
      %3484 = vmatmul.f32.gmra.mxu0 %v3457
      %v3485 = vpop.f32.mrf.mxu0
      %v3486 = vadd.f32 %v3445, %v3485
      %3487 = vdwg.mxu0
      %s3488 = scalar_lea.vmem %s332, 64
      %3489 = vst.msk [vmem:[%s3488] sm:$0xff] %vm440, %v3477
      %3490 = vst.msk [vmem:[%s3488 + $0x8] sm:$0xff] %vm440, %v3480
      %3491 = vst.msk [vmem:[%s3488 + $0x10] sm:$0xff] %vm440, %v3483
      %3492 = vst.msk [vmem:[%s3488 + $0x18] sm:$0x1] %vm3433, %v3486
      %v3493 = vld [vmem:[%s3127] sm:$0xff]
      %v3494 = vld [vmem:[%s3127 + $0x8] sm:$0xff]
      %v3495 = vld [vmem:[%s3127 + $0x10] sm:$0xff]
      %v3496 = vld [vmem:[%s3127 + $0x18] sm:$0x1]
      %v3497 = vld [vmem:[%s3380] sm:$0xff]
      %v3498 = vld [vmem:[%s3380 + $0x8] sm:$0xff]
      %v3499 = vld [vmem:[%s3380 + $0x10] sm:$0xff]
      %v3500 = vld [vmem:[%s3380 + $0x18] sm:$0xff]
      %v3501 = vld [vmem:[%s8] sm:$0x1]
      %v3503 = vperm.slane %v3501, 0
      %v3506 = vsel %vm389, %v3493, 0
      %v3509 = vsel %vm389, %v3494, 0
      %v3512 = vsel %vm389, %v3495, 0
      %v3515 = vsel %vm389, %v3496, 0
      %3517 = vmatpush.msra.mxu0 0.0
      %3518 = vmatpush.msra.mxu0 0.0
      %3519 = vmatpush.msra.mxu0 0.0
      %3520 = vmatpush.msra.mxu0 0.0
      %3521 = vmatpush.msra.mxu0 0.0
      %3522 = vmatpush.msra.mxu0 0.0
      %3523 = vmatpush.msra.mxu0 0.0
      %3524 = vmatpush.msra.mxu0 0.0
      %3525 = vmatpush.msra.mxu0 0.0
      %3526 = vmatpush.msra.mxu0 0.0
      %3527 = vmatpush.msra.mxu0 0.0
      %3528 = vmatpush.msra.mxu0 0.0
      %3529 = vmatpush.msra.mxu0 %v3500
      %3530 = vmatpush.msra.mxu0 %v3499
      %3531 = vmatpush.msra.mxu0 %v3498
      %3532 = vmatpush.msra.mxu0 %v3497
      %3533 = vmatmul.f32.gmra.mxu0 %v3506
      %v3534 = vpop.f32.mrf.mxu0
      %v3535 = vadd.f32 %v3503, %v3534
      %3536 = vmatmul.f32.gmra.mxu0 %v3509
      %v3537 = vpop.f32.mrf.mxu0
      %v3538 = vadd.f32 %v3503, %v3537
      %3539 = vmatmul.f32.gmra.mxu0 %v3512
      %v3540 = vpop.f32.mrf.mxu0
      %v3541 = vadd.f32 %v3503, %v3540
      %3542 = vmatmul.f32.gmra.mxu0 %v3515
      %v3543 = vpop.f32.mrf.mxu0
      %v3544 = vadd.f32 %v3503, %v3543
      %3545 = vdwg.mxu0
      %s3546 = scalar_lea.vmem %s332, 256
      %3547 = vst.msk [vmem:[%s3546] sm:$0xff] %vm440, %v3535
      %3548 = vst.msk [vmem:[%s3546 + $0x8] sm:$0xff] %vm440, %v3538
      %3549 = vst.msk [vmem:[%s3546 + $0x10] sm:$0xff] %vm440, %v3541
      %3550 = vst.msk [vmem:[%s3546 + $0x18] sm:$0x1] %vm3433, %v3544
      %v3551 = vld [vmem:[%s3371] sm:$0xff]
      %v3552 = vld [vmem:[%s3371 + $0x8] sm:$0xff]
      %v3553 = vld [vmem:[%s3371 + $0x10] sm:$0xff]
      %v3554 = vld [vmem:[%s3371 + $0x18] sm:$0x1]
      %v3555 = vld [vmem:[%s3380] sm:$0xff]
      %v3556 = vld [vmem:[%s3380 + $0x8] sm:$0xff]
      %v3557 = vld [vmem:[%s3380 + $0x10] sm:$0xff]
      %v3558 = vld [vmem:[%s3380 + $0x18] sm:$0xff]
      %v3559 = vld [vmem:[%s8] sm:$0x1]
      %v3561 = vperm.slane %v3559, 0
      %v3564 = vsel %vm389, %v3551, 0
      %v3567 = vsel %vm389, %v3552, 0
      %v3570 = vsel %vm389, %v3553, 0
      %v3573 = vsel %vm389, %v3554, 0
      %3575 = vmatpush.msra.mxu0 0.0
      %3576 = vmatpush.msra.mxu0 0.0
      %3577 = vmatpush.msra.mxu0 0.0
      %3578 = vmatpush.msra.mxu0 0.0
      %3579 = vmatpush.msra.mxu0 0.0
      %3580 = vmatpush.msra.mxu0 0.0
      %3581 = vmatpush.msra.mxu0 0.0
      %3582 = vmatpush.msra.mxu0 0.0
      %3583 = vmatpush.msra.mxu0 0.0
      %3584 = vmatpush.msra.mxu0 0.0
      %3585 = vmatpush.msra.mxu0 0.0
      %3586 = vmatpush.msra.mxu0 0.0
      %3587 = vmatpush.msra.mxu0 %v3558
      %3588 = vmatpush.msra.mxu0 %v3557
      %3589 = vmatpush.msra.mxu0 %v3556
      %3590 = vmatpush.msra.mxu0 %v3555
      %3591 = vmatmul.f32.gmra.mxu0 %v3564
      %v3592 = vpop.f32.mrf.mxu0
      %v3593 = vadd.f32 %v3561, %v3592
      %3594 = vmatmul.f32.gmra.mxu0 %v3567
      %v3595 = vpop.f32.mrf.mxu0
      %v3596 = vadd.f32 %v3561, %v3595
      %3597 = vmatmul.f32.gmra.mxu0 %v3570
      %v3598 = vpop.f32.mrf.mxu0
      %v3599 = vadd.f32 %v3561, %v3598
      %3600 = vmatmul.f32.gmra.mxu0 %v3573
      %v3601 = vpop.f32.mrf.mxu0
      %v3602 = vadd.f32 %v3561, %v3601
      %3603 = vdwg.mxu0
      %s3604 = scalar_lea.vmem %s332, 320
      %3605 = vst.msk [vmem:[%s3604] sm:$0xff] %vm440, %v3593
      %3606 = vst.msk [vmem:[%s3604 + $0x8] sm:$0xff] %vm440, %v3596
      %3607 = vst.msk [vmem:[%s3604 + $0x10] sm:$0xff] %vm440, %v3599
      %3608 = vst.msk [vmem:[%s3604 + $0x18] sm:$0x1] %vm3433, %v3602
      %v3609 = vld [vmem:[%s2998] sm:$0xff]
      %v3610 = vld [vmem:[%s2998 + $0x8] sm:$0xff]
      %v3611 = vld [vmem:[%s2998 + $0x10] sm:$0xff]
      %v3612 = vld [vmem:[%s2998 + $0x18] sm:$0x1]
      %s3613 = scalar_lea.vmem %s7, 96
      %v3614 = vld [vmem:[%s3613] sm:$0xff]
      %v3615 = vld [vmem:[%s3613 + $0x8] sm:$0xff]
      %v3616 = vld [vmem:[%s3613 + $0x10] sm:$0xff]
      %v3617 = vld [vmem:[%s3613 + $0x18] sm:$0xff]
      %v3618 = vld [vmem:[#allocation4] sm:$0xff]
      %v3619 = vld [vmem:[#allocation4 + $0x8] sm:$0xff]
      %v3620 = vld [vmem:[#allocation4 + $0x10] sm:$0xff]
      %v3621 = vld [vmem:[#allocation4 + $0x18] sm:$0x1]
      %s3622 = scalar_lea.vmem %s7, 160
      %v3623 = vld [vmem:[%s3622] sm:$0xff]
      %v3624 = vld [vmem:[%s3622 + $0x8] sm:$0xff]
      %v3625 = vld [vmem:[%s3622 + $0x10] sm:$0xff]
      %v3626 = vld [vmem:[%s3622 + $0x18] sm:$0xff]
      %v3628 = vsel %vm389, %v3618, 0
      %v3631 = vsel %vm389, %v3619, 0
      %v3634 = vsel %vm389, %v3620, 0
      %v3637 = vsel %vm389, %v3621, 0
      %3639 = vmatpush.msra.mxu0 0.0
      %3640 = vmatpush.msra.mxu0 0.0
      %3641 = vmatpush.msra.mxu0 0.0
      %3642 = vmatpush.msra.mxu0 0.0
      %3643 = vmatpush.msra.mxu0 0.0
      %3644 = vmatpush.msra.mxu0 0.0
      %3645 = vmatpush.msra.mxu0 0.0
      %3646 = vmatpush.msra.mxu0 0.0
      %3647 = vmatpush.msra.mxu0 0.0
      %3648 = vmatpush.msra.mxu0 0.0
      %3649 = vmatpush.msra.mxu0 0.0
      %3650 = vmatpush.msra.mxu0 0.0
      %3651 = vmatpush.msra.mxu0 %v3626
      %3652 = vmatpush.msra.mxu0 %v3625
      %3653 = vmatpush.msra.mxu0 %v3624
      %3654 = vmatpush.msra.mxu0 %v3623
      %3655 = vmatmul.f32.gmra.mxu0 %v3628
      %v3656 = vpop.f32.mrf.mxu0
      %v3657 = vadd.f32 0.0, %v3656
      %3658 = vmatmul.f32.gmra.mxu0 %v3631
      %v3659 = vpop.f32.mrf.mxu0
      %v3660 = vadd.f32 0.0, %v3659
      %3661 = vmatmul.f32.gmra.mxu0 %v3634
      %v3662 = vpop.f32.mrf.mxu0
      %v3663 = vadd.f32 0.0, %v3662
      %3664 = vmatmul.f32.gmra.mxu0 %v3637
      %v3665 = vpop.f32.mrf.mxu0
      %v3666 = vadd.f32 0.0, %v3665
      %3667 = vdwg.mxu0
      %v3669 = vsel %vm389, %v3609, 0
      %v3672 = vsel %vm389, %v3610, 0
      %v3675 = vsel %vm389, %v3611, 0
      %v3678 = vsel %vm389, %v3612, 0
      %3680 = vmatpush.msra.mxu0 0.0
      %3681 = vmatpush.msra.mxu0 0.0
      %3682 = vmatpush.msra.mxu0 0.0
      %3683 = vmatpush.msra.mxu0 0.0
      %3684 = vmatpush.msra.mxu0 0.0
      %3685 = vmatpush.msra.mxu0 0.0
      %3686 = vmatpush.msra.mxu0 0.0
      %3687 = vmatpush.msra.mxu0 0.0
      %3688 = vmatpush.msra.mxu0 0.0
      %3689 = vmatpush.msra.mxu0 0.0
      %3690 = vmatpush.msra.mxu0 0.0
      %3691 = vmatpush.msra.mxu0 0.0
      %3692 = vmatpush.msra.mxu0 %v3617
      %3693 = vmatpush.msra.mxu0 %v3616
      %3694 = vmatpush.msra.mxu0 %v3615
      %3695 = vmatpush.msra.mxu0 %v3614
      %3696 = vmatmul.f32.gmra.mxu0 %v3669
      %v3697 = vpop.f32.mrf.mxu0
      %v3698 = vadd.f32 %v3657, %v3697
      %3699 = vmatmul.f32.gmra.mxu0 %v3672
      %v3700 = vpop.f32.mrf.mxu0
      %v3701 = vadd.f32 %v3660, %v3700
      %3702 = vmatmul.f32.gmra.mxu0 %v3675
      %v3703 = vpop.f32.mrf.mxu0
      %v3704 = vadd.f32 %v3663, %v3703
      %3705 = vmatmul.f32.gmra.mxu0 %v3678
      %v3706 = vpop.f32.mrf.mxu0
      %v3707 = vadd.f32 %v3666, %v3706
      %3708 = vdwg.mxu0
      %v3709 = vld [vmem:[%s8] sm:$0x1]
      %v3711 = vperm.slane %v3709, 0
      %v3713 = vadd.f32 %v3698, %v3711
      %v3714 = vadd.f32 %v3701, %v3711
      %v3715 = vadd.f32 %v3704, %v3711
      %v3716 = vadd.f32 %v3707, %v3711
      %s3717 = scalar_lea.vmem %s332, 32
      %3718 = vst.msk [vmem:[%s3717] sm:$0xff] %vm440, %v3713
      %3719 = vst.msk [vmem:[%s3717 + $0x8] sm:$0xff] %vm440, %v3714
      %3720 = vst.msk [vmem:[%s3717 + $0x10] sm:$0xff] %vm440, %v3715
      %3721 = vst.msk [vmem:[%s3717 + $0x18] sm:$0x1] %vm3433, %v3716
      %v3722 = vld [vmem:[#allocation4 + $0x1] sm:$0xff]
      %v3723 = vld [vmem:[#allocation4 + $0x9] sm:$0xff]
      %v3724 = vld [vmem:[#allocation4 + $0x11] sm:$0xff]
      %v3725 = vld [vmem:[#allocation4 + $0x19] sm:$0x1]
      %v3726 = vld [vmem:[%s3613] sm:$0xff]
      %v3727 = vld [vmem:[%s3613 + $0x8] sm:$0xff]
      %v3728 = vld [vmem:[%s3613 + $0x10] sm:$0xff]
      %v3729 = vld [vmem:[%s3613 + $0x18] sm:$0xff]
      %v3730 = vld [vmem:[%s2998] sm:$0xff]
      %v3731 = vld [vmem:[%s2998 + $0x8] sm:$0xff]
      %v3732 = vld [vmem:[%s2998 + $0x10] sm:$0xff]
      %v3733 = vld [vmem:[%s2998 + $0x18] sm:$0x1]
      %v3734 = vld [vmem:[%s3622] sm:$0xff]
      %v3735 = vld [vmem:[%s3622 + $0x8] sm:$0xff]
      %v3736 = vld [vmem:[%s3622 + $0x10] sm:$0xff]
      %v3737 = vld [vmem:[%s3622 + $0x18] sm:$0xff]
      %v3739 = vsel %vm389, %v3730, 0
      %v3742 = vsel %vm389, %v3731, 0
      %v3745 = vsel %vm389, %v3732, 0
      %v3748 = vsel %vm389, %v3733, 0
      %3750 = vmatpush.msra.mxu0 0.0
      %3751 = vmatpush.msra.mxu0 0.0
      %3752 = vmatpush.msra.mxu0 0.0
      %3753 = vmatpush.msra.mxu0 0.0
      %3754 = vmatpush.msra.mxu0 0.0
      %3755 = vmatpush.msra.mxu0 0.0
      %3756 = vmatpush.msra.mxu0 0.0
      %3757 = vmatpush.msra.mxu0 0.0
      %3758 = vmatpush.msra.mxu0 0.0
      %3759 = vmatpush.msra.mxu0 0.0
      %3760 = vmatpush.msra.mxu0 0.0
      %3761 = vmatpush.msra.mxu0 0.0
      %3762 = vmatpush.msra.mxu0 %v3737
      %3763 = vmatpush.msra.mxu0 %v3736
      %3764 = vmatpush.msra.mxu0 %v3735
      %3765 = vmatpush.msra.mxu0 %v3734
      %3766 = vmatmul.f32.gmra.mxu0 %v3739
      %v3767 = vpop.f32.mrf.mxu0
      %v3768 = vadd.f32 0.0, %v3767
      %3769 = vmatmul.f32.gmra.mxu0 %v3742
      %v3770 = vpop.f32.mrf.mxu0
      %v3771 = vadd.f32 0.0, %v3770
      %3772 = vmatmul.f32.gmra.mxu0 %v3745
      %v3773 = vpop.f32.mrf.mxu0
      %v3774 = vadd.f32 0.0, %v3773
      %3775 = vmatmul.f32.gmra.mxu0 %v3748
      %v3776 = vpop.f32.mrf.mxu0
      %v3777 = vadd.f32 0.0, %v3776
      %3778 = vdwg.mxu0
      %v3780 = vsel %vm389, %v3722, 0
      %v3783 = vsel %vm389, %v3723, 0
      %v3786 = vsel %vm389, %v3724, 0
      %v3789 = vsel %vm389, %v3725, 0
      %3791 = vmatpush.msra.mxu0 0.0
      %3792 = vmatpush.msra.mxu0 0.0
      %3793 = vmatpush.msra.mxu0 0.0
      %3794 = vmatpush.msra.mxu0 0.0
      %3795 = vmatpush.msra.mxu0 0.0
      %3796 = vmatpush.msra.mxu0 0.0
      %3797 = vmatpush.msra.mxu0 0.0
      %3798 = vmatpush.msra.mxu0 0.0
      %3799 = vmatpush.msra.mxu0 0.0
      %3800 = vmatpush.msra.mxu0 0.0
      %3801 = vmatpush.msra.mxu0 0.0
      %3802 = vmatpush.msra.mxu0 0.0
      %3803 = vmatpush.msra.mxu0 %v3729
      %3804 = vmatpush.msra.mxu0 %v3728
      %3805 = vmatpush.msra.mxu0 %v3727
      %3806 = vmatpush.msra.mxu0 %v3726
      %3807 = vmatmul.f32.gmra.mxu0 %v3780
      %v3808 = vpop.f32.mrf.mxu0
      %v3809 = vadd.f32 %v3768, %v3808
      %3810 = vmatmul.f32.gmra.mxu0 %v3783
      %v3811 = vpop.f32.mrf.mxu0
      %v3812 = vadd.f32 %v3771, %v3811
      %3813 = vmatmul.f32.gmra.mxu0 %v3786
      %v3814 = vpop.f32.mrf.mxu0
      %v3815 = vadd.f32 %v3774, %v3814
      %3816 = vmatmul.f32.gmra.mxu0 %v3789
      %v3817 = vpop.f32.mrf.mxu0
      %v3818 = vadd.f32 %v3777, %v3817
      %3819 = vdwg.mxu0
      %v3820 = vld [vmem:[%s8] sm:$0x1]
      %v3822 = vperm.slane %v3820, 0
      %v3824 = vadd.f32 %v3809, %v3822
      %v3825 = vadd.f32 %v3812, %v3822
      %v3826 = vadd.f32 %v3815, %v3822
      %v3827 = vadd.f32 %v3818, %v3822
      %s3828 = scalar_lea.vmem %s332, 96
      %3829 = vst.msk [vmem:[%s3828] sm:$0xff] %vm440, %v3824
      %3830 = vst.msk [vmem:[%s3828 + $0x8] sm:$0xff] %vm440, %v3825
      %3831 = vst.msk [vmem:[%s3828 + $0x10] sm:$0xff] %vm440, %v3826
      %3832 = vst.msk [vmem:[%s3828 + $0x18] sm:$0x1] %vm3433, %v3827
      %v3833 = vld [vmem:[%s3371] sm:$0xff]
      %v3834 = vld [vmem:[%s3371 + $0x8] sm:$0xff]
      %v3835 = vld [vmem:[%s3371 + $0x10] sm:$0xff]
      %v3836 = vld [vmem:[%s3371 + $0x18] sm:$0x1]
      %v3837 = vld [vmem:[%s3613] sm:$0xff]
      %v3838 = vld [vmem:[%s3613 + $0x8] sm:$0xff]
      %v3839 = vld [vmem:[%s3613 + $0x10] sm:$0xff]
      %v3840 = vld [vmem:[%s3613 + $0x18] sm:$0xff]
      %v3841 = vld [vmem:[%s3127] sm:$0xff]
      %v3842 = vld [vmem:[%s3127 + $0x8] sm:$0xff]
      %v3843 = vld [vmem:[%s3127 + $0x10] sm:$0xff]
      %v3844 = vld [vmem:[%s3127 + $0x18] sm:$0x1]
      %v3845 = vld [vmem:[%s3622] sm:$0xff]
      %v3846 = vld [vmem:[%s3622 + $0x8] sm:$0xff]
      %v3847 = vld [vmem:[%s3622 + $0x10] sm:$0xff]
      %v3848 = vld [vmem:[%s3622 + $0x18] sm:$0xff]
      %v3850 = vsel %vm389, %v3841, 0
      %v3853 = vsel %vm389, %v3842, 0
      %v3856 = vsel %vm389, %v3843, 0
      %v3859 = vsel %vm389, %v3844, 0
      %3861 = vmatpush.msra.mxu0 0.0
      %3862 = vmatpush.msra.mxu0 0.0
      %3863 = vmatpush.msra.mxu0 0.0
      %3864 = vmatpush.msra.mxu0 0.0
      %3865 = vmatpush.msra.mxu0 0.0
      %3866 = vmatpush.msra.mxu0 0.0
      %3867 = vmatpush.msra.mxu0 0.0
      %3868 = vmatpush.msra.mxu0 0.0
      %3869 = vmatpush.msra.mxu0 0.0
      %3870 = vmatpush.msra.mxu0 0.0
      %3871 = vmatpush.msra.mxu0 0.0
      %3872 = vmatpush.msra.mxu0 0.0
      %3873 = vmatpush.msra.mxu0 %v3848
      %3874 = vmatpush.msra.mxu0 %v3847
      %3875 = vmatpush.msra.mxu0 %v3846
      %3876 = vmatpush.msra.mxu0 %v3845
      %3877 = vmatmul.f32.gmra.mxu0 %v3850
      %v3878 = vpop.f32.mrf.mxu0
      %v3879 = vadd.f32 0.0, %v3878
      %3880 = vmatmul.f32.gmra.mxu0 %v3853
      %v3881 = vpop.f32.mrf.mxu0
      %v3882 = vadd.f32 0.0, %v3881
      %3883 = vmatmul.f32.gmra.mxu0 %v3856
      %v3884 = vpop.f32.mrf.mxu0
      %v3885 = vadd.f32 0.0, %v3884
      %3886 = vmatmul.f32.gmra.mxu0 %v3859
      %v3887 = vpop.f32.mrf.mxu0
      %v3888 = vadd.f32 0.0, %v3887
      %3889 = vdwg.mxu0
      %v3891 = vsel %vm389, %v3833, 0
      %v3894 = vsel %vm389, %v3834, 0
      %v3897 = vsel %vm389, %v3835, 0
      %v3900 = vsel %vm389, %v3836, 0
      %3902 = vmatpush.msra.mxu0 0.0
      %3903 = vmatpush.msra.mxu0 0.0
      %3904 = vmatpush.msra.mxu0 0.0
      %3905 = vmatpush.msra.mxu0 0.0
      %3906 = vmatpush.msra.mxu0 0.0
      %3907 = vmatpush.msra.mxu0 0.0
      %3908 = vmatpush.msra.mxu0 0.0
      %3909 = vmatpush.msra.mxu0 0.0
      %3910 = vmatpush.msra.mxu0 0.0
      %3911 = vmatpush.msra.mxu0 0.0
      %3912 = vmatpush.msra.mxu0 0.0
      %3913 = vmatpush.msra.mxu0 0.0
      %3914 = vmatpush.msra.mxu0 %v3840
      %3915 = vmatpush.msra.mxu0 %v3839
      %3916 = vmatpush.msra.mxu0 %v3838
      %3917 = vmatpush.msra.mxu0 %v3837
      %3918 = vmatmul.f32.gmra.mxu0 %v3891
      %v3919 = vpop.f32.mrf.mxu0
      %v3920 = vadd.f32 %v3879, %v3919
      %3921 = vmatmul.f32.gmra.mxu0 %v3894
      %v3922 = vpop.f32.mrf.mxu0
      %v3923 = vadd.f32 %v3882, %v3922
      %3924 = vmatmul.f32.gmra.mxu0 %v3897
      %v3925 = vpop.f32.mrf.mxu0
      %v3926 = vadd.f32 %v3885, %v3925
      %3927 = vmatmul.f32.gmra.mxu0 %v3900
      %v3928 = vpop.f32.mrf.mxu0
      %v3929 = vadd.f32 %v3888, %v3928
      %3930 = vdwg.mxu0
      %v3931 = vld [vmem:[%s8] sm:$0x1]
      %v3933 = vperm.slane %v3931, 0
      %v3935 = vadd.f32 %v3920, %v3933
      %v3936 = vadd.f32 %v3923, %v3933
      %v3937 = vadd.f32 %v3926, %v3933
      %v3938 = vadd.f32 %v3929, %v3933
      %s3939 = scalar_lea.vmem %s332, 288
      %3940 = vst.msk [vmem:[%s3939] sm:$0xff] %vm440, %v3935
      %3941 = vst.msk [vmem:[%s3939 + $0x8] sm:$0xff] %vm440, %v3936
      %3942 = vst.msk [vmem:[%s3939 + $0x10] sm:$0xff] %vm440, %v3937
      %3943 = vst.msk [vmem:[%s3939 + $0x18] sm:$0x1] %vm3433, %v3938
      %v3944 = vld [vmem:[%s3127 + $0x1] sm:$0xff]
      %v3945 = vld [vmem:[%s3127 + $0x9] sm:$0xff]
      %v3946 = vld [vmem:[%s3127 + $0x11] sm:$0xff]
      %v3947 = vld [vmem:[%s3127 + $0x19] sm:$0x1]
      %v3948 = vld [vmem:[%s3613] sm:$0xff]
      %v3949 = vld [vmem:[%s3613 + $0x8] sm:$0xff]
      %v3950 = vld [vmem:[%s3613 + $0x10] sm:$0xff]
      %v3951 = vld [vmem:[%s3613 + $0x18] sm:$0xff]
      %v3952 = vld [vmem:[%s3371] sm:$0xff]
      %v3953 = vld [vmem:[%s3371 + $0x8] sm:$0xff]
      %v3954 = vld [vmem:[%s3371 + $0x10] sm:$0xff]
      %v3955 = vld [vmem:[%s3371 + $0x18] sm:$0x1]
      %v3956 = vld [vmem:[%s3622] sm:$0xff]
      %v3957 = vld [vmem:[%s3622 + $0x8] sm:$0xff]
      %v3958 = vld [vmem:[%s3622 + $0x10] sm:$0xff]
      %v3959 = vld [vmem:[%s3622 + $0x18] sm:$0xff]
      %v3961 = vsel %vm389, %v3952, 0
      %v3964 = vsel %vm389, %v3953, 0
      %v3967 = vsel %vm389, %v3954, 0
      %v3970 = vsel %vm389, %v3955, 0
      %3972 = vmatpush.msra.mxu0 0.0
      %3973 = vmatpush.msra.mxu0 0.0
      %3974 = vmatpush.msra.mxu0 0.0
      %3975 = vmatpush.msra.mxu0 0.0
      %3976 = vmatpush.msra.mxu0 0.0
      %3977 = vmatpush.msra.mxu0 0.0
      %3978 = vmatpush.msra.mxu0 0.0
      %3979 = vmatpush.msra.mxu0 0.0
      %3980 = vmatpush.msra.mxu0 0.0
      %3981 = vmatpush.msra.mxu0 0.0
      %3982 = vmatpush.msra.mxu0 0.0
      %3983 = vmatpush.msra.mxu0 0.0
      %3984 = vmatpush.msra.mxu0 %v3959
      %3985 = vmatpush.msra.mxu0 %v3958
      %3986 = vmatpush.msra.mxu0 %v3957
      %3987 = vmatpush.msra.mxu0 %v3956
      %3988 = vmatmul.f32.gmra.mxu0 %v3961
      %v3989 = vpop.f32.mrf.mxu0
      %v3990 = vadd.f32 0.0, %v3989
      %3991 = vmatmul.f32.gmra.mxu0 %v3964
      %v3992 = vpop.f32.mrf.mxu0
      %v3993 = vadd.f32 0.0, %v3992
      %3994 = vmatmul.f32.gmra.mxu0 %v3967
      %v3995 = vpop.f32.mrf.mxu0
      %v3996 = vadd.f32 0.0, %v3995
      %3997 = vmatmul.f32.gmra.mxu0 %v3970
      %v3998 = vpop.f32.mrf.mxu0
      %v3999 = vadd.f32 0.0, %v3998
      %4000 = vdwg.mxu0
      %v4002 = vsel %vm389, %v3944, 0
      %v4005 = vsel %vm389, %v3945, 0
      %v4008 = vsel %vm389, %v3946, 0
      %v4011 = vsel %vm389, %v3947, 0
      %4013 = vmatpush.msra.mxu0 0.0
      %4014 = vmatpush.msra.mxu0 0.0
      %4015 = vmatpush.msra.mxu0 0.0
      %4016 = vmatpush.msra.mxu0 0.0
      %4017 = vmatpush.msra.mxu0 0.0
      %4018 = vmatpush.msra.mxu0 0.0
      %4019 = vmatpush.msra.mxu0 0.0
      %4020 = vmatpush.msra.mxu0 0.0
      %4021 = vmatpush.msra.mxu0 0.0
      %4022 = vmatpush.msra.mxu0 0.0
      %4023 = vmatpush.msra.mxu0 0.0
      %4024 = vmatpush.msra.mxu0 0.0
      %4025 = vmatpush.msra.mxu0 %v3951
      %4026 = vmatpush.msra.mxu0 %v3950
      %4027 = vmatpush.msra.mxu0 %v3949
      %4028 = vmatpush.msra.mxu0 %v3948
      %4029 = vmatmul.f32.gmra.mxu0 %v4002
      %v4030 = vpop.f32.mrf.mxu0
      %v4031 = vadd.f32 %v3990, %v4030
      %4032 = vmatmul.f32.gmra.mxu0 %v4005
      %v4033 = vpop.f32.mrf.mxu0
      %v4034 = vadd.f32 %v3993, %v4033
      %4035 = vmatmul.f32.gmra.mxu0 %v4008
      %v4036 = vpop.f32.mrf.mxu0
      %v4037 = vadd.f32 %v3996, %v4036
      %4038 = vmatmul.f32.gmra.mxu0 %v4011
      %v4039 = vpop.f32.mrf.mxu0
      %v4040 = vadd.f32 %v3999, %v4039
      %4041 = vdwg.mxu0
      %v4042 = vld [vmem:[%s8] sm:$0x1]
      %v4044 = vperm.slane %v4042, 0
      %v4046 = vadd.f32 %v4031, %v4044
      %v4047 = vadd.f32 %v4034, %v4044
      %v4048 = vadd.f32 %v4037, %v4044
      %v4049 = vadd.f32 %v4040, %v4044
      %s4050 = scalar_lea.vmem %s332, 352
      %4051 = vst.msk [vmem:[%s4050] sm:$0xff] %vm440, %v4046
      %4052 = vst.msk [vmem:[%s4050 + $0x8] sm:$0xff] %vm440, %v4047
      %4053 = vst.msk [vmem:[%s4050 + $0x10] sm:$0xff] %vm440, %v4048
      %4054 = vst.msk [vmem:[%s4050 + $0x18] sm:$0x1] %vm3433, %v4049
      %v4055 = vld [vmem:[%s3127] sm:$0xff]
      %v4056 = vld [vmem:[%s3127 + $0x8] sm:$0xff]
      %v4057 = vld [vmem:[%s3127 + $0x10] sm:$0xff]
      %v4058 = vld [vmem:[%s3127 + $0x18] sm:$0x1]
      %s4059 = scalar_lea.vmem %s7, 32
      %v4060 = vld [vmem:[%s4059] sm:$0xff]
      %v4061 = vld [vmem:[%s4059 + $0x8] sm:$0xff]
      %v4062 = vld [vmem:[%s4059 + $0x10] sm:$0xff]
      %v4063 = vld [vmem:[%s4059 + $0x18] sm:$0xff]
      %v4064 = vld [vmem:[#allocation4] sm:$0xff]
      %v4065 = vld [vmem:[#allocation4 + $0x8] sm:$0xff]
      %v4066 = vld [vmem:[#allocation4 + $0x10] sm:$0xff]
      %v4067 = vld [vmem:[#allocation4 + $0x18] sm:$0x1]
      %s4068 = scalar_lea.vmem %s7, 224
      %v4069 = vld [vmem:[%s4068] sm:$0xff]
      %v4070 = vld [vmem:[%s4068 + $0x8] sm:$0xff]
      %v4071 = vld [vmem:[%s4068 + $0x10] sm:$0xff]
      %v4072 = vld [vmem:[%s4068 + $0x18] sm:$0xff]
      %v4074 = vsel %vm389, %v4064, 0
      %v4077 = vsel %vm389, %v4065, 0
      %v4080 = vsel %vm389, %v4066, 0
      %v4083 = vsel %vm389, %v4067, 0
      %4085 = vmatpush.msra.mxu0 0.0
      %4086 = vmatpush.msra.mxu0 0.0
      %4087 = vmatpush.msra.mxu0 0.0
      %4088 = vmatpush.msra.mxu0 0.0
      %4089 = vmatpush.msra.mxu0 0.0
      %4090 = vmatpush.msra.mxu0 0.0
      %4091 = vmatpush.msra.mxu0 0.0
      %4092 = vmatpush.msra.mxu0 0.0
      %4093 = vmatpush.msra.mxu0 0.0
      %4094 = vmatpush.msra.mxu0 0.0
      %4095 = vmatpush.msra.mxu0 0.0
      %4096 = vmatpush.msra.mxu0 0.0
      %4097 = vmatpush.msra.mxu0 %v4072
      %4098 = vmatpush.msra.mxu0 %v4071
      %4099 = vmatpush.msra.mxu0 %v4070
      %4100 = vmatpush.msra.mxu0 %v4069
      %4101 = vmatmul.f32.gmra.mxu0 %v4074
      %v4102 = vpop.f32.mrf.mxu0
      %v4103 = vadd.f32 0.0, %v4102
      %4104 = vmatmul.f32.gmra.mxu0 %v4077
      %v4105 = vpop.f32.mrf.mxu0
      %v4106 = vadd.f32 0.0, %v4105
      %4107 = vmatmul.f32.gmra.mxu0 %v4080
      %v4108 = vpop.f32.mrf.mxu0
      %v4109 = vadd.f32 0.0, %v4108
      %4110 = vmatmul.f32.gmra.mxu0 %v4083
      %v4111 = vpop.f32.mrf.mxu0
      %v4112 = vadd.f32 0.0, %v4111
      %4113 = vdwg.mxu0
      %v4115 = vsel %vm389, %v4055, 0
      %v4118 = vsel %vm389, %v4056, 0
      %v4121 = vsel %vm389, %v4057, 0
      %v4124 = vsel %vm389, %v4058, 0
      %4126 = vmatpush.msra.mxu0 0.0
      %4127 = vmatpush.msra.mxu0 0.0
      %4128 = vmatpush.msra.mxu0 0.0
      %4129 = vmatpush.msra.mxu0 0.0
      %4130 = vmatpush.msra.mxu0 0.0
      %4131 = vmatpush.msra.mxu0 0.0
      %4132 = vmatpush.msra.mxu0 0.0
      %4133 = vmatpush.msra.mxu0 0.0
      %4134 = vmatpush.msra.mxu0 0.0
      %4135 = vmatpush.msra.mxu0 0.0
      %4136 = vmatpush.msra.mxu0 0.0
      %4137 = vmatpush.msra.mxu0 0.0
      %4138 = vmatpush.msra.mxu0 %v4063
      %4139 = vmatpush.msra.mxu0 %v4062
      %4140 = vmatpush.msra.mxu0 %v4061
      %4141 = vmatpush.msra.mxu0 %v4060
      %4142 = vmatmul.f32.gmra.mxu0 %v4115
      %v4143 = vpop.f32.mrf.mxu0
      %v4144 = vadd.f32 %v4103, %v4143
      %4145 = vmatmul.f32.gmra.mxu0 %v4118
      %v4146 = vpop.f32.mrf.mxu0
      %v4147 = vadd.f32 %v4106, %v4146
      %4148 = vmatmul.f32.gmra.mxu0 %v4121
      %v4149 = vpop.f32.mrf.mxu0
      %v4150 = vadd.f32 %v4109, %v4149
      %4151 = vmatmul.f32.gmra.mxu0 %v4124
      %v4152 = vpop.f32.mrf.mxu0
      %v4153 = vadd.f32 %v4112, %v4152
      %4154 = vdwg.mxu0
      %v4155 = vld [vmem:[%s8] sm:$0x1]
      %v4157 = vperm.slane %v4155, 0
      %v4159 = vadd.f32 %v4144, %v4157
      %v4160 = vadd.f32 %v4147, %v4157
      %v4161 = vadd.f32 %v4150, %v4157
      %v4162 = vadd.f32 %v4153, %v4157
      %s4163 = scalar_lea.vmem %s332, 128
      %4164 = vst.msk [vmem:[%s4163] sm:$0xff] %vm440, %v4159
      %4165 = vst.msk [vmem:[%s4163 + $0x8] sm:$0xff] %vm440, %v4160
      %4166 = vst.msk [vmem:[%s4163 + $0x10] sm:$0xff] %vm440, %v4161
      %4167 = vst.msk [vmem:[%s4163 + $0x18] sm:$0x1] %vm3433, %v4162
      %v4168 = vld [vmem:[%s3371] sm:$0xff]
      %v4169 = vld [vmem:[%s3371 + $0x8] sm:$0xff]
      %v4170 = vld [vmem:[%s3371 + $0x10] sm:$0xff]
      %v4171 = vld [vmem:[%s3371 + $0x18] sm:$0x1]
      %v4172 = vld [vmem:[%s4059] sm:$0xff]
      %v4173 = vld [vmem:[%s4059 + $0x8] sm:$0xff]
      %v4174 = vld [vmem:[%s4059 + $0x10] sm:$0xff]
      %v4175 = vld [vmem:[%s4059 + $0x18] sm:$0xff]
      %v4176 = vld [vmem:[%s2998] sm:$0xff]
      %v4177 = vld [vmem:[%s2998 + $0x8] sm:$0xff]
      %v4178 = vld [vmem:[%s2998 + $0x10] sm:$0xff]
      %v4179 = vld [vmem:[%s2998 + $0x18] sm:$0x1]
      %v4180 = vld [vmem:[%s4068] sm:$0xff]
      %v4181 = vld [vmem:[%s4068 + $0x8] sm:$0xff]
      %v4182 = vld [vmem:[%s4068 + $0x10] sm:$0xff]
      %v4183 = vld [vmem:[%s4068 + $0x18] sm:$0xff]
      %v4185 = vsel %vm389, %v4176, 0
      %v4188 = vsel %vm389, %v4177, 0
      %v4191 = vsel %vm389, %v4178, 0
      %v4194 = vsel %vm389, %v4179, 0
      %4196 = vmatpush.msra.mxu0 0.0
      %4197 = vmatpush.msra.mxu0 0.0
      %4198 = vmatpush.msra.mxu0 0.0
      %4199 = vmatpush.msra.mxu0 0.0
      %4200 = vmatpush.msra.mxu0 0.0
      %4201 = vmatpush.msra.mxu0 0.0
      %4202 = vmatpush.msra.mxu0 0.0
      %4203 = vmatpush.msra.mxu0 0.0
      %4204 = vmatpush.msra.mxu0 0.0
      %4205 = vmatpush.msra.mxu0 0.0
      %4206 = vmatpush.msra.mxu0 0.0
      %4207 = vmatpush.msra.mxu0 0.0
      %4208 = vmatpush.msra.mxu0 %v4183
      %4209 = vmatpush.msra.mxu0 %v4182
      %4210 = vmatpush.msra.mxu0 %v4181
      %4211 = vmatpush.msra.mxu0 %v4180
      %4212 = vmatmul.f32.gmra.mxu0 %v4185
      %v4213 = vpop.f32.mrf.mxu0
      %v4214 = vadd.f32 0.0, %v4213
      %4215 = vmatmul.f32.gmra.mxu0 %v4188
      %v4216 = vpop.f32.mrf.mxu0
      %v4217 = vadd.f32 0.0, %v4216
      %4218 = vmatmul.f32.gmra.mxu0 %v4191
      %v4219 = vpop.f32.mrf.mxu0
      %v4220 = vadd.f32 0.0, %v4219
      %4221 = vmatmul.f32.gmra.mxu0 %v4194
      %v4222 = vpop.f32.mrf.mxu0
      %v4223 = vadd.f32 0.0, %v4222
      %4224 = vdwg.mxu0
      %v4226 = vsel %vm389, %v4168, 0
      %v4229 = vsel %vm389, %v4169, 0
      %v4232 = vsel %vm389, %v4170, 0
      %v4235 = vsel %vm389, %v4171, 0
      %4237 = vmatpush.msra.mxu0 0.0
      %4238 = vmatpush.msra.mxu0 0.0
      %4239 = vmatpush.msra.mxu0 0.0
      %4240 = vmatpush.msra.mxu0 0.0
      %4241 = vmatpush.msra.mxu0 0.0
      %4242 = vmatpush.msra.mxu0 0.0
      %4243 = vmatpush.msra.mxu0 0.0
      %4244 = vmatpush.msra.mxu0 0.0
      %4245 = vmatpush.msra.mxu0 0.0
      %4246 = vmatpush.msra.mxu0 0.0
      %4247 = vmatpush.msra.mxu0 0.0
      %4248 = vmatpush.msra.mxu0 0.0
      %4249 = vmatpush.msra.mxu0 %v4175
      %4250 = vmatpush.msra.mxu0 %v4174
      %4251 = vmatpush.msra.mxu0 %v4173
      %4252 = vmatpush.msra.mxu0 %v4172
      %4253 = vmatmul.f32.gmra.mxu0 %v4226
      %v4254 = vpop.f32.mrf.mxu0
      %v4255 = vadd.f32 %v4214, %v4254
      %4256 = vmatmul.f32.gmra.mxu0 %v4229
      %v4257 = vpop.f32.mrf.mxu0
      %v4258 = vadd.f32 %v4217, %v4257
      %4259 = vmatmul.f32.gmra.mxu0 %v4232
      %v4260 = vpop.f32.mrf.mxu0
      %v4261 = vadd.f32 %v4220, %v4260
      %4262 = vmatmul.f32.gmra.mxu0 %v4235
      %v4263 = vpop.f32.mrf.mxu0
      %v4264 = vadd.f32 %v4223, %v4263
      %4265 = vdwg.mxu0
      %v4266 = vld [vmem:[%s8] sm:$0x1]
      %v4268 = vperm.slane %v4266, 0
      %v4270 = vadd.f32 %v4255, %v4268
      %v4271 = vadd.f32 %v4258, %v4268
      %v4272 = vadd.f32 %v4261, %v4268
      %v4273 = vadd.f32 %v4264, %v4268
      %s4274 = scalar_lea.vmem %s332, 192
      %4275 = vst.msk [vmem:[%s4274] sm:$0xff] %vm440, %v4270
      %4276 = vst.msk [vmem:[%s4274 + $0x8] sm:$0xff] %vm440, %v4271
      %4277 = vst.msk [vmem:[%s4274 + $0x10] sm:$0xff] %vm440, %v4272
      %4278 = vst.msk [vmem:[%s4274 + $0x18] sm:$0x1] %vm3433, %v4273
      %v4279 = vld [vmem:[#allocation4 + $0x5] sm:$0xff]
      %v4280 = vld [vmem:[#allocation4 + $0xd] sm:$0xff]
      %v4281 = vld [vmem:[#allocation4 + $0x15] sm:$0xff]
      %v4282 = vld [vmem:[#allocation4 + $0x1d] sm:$0x1]
      %v4283 = vld [vmem:[%s4059] sm:$0xff]
      %v4284 = vld [vmem:[%s4059 + $0x8] sm:$0xff]
      %v4285 = vld [vmem:[%s4059 + $0x10] sm:$0xff]
      %v4286 = vld [vmem:[%s4059 + $0x18] sm:$0xff]
      %v4287 = vld [vmem:[%s3127] sm:$0xff]
      %v4288 = vld [vmem:[%s3127 + $0x8] sm:$0xff]
      %v4289 = vld [vmem:[%s3127 + $0x10] sm:$0xff]
      %v4290 = vld [vmem:[%s3127 + $0x18] sm:$0x1]
      %v4291 = vld [vmem:[%s4068] sm:$0xff]
      %v4292 = vld [vmem:[%s4068 + $0x8] sm:$0xff]
      %v4293 = vld [vmem:[%s4068 + $0x10] sm:$0xff]
      %v4294 = vld [vmem:[%s4068 + $0x18] sm:$0xff]
      %v4296 = vsel %vm389, %v4287, 0
      %v4299 = vsel %vm389, %v4288, 0
      %v4302 = vsel %vm389, %v4289, 0
      %v4305 = vsel %vm389, %v4290, 0
      %4307 = vmatpush.msra.mxu0 0.0
      %4308 = vmatpush.msra.mxu0 0.0
      %4309 = vmatpush.msra.mxu0 0.0
      %4310 = vmatpush.msra.mxu0 0.0
      %4311 = vmatpush.msra.mxu0 0.0
      %4312 = vmatpush.msra.mxu0 0.0
      %4313 = vmatpush.msra.mxu0 0.0
      %4314 = vmatpush.msra.mxu0 0.0
      %4315 = vmatpush.msra.mxu0 0.0
      %4316 = vmatpush.msra.mxu0 0.0
      %4317 = vmatpush.msra.mxu0 0.0
      %4318 = vmatpush.msra.mxu0 0.0
      %4319 = vmatpush.msra.mxu0 %v4294
      %4320 = vmatpush.msra.mxu0 %v4293
      %4321 = vmatpush.msra.mxu0 %v4292
      %4322 = vmatpush.msra.mxu0 %v4291
      %4323 = vmatmul.f32.gmra.mxu0 %v4296
      %v4324 = vpop.f32.mrf.mxu0
      %v4325 = vadd.f32 0.0, %v4324
      %4326 = vmatmul.f32.gmra.mxu0 %v4299
      %v4327 = vpop.f32.mrf.mxu0
      %v4328 = vadd.f32 0.0, %v4327
      %4329 = vmatmul.f32.gmra.mxu0 %v4302
      %v4330 = vpop.f32.mrf.mxu0
      %v4331 = vadd.f32 0.0, %v4330
      %4332 = vmatmul.f32.gmra.mxu0 %v4305
      %v4333 = vpop.f32.mrf.mxu0
      %v4334 = vadd.f32 0.0, %v4333
      %4335 = vdwg.mxu0
      %v4337 = vsel %vm389, %v4279, 0
      %v4340 = vsel %vm389, %v4280, 0
      %v4343 = vsel %vm389, %v4281, 0
      %v4346 = vsel %vm389, %v4282, 0
      %4348 = vmatpush.msra.mxu0 0.0
      %4349 = vmatpush.msra.mxu0 0.0
      %4350 = vmatpush.msra.mxu0 0.0
      %4351 = vmatpush.msra.mxu0 0.0
      %4352 = vmatpush.msra.mxu0 0.0
      %4353 = vmatpush.msra.mxu0 0.0
      %4354 = vmatpush.msra.mxu0 0.0
      %4355 = vmatpush.msra.mxu0 0.0
      %4356 = vmatpush.msra.mxu0 0.0
      %4357 = vmatpush.msra.mxu0 0.0
      %4358 = vmatpush.msra.mxu0 0.0
      %4359 = vmatpush.msra.mxu0 0.0
      %4360 = vmatpush.msra.mxu0 %v4286
      %4361 = vmatpush.msra.mxu0 %v4285
      %4362 = vmatpush.msra.mxu0 %v4284
      %4363 = vmatpush.msra.mxu0 %v4283
      %4364 = vmatmul.f32.gmra.mxu0 %v4337
      %v4365 = vpop.f32.mrf.mxu0
      %v4366 = vadd.f32 %v4325, %v4365
      %4367 = vmatmul.f32.gmra.mxu0 %v4340
      %v4368 = vpop.f32.mrf.mxu0
      %v4369 = vadd.f32 %v4328, %v4368
      %4370 = vmatmul.f32.gmra.mxu0 %v4343
      %v4371 = vpop.f32.mrf.mxu0
      %v4372 = vadd.f32 %v4331, %v4371
      %4373 = vmatmul.f32.gmra.mxu0 %v4346
      %v4374 = vpop.f32.mrf.mxu0
      %v4375 = vadd.f32 %v4334, %v4374
      %4376 = vdwg.mxu0
      %v4377 = vld [vmem:[%s8] sm:$0x1]
      %v4379 = vperm.slane %v4377, 0
      %v4381 = vadd.f32 %v4366, %v4379
      %v4382 = vadd.f32 %v4369, %v4379
      %v4383 = vadd.f32 %v4372, %v4379
      %v4384 = vadd.f32 %v4375, %v4379
      %s4385 = scalar_lea.vmem %s332, 384
      %4386 = vst.msk [vmem:[%s4385] sm:$0xff] %vm440, %v4381
      %4387 = vst.msk [vmem:[%s4385 + $0x8] sm:$0xff] %vm440, %v4382
      %4388 = vst.msk [vmem:[%s4385 + $0x10] sm:$0xff] %vm440, %v4383
      %4389 = vst.msk [vmem:[%s4385 + $0x18] sm:$0x1] %vm3433, %v4384
      %v4390 = vld [vmem:[%s2998 + $0x5] sm:$0xff]
      %v4391 = vld [vmem:[%s2998 + $0xd] sm:$0xff]
      %v4392 = vld [vmem:[%s2998 + $0x15] sm:$0xff]
      %v4393 = vld [vmem:[%s2998 + $0x1d] sm:$0x1]
      %v4394 = vld [vmem:[%s4059] sm:$0xff]
      %v4395 = vld [vmem:[%s4059 + $0x8] sm:$0xff]
      %v4396 = vld [vmem:[%s4059 + $0x10] sm:$0xff]
      %v4397 = vld [vmem:[%s4059 + $0x18] sm:$0xff]
      %v4398 = vld [vmem:[%s3371] sm:$0xff]
      %v4399 = vld [vmem:[%s3371 + $0x8] sm:$0xff]
      %v4400 = vld [vmem:[%s3371 + $0x10] sm:$0xff]
      %v4401 = vld [vmem:[%s3371 + $0x18] sm:$0x1]
      %v4402 = vld [vmem:[%s4068] sm:$0xff]
      %v4403 = vld [vmem:[%s4068 + $0x8] sm:$0xff]
      %v4404 = vld [vmem:[%s4068 + $0x10] sm:$0xff]
      %v4405 = vld [vmem:[%s4068 + $0x18] sm:$0xff]
      %v4407 = vsel %vm389, %v4398, 0
      %v4410 = vsel %vm389, %v4399, 0
      %v4413 = vsel %vm389, %v4400, 0
      %v4416 = vsel %vm389, %v4401, 0
      %4418 = vmatpush.msra.mxu0 0.0
      %4419 = vmatpush.msra.mxu0 0.0
      %4420 = vmatpush.msra.mxu0 0.0
      %4421 = vmatpush.msra.mxu0 0.0
      %4422 = vmatpush.msra.mxu0 0.0
      %4423 = vmatpush.msra.mxu0 0.0
      %4424 = vmatpush.msra.mxu0 0.0
      %4425 = vmatpush.msra.mxu0 0.0
      %4426 = vmatpush.msra.mxu0 0.0
      %4427 = vmatpush.msra.mxu0 0.0
      %4428 = vmatpush.msra.mxu0 0.0
      %4429 = vmatpush.msra.mxu0 0.0
      %4430 = vmatpush.msra.mxu0 %v4405
      %4431 = vmatpush.msra.mxu0 %v4404
      %4432 = vmatpush.msra.mxu0 %v4403
      %4433 = vmatpush.msra.mxu0 %v4402
      %4434 = vmatmul.f32.gmra.mxu0 %v4407
      %v4435 = vpop.f32.mrf.mxu0
      %v4436 = vadd.f32 0.0, %v4435
      %4437 = vmatmul.f32.gmra.mxu0 %v4410
      %v4438 = vpop.f32.mrf.mxu0
      %v4439 = vadd.f32 0.0, %v4438
      %4440 = vmatmul.f32.gmra.mxu0 %v4413
      %v4441 = vpop.f32.mrf.mxu0
      %v4442 = vadd.f32 0.0, %v4441
      %4443 = vmatmul.f32.gmra.mxu0 %v4416
      %v4444 = vpop.f32.mrf.mxu0
      %v4445 = vadd.f32 0.0, %v4444
      %4446 = vdwg.mxu0
      %v4448 = vsel %vm389, %v4390, 0
      %v4451 = vsel %vm389, %v4391, 0
      %v4454 = vsel %vm389, %v4392, 0
      %v4457 = vsel %vm389, %v4393, 0
      %4459 = vmatpush.msra.mxu0 0.0
      %4460 = vmatpush.msra.mxu0 0.0
      %4461 = vmatpush.msra.mxu0 0.0
      %4462 = vmatpush.msra.mxu0 0.0
      %4463 = vmatpush.msra.mxu0 0.0
      %4464 = vmatpush.msra.mxu0 0.0
      %4465 = vmatpush.msra.mxu0 0.0
      %4466 = vmatpush.msra.mxu0 0.0
      %4467 = vmatpush.msra.mxu0 0.0
      %4468 = vmatpush.msra.mxu0 0.0
      %4469 = vmatpush.msra.mxu0 0.0
      %4470 = vmatpush.msra.mxu0 0.0
      %4471 = vmatpush.msra.mxu0 %v4397
      %4472 = vmatpush.msra.mxu0 %v4396
      %4473 = vmatpush.msra.mxu0 %v4395
      %4474 = vmatpush.msra.mxu0 %v4394
      %4475 = vmatmul.f32.gmra.mxu0 %v4448
      %v4476 = vpop.f32.mrf.mxu0
      %v4477 = vadd.f32 %v4436, %v4476
      %4478 = vmatmul.f32.gmra.mxu0 %v4451
      %v4479 = vpop.f32.mrf.mxu0
      %v4480 = vadd.f32 %v4439, %v4479
      %4481 = vmatmul.f32.gmra.mxu0 %v4454
      %v4482 = vpop.f32.mrf.mxu0
      %v4483 = vadd.f32 %v4442, %v4482
      %4484 = vmatmul.f32.gmra.mxu0 %v4457
      %v4485 = vpop.f32.mrf.mxu0
      %v4486 = vadd.f32 %v4445, %v4485
      %4487 = vdwg.mxu0
      %v4488 = vld [vmem:[%s8] sm:$0x1]
      %v4490 = vperm.slane %v4488, 0
      %v4492 = vadd.f32 %v4477, %v4490
      %v4493 = vadd.f32 %v4480, %v4490
      %v4494 = vadd.f32 %v4483, %v4490
      %v4495 = vadd.f32 %v4486, %v4490
      %s4496 = scalar_lea.vmem %s332, 448
      %4497 = vst.msk [vmem:[%s4496] sm:$0xff] %vm440, %v4492
      %4498 = vst.msk [vmem:[%s4496 + $0x8] sm:$0xff] %vm440, %v4493
      %4499 = vst.msk [vmem:[%s4496 + $0x10] sm:$0xff] %vm440, %v4494
      %4500 = vst.msk [vmem:[%s4496 + $0x18] sm:$0x1] %vm3433, %v4495
      %v4501 = vld [vmem:[%s3371] sm:$0xff]
      %v4502 = vld [vmem:[%s3371 + $0x8] sm:$0xff]
      %v4503 = vld [vmem:[%s3371 + $0x10] sm:$0xff]
      %v4504 = vld [vmem:[%s3371 + $0x18] sm:$0x1]
      %v4505 = vld [vmem:[%s7] sm:$0xff]
      %v4506 = vld [vmem:[%s7 + $0x8] sm:$0xff]
      %v4507 = vld [vmem:[%s7 + $0x10] sm:$0xff]
      %v4508 = vld [vmem:[%s7 + $0x18] sm:$0xff]
      %v4509 = vld [vmem:[%s3127] sm:$0xff]
      %v4510 = vld [vmem:[%s3127 + $0x8] sm:$0xff]
      %v4511 = vld [vmem:[%s3127 + $0x10] sm:$0xff]
      %v4512 = vld [vmem:[%s3127 + $0x18] sm:$0x1]
      %s4513 = scalar_lea.vmem %s7, 64
      %v4514 = vld [vmem:[%s4513] sm:$0xff]
      %v4515 = vld [vmem:[%s4513 + $0x8] sm:$0xff]
      %v4516 = vld [vmem:[%s4513 + $0x10] sm:$0xff]
      %v4517 = vld [vmem:[%s4513 + $0x18] sm:$0xff]
      %v4519 = vsel %vm389, %v4509, 0
      %v4522 = vsel %vm389, %v4510, 0
      %v4525 = vsel %vm389, %v4511, 0
      %v4528 = vsel %vm389, %v4512, 0
      %4530 = vmatpush.msra.mxu0 0.0
      %4531 = vmatpush.msra.mxu0 0.0
      %4532 = vmatpush.msra.mxu0 0.0
      %4533 = vmatpush.msra.mxu0 0.0
      %4534 = vmatpush.msra.mxu0 0.0
      %4535 = vmatpush.msra.mxu0 0.0
      %4536 = vmatpush.msra.mxu0 0.0
      %4537 = vmatpush.msra.mxu0 0.0
      %4538 = vmatpush.msra.mxu0 0.0
      %4539 = vmatpush.msra.mxu0 0.0
      %4540 = vmatpush.msra.mxu0 0.0
      %4541 = vmatpush.msra.mxu0 0.0
      %4542 = vmatpush.msra.mxu0 %v4517
      %4543 = vmatpush.msra.mxu0 %v4516
      %4544 = vmatpush.msra.mxu0 %v4515
      %4545 = vmatpush.msra.mxu0 %v4514
      %4546 = vmatmul.f32.gmra.mxu0 %v4519
      %v4547 = vpop.f32.mrf.mxu0
      %v4548 = vadd.f32 0.0, %v4547
      %4549 = vmatmul.f32.gmra.mxu0 %v4522
      %v4550 = vpop.f32.mrf.mxu0
      %v4551 = vadd.f32 0.0, %v4550
      %4552 = vmatmul.f32.gmra.mxu0 %v4525
      %v4553 = vpop.f32.mrf.mxu0
      %v4554 = vadd.f32 0.0, %v4553
      %4555 = vmatmul.f32.gmra.mxu0 %v4528
      %v4556 = vpop.f32.mrf.mxu0
      %v4557 = vadd.f32 0.0, %v4556
      %4558 = vdwg.mxu0
      %v4560 = vsel %vm389, %v4501, 0
      %v4563 = vsel %vm389, %v4502, 0
      %v4566 = vsel %vm389, %v4503, 0
      %v4569 = vsel %vm389, %v4504, 0
      %4571 = vmatpush.msra.mxu0 0.0
      %4572 = vmatpush.msra.mxu0 0.0
      %4573 = vmatpush.msra.mxu0 0.0
      %4574 = vmatpush.msra.mxu0 0.0
      %4575 = vmatpush.msra.mxu0 0.0
      %4576 = vmatpush.msra.mxu0 0.0
      %4577 = vmatpush.msra.mxu0 0.0
      %4578 = vmatpush.msra.mxu0 0.0
      %4579 = vmatpush.msra.mxu0 0.0
      %4580 = vmatpush.msra.mxu0 0.0
      %4581 = vmatpush.msra.mxu0 0.0
      %4582 = vmatpush.msra.mxu0 0.0
      %4583 = vmatpush.msra.mxu0 %v4508
      %4584 = vmatpush.msra.mxu0 %v4507
      %4585 = vmatpush.msra.mxu0 %v4506
      %4586 = vmatpush.msra.mxu0 %v4505
      %4587 = vmatmul.f32.gmra.mxu0 %v4560
      %v4588 = vpop.f32.mrf.mxu0
      %v4589 = vadd.f32 %v4548, %v4588
      %4590 = vmatmul.f32.gmra.mxu0 %v4563
      %v4591 = vpop.f32.mrf.mxu0
      %v4592 = vadd.f32 %v4551, %v4591
      %4593 = vmatmul.f32.gmra.mxu0 %v4566
      %v4594 = vpop.f32.mrf.mxu0
      %v4595 = vadd.f32 %v4554, %v4594
      %4596 = vmatmul.f32.gmra.mxu0 %v4569
      %v4597 = vpop.f32.mrf.mxu0
      %v4598 = vadd.f32 %v4557, %v4597
      %4599 = vdwg.mxu0
      %v4600 = vld [vmem:[%s2998] sm:$0xff]
      %v4601 = vld [vmem:[%s2998 + $0x8] sm:$0xff]
      %v4602 = vld [vmem:[%s2998 + $0x10] sm:$0xff]
      %v4603 = vld [vmem:[%s2998 + $0x18] sm:$0x1]
      %s4604 = scalar_lea.vmem %s7, 192
      %v4605 = vld [vmem:[%s4604] sm:$0xff]
      %v4606 = vld [vmem:[%s4604 + $0x8] sm:$0xff]
      %v4607 = vld [vmem:[%s4604 + $0x10] sm:$0xff]
      %v4608 = vld [vmem:[%s4604 + $0x18] sm:$0xff]
      %v4610 = vsel %vm389, %v4600, 0
      %v4613 = vsel %vm389, %v4601, 0
      %v4616 = vsel %vm389, %v4602, 0
      %v4619 = vsel %vm389, %v4603, 0
      %4621 = vmatpush.msra.mxu0 0.0
      %4622 = vmatpush.msra.mxu0 0.0
      %4623 = vmatpush.msra.mxu0 0.0
      %4624 = vmatpush.msra.mxu0 0.0
      %4625 = vmatpush.msra.mxu0 0.0
      %4626 = vmatpush.msra.mxu0 0.0
      %4627 = vmatpush.msra.mxu0 0.0
      %4628 = vmatpush.msra.mxu0 0.0
      %4629 = vmatpush.msra.mxu0 0.0
      %4630 = vmatpush.msra.mxu0 0.0
      %4631 = vmatpush.msra.mxu0 0.0
      %4632 = vmatpush.msra.mxu0 0.0
      %4633 = vmatpush.msra.mxu0 %v4608
      %4634 = vmatpush.msra.mxu0 %v4607
      %4635 = vmatpush.msra.mxu0 %v4606
      %4636 = vmatpush.msra.mxu0 %v4605
      %4637 = vmatmul.f32.gmra.mxu0 %v4610
      %v4638 = vpop.f32.mrf.mxu0
      %v4639 = vadd.f32 0.0, %v4638
      %4640 = vmatmul.f32.gmra.mxu0 %v4613
      %v4641 = vpop.f32.mrf.mxu0
      %v4642 = vadd.f32 0.0, %v4641
      %4643 = vmatmul.f32.gmra.mxu0 %v4616
      %v4644 = vpop.f32.mrf.mxu0
      %v4645 = vadd.f32 0.0, %v4644
      %4646 = vmatmul.f32.gmra.mxu0 %v4619
      %v4647 = vpop.f32.mrf.mxu0
      %v4648 = vadd.f32 0.0, %v4647
      %4649 = vdwg.mxu0
      %v4650 = vadd.f32 %v4589, %v4639
      %v4651 = vadd.f32 %v4592, %v4642
      %v4652 = vadd.f32 %v4595, %v4645
      %v4653 = vadd.f32 %v4598, %v4648
      %v4654 = vld [vmem:[#allocation4] sm:$0xff]
      %v4655 = vld [vmem:[#allocation4 + $0x8] sm:$0xff]
      %v4656 = vld [vmem:[#allocation4 + $0x10] sm:$0xff]
      %v4657 = vld [vmem:[#allocation4 + $0x18] sm:$0x1]
      %s4658 = scalar_lea.vmem %s7, 256
      %v4659 = vld [vmem:[%s4658] sm:$0xff]
      %v4660 = vld [vmem:[%s4658 + $0x8] sm:$0xff]
      %v4661 = vld [vmem:[%s4658 + $0x10] sm:$0xff]
      %v4662 = vld [vmem:[%s4658 + $0x18] sm:$0xff]
      %v4664 = vsel %vm389, %v4654, 0
      %v4667 = vsel %vm389, %v4655, 0
      %v4670 = vsel %vm389, %v4656, 0
      %v4673 = vsel %vm389, %v4657, 0
      %4675 = vmatpush.msra.mxu0 0.0
      %4676 = vmatpush.msra.mxu0 0.0
      %4677 = vmatpush.msra.mxu0 0.0
      %4678 = vmatpush.msra.mxu0 0.0
      %4679 = vmatpush.msra.mxu0 0.0
      %4680 = vmatpush.msra.mxu0 0.0
      %4681 = vmatpush.msra.mxu0 0.0
      %4682 = vmatpush.msra.mxu0 0.0
      %4683 = vmatpush.msra.mxu0 0.0
      %4684 = vmatpush.msra.mxu0 0.0
      %4685 = vmatpush.msra.mxu0 0.0
      %4686 = vmatpush.msra.mxu0 0.0
      %4687 = vmatpush.msra.mxu0 %v4662
      %4688 = vmatpush.msra.mxu0 %v4661
      %4689 = vmatpush.msra.mxu0 %v4660
      %4690 = vmatpush.msra.mxu0 %v4659
      %4691 = vmatmul.f32.gmra.mxu0 %v4664
      %v4692 = vpop.f32.mrf.mxu0
      %v4693 = vadd.f32 0.0, %v4692
      %4694 = vmatmul.f32.gmra.mxu0 %v4667
      %v4695 = vpop.f32.mrf.mxu0
      %v4696 = vadd.f32 0.0, %v4695
      %4697 = vmatmul.f32.gmra.mxu0 %v4670
      %v4698 = vpop.f32.mrf.mxu0
      %v4699 = vadd.f32 0.0, %v4698
      %4700 = vmatmul.f32.gmra.mxu0 %v4673
      %v4701 = vpop.f32.mrf.mxu0
      %v4702 = vadd.f32 0.0, %v4701
      %4703 = vdwg.mxu0
      %v4704 = vadd.f32 %v4650, %v4693
      %v4705 = vadd.f32 %v4651, %v4696
      %v4706 = vadd.f32 %v4652, %v4699
      %v4707 = vadd.f32 %v4653, %v4702
      %v4708 = vld [vmem:[%s8] sm:$0x1]
      %v4710 = vperm.slane %v4708, 0
      %v4712 = vadd.f32 %v4704, %v4710
      %v4713 = vadd.f32 %v4705, %v4710
      %v4714 = vadd.f32 %v4706, %v4710
      %v4715 = vadd.f32 %v4707, %v4710
      %s4716 = scalar_lea.vmem %s332, 160
      %4717 = vst.msk [vmem:[%s4716] sm:$0xff] %vm440, %v4712
      %4718 = vst.msk [vmem:[%s4716 + $0x8] sm:$0xff] %vm440, %v4713
      %4719 = vst.msk [vmem:[%s4716 + $0x10] sm:$0xff] %vm440, %v4714
      %4720 = vst.msk [vmem:[%s4716 + $0x18] sm:$0x1] %vm3433, %v4715
      %v4721 = vld [vmem:[%s3127 + $0x1] sm:$0xff]
      %v4722 = vld [vmem:[%s3127 + $0x9] sm:$0xff]
      %v4723 = vld [vmem:[%s3127 + $0x11] sm:$0xff]
      %v4724 = vld [vmem:[%s3127 + $0x19] sm:$0x1]
      %v4725 = vld [vmem:[%s7] sm:$0xff]
      %v4726 = vld [vmem:[%s7 + $0x8] sm:$0xff]
      %v4727 = vld [vmem:[%s7 + $0x10] sm:$0xff]
      %v4728 = vld [vmem:[%s7 + $0x18] sm:$0xff]
      %v4729 = vld [vmem:[%s3371] sm:$0xff]
      %v4730 = vld [vmem:[%s3371 + $0x8] sm:$0xff]
      %v4731 = vld [vmem:[%s3371 + $0x10] sm:$0xff]
      %v4732 = vld [vmem:[%s3371 + $0x18] sm:$0x1]
      %v4733 = vld [vmem:[%s4513] sm:$0xff]
      %v4734 = vld [vmem:[%s4513 + $0x8] sm:$0xff]
      %v4735 = vld [vmem:[%s4513 + $0x10] sm:$0xff]
      %v4736 = vld [vmem:[%s4513 + $0x18] sm:$0xff]
      %v4738 = vsel %vm389, %v4729, 0
      %v4741 = vsel %vm389, %v4730, 0
      %v4744 = vsel %vm389, %v4731, 0
      %v4747 = vsel %vm389, %v4732, 0
      %4749 = vmatpush.msra.mxu0 0.0
      %4750 = vmatpush.msra.mxu0 0.0
      %4751 = vmatpush.msra.mxu0 0.0
      %4752 = vmatpush.msra.mxu0 0.0
      %4753 = vmatpush.msra.mxu0 0.0
      %4754 = vmatpush.msra.mxu0 0.0
      %4755 = vmatpush.msra.mxu0 0.0
      %4756 = vmatpush.msra.mxu0 0.0
      %4757 = vmatpush.msra.mxu0 0.0
      %4758 = vmatpush.msra.mxu0 0.0
      %4759 = vmatpush.msra.mxu0 0.0
      %4760 = vmatpush.msra.mxu0 0.0
      %4761 = vmatpush.msra.mxu0 %v4736
      %4762 = vmatpush.msra.mxu0 %v4735
      %4763 = vmatpush.msra.mxu0 %v4734
      %4764 = vmatpush.msra.mxu0 %v4733
      %4765 = vmatmul.f32.gmra.mxu0 %v4738
      %v4766 = vpop.f32.mrf.mxu0
      %v4767 = vadd.f32 0.0, %v4766
      %4768 = vmatmul.f32.gmra.mxu0 %v4741
      %v4769 = vpop.f32.mrf.mxu0
      %v4770 = vadd.f32 0.0, %v4769
      %4771 = vmatmul.f32.gmra.mxu0 %v4744
      %v4772 = vpop.f32.mrf.mxu0
      %v4773 = vadd.f32 0.0, %v4772
      %4774 = vmatmul.f32.gmra.mxu0 %v4747
      %v4775 = vpop.f32.mrf.mxu0
      %v4776 = vadd.f32 0.0, %v4775
      %4777 = vdwg.mxu0
      %v4779 = vsel %vm389, %v4721, 0
      %v4782 = vsel %vm389, %v4722, 0
      %v4785 = vsel %vm389, %v4723, 0
      %v4788 = vsel %vm389, %v4724, 0
      %4790 = vmatpush.msra.mxu0 0.0
      %4791 = vmatpush.msra.mxu0 0.0
      %4792 = vmatpush.msra.mxu0 0.0
      %4793 = vmatpush.msra.mxu0 0.0
      %4794 = vmatpush.msra.mxu0 0.0
      %4795 = vmatpush.msra.mxu0 0.0
      %4796 = vmatpush.msra.mxu0 0.0
      %4797 = vmatpush.msra.mxu0 0.0
      %4798 = vmatpush.msra.mxu0 0.0
      %4799 = vmatpush.msra.mxu0 0.0
      %4800 = vmatpush.msra.mxu0 0.0
      %4801 = vmatpush.msra.mxu0 0.0
      %4802 = vmatpush.msra.mxu0 %v4728
      %4803 = vmatpush.msra.mxu0 %v4727
      %4804 = vmatpush.msra.mxu0 %v4726
      %4805 = vmatpush.msra.mxu0 %v4725
      %4806 = vmatmul.f32.gmra.mxu0 %v4779
      %v4807 = vpop.f32.mrf.mxu0
      %v4808 = vadd.f32 %v4767, %v4807
      %4809 = vmatmul.f32.gmra.mxu0 %v4782
      %v4810 = vpop.f32.mrf.mxu0
      %v4811 = vadd.f32 %v4770, %v4810
      %4812 = vmatmul.f32.gmra.mxu0 %v4785
      %v4813 = vpop.f32.mrf.mxu0
      %v4814 = vadd.f32 %v4773, %v4813
      %4815 = vmatmul.f32.gmra.mxu0 %v4788
      %v4816 = vpop.f32.mrf.mxu0
      %v4817 = vadd.f32 %v4776, %v4816
      %4818 = vdwg.mxu0
      %v4819 = vld [vmem:[#allocation4 + $0x1] sm:$0xff]
      %v4820 = vld [vmem:[#allocation4 + $0x9] sm:$0xff]
      %v4821 = vld [vmem:[#allocation4 + $0x11] sm:$0xff]
      %v4822 = vld [vmem:[#allocation4 + $0x19] sm:$0x1]
      %v4823 = vld [vmem:[%s4604] sm:$0xff]
      %v4824 = vld [vmem:[%s4604 + $0x8] sm:$0xff]
      %v4825 = vld [vmem:[%s4604 + $0x10] sm:$0xff]
      %v4826 = vld [vmem:[%s4604 + $0x18] sm:$0xff]
      %v4828 = vsel %vm389, %v4819, 0
      %v4831 = vsel %vm389, %v4820, 0
      %v4834 = vsel %vm389, %v4821, 0
      %v4837 = vsel %vm389, %v4822, 0
      %4839 = vmatpush.msra.mxu0 0.0
      %4840 = vmatpush.msra.mxu0 0.0
      %4841 = vmatpush.msra.mxu0 0.0
      %4842 = vmatpush.msra.mxu0 0.0
      %4843 = vmatpush.msra.mxu0 0.0
      %4844 = vmatpush.msra.mxu0 0.0
      %4845 = vmatpush.msra.mxu0 0.0
      %4846 = vmatpush.msra.mxu0 0.0
      %4847 = vmatpush.msra.mxu0 0.0
      %4848 = vmatpush.msra.mxu0 0.0
      %4849 = vmatpush.msra.mxu0 0.0
      %4850 = vmatpush.msra.mxu0 0.0
      %4851 = vmatpush.msra.mxu0 %v4826
      %4852 = vmatpush.msra.mxu0 %v4825
      %4853 = vmatpush.msra.mxu0 %v4824
      %4854 = vmatpush.msra.mxu0 %v4823
      %4855 = vmatmul.f32.gmra.mxu0 %v4828
      %v4856 = vpop.f32.mrf.mxu0
      %v4857 = vadd.f32 0.0, %v4856
      %4858 = vmatmul.f32.gmra.mxu0 %v4831
      %v4859 = vpop.f32.mrf.mxu0
      %v4860 = vadd.f32 0.0, %v4859
      %4861 = vmatmul.f32.gmra.mxu0 %v4834
      %v4862 = vpop.f32.mrf.mxu0
      %v4863 = vadd.f32 0.0, %v4862
      %4864 = vmatmul.f32.gmra.mxu0 %v4837
      %v4865 = vpop.f32.mrf.mxu0
      %v4866 = vadd.f32 0.0, %v4865
      %4867 = vdwg.mxu0
      %v4868 = vadd.f32 %v4808, %v4857
      %v4869 = vadd.f32 %v4811, %v4860
      %v4870 = vadd.f32 %v4814, %v4863
      %v4871 = vadd.f32 %v4817, %v4866
      %v4872 = vld [vmem:[%s2998] sm:$0xff]
      %v4873 = vld [vmem:[%s2998 + $0x8] sm:$0xff]
      %v4874 = vld [vmem:[%s2998 + $0x10] sm:$0xff]
      %v4875 = vld [vmem:[%s2998 + $0x18] sm:$0x1]
      %v4876 = vld [vmem:[%s4658] sm:$0xff]
      %v4877 = vld [vmem:[%s4658 + $0x8] sm:$0xff]
      %v4878 = vld [vmem:[%s4658 + $0x10] sm:$0xff]
      %v4879 = vld [vmem:[%s4658 + $0x18] sm:$0xff]
      %v4881 = vsel %vm389, %v4872, 0
      %v4884 = vsel %vm389, %v4873, 0
      %v4887 = vsel %vm389, %v4874, 0
      %v4890 = vsel %vm389, %v4875, 0
      %4892 = vmatpush.msra.mxu0 0.0
      %4893 = vmatpush.msra.mxu0 0.0
      %4894 = vmatpush.msra.mxu0 0.0
      %4895 = vmatpush.msra.mxu0 0.0
      %4896 = vmatpush.msra.mxu0 0.0
      %4897 = vmatpush.msra.mxu0 0.0
      %4898 = vmatpush.msra.mxu0 0.0
      %4899 = vmatpush.msra.mxu0 0.0
      %4900 = vmatpush.msra.mxu0 0.0
      %4901 = vmatpush.msra.mxu0 0.0
      %4902 = vmatpush.msra.mxu0 0.0
      %4903 = vmatpush.msra.mxu0 0.0
      %4904 = vmatpush.msra.mxu0 %v4879
      %4905 = vmatpush.msra.mxu0 %v4878
      %4906 = vmatpush.msra.mxu0 %v4877
      %4907 = vmatpush.msra.mxu0 %v4876
      %4908 = vmatmul.f32.gmra.mxu0 %v4881
      %v4909 = vpop.f32.mrf.mxu0
      %v4910 = vadd.f32 0.0, %v4909
      %4911 = vmatmul.f32.gmra.mxu0 %v4884
      %v4912 = vpop.f32.mrf.mxu0
      %v4913 = vadd.f32 0.0, %v4912
      %4914 = vmatmul.f32.gmra.mxu0 %v4887
      %v4915 = vpop.f32.mrf.mxu0
      %v4916 = vadd.f32 0.0, %v4915
      %4917 = vmatmul.f32.gmra.mxu0 %v4890
      %v4918 = vpop.f32.mrf.mxu0
      %v4919 = vadd.f32 0.0, %v4918
      %4920 = vdwg.mxu0
      %v4921 = vadd.f32 %v4868, %v4910
      %v4922 = vadd.f32 %v4869, %v4913
      %v4923 = vadd.f32 %v4870, %v4916
      %v4924 = vadd.f32 %v4871, %v4919
      %v4925 = vld [vmem:[%s8] sm:$0x1]
      %v4927 = vperm.slane %v4925, 0
      %v4929 = vadd.f32 %v4921, %v4927
      %v4930 = vadd.f32 %v4922, %v4927
      %v4931 = vadd.f32 %v4923, %v4927
      %v4932 = vadd.f32 %v4924, %v4927
      %s4933 = scalar_lea.vmem %s332, 224
      %4934 = vst.msk [vmem:[%s4933] sm:$0xff] %vm440, %v4929
      %4935 = vst.msk [vmem:[%s4933 + $0x8] sm:$0xff] %vm440, %v4930
      %4936 = vst.msk [vmem:[%s4933 + $0x10] sm:$0xff] %vm440, %v4931
      %4937 = vst.msk [vmem:[%s4933 + $0x18] sm:$0x1] %vm3433, %v4932
      %v4938 = vld [vmem:[%s2998 + $0x5] sm:$0xff]
      %v4939 = vld [vmem:[%s2998 + $0xd] sm:$0xff]
      %v4940 = vld [vmem:[%s2998 + $0x15] sm:$0xff]
      %v4941 = vld [vmem:[%s2998 + $0x1d] sm:$0x1]
      %v4942 = vld [vmem:[%s7] sm:$0xff]
      %v4943 = vld [vmem:[%s7 + $0x8] sm:$0xff]
      %v4944 = vld [vmem:[%s7 + $0x10] sm:$0xff]
      %v4945 = vld [vmem:[%s7 + $0x18] sm:$0xff]
      %v4946 = vld [vmem:[#allocation4 + $0x5] sm:$0xff]
      %v4947 = vld [vmem:[#allocation4 + $0xd] sm:$0xff]
      %v4948 = vld [vmem:[#allocation4 + $0x15] sm:$0xff]
      %v4949 = vld [vmem:[#allocation4 + $0x1d] sm:$0x1]
      %v4950 = vld [vmem:[%s4513] sm:$0xff]
      %v4951 = vld [vmem:[%s4513 + $0x8] sm:$0xff]
      %v4952 = vld [vmem:[%s4513 + $0x10] sm:$0xff]
      %v4953 = vld [vmem:[%s4513 + $0x18] sm:$0xff]
      %v4955 = vsel %vm389, %v4946, 0
      %v4958 = vsel %vm389, %v4947, 0
      %v4961 = vsel %vm389, %v4948, 0
      %v4964 = vsel %vm389, %v4949, 0
      %4966 = vmatpush.msra.mxu0 0.0
      %4967 = vmatpush.msra.mxu0 0.0
      %4968 = vmatpush.msra.mxu0 0.0
      %4969 = vmatpush.msra.mxu0 0.0
      %4970 = vmatpush.msra.mxu0 0.0
      %4971 = vmatpush.msra.mxu0 0.0
      %4972 = vmatpush.msra.mxu0 0.0
      %4973 = vmatpush.msra.mxu0 0.0
      %4974 = vmatpush.msra.mxu0 0.0
      %4975 = vmatpush.msra.mxu0 0.0
      %4976 = vmatpush.msra.mxu0 0.0
      %4977 = vmatpush.msra.mxu0 0.0
      %4978 = vmatpush.msra.mxu0 %v4953
      %4979 = vmatpush.msra.mxu0 %v4952
      %4980 = vmatpush.msra.mxu0 %v4951
      %4981 = vmatpush.msra.mxu0 %v4950
      %4982 = vmatmul.f32.gmra.mxu0 %v4955
      %v4983 = vpop.f32.mrf.mxu0
      %v4984 = vadd.f32 0.0, %v4983
      %4985 = vmatmul.f32.gmra.mxu0 %v4958
      %v4986 = vpop.f32.mrf.mxu0
      %v4987 = vadd.f32 0.0, %v4986
      %4988 = vmatmul.f32.gmra.mxu0 %v4961
      %v4989 = vpop.f32.mrf.mxu0
      %v4990 = vadd.f32 0.0, %v4989
      %4991 = vmatmul.f32.gmra.mxu0 %v4964
      %v4992 = vpop.f32.mrf.mxu0
      %v4993 = vadd.f32 0.0, %v4992
      %4994 = vdwg.mxu0
      %v4996 = vsel %vm389, %v4938, 0
      %v4999 = vsel %vm389, %v4939, 0
      %v5002 = vsel %vm389, %v4940, 0
      %v5005 = vsel %vm389, %v4941, 0
      %5007 = vmatpush.msra.mxu0 0.0
      %5008 = vmatpush.msra.mxu0 0.0
      %5009 = vmatpush.msra.mxu0 0.0
      %5010 = vmatpush.msra.mxu0 0.0
      %5011 = vmatpush.msra.mxu0 0.0
      %5012 = vmatpush.msra.mxu0 0.0
      %5013 = vmatpush.msra.mxu0 0.0
      %5014 = vmatpush.msra.mxu0 0.0
      %5015 = vmatpush.msra.mxu0 0.0
      %5016 = vmatpush.msra.mxu0 0.0
      %5017 = vmatpush.msra.mxu0 0.0
      %5018 = vmatpush.msra.mxu0 0.0
      %5019 = vmatpush.msra.mxu0 %v4945
      %5020 = vmatpush.msra.mxu0 %v4944
      %5021 = vmatpush.msra.mxu0 %v4943
      %5022 = vmatpush.msra.mxu0 %v4942
      %5023 = vmatmul.f32.gmra.mxu0 %v4996
      %v5024 = vpop.f32.mrf.mxu0
      %v5025 = vadd.f32 %v4984, %v5024
      %5026 = vmatmul.f32.gmra.mxu0 %v4999
      %v5027 = vpop.f32.mrf.mxu0
      %v5028 = vadd.f32 %v4987, %v5027
      %5029 = vmatmul.f32.gmra.mxu0 %v5002
      %v5030 = vpop.f32.mrf.mxu0
      %v5031 = vadd.f32 %v4990, %v5030
      %5032 = vmatmul.f32.gmra.mxu0 %v5005
      %v5033 = vpop.f32.mrf.mxu0
      %v5034 = vadd.f32 %v4993, %v5033
      %5035 = vdwg.mxu0
      %v5036 = vld [vmem:[%s3371] sm:$0xff]
      %v5037 = vld [vmem:[%s3371 + $0x8] sm:$0xff]
      %v5038 = vld [vmem:[%s3371 + $0x10] sm:$0xff]
      %v5039 = vld [vmem:[%s3371 + $0x18] sm:$0x1]
      %v5040 = vld [vmem:[%s4604] sm:$0xff]
      %v5041 = vld [vmem:[%s4604 + $0x8] sm:$0xff]
      %v5042 = vld [vmem:[%s4604 + $0x10] sm:$0xff]
      %v5043 = vld [vmem:[%s4604 + $0x18] sm:$0xff]
      %v5045 = vsel %vm389, %v5036, 0
      %v5048 = vsel %vm389, %v5037, 0
      %v5051 = vsel %vm389, %v5038, 0
      %v5054 = vsel %vm389, %v5039, 0
      %5056 = vmatpush.msra.mxu0 0.0
      %5057 = vmatpush.msra.mxu0 0.0
      %5058 = vmatpush.msra.mxu0 0.0
      %5059 = vmatpush.msra.mxu0 0.0
      %5060 = vmatpush.msra.mxu0 0.0
      %5061 = vmatpush.msra.mxu0 0.0
      %5062 = vmatpush.msra.mxu0 0.0
      %5063 = vmatpush.msra.mxu0 0.0
      %5064 = vmatpush.msra.mxu0 0.0
      %5065 = vmatpush.msra.mxu0 0.0
      %5066 = vmatpush.msra.mxu0 0.0
      %5067 = vmatpush.msra.mxu0 0.0
      %5068 = vmatpush.msra.mxu0 %v5043
      %5069 = vmatpush.msra.mxu0 %v5042
      %5070 = vmatpush.msra.mxu0 %v5041
      %5071 = vmatpush.msra.mxu0 %v5040
      %5072 = vmatmul.f32.gmra.mxu0 %v5045
      %v5073 = vpop.f32.mrf.mxu0
      %v5074 = vadd.f32 0.0, %v5073
      %5075 = vmatmul.f32.gmra.mxu0 %v5048
      %v5076 = vpop.f32.mrf.mxu0
      %v5077 = vadd.f32 0.0, %v5076
      %5078 = vmatmul.f32.gmra.mxu0 %v5051
      %v5079 = vpop.f32.mrf.mxu0
      %v5080 = vadd.f32 0.0, %v5079
      %5081 = vmatmul.f32.gmra.mxu0 %v5054
      %v5082 = vpop.f32.mrf.mxu0
      %v5083 = vadd.f32 0.0, %v5082
      %5084 = vdwg.mxu0
      %v5085 = vadd.f32 %v5025, %v5074
      %v5086 = vadd.f32 %v5028, %v5077
      %v5087 = vadd.f32 %v5031, %v5080
      %v5088 = vadd.f32 %v5034, %v5083
      %v5089 = vld [vmem:[%s3127] sm:$0xff]
      %v5090 = vld [vmem:[%s3127 + $0x8] sm:$0xff]
      %v5091 = vld [vmem:[%s3127 + $0x10] sm:$0xff]
      %v5092 = vld [vmem:[%s3127 + $0x18] sm:$0x1]
      %v5093 = vld [vmem:[%s4658] sm:$0xff]
      %v5094 = vld [vmem:[%s4658 + $0x8] sm:$0xff]
      %v5095 = vld [vmem:[%s4658 + $0x10] sm:$0xff]
      %v5096 = vld [vmem:[%s4658 + $0x18] sm:$0xff]
      %v5098 = vsel %vm389, %v5089, 0
      %v5101 = vsel %vm389, %v5090, 0
      %v5104 = vsel %vm389, %v5091, 0
      %v5107 = vsel %vm389, %v5092, 0
      %5109 = vmatpush.msra.mxu0 0.0
      %5110 = vmatpush.msra.mxu0 0.0
      %5111 = vmatpush.msra.mxu0 0.0
      %5112 = vmatpush.msra.mxu0 0.0
      %5113 = vmatpush.msra.mxu0 0.0
      %5114 = vmatpush.msra.mxu0 0.0
      %5115 = vmatpush.msra.mxu0 0.0
      %5116 = vmatpush.msra.mxu0 0.0
      %5117 = vmatpush.msra.mxu0 0.0
      %5118 = vmatpush.msra.mxu0 0.0
      %5119 = vmatpush.msra.mxu0 0.0
      %5120 = vmatpush.msra.mxu0 0.0
      %5121 = vmatpush.msra.mxu0 %v5096
      %5122 = vmatpush.msra.mxu0 %v5095
      %5123 = vmatpush.msra.mxu0 %v5094
      %5124 = vmatpush.msra.mxu0 %v5093
      %5125 = vmatmul.f32.gmra.mxu0 %v5098
      %v5126 = vpop.f32.mrf.mxu0
      %v5127 = vadd.f32 0.0, %v5126
      %5128 = vmatmul.f32.gmra.mxu0 %v5101
      %v5129 = vpop.f32.mrf.mxu0
      %v5130 = vadd.f32 0.0, %v5129
      %5131 = vmatmul.f32.gmra.mxu0 %v5104
      %v5132 = vpop.f32.mrf.mxu0
      %v5133 = vadd.f32 0.0, %v5132
      %5134 = vmatmul.f32.gmra.mxu0 %v5107
      %v5135 = vpop.f32.mrf.mxu0
      %v5136 = vadd.f32 0.0, %v5135
      %5137 = vdwg.mxu0
      %v5138 = vadd.f32 %v5085, %v5127
      %v5139 = vadd.f32 %v5086, %v5130
      %v5140 = vadd.f32 %v5087, %v5133
      %v5141 = vadd.f32 %v5088, %v5136
      %v5142 = vld [vmem:[%s8] sm:$0x1]
      %v5144 = vperm.slane %v5142, 0
      %v5146 = vadd.f32 %v5138, %v5144
      %v5147 = vadd.f32 %v5139, %v5144
      %v5148 = vadd.f32 %v5140, %v5144
      %v5149 = vadd.f32 %v5141, %v5144
      %s5150 = scalar_lea.vmem %s332, 416
      %5151 = vst.msk [vmem:[%s5150] sm:$0xff] %vm440, %v5146
      %5152 = vst.msk [vmem:[%s5150 + $0x8] sm:$0xff] %vm440, %v5147
      %5153 = vst.msk [vmem:[%s5150 + $0x10] sm:$0xff] %vm440, %v5148
      %5154 = vst.msk [vmem:[%s5150 + $0x18] sm:$0x1] %vm3433, %v5149
      %v5155 = vld [vmem:[#allocation4 + $0x6] sm:$0xff]
      %v5156 = vld [vmem:[#allocation4 + $0xe] sm:$0xff]
      %v5157 = vld [vmem:[#allocation4 + $0x16] sm:$0xff]
      %v5158 = vld [vmem:[#allocation4 + $0x1e] sm:$0x1]
      %v5159 = vld [vmem:[%s7] sm:$0xff]
      %v5160 = vld [vmem:[%s7 + $0x8] sm:$0xff]
      %v5161 = vld [vmem:[%s7 + $0x10] sm:$0xff]
      %v5162 = vld [vmem:[%s7 + $0x18] sm:$0xff]
      %v5163 = vld [vmem:[%s2998 + $0x5] sm:$0xff]
      %v5164 = vld [vmem:[%s2998 + $0xd] sm:$0xff]
      %v5165 = vld [vmem:[%s2998 + $0x15] sm:$0xff]
      %v5166 = vld [vmem:[%s2998 + $0x1d] sm:$0x1]
      %v5167 = vld [vmem:[%s4513] sm:$0xff]
      %v5168 = vld [vmem:[%s4513 + $0x8] sm:$0xff]
      %v5169 = vld [vmem:[%s4513 + $0x10] sm:$0xff]
      %v5170 = vld [vmem:[%s4513 + $0x18] sm:$0xff]
      %v5172 = vsel %vm389, %v5163, 0
      %v5175 = vsel %vm389, %v5164, 0
      %v5178 = vsel %vm389, %v5165, 0
      %v5181 = vsel %vm389, %v5166, 0
      %5183 = vmatpush.msra.mxu0 0.0
      %5184 = vmatpush.msra.mxu0 0.0
      %5185 = vmatpush.msra.mxu0 0.0
      %5186 = vmatpush.msra.mxu0 0.0
      %5187 = vmatpush.msra.mxu0 0.0
      %5188 = vmatpush.msra.mxu0 0.0
      %5189 = vmatpush.msra.mxu0 0.0
      %5190 = vmatpush.msra.mxu0 0.0
      %5191 = vmatpush.msra.mxu0 0.0
      %5192 = vmatpush.msra.mxu0 0.0
      %5193 = vmatpush.msra.mxu0 0.0
      %5194 = vmatpush.msra.mxu0 0.0
      %5195 = vmatpush.msra.mxu0 %v5170
      %5196 = vmatpush.msra.mxu0 %v5169
      %5197 = vmatpush.msra.mxu0 %v5168
      %5198 = vmatpush.msra.mxu0 %v5167
      %5199 = vmatmul.f32.gmra.mxu0 %v5172
      %v5200 = vpop.f32.mrf.mxu0
      %v5201 = vadd.f32 0.0, %v5200
      %5202 = vmatmul.f32.gmra.mxu0 %v5175
      %v5203 = vpop.f32.mrf.mxu0
      %v5204 = vadd.f32 0.0, %v5203
      %5205 = vmatmul.f32.gmra.mxu0 %v5178
      %v5206 = vpop.f32.mrf.mxu0
      %v5207 = vadd.f32 0.0, %v5206
      %5208 = vmatmul.f32.gmra.mxu0 %v5181
      %v5209 = vpop.f32.mrf.mxu0
      %v5210 = vadd.f32 0.0, %v5209
      %5211 = vdwg.mxu0
      %v5213 = vsel %vm389, %v5155, 0
      %v5216 = vsel %vm389, %v5156, 0
      %v5219 = vsel %vm389, %v5157, 0
      %v5222 = vsel %vm389, %v5158, 0
      %5224 = vmatpush.msra.mxu0 0.0
      %5225 = vmatpush.msra.mxu0 0.0
      %5226 = vmatpush.msra.mxu0 0.0
      %5227 = vmatpush.msra.mxu0 0.0
      %5228 = vmatpush.msra.mxu0 0.0
      %5229 = vmatpush.msra.mxu0 0.0
      %5230 = vmatpush.msra.mxu0 0.0
      %5231 = vmatpush.msra.mxu0 0.0
      %5232 = vmatpush.msra.mxu0 0.0
      %5233 = vmatpush.msra.mxu0 0.0
      %5234 = vmatpush.msra.mxu0 0.0
      %5235 = vmatpush.msra.mxu0 0.0
      %5236 = vmatpush.msra.mxu0 %v5162
      %5237 = vmatpush.msra.mxu0 %v5161
      %5238 = vmatpush.msra.mxu0 %v5160
      %5239 = vmatpush.msra.mxu0 %v5159
      %5240 = vmatmul.f32.gmra.mxu0 %v5213
      %v5241 = vpop.f32.mrf.mxu0
      %v5242 = vadd.f32 %v5201, %v5241
      %5243 = vmatmul.f32.gmra.mxu0 %v5216
      %v5244 = vpop.f32.mrf.mxu0
      %v5245 = vadd.f32 %v5204, %v5244
      %5246 = vmatmul.f32.gmra.mxu0 %v5219
      %v5247 = vpop.f32.mrf.mxu0
      %v5248 = vadd.f32 %v5207, %v5247
      %5249 = vmatmul.f32.gmra.mxu0 %v5222
      %v5250 = vpop.f32.mrf.mxu0
      %v5251 = vadd.f32 %v5210, %v5250
      %5252 = vdwg.mxu0
      %v5253 = vld [vmem:[%s3127 + $0x1] sm:$0xff]
      %v5254 = vld [vmem:[%s3127 + $0x9] sm:$0xff]
      %v5255 = vld [vmem:[%s3127 + $0x11] sm:$0xff]
      %v5256 = vld [vmem:[%s3127 + $0x19] sm:$0x1]
      %v5257 = vld [vmem:[%s4604] sm:$0xff]
      %v5258 = vld [vmem:[%s4604 + $0x8] sm:$0xff]
      %v5259 = vld [vmem:[%s4604 + $0x10] sm:$0xff]
      %v5260 = vld [vmem:[%s4604 + $0x18] sm:$0xff]
      %v5262 = vsel %vm389, %v5253, 0
      %v5265 = vsel %vm389, %v5254, 0
      %v5268 = vsel %vm389, %v5255, 0
      %v5271 = vsel %vm389, %v5256, 0
      %5273 = vmatpush.msra.mxu0 0.0
      %5274 = vmatpush.msra.mxu0 0.0
      %5275 = vmatpush.msra.mxu0 0.0
      %5276 = vmatpush.msra.mxu0 0.0
      %5277 = vmatpush.msra.mxu0 0.0
      %5278 = vmatpush.msra.mxu0 0.0
      %5279 = vmatpush.msra.mxu0 0.0
      %5280 = vmatpush.msra.mxu0 0.0
      %5281 = vmatpush.msra.mxu0 0.0
      %5282 = vmatpush.msra.mxu0 0.0
      %5283 = vmatpush.msra.mxu0 0.0
      %5284 = vmatpush.msra.mxu0 0.0
      %5285 = vmatpush.msra.mxu0 %v5260
      %5286 = vmatpush.msra.mxu0 %v5259
      %5287 = vmatpush.msra.mxu0 %v5258
      %5288 = vmatpush.msra.mxu0 %v5257
      %5289 = vmatmul.f32.gmra.mxu0 %v5262
      %v5290 = vpop.f32.mrf.mxu0
      %v5291 = vadd.f32 0.0, %v5290
      %5292 = vmatmul.f32.gmra.mxu0 %v5265
      %v5293 = vpop.f32.mrf.mxu0
      %v5294 = vadd.f32 0.0, %v5293
      %5295 = vmatmul.f32.gmra.mxu0 %v5268
      %v5296 = vpop.f32.mrf.mxu0
      %v5297 = vadd.f32 0.0, %v5296
      %5298 = vmatmul.f32.gmra.mxu0 %v5271
      %v5299 = vpop.f32.mrf.mxu0
      %v5300 = vadd.f32 0.0, %v5299
      %5301 = vdwg.mxu0
      %v5302 = vadd.f32 %v5242, %v5291
      %v5303 = vadd.f32 %v5245, %v5294
      %v5304 = vadd.f32 %v5248, %v5297
      %v5305 = vadd.f32 %v5251, %v5300
      %v5306 = vld [vmem:[%s3371] sm:$0xff]
      %v5307 = vld [vmem:[%s3371 + $0x8] sm:$0xff]
      %v5308 = vld [vmem:[%s3371 + $0x10] sm:$0xff]
      %v5309 = vld [vmem:[%s3371 + $0x18] sm:$0x1]
      %v5310 = vld [vmem:[%s4658] sm:$0xff]
      %v5311 = vld [vmem:[%s4658 + $0x8] sm:$0xff]
      %v5312 = vld [vmem:[%s4658 + $0x10] sm:$0xff]
      %v5313 = vld [vmem:[%s4658 + $0x18] sm:$0xff]
      %v5315 = vsel %vm389, %v5306, 0
      %v5318 = vsel %vm389, %v5307, 0
      %v5321 = vsel %vm389, %v5308, 0
      %v5324 = vsel %vm389, %v5309, 0
      %5326 = vmatpush.msra.mxu0 0.0
      %5327 = vmatpush.msra.mxu0 0.0
      %5328 = vmatpush.msra.mxu0 0.0
      %5329 = vmatpush.msra.mxu0 0.0
      %5330 = vmatpush.msra.mxu0 0.0
      %5331 = vmatpush.msra.mxu0 0.0
      %5332 = vmatpush.msra.mxu0 0.0
      %5333 = vmatpush.msra.mxu0 0.0
      %5334 = vmatpush.msra.mxu0 0.0
      %5335 = vmatpush.msra.mxu0 0.0
      %5336 = vmatpush.msra.mxu0 0.0
      %5337 = vmatpush.msra.mxu0 0.0
      %5338 = vmatpush.msra.mxu0 %v5313
      %5339 = vmatpush.msra.mxu0 %v5312
      %5340 = vmatpush.msra.mxu0 %v5311
      %5341 = vmatpush.msra.mxu0 %v5310
      %5342 = vmatmul.f32.gmra.mxu0 %v5315
      %v5343 = vpop.f32.mrf.mxu0
      %v5344 = vadd.f32 0.0, %v5343
      %5345 = vmatmul.f32.gmra.mxu0 %v5318
      %v5346 = vpop.f32.mrf.mxu0
      %v5347 = vadd.f32 0.0, %v5346
      %5348 = vmatmul.f32.gmra.mxu0 %v5321
      %v5349 = vpop.f32.mrf.mxu0
      %v5350 = vadd.f32 0.0, %v5349
      %5351 = vmatmul.f32.gmra.mxu0 %v5324
      %v5352 = vpop.f32.mrf.mxu0
      %v5353 = vadd.f32 0.0, %v5352
      %5354 = vdwg.mxu0
      %v5355 = vadd.f32 %v5302, %v5344
      %v5356 = vadd.f32 %v5303, %v5347
      %v5357 = vadd.f32 %v5304, %v5350
      %v5358 = vadd.f32 %v5305, %v5353
      %v5359 = vld [vmem:[%s8] sm:$0x1]
      %v5361 = vperm.slane %v5359, 0
      %v5363 = vadd.f32 %v5355, %v5361
      %v5364 = vadd.f32 %v5356, %v5361
      %v5365 = vadd.f32 %v5357, %v5361
      %v5366 = vadd.f32 %v5358, %v5361
      %s5367 = scalar_lea.vmem %s332, 480
      %5368 = vst.msk [vmem:[%s5367] sm:$0xff] %vm440, %v5363
      %5369 = vst.msk [vmem:[%s5367 + $0x8] sm:$0xff] %vm440, %v5364
      %5370 = vst.msk [vmem:[%s5367 + $0x10] sm:$0xff] %vm440, %v5365
      %5371 = vst.msk [vmem:[%s5367 + $0x18] sm:$0x1] %vm3433, %v5366
      %p5372 = scmp.lt.s32.totalorder %s20, 1
      %s5373 = scalar_select %p5372, %s20, 1
      %s5374 = smul.addr %s5373, 64
      %s5375 = smul.addr %s5374, 8
      %s5376 = scalar_lea.vmem %s9, %s5375
      // Predicated region
      $region57: #{autoencoder_forward.1} parent=55 // pred_check
        %p5377 = pneg %p232
      $region58: #{autoencoder_forward.1} parent=55 // pred_check_branch
        %5379 = sbr.rel (%p5377) target = $region60
      $region59: #{autoencoder_forward.1} parent=55 // pred_region
        _
      $region60: #{autoencoder_forward.1} parent=55 // pred_fallthru
        _
    $region56: #{autoencoder_forward.1} parent=5 // pred_fallthru
      _
    %p5380 = scmp.le.s32.totalorder 2, %s15
    // Predicated region
    $region61: #{autoencoder_forward.1} parent=5 // pred_check
      %p5381 = pneg %p5380
    $region62: #{autoencoder_forward.1} parent=5 // pred_check_branch
      %5383 = sbr.rel (%p5381) target = $region64
    $region63: #{autoencoder_forward.1} parent=5 // pred_region
      %s5384 = ssub.s32 %s15, 2
      // Predicated region
      $region65: #{autoencoder_forward.1} parent=63 // pred_check
        %p5385 = pneg %p238
      $region66: #{autoencoder_forward.1} parent=63 // pred_check_branch
        %5387 = sbr.rel (%p5385) target = $region68
      $region67: #{autoencoder_forward.1} parent=63 // pred_region
        %p5388 = scmp.lt.s32.totalorder %s21, 1
        %s5389 = scalar_select %p5388, %s21, 1
        %s5390 = smul.addr %s5389, 64
        %s5391 = smul.addr %s5390, 8
        %s5392 = scalar_lea.vmem %s9, %s5391
      $region68: #{autoencoder_forward.1} parent=63 // pred_fallthru
        _
    $region64: #{autoencoder_forward.1} parent=5 // pred_fallthru
      _
  $region6: #{autoencoder_forward.1} parent=0 // loop_footer
    %s19 = sadd.s32 1, %s15
  $region7: #{autoencoder_forward.1} parent=0 // loop_footer_branch
    %14 = sbr.rel target = $region3
  $region8: #{autoencoder_forward.1} parent=0 // loop_exit
    _

</llo_original>
